<compile_context>
chip_gen: v6e
topology: v6e:2x2x1
jax: 0.10.0
libtpu: 0.0.40
codegen_flags: <defaults>
</compile_context>

<pallas_src>
import functools

import numpy as np
import jax
import jax.numpy as jnp
from jax import lax
from jax.experimental import pallas as pl
from jax.experimental.pallas import tpu as pltpu

NEG_SLOPE = 0.2
BN_EPS = 1e-5


# -----------------------------------------------------------------------------
# Single fused kernel: 4 convs (+ folded BN shift + LeakyReLU) + final Linear.
# All operands are plain 2-D matmuls on bf16 values with f32 accumulation.
# -----------------------------------------------------------------------------
def encoder_kernel(a1_ref, lw_ref, r_ref, shift_ref, lwfc_ref, rfc_ref, bfc_ref,
                   out_ref, *, slope):
    n_layers = lw_ref.shape[0]
    n_taps = lw_ref.shape[1]          # 4 (kernel width)

    act = a1_ref[...]                 # (R, C) bf16, rows=(ci,h), cols=(b,w)

    for li in range(n_layers):        # static unroll: 4 conv layers
        acc = None
        for kw in range(n_taps):
            # column gather (stride-2 W selection + zero padding) as a 0/1 matmul;
            # the result is an exact copy of bf16 activation values -> bf16 cast lossless
            g = jnp.dot(act, r_ref[li, kw, :, :],
                        preferred_element_type=jnp.float32).astype(jnp.bfloat16)
            # row gather fused with BN-scaled conv weights
            t = jnp.dot(lw_ref[li, kw, :, :], g,
                        preferred_element_type=jnp.float32)
            acc = t if acc is None else acc + t
        y = acc + shift_ref[li, :, :]             # per-output-channel BN shift (f32)
        y = jnp.where(y > 0, y, slope * y)        # LeakyReLU(0.2), f32
        act = y.astype(jnp.bfloat16)              # next layer's A_l, layout already correct

    # final Linear, expressed as a k=4 / stride-1 / pad-0 "conv" on the 4x4 map
    accf = None
    for kw in range(n_taps):
        gf = jnp.dot(act, rfc_ref[kw, :, :],
                     preferred_element_type=jnp.float32).astype(jnp.bfloat16)
        t = jnp.dot(lwfc_ref[kw, :, :], gf,
                    preferred_element_type=jnp.float32)
        accf = t if accf is None else accf + t
    out_ref[...] = accf + bfc_ref[...]            # (n_z, B) f32


def encoder_call(a1, lw, rmat, shifts, lw_fc, r_fc, b_fc):
    n_z = lw_fc.shape[1]
    batch = r_fc.shape[2]
    kernel = functools.partial(encoder_kernel, slope=NEG_SLOPE)
    return pl.pallas_call(
        kernel,
        out_shape=jax.ShapeDtypeStruct((n_z, batch), jnp.float32),
        grid=(1,),
        in_specs=[
            pl.BlockSpec(a1.shape, lambda i: (0, 0)),
            pl.BlockSpec(lw.shape, lambda i: (0, 0, 0, 0)),
            pl.BlockSpec(rmat.shape, lambda i: (0, 0, 0, 0)),
            pl.BlockSpec(shifts.shape, lambda i: (0, 0, 0)),
            pl.BlockSpec(lw_fc.shape, lambda i: (0, 0, 0)),
            pl.BlockSpec(r_fc.shape, lambda i: (0, 0, 0)),
            pl.BlockSpec(b_fc.shape, lambda i: (0, 0)),
        ],
        out_specs=pl.BlockSpec((n_z, batch), lambda i: (0, 0)),
        compiler_params=pltpu.CompilerParams(dimension_semantics=("arbitrary",)),
    )(a1, lw, rmat, shifts, lw_fc, r_fc, b_fc)


# -----------------------------------------------------------------------------
# Host-side parameter prep: BN folding + gather/weight matrix construction.
# -----------------------------------------------------------------------------
def _gather_matrix(size_in, size_out, stride, pad, k_off):
    """G[w, wo] = 1 iff w == stride*wo - pad + k_off and 0 <= w < size_in (else 0)."""
    g = np.zeros((size_in, size_out), np.float32)
    for wo in range(size_out):
        w = stride * wo - pad + k_off
        if 0 <= w < size_in:
            g[w, wo] = 1.0
    return g


def prep_params(params, batch, img_hw):
    n_layers = 4
    Hs = [img_hw // (2 ** l) for l in range(n_layers)]     # input H(=W) per conv layer
    Hos = [h // 2 for h in Hs]                              # output H(=W) per conv layer
    Cis = [int(params[f"w{l + 1}"].shape[1]) for l in range(n_layers)]
    Cos = [int(params[f"w{l + 1}"].shape[0]) for l in range(n_layers)]

    R_DIM = max(max(Cos[l] * Hos[l] for l in range(n_layers)),
                max(Cis[l] * Hs[l] for l in range(n_layers)))      # 256 here
    C_DIM = batch * img_hw                                          # 128 here (lane axis)

    lw = np.zeros((n_layers, 4, R_DIM, R_DIM), np.float32)
    rmat = np.zeros((n_layers, 4, C_DIM, C_DIM), np.float32)
    shifts = np.zeros((n_layers, R_DIM, 1), np.float32)

    for l in range(n_layers):
        w = np.asarray(params[f"w{l + 1}"], np.float32)             # (Co, Ci, 4, 4)
        Co, Ci, H, Ho = Cos[l], Cis[l], Hs[l], Hos[l]
        if l >= 1:  # layers 2..4 have (eval-mode) BatchNorm -> fold scale, keep shift f32
            g = np.asarray(params[f"bn{l + 1}_gamma"], np.float32)
            b = np.asarray(params[f"bn{l + 1}_beta"], np.float32)
            m = np.asarray(params[f"bn{l + 1}_mean"], np.float32)
            v = np.asarray(params[f"bn{l + 1}_var"], np.float32)
            scale = g / np.sqrt(v + BN_EPS)
            shift = b - m * scale
            w = w * scale[:, None, None, None]
        else:
            shift = np.zeros((Co,), np.float32)

        # H-axis gather matrices per kh (handles stride-2 rows + zero padding)
        gh = np.stack([_gather_matrix(H, Ho, 2, 1, kh) for kh in range(4)])   # (4, H, Ho)
        # LW_kw[(co,ho), (ci,h)] = sum_kh w[co,ci,kh,kw] * gh[kh, h, ho]
        lw_l = np.einsum('oiyx,yht->xotih', w, gh).reshape(4, Co * Ho, Ci * H)
        lw[l, :, :Co * Ho, :Ci * H] = lw_l
        # R_kw = I_B (x) Gw_kw  (stride-2 column gather + zero padding)
        for kw in range(4):
            gw = _gather_matrix(H, Ho, 2, 1, kw)                              # W == H
            rmat[l, kw, :batch * H, :batch * Ho] = np.kron(
                np.eye(batch, dtype=np.float32), gw)
        shifts[l, :Co * Ho, 0] = np.repeat(shift, Ho)

    # Final Linear as a k=4 / stride-1 / pad-0 conv on the (C4, 4, 4) feature map.
    fc_w = np.asarray(params["fc_w"], np.float32)                   # (Z, C4*4*4)
    fc_b = np.asarray(params["fc_b"], np.float32)
    Z = fc_w.shape[0]
    C4, S4 = Cos[-1], Hos[-1]
    assert S4 == 4 and fc_w.shape[1] == C4 * S4 * S4, "Encoder expects a 4x4 final map"
    w5 = fc_w.reshape(Z, C4, S4, S4)                                # (Z, C4, kh, kw)
    lw_fc = np.zeros((4, Z, R_DIM), np.float32)
    lw_fc[:, :, :C4 * S4] = np.transpose(w5, (3, 0, 1, 2)).reshape(4, Z, C4 * S4)
    r_fc = np.zeros((4, C_DIM, batch), np.float32)
    for kw in range(4):
        for b in range(batch):
            r_fc[kw, b * S4 + kw, b] = 1.0

    return {
        "lw": jnp.asarray(lw, jnp.bfloat16),
        "r": jnp.asarray(rmat, jnp.bfloat16),
        "shift": jnp.asarray(shifts, jnp.float32),
        "lw_fc": jnp.asarray(lw_fc, jnp.bfloat16),
        "r_fc": jnp.asarray(r_fc, jnp.bfloat16),
        "b_fc": jnp.asarray(fc_b.reshape(Z, 1), jnp.float32),
    }


# -----------------------------------------------------------------------------
# Encoder forward: ONE pallas_call (plus a single tiny XLA input rearrangement).
# -----------------------------------------------------------------------------
def encoder_forward(prep, x_nchw):
    B, Ci, H, W = x_nchw.shape
    R_DIM = prep["lw"].shape[2]
    # A_1[ci*H + h, b*W + w] = x[b, ci, h, w]; pad rows to the uniform R_DIM.
    a1 = jnp.transpose(x_nchw, (1, 2, 0, 3)).reshape(Ci * H, B * W)
    a1 = jnp.pad(a1, ((0, R_DIM - Ci * H), (0, 0))).astype(jnp.bfloat16)
    out_t = encoder_call(a1, prep["lw"], prep["r"], prep["shift"],
                         prep["lw_fc"], prep["r_fc"], prep["b_fc"])   # (n_z, B)
    return out_t.T                                                     # (B, n_z)


# -----------------------------------------------------------------------------
# Plain-JAX f32 reference (for correctness check)
# -----------------------------------------------------------------------------
def encoder_reference(params, x):
    eps, slope = BN_EPS, NEG_SLOPE

    def conv(x, w):
        return lax.conv_general_dilated(x, w, (2, 2), [(1, 1), (1, 1)],
                                        dimension_numbers=("NCHW", "OIHW", "NCHW"))

    x = conv(x, params["w1"])
    x = jnp.where(x > 0, x, slope * x)
    for li in (2, 3, 4):
        x = conv(x, params[f"w{li}"])
        g, b = params[f"bn{li}_gamma"], params[f"bn{li}_beta"]
        m, v = params[f"bn{li}_mean"], params[f"bn{li}_var"]
        x = (x - m[None, :, None, None]) / jnp.sqrt(v[None, :, None, None] + eps)
        x = x * g[None, :, None, None] + b[None, :, None, None]
        x = jnp.where(x > 0, x, slope * x)
    x = x.reshape(x.shape[0], -1)
    return x @ params["fc_w"].T + params["fc_b"]


# -----------------------------------------------------------------------------
# Deterministic parameter init (matches the PyTorch module's structure)
# -----------------------------------------------------------------------------
def init_params(key, n_channel, dim_h, n_z):
    ks = jax.random.split(key, 24)
    chans = [n_channel, dim_h, dim_h * 2, dim_h * 4, dim_h * 8]
    params = {}
    ki = 0
    for li in range(1, 5):
        cin, cout = chans[li - 1], chans[li]
        params[f"w{li}"] = 0.05 * jax.random.normal(ks[ki], (cout, cin, 4, 4), jnp.float32); ki += 1
        if li >= 2:
            params[f"bn{li}_gamma"] = 1.0 + 0.1 * jax.random.normal(ks[ki], (cout,), jnp.float32); ki += 1
            params[f"bn{li}_beta"] = 0.1 * jax.random.normal(ks[ki], (cout,), jnp.float32); ki += 1
            params[f"bn{li}_mean"] = 0.05 * jax.random.normal(ks[ki], (cout,), jnp.float32); ki += 1
            params[f"bn{li}_var"] = jax.random.uniform(ks[ki], (cout,), jnp.float32, 0.5, 1.5); ki += 1
    in_features = dim_h * 8 * 4 * 4
    params["fc_w"] = 0.05 * jax.random.normal(ks[ki], (n_z, in_features), jnp.float32); ki += 1
    params["fc_b"] = 0.05 * jax.random.normal(ks[ki], (n_z,), jnp.float32)
    return params


if __name__ == "__main__":
    # args = {'n_channel': 3, 'dim_h': 8, 'n_z': 16}; input must be 64x64 so the
    # final feature map is 4x4 (fc in_features = dim_h*8*4*4).
    n_channel, dim_h, n_z = 3, 8, 16
    B, H, W = 2, 64, 64

    key = jax.random.PRNGKey(0)
    k_x, k_p = jax.random.split(key)
    x = jax.random.normal(k_x, (B, n_channel, H, W), jnp.float32)
    params = init_params(k_p, n_channel, dim_h, n_z)
    prep = prep_params(params, batch=B, img_hw=H)

    fwd = jax.jit(encoder_forward)
    out = jax.block_until_ready(fwd(prep, x))
    ref = jax.block_until_ready(jax.jit(encoder_reference)(params, x))

    assert out.shape == (B, n_z), out.shape
    # bf16 MXU operands -> relaxed tolerance (reference is pure f32)
    assert jnp.allclose(out.astype(jnp.float32), ref, rtol=2e-2, atol=2e-2), \
        float(jnp.max(jnp.abs(out.astype(jnp.float32) - ref)))
    print("KERNEL_OK")
</pallas_src>

<mosaic_0001>
module attributes {stable_mosaic.version = 11 : i64} {
  func.func @encoder_kernel(%arg0: i32, %arg1: memref<256x128xbf16, #tpu.memory_space<vmem>>, %arg2: memref<4x4x256x256xbf16, #tpu.memory_space<vmem>>, %arg3: memref<4x4x128x128xbf16, #tpu.memory_space<vmem>>, %arg4: memref<4x256x1xf32, #tpu.memory_space<vmem>>, %arg5: memref<4x16x256xbf16, #tpu.memory_space<vmem>>, %arg6: memref<4x128x2xbf16, #tpu.memory_space<vmem>>, %arg7: memref<16x1xf32, #tpu.memory_space<vmem>>, %arg8: memref<16x2xf32, #tpu.memory_space<vmem>>) attributes {dimension_semantics = [#tpu.dimension_semantics<arbitrary>], iteration_bounds = array<i64: 1>, scalar_prefetch = 0 : i64, scratch_operands = 0 : i64, tpu.core_type = #tpu.core_type<tc>, window_params = [{pipeline_mode = #tpu.pipeline_mode<synchronous>, transform_indices = @transform_0, window_bounds = array<i64: 256, 128>}, {pipeline_mode = #tpu.pipeline_mode<synchronous>, transform_indices = @transform_1, window_bounds = array<i64: 4, 4, 256, 256>}, {pipeline_mode = #tpu.pipeline_mode<synchronous>, transform_indices = @transform_2, window_bounds = array<i64: 4, 4, 128, 128>}, {pipeline_mode = #tpu.pipeline_mode<synchronous>, transform_indices = @transform_3, window_bounds = array<i64: 4, 256, 1>}, {pipeline_mode = #tpu.pipeline_mode<synchronous>, transform_indices = @transform_4, window_bounds = array<i64: 4, 16, 256>}, {pipeline_mode = #tpu.pipeline_mode<synchronous>, transform_indices = @transform_5, window_bounds = array<i64: 4, 128, 2>}, {pipeline_mode = #tpu.pipeline_mode<synchronous>, transform_indices = @transform_6, window_bounds = array<i64: 16, 1>}, {pipeline_mode = #tpu.pipeline_mode<synchronous>, transform_indices = @transform_7, window_bounds = array<i64: 16, 2>}]} {
    %c0 = arith.constant 0 : index
    %c0_0 = arith.constant 0 : index
    %0 = vector.load %arg1[%c0, %c0_0] : memref<256x128xbf16, #tpu.memory_space<vmem>>, vector<256x128xbf16>
    %c0_1 = arith.constant 0 : index
    %c0_2 = arith.constant 0 : index
    %c0_3 = arith.constant 0 : index
    %c0_4 = arith.constant 0 : index
    %1 = vector.load %arg3[%c0_1, %c0_2, %c0_3, %c0_4] : memref<4x4x128x128xbf16, #tpu.memory_space<vmem>>, vector<1x1x128x128xbf16>
    %2 = vector.shape_cast %1 : vector<1x1x128x128xbf16> to vector<128x128xbf16>
    %cst = arith.constant dense<0.000000e+00> : vector<256x128xf32>
    %3 = tpu.matmul %0, %2, %cst {dimension_numbers = #tpu.dot_dimension_numbers<[1], [0], [0], [1], [0, 0, 1, 1], [], []>} : vector<256x128xbf16>, vector<128x128xbf16>, vector<256x128xf32> -> vector<256x128xf32>
    %4 = arith.truncf %3 : vector<256x128xf32> to vector<256x128xbf16>
    %c0_5 = arith.constant 0 : index
    %c0_6 = arith.constant 0 : index
    %c0_7 = arith.constant 0 : index
    %c0_8 = arith.constant 0 : index
    %5 = vector.load %arg2[%c0_5, %c0_6, %c0_7, %c0_8] : memref<4x4x256x256xbf16, #tpu.memory_space<vmem>>, vector<1x1x256x256xbf16>
    %6 = vector.shape_cast %5 : vector<1x1x256x256xbf16> to vector<256x256xbf16>
    %cst_9 = arith.constant dense<0.000000e+00> : vector<256x128xf32>
    %7 = tpu.matmul %6, %4, %cst_9 {dimension_numbers = #tpu.dot_dimension_numbers<[1], [0], [0], [1], [0, 0, 1, 1], [], []>} : vector<256x256xbf16>, vector<256x128xbf16>, vector<256x128xf32> -> vector<256x128xf32>
    %c0_10 = arith.constant 0 : index
    %c1 = arith.constant 1 : index
    %c0_11 = arith.constant 0 : index
    %c0_12 = arith.constant 0 : index
    %8 = vector.load %arg3[%c0_10, %c1, %c0_11, %c0_12] : memref<4x4x128x128xbf16, #tpu.memory_space<vmem>>, vector<1x1x128x128xbf16>
    %9 = vector.shape_cast %8 : vector<1x1x128x128xbf16> to vector<128x128xbf16>
    %cst_13 = arith.constant dense<0.000000e+00> : vector<256x128xf32>
    %10 = tpu.matmul %0, %9, %cst_13 {dimension_numbers = #tpu.dot_dimension_numbers<[1], [0], [0], [1], [0, 0, 1, 1], [], []>} : vector<256x128xbf16>, vector<128x128xbf16>, vector<256x128xf32> -> vector<256x128xf32>
    %11 = arith.truncf %10 : vector<256x128xf32> to vector<256x128xbf16>
    %c0_14 = arith.constant 0 : index
    %c1_15 = arith.constant 1 : index
    %c0_16 = arith.constant 0 : index
    %c0_17 = arith.constant 0 : index
    %12 = vector.load %arg2[%c0_14, %c1_15, %c0_16, %c0_17] : memref<4x4x256x256xbf16, #tpu.memory_space<vmem>>, vector<1x1x256x256xbf16>
    %13 = vector.shape_cast %12 : vector<1x1x256x256xbf16> to vector<256x256xbf16>
    %cst_18 = arith.constant dense<0.000000e+00> : vector<256x128xf32>
    %14 = tpu.matmul %13, %11, %cst_18 {dimension_numbers = #tpu.dot_dimension_numbers<[1], [0], [0], [1], [0, 0, 1, 1], [], []>} : vector<256x256xbf16>, vector<256x128xbf16>, vector<256x128xf32> -> vector<256x128xf32>
    %15 = arith.addf %7, %14 : vector<256x128xf32>
    %c0_19 = arith.constant 0 : index
    %c2 = arith.constant 2 : index
    %c0_20 = arith.constant 0 : index
    %c0_21 = arith.constant 0 : index
    %16 = vector.load %arg3[%c0_19, %c2, %c0_20, %c0_21] : memref<4x4x128x128xbf16, #tpu.memory_space<vmem>>, vector<1x1x128x128xbf16>
    %17 = vector.shape_cast %16 : vector<1x1x128x128xbf16> to vector<128x128xbf16>
    %cst_22 = arith.constant dense<0.000000e+00> : vector<256x128xf32>
    %18 = tpu.matmul %0, %17, %cst_22 {dimension_numbers = #tpu.dot_dimension_numbers<[1], [0], [0], [1], [0, 0, 1, 1], [], []>} : vector<256x128xbf16>, vector<128x128xbf16>, vector<256x128xf32> -> vector<256x128xf32>
    %19 = arith.truncf %18 : vector<256x128xf32> to vector<256x128xbf16>
    %c0_23 = arith.constant 0 : index
    %c2_24 = arith.constant 2 : index
    %c0_25 = arith.constant 0 : index
    %c0_26 = arith.constant 0 : index
    %20 = vector.load %arg2[%c0_23, %c2_24, %c0_25, %c0_26] : memref<4x4x256x256xbf16, #tpu.memory_space<vmem>>, vector<1x1x256x256xbf16>
    %21 = vector.shape_cast %20 : vector<1x1x256x256xbf16> to vector<256x256xbf16>
    %cst_27 = arith.constant dense<0.000000e+00> : vector<256x128xf32>
    %22 = tpu.matmul %21, %19, %cst_27 {dimension_numbers = #tpu.dot_dimension_numbers<[1], [0], [0], [1], [0, 0, 1, 1], [], []>} : vector<256x256xbf16>, vector<256x128xbf16>, vector<256x128xf32> -> vector<256x128xf32>
    %23 = arith.addf %15, %22 : vector<256x128xf32>
    %c0_28 = arith.constant 0 : index
    %c3 = arith.constant 3 : index
    %c0_29 = arith.constant 0 : index
    %c0_30 = arith.constant 0 : index
    %24 = vector.load %arg3[%c0_28, %c3, %c0_29, %c0_30] : memref<4x4x128x128xbf16, #tpu.memory_space<vmem>>, vector<1x1x128x128xbf16>
    %25 = vector.shape_cast %24 : vector<1x1x128x128xbf16> to vector<128x128xbf16>
    %cst_31 = arith.constant dense<0.000000e+00> : vector<256x128xf32>
    %26 = tpu.matmul %0, %25, %cst_31 {dimension_numbers = #tpu.dot_dimension_numbers<[1], [0], [0], [1], [0, 0, 1, 1], [], []>} : vector<256x128xbf16>, vector<128x128xbf16>, vector<256x128xf32> -> vector<256x128xf32>
    %27 = arith.truncf %26 : vector<256x128xf32> to vector<256x128xbf16>
    %c0_32 = arith.constant 0 : index
    %c3_33 = arith.constant 3 : index
    %c0_34 = arith.constant 0 : index
    %c0_35 = arith.constant 0 : index
    %28 = vector.load %arg2[%c0_32, %c3_33, %c0_34, %c0_35] : memref<4x4x256x256xbf16, #tpu.memory_space<vmem>>, vector<1x1x256x256xbf16>
    %29 = vector.shape_cast %28 : vector<1x1x256x256xbf16> to vector<256x256xbf16>
    %cst_36 = arith.constant dense<0.000000e+00> : vector<256x128xf32>
    %30 = tpu.matmul %29, %27, %cst_36 {dimension_numbers = #tpu.dot_dimension_numbers<[1], [0], [0], [1], [0, 0, 1, 1], [], []>} : vector<256x256xbf16>, vector<256x128xbf16>, vector<256x128xf32> -> vector<256x128xf32>
    %31 = arith.addf %23, %30 : vector<256x128xf32>
    %c0_37 = arith.constant 0 : index
    %c0_38 = arith.constant 0 : index
    %c0_39 = arith.constant 0 : index
    %32 = vector.load %arg4[%c0_37, %c0_38, %c0_39] : memref<4x256x1xf32, #tpu.memory_space<vmem>>, vector<1x256x1xf32>
    %33 = vector.shape_cast %32 : vector<1x256x1xf32> to vector<256x1xf32>
    %34 = vector.broadcast %33 : vector<256x1xf32> to vector<256x128xf32>
    %35 = arith.addf %31, %34 : vector<256x128xf32>
    %cst_40 = arith.constant 0.000000e+00 : f32
    %36 = vector.broadcast %cst_40 : f32 to vector<256x128xf32>
    %37 = arith.cmpf ogt, %35, %36 : vector<256x128xf32>
    %cst_41 = arith.constant 2.000000e-01 : f32
    %38 = vector.broadcast %cst_41 : f32 to vector<256x128xf32>
    %39 = arith.mulf %38, %35 : vector<256x128xf32>
    %40 = arith.select %37, %35, %39 : vector<256x128xi1>, vector<256x128xf32>
    %41 = arith.truncf %40 : vector<256x128xf32> to vector<256x128xbf16>
    %c1_42 = arith.constant 1 : index
    %c0_43 = arith.constant 0 : index
    %c0_44 = arith.constant 0 : index
    %c0_45 = arith.constant 0 : index
    %42 = vector.load %arg3[%c1_42, %c0_43, %c0_44, %c0_45] : memref<4x4x128x128xbf16, #tpu.memory_space<vmem>>, vector<1x1x128x128xbf16>
    %43 = vector.shape_cast %42 : vector<1x1x128x128xbf16> to vector<128x128xbf16>
    %cst_46 = arith.constant dense<0.000000e+00> : vector<256x128xf32>
    %44 = tpu.matmul %41, %43, %cst_46 {dimension_numbers = #tpu.dot_dimension_numbers<[1], [0], [0], [1], [0, 0, 1, 1], [], []>} : vector<256x128xbf16>, vector<128x128xbf16>, vector<256x128xf32> -> vector<256x128xf32>
    %45 = arith.truncf %44 : vector<256x128xf32> to vector<256x128xbf16>
    %c1_47 = arith.constant 1 : index
    %c0_48 = arith.constant 0 : index
    %c0_49 = arith.constant 0 : index
    %c0_50 = arith.constant 0 : index
    %46 = vector.load %arg2[%c1_47, %c0_48, %c0_49, %c0_50] : memref<4x4x256x256xbf16, #tpu.memory_space<vmem>>, vector<1x1x256x256xbf16>
    %47 = vector.shape_cast %46 : vector<1x1x256x256xbf16> to vector<256x256xbf16>
    %cst_51 = arith.constant dense<0.000000e+00> : vector<256x128xf32>
    %48 = tpu.matmul %47, %45, %cst_51 {dimension_numbers = #tpu.dot_dimension_numbers<[1], [0], [0], [1], [0, 0, 1, 1], [], []>} : vector<256x256xbf16>, vector<256x128xbf16>, vector<256x128xf32> -> vector<256x128xf32>
    %c1_52 = arith.constant 1 : index
    %c1_53 = arith.constant 1 : index
    %c0_54 = arith.constant 0 : index
    %c0_55 = arith.constant 0 : index
    %49 = vector.load %arg3[%c1_52, %c1_53, %c0_54, %c0_55] : memref<4x4x128x128xbf16, #tpu.memory_space<vmem>>, vector<1x1x128x128xbf16>
    %50 = vector.shape_cast %49 : vector<1x1x128x128xbf16> to vector<128x128xbf16>
    %cst_56 = arith.constant dense<0.000000e+00> : vector<256x128xf32>
    %51 = tpu.matmul %41, %50, %cst_56 {dimension_numbers = #tpu.dot_dimension_numbers<[1], [0], [0], [1], [0, 0, 1, 1], [], []>} : vector<256x128xbf16>, vector<128x128xbf16>, vector<256x128xf32> -> vector<256x128xf32>
    %52 = arith.truncf %51 : vector<256x128xf32> to vector<256x128xbf16>
    %c1_57 = arith.constant 1 : index
    %c1_58 = arith.constant 1 : index
    %c0_59 = arith.constant 0 : index
    %c0_60 = arith.constant 0 : index
    %53 = vector.load %arg2[%c1_57, %c1_58, %c0_59, %c0_60] : memref<4x4x256x256xbf16, #tpu.memory_space<vmem>>, vector<1x1x256x256xbf16>
    %54 = vector.shape_cast %53 : vector<1x1x256x256xbf16> to vector<256x256xbf16>
    %cst_61 = arith.constant dense<0.000000e+00> : vector<256x128xf32>
    %55 = tpu.matmul %54, %52, %cst_61 {dimension_numbers = #tpu.dot_dimension_numbers<[1], [0], [0], [1], [0, 0, 1, 1], [], []>} : vector<256x256xbf16>, vector<256x128xbf16>, vector<256x128xf32> -> vector<256x128xf32>
    %56 = arith.addf %48, %55 : vector<256x128xf32>
    %c1_62 = arith.constant 1 : index
    %c2_63 = arith.constant 2 : index
    %c0_64 = arith.constant 0 : index
    %c0_65 = arith.constant 0 : index
    %57 = vector.load %arg3[%c1_62, %c2_63, %c0_64, %c0_65] : memref<4x4x128x128xbf16, #tpu.memory_space<vmem>>, vector<1x1x128x128xbf16>
    %58 = vector.shape_cast %57 : vector<1x1x128x128xbf16> to vector<128x128xbf16>
    %cst_66 = arith.constant dense<0.000000e+00> : vector<256x128xf32>
    %59 = tpu.matmul %41, %58, %cst_66 {dimension_numbers = #tpu.dot_dimension_numbers<[1], [0], [0], [1], [0, 0, 1, 1], [], []>} : vector<256x128xbf16>, vector<128x128xbf16>, vector<256x128xf32> -> vector<256x128xf32>
    %60 = arith.truncf %59 : vector<256x128xf32> to vector<256x128xbf16>
    %c1_67 = arith.constant 1 : index
    %c2_68 = arith.constant 2 : index
    %c0_69 = arith.constant 0 : index
    %c0_70 = arith.constant 0 : index
    %61 = vector.load %arg2[%c1_67, %c2_68, %c0_69, %c0_70] : memref<4x4x256x256xbf16, #tpu.memory_space<vmem>>, vector<1x1x256x256xbf16>
    %62 = vector.shape_cast %61 : vector<1x1x256x256xbf16> to vector<256x256xbf16>
    %cst_71 = arith.constant dense<0.000000e+00> : vector<256x128xf32>
    %63 = tpu.matmul %62, %60, %cst_71 {dimension_numbers = #tpu.dot_dimension_numbers<[1], [0], [0], [1], [0, 0, 1, 1], [], []>} : vector<256x256xbf16>, vector<256x128xbf16>, vector<256x128xf32> -> vector<256x128xf32>
    %64 = arith.addf %56, %63 : vector<256x128xf32>
    %c1_72 = arith.constant 1 : index
    %c3_73 = arith.constant 3 : index
    %c0_74 = arith.constant 0 : index
    %c0_75 = arith.constant 0 : index
    %65 = vector.load %arg3[%c1_72, %c3_73, %c0_74, %c0_75] : memref<4x4x128x128xbf16, #tpu.memory_space<vmem>>, vector<1x1x128x128xbf16>
    %66 = vector.shape_cast %65 : vector<1x1x128x128xbf16> to vector<128x128xbf16>
    %cst_76 = arith.constant dense<0.000000e+00> : vector<256x128xf32>
    %67 = tpu.matmul %41, %66, %cst_76 {dimension_numbers = #tpu.dot_dimension_numbers<[1], [0], [0], [1], [0, 0, 1, 1], [], []>} : vector<256x128xbf16>, vector<128x128xbf16>, vector<256x128xf32> -> vector<256x128xf32>
    %68 = arith.truncf %67 : vector<256x128xf32> to vector<256x128xbf16>
    %c1_77 = arith.constant 1 : index
    %c3_78 = arith.constant 3 : index
    %c0_79 = arith.constant 0 : index
    %c0_80 = arith.constant 0 : index
    %69 = vector.load %arg2[%c1_77, %c3_78, %c0_79, %c0_80] : memref<4x4x256x256xbf16, #tpu.memory_space<vmem>>, vector<1x1x256x256xbf16>
    %70 = vector.shape_cast %69 : vector<1x1x256x256xbf16> to vector<256x256xbf16>
    %cst_81 = arith.constant dense<0.000000e+00> : vector<256x128xf32>
    %71 = tpu.matmul %70, %68, %cst_81 {dimension_numbers = #tpu.dot_dimension_numbers<[1], [0], [0], [1], [0, 0, 1, 1], [], []>} : vector<256x256xbf16>, vector<256x128xbf16>, vector<256x128xf32> -> vector<256x128xf32>
    %72 = arith.addf %64, %71 : vector<256x128xf32>
    %c1_82 = arith.constant 1 : index
    %c0_83 = arith.constant 0 : index
    %c0_84 = arith.constant 0 : index
    %73 = vector.load %arg4[%c1_82, %c0_83, %c0_84] : memref<4x256x1xf32, #tpu.memory_space<vmem>>, vector<1x256x1xf32>
    %74 = vector.shape_cast %73 : vector<1x256x1xf32> to vector<256x1xf32>
    %75 = vector.broadcast %74 : vector<256x1xf32> to vector<256x128xf32>
    %76 = arith.addf %72, %75 : vector<256x128xf32>
    %cst_85 = arith.constant 0.000000e+00 : f32
    %77 = vector.broadcast %cst_85 : f32 to vector<256x128xf32>
    %78 = arith.cmpf ogt, %76, %77 : vector<256x128xf32>
    %cst_86 = arith.constant 2.000000e-01 : f32
    %79 = vector.broadcast %cst_86 : f32 to vector<256x128xf32>
    %80 = arith.mulf %79, %76 : vector<256x128xf32>
    %81 = arith.select %78, %76, %80 : vector<256x128xi1>, vector<256x128xf32>
    %82 = arith.truncf %81 : vector<256x128xf32> to vector<256x128xbf16>
    %c2_87 = arith.constant 2 : index
    %c0_88 = arith.constant 0 : index
    %c0_89 = arith.constant 0 : index
    %c0_90 = arith.constant 0 : index
    %83 = vector.load %arg3[%c2_87, %c0_88, %c0_89, %c0_90] : memref<4x4x128x128xbf16, #tpu.memory_space<vmem>>, vector<1x1x128x128xbf16>
    %84 = vector.shape_cast %83 : vector<1x1x128x128xbf16> to vector<128x128xbf16>
    %cst_91 = arith.constant dense<0.000000e+00> : vector<256x128xf32>
    %85 = tpu.matmul %82, %84, %cst_91 {dimension_numbers = #tpu.dot_dimension_numbers<[1], [0], [0], [1], [0, 0, 1, 1], [], []>} : vector<256x128xbf16>, vector<128x128xbf16>, vector<256x128xf32> -> vector<256x128xf32>
    %86 = arith.truncf %85 : vector<256x128xf32> to vector<256x128xbf16>
    %c2_92 = arith.constant 2 : index
    %c0_93 = arith.constant 0 : index
    %c0_94 = arith.constant 0 : index
    %c0_95 = arith.constant 0 : index
    %87 = vector.load %arg2[%c2_92, %c0_93, %c0_94, %c0_95] : memref<4x4x256x256xbf16, #tpu.memory_space<vmem>>, vector<1x1x256x256xbf16>
    %88 = vector.shape_cast %87 : vector<1x1x256x256xbf16> to vector<256x256xbf16>
    %cst_96 = arith.constant dense<0.000000e+00> : vector<256x128xf32>
    %89 = tpu.matmul %88, %86, %cst_96 {dimension_numbers = #tpu.dot_dimension_numbers<[1], [0], [0], [1], [0, 0, 1, 1], [], []>} : vector<256x256xbf16>, vector<256x128xbf16>, vector<256x128xf32> -> vector<256x128xf32>
    %c2_97 = arith.constant 2 : index
    %c1_98 = arith.constant 1 : index
    %c0_99 = arith.constant 0 : index
    %c0_100 = arith.constant 0 : index
    %90 = vector.load %arg3[%c2_97, %c1_98, %c0_99, %c0_100] : memref<4x4x128x128xbf16, #tpu.memory_space<vmem>>, vector<1x1x128x128xbf16>
    %91 = vector.shape_cast %90 : vector<1x1x128x128xbf16> to vector<128x128xbf16>
    %cst_101 = arith.constant dense<0.000000e+00> : vector<256x128xf32>
    %92 = tpu.matmul %82, %91, %cst_101 {dimension_numbers = #tpu.dot_dimension_numbers<[1], [0], [0], [1], [0, 0, 1, 1], [], []>} : vector<256x128xbf16>, vector<128x128xbf16>, vector<256x128xf32> -> vector<256x128xf32>
    %93 = arith.truncf %92 : vector<256x128xf32> to vector<256x128xbf16>
    %c2_102 = arith.constant 2 : index
    %c1_103 = arith.constant 1 : index
    %c0_104 = arith.constant 0 : index
    %c0_105 = arith.constant 0 : index
    %94 = vector.load %arg2[%c2_102, %c1_103, %c0_104, %c0_105] : memref<4x4x256x256xbf16, #tpu.memory_space<vmem>>, vector<1x1x256x256xbf16>
    %95 = vector.shape_cast %94 : vector<1x1x256x256xbf16> to vector<256x256xbf16>
    %cst_106 = arith.constant dense<0.000000e+00> : vector<256x128xf32>
    %96 = tpu.matmul %95, %93, %cst_106 {dimension_numbers = #tpu.dot_dimension_numbers<[1], [0], [0], [1], [0, 0, 1, 1], [], []>} : vector<256x256xbf16>, vector<256x128xbf16>, vector<256x128xf32> -> vector<256x128xf32>
    %97 = arith.addf %89, %96 : vector<256x128xf32>
    %c2_107 = arith.constant 2 : index
    %c2_108 = arith.constant 2 : index
    %c0_109 = arith.constant 0 : index
    %c0_110 = arith.constant 0 : index
    %98 = vector.load %arg3[%c2_107, %c2_108, %c0_109, %c0_110] : memref<4x4x128x128xbf16, #tpu.memory_space<vmem>>, vector<1x1x128x128xbf16>
    %99 = vector.shape_cast %98 : vector<1x1x128x128xbf16> to vector<128x128xbf16>
    %cst_111 = arith.constant dense<0.000000e+00> : vector<256x128xf32>
    %100 = tpu.matmul %82, %99, %cst_111 {dimension_numbers = #tpu.dot_dimension_numbers<[1], [0], [0], [1], [0, 0, 1, 1], [], []>} : vector<256x128xbf16>, vector<128x128xbf16>, vector<256x128xf32> -> vector<256x128xf32>
    %101 = arith.truncf %100 : vector<256x128xf32> to vector<256x128xbf16>
    %c2_112 = arith.constant 2 : index
    %c2_113 = arith.constant 2 : index
    %c0_114 = arith.constant 0 : index
    %c0_115 = arith.constant 0 : index
    %102 = vector.load %arg2[%c2_112, %c2_113, %c0_114, %c0_115] : memref<4x4x256x256xbf16, #tpu.memory_space<vmem>>, vector<1x1x256x256xbf16>
    %103 = vector.shape_cast %102 : vector<1x1x256x256xbf16> to vector<256x256xbf16>
    %cst_116 = arith.constant dense<0.000000e+00> : vector<256x128xf32>
    %104 = tpu.matmul %103, %101, %cst_116 {dimension_numbers = #tpu.dot_dimension_numbers<[1], [0], [0], [1], [0, 0, 1, 1], [], []>} : vector<256x256xbf16>, vector<256x128xbf16>, vector<256x128xf32> -> vector<256x128xf32>
    %105 = arith.addf %97, %104 : vector<256x128xf32>
    %c2_117 = arith.constant 2 : index
    %c3_118 = arith.constant 3 : index
    %c0_119 = arith.constant 0 : index
    %c0_120 = arith.constant 0 : index
    %106 = vector.load %arg3[%c2_117, %c3_118, %c0_119, %c0_120] : memref<4x4x128x128xbf16, #tpu.memory_space<vmem>>, vector<1x1x128x128xbf16>
    %107 = vector.shape_cast %106 : vector<1x1x128x128xbf16> to vector<128x128xbf16>
    %cst_121 = arith.constant dense<0.000000e+00> : vector<256x128xf32>
    %108 = tpu.matmul %82, %107, %cst_121 {dimension_numbers = #tpu.dot_dimension_numbers<[1], [0], [0], [1], [0, 0, 1, 1], [], []>} : vector<256x128xbf16>, vector<128x128xbf16>, vector<256x128xf32> -> vector<256x128xf32>
    %109 = arith.truncf %108 : vector<256x128xf32> to vector<256x128xbf16>
    %c2_122 = arith.constant 2 : index
    %c3_123 = arith.constant 3 : index
    %c0_124 = arith.constant 0 : index
    %c0_125 = arith.constant 0 : index
    %110 = vector.load %arg2[%c2_122, %c3_123, %c0_124, %c0_125] : memref<4x4x256x256xbf16, #tpu.memory_space<vmem>>, vector<1x1x256x256xbf16>
    %111 = vector.shape_cast %110 : vector<1x1x256x256xbf16> to vector<256x256xbf16>
    %cst_126 = arith.constant dense<0.000000e+00> : vector<256x128xf32>
    %112 = tpu.matmul %111, %109, %cst_126 {dimension_numbers = #tpu.dot_dimension_numbers<[1], [0], [0], [1], [0, 0, 1, 1], [], []>} : vector<256x256xbf16>, vector<256x128xbf16>, vector<256x128xf32> -> vector<256x128xf32>
    %113 = arith.addf %105, %112 : vector<256x128xf32>
    %c2_127 = arith.constant 2 : index
    %c0_128 = arith.constant 0 : index
    %c0_129 = arith.constant 0 : index
    %114 = vector.load %arg4[%c2_127, %c0_128, %c0_129] : memref<4x256x1xf32, #tpu.memory_space<vmem>>, vector<1x256x1xf32>
    %115 = vector.shape_cast %114 : vector<1x256x1xf32> to vector<256x1xf32>
    %116 = vector.broadcast %115 : vector<256x1xf32> to vector<256x128xf32>
    %117 = arith.addf %113, %116 : vector<256x128xf32>
    %cst_130 = arith.constant 0.000000e+00 : f32
    %118 = vector.broadcast %cst_130 : f32 to vector<256x128xf32>
    %119 = arith.cmpf ogt, %117, %118 : vector<256x128xf32>
    %cst_131 = arith.constant 2.000000e-01 : f32
    %120 = vector.broadcast %cst_131 : f32 to vector<256x128xf32>
    %121 = arith.mulf %120, %117 : vector<256x128xf32>
    %122 = arith.select %119, %117, %121 : vector<256x128xi1>, vector<256x128xf32>
    %123 = arith.truncf %122 : vector<256x128xf32> to vector<256x128xbf16>
    %c3_132 = arith.constant 3 : index
    %c0_133 = arith.constant 0 : index
    %c0_134 = arith.constant 0 : index
    %c0_135 = arith.constant 0 : index
    %124 = vector.load %arg3[%c3_132, %c0_133, %c0_134, %c0_135] : memref<4x4x128x128xbf16, #tpu.memory_space<vmem>>, vector<1x1x128x128xbf16>
    %125 = vector.shape_cast %124 : vector<1x1x128x128xbf16> to vector<128x128xbf16>
    %cst_136 = arith.constant dense<0.000000e+00> : vector<256x128xf32>
    %126 = tpu.matmul %123, %125, %cst_136 {dimension_numbers = #tpu.dot_dimension_numbers<[1], [0], [0], [1], [0, 0, 1, 1], [], []>} : vector<256x128xbf16>, vector<128x128xbf16>, vector<256x128xf32> -> vector<256x128xf32>
    %127 = arith.truncf %126 : vector<256x128xf32> to vector<256x128xbf16>
    %c3_137 = arith.constant 3 : index
    %c0_138 = arith.constant 0 : index
    %c0_139 = arith.constant 0 : index
    %c0_140 = arith.constant 0 : index
    %128 = vector.load %arg2[%c3_137, %c0_138, %c0_139, %c0_140] : memref<4x4x256x256xbf16, #tpu.memory_space<vmem>>, vector<1x1x256x256xbf16>
    %129 = vector.shape_cast %128 : vector<1x1x256x256xbf16> to vector<256x256xbf16>
    %cst_141 = arith.constant dense<0.000000e+00> : vector<256x128xf32>
    %130 = tpu.matmul %129, %127, %cst_141 {dimension_numbers = #tpu.dot_dimension_numbers<[1], [0], [0], [1], [0, 0, 1, 1], [], []>} : vector<256x256xbf16>, vector<256x128xbf16>, vector<256x128xf32> -> vector<256x128xf32>
    %c3_142 = arith.constant 3 : index
    %c1_143 = arith.constant 1 : index
    %c0_144 = arith.constant 0 : index
    %c0_145 = arith.constant 0 : index
    %131 = vector.load %arg3[%c3_142, %c1_143, %c0_144, %c0_145] : memref<4x4x128x128xbf16, #tpu.memory_space<vmem>>, vector<1x1x128x128xbf16>
    %132 = vector.shape_cast %131 : vector<1x1x128x128xbf16> to vector<128x128xbf16>
    %cst_146 = arith.constant dense<0.000000e+00> : vector<256x128xf32>
    %133 = tpu.matmul %123, %132, %cst_146 {dimension_numbers = #tpu.dot_dimension_numbers<[1], [0], [0], [1], [0, 0, 1, 1], [], []>} : vector<256x128xbf16>, vector<128x128xbf16>, vector<256x128xf32> -> vector<256x128xf32>
    %134 = arith.truncf %133 : vector<256x128xf32> to vector<256x128xbf16>
    %c3_147 = arith.constant 3 : index
    %c1_148 = arith.constant 1 : index
    %c0_149 = arith.constant 0 : index
    %c0_150 = arith.constant 0 : index
    %135 = vector.load %arg2[%c3_147, %c1_148, %c0_149, %c0_150] : memref<4x4x256x256xbf16, #tpu.memory_space<vmem>>, vector<1x1x256x256xbf16>
    %136 = vector.shape_cast %135 : vector<1x1x256x256xbf16> to vector<256x256xbf16>
    %cst_151 = arith.constant dense<0.000000e+00> : vector<256x128xf32>
    %137 = tpu.matmul %136, %134, %cst_151 {dimension_numbers = #tpu.dot_dimension_numbers<[1], [0], [0], [1], [0, 0, 1, 1], [], []>} : vector<256x256xbf16>, vector<256x128xbf16>, vector<256x128xf32> -> vector<256x128xf32>
    %138 = arith.addf %130, %137 : vector<256x128xf32>
    %c3_152 = arith.constant 3 : index
    %c2_153 = arith.constant 2 : index
    %c0_154 = arith.constant 0 : index
    %c0_155 = arith.constant 0 : index
    %139 = vector.load %arg3[%c3_152, %c2_153, %c0_154, %c0_155] : memref<4x4x128x128xbf16, #tpu.memory_space<vmem>>, vector<1x1x128x128xbf16>
    %140 = vector.shape_cast %139 : vector<1x1x128x128xbf16> to vector<128x128xbf16>
    %cst_156 = arith.constant dense<0.000000e+00> : vector<256x128xf32>
    %141 = tpu.matmul %123, %140, %cst_156 {dimension_numbers = #tpu.dot_dimension_numbers<[1], [0], [0], [1], [0, 0, 1, 1], [], []>} : vector<256x128xbf16>, vector<128x128xbf16>, vector<256x128xf32> -> vector<256x128xf32>
    %142 = arith.truncf %141 : vector<256x128xf32> to vector<256x128xbf16>
    %c3_157 = arith.constant 3 : index
    %c2_158 = arith.constant 2 : index
    %c0_159 = arith.constant 0 : index
    %c0_160 = arith.constant 0 : index
    %143 = vector.load %arg2[%c3_157, %c2_158, %c0_159, %c0_160] : memref<4x4x256x256xbf16, #tpu.memory_space<vmem>>, vector<1x1x256x256xbf16>
    %144 = vector.shape_cast %143 : vector<1x1x256x256xbf16> to vector<256x256xbf16>
    %cst_161 = arith.constant dense<0.000000e+00> : vector<256x128xf32>
    %145 = tpu.matmul %144, %142, %cst_161 {dimension_numbers = #tpu.dot_dimension_numbers<[1], [0], [0], [1], [0, 0, 1, 1], [], []>} : vector<256x256xbf16>, vector<256x128xbf16>, vector<256x128xf32> -> vector<256x128xf32>
    %146 = arith.addf %138, %145 : vector<256x128xf32>
    %c3_162 = arith.constant 3 : index
    %c3_163 = arith.constant 3 : index
    %c0_164 = arith.constant 0 : index
    %c0_165 = arith.constant 0 : index
    %147 = vector.load %arg3[%c3_162, %c3_163, %c0_164, %c0_165] : memref<4x4x128x128xbf16, #tpu.memory_space<vmem>>, vector<1x1x128x128xbf16>
    %148 = vector.shape_cast %147 : vector<1x1x128x128xbf16> to vector<128x128xbf16>
    %cst_166 = arith.constant dense<0.000000e+00> : vector<256x128xf32>
    %149 = tpu.matmul %123, %148, %cst_166 {dimension_numbers = #tpu.dot_dimension_numbers<[1], [0], [0], [1], [0, 0, 1, 1], [], []>} : vector<256x128xbf16>, vector<128x128xbf16>, vector<256x128xf32> -> vector<256x128xf32>
    %150 = arith.truncf %149 : vector<256x128xf32> to vector<256x128xbf16>
    %c3_167 = arith.constant 3 : index
    %c3_168 = arith.constant 3 : index
    %c0_169 = arith.constant 0 : index
    %c0_170 = arith.constant 0 : index
    %151 = vector.load %arg2[%c3_167, %c3_168, %c0_169, %c0_170] : memref<4x4x256x256xbf16, #tpu.memory_space<vmem>>, vector<1x1x256x256xbf16>
    %152 = vector.shape_cast %151 : vector<1x1x256x256xbf16> to vector<256x256xbf16>
    %cst_171 = arith.constant dense<0.000000e+00> : vector<256x128xf32>
    %153 = tpu.matmul %152, %150, %cst_171 {dimension_numbers = #tpu.dot_dimension_numbers<[1], [0], [0], [1], [0, 0, 1, 1], [], []>} : vector<256x256xbf16>, vector<256x128xbf16>, vector<256x128xf32> -> vector<256x128xf32>
    %154 = arith.addf %146, %153 : vector<256x128xf32>
    %c3_172 = arith.constant 3 : index
    %c0_173 = arith.constant 0 : index
    %c0_174 = arith.constant 0 : index
    %155 = vector.load %arg4[%c3_172, %c0_173, %c0_174] : memref<4x256x1xf32, #tpu.memory_space<vmem>>, vector<1x256x1xf32>
    %156 = vector.shape_cast %155 : vector<1x256x1xf32> to vector<256x1xf32>
    %157 = vector.broadcast %156 : vector<256x1xf32> to vector<256x128xf32>
    %158 = arith.addf %154, %157 : vector<256x128xf32>
    %cst_175 = arith.constant 0.000000e+00 : f32
    %159 = vector.broadcast %cst_175 : f32 to vector<256x128xf32>
    %160 = arith.cmpf ogt, %158, %159 : vector<256x128xf32>
    %cst_176 = arith.constant 2.000000e-01 : f32
    %161 = vector.broadcast %cst_176 : f32 to vector<256x128xf32>
    %162 = arith.mulf %161, %158 : vector<256x128xf32>
    %163 = arith.select %160, %158, %162 : vector<256x128xi1>, vector<256x128xf32>
    %164 = arith.truncf %163 : vector<256x128xf32> to vector<256x128xbf16>
    %c0_177 = arith.constant 0 : index
    %c0_178 = arith.constant 0 : index
    %c0_179 = arith.constant 0 : index
    %165 = vector.load %arg6[%c0_177, %c0_178, %c0_179] : memref<4x128x2xbf16, #tpu.memory_space<vmem>>, vector<1x128x2xbf16>
    %166 = vector.shape_cast %165 : vector<1x128x2xbf16> to vector<128x2xbf16>
    %cst_180 = arith.constant dense<0.000000e+00> : vector<256x2xf32>
    %167 = tpu.matmul %164, %166, %cst_180 {dimension_numbers = #tpu.dot_dimension_numbers<[1], [0], [0], [1], [0, 0, 1, 1], [], []>} : vector<256x128xbf16>, vector<128x2xbf16>, vector<256x2xf32> -> vector<256x2xf32>
    %168 = arith.truncf %167 : vector<256x2xf32> to vector<256x2xbf16>
    %c0_181 = arith.constant 0 : index
    %c0_182 = arith.constant 0 : index
    %c0_183 = arith.constant 0 : index
    %169 = vector.load %arg5[%c0_181, %c0_182, %c0_183] : memref<4x16x256xbf16, #tpu.memory_space<vmem>>, vector<1x16x256xbf16>
    %170 = vector.shape_cast %169 : vector<1x16x256xbf16> to vector<16x256xbf16>
    %cst_184 = arith.constant dense<0.000000e+00> : vector<16x2xf32>
    %171 = tpu.matmul %170, %168, %cst_184 {dimension_numbers = #tpu.dot_dimension_numbers<[1], [0], [0], [1], [0, 0, 1, 1], [], []>} : vector<16x256xbf16>, vector<256x2xbf16>, vector<16x2xf32> -> vector<16x2xf32>
    %c1_185 = arith.constant 1 : index
    %c0_186 = arith.constant 0 : index
    %c0_187 = arith.constant 0 : index
    %172 = vector.load %arg6[%c1_185, %c0_186, %c0_187] : memref<4x128x2xbf16, #tpu.memory_space<vmem>>, vector<1x128x2xbf16>
    %173 = vector.shape_cast %172 : vector<1x128x2xbf16> to vector<128x2xbf16>
    %cst_188 = arith.constant dense<0.000000e+00> : vector<256x2xf32>
    %174 = tpu.matmul %164, %173, %cst_188 {dimension_numbers = #tpu.dot_dimension_numbers<[1], [0], [0], [1], [0, 0, 1, 1], [], []>} : vector<256x128xbf16>, vector<128x2xbf16>, vector<256x2xf32> -> vector<256x2xf32>
    %175 = arith.truncf %174 : vector<256x2xf32> to vector<256x2xbf16>
    %c1_189 = arith.constant 1 : index
    %c0_190 = arith.constant 0 : index
    %c0_191 = arith.constant 0 : index
    %176 = vector.load %arg5[%c1_189, %c0_190, %c0_191] : memref<4x16x256xbf16, #tpu.memory_space<vmem>>, vector<1x16x256xbf16>
    %177 = vector.shape_cast %176 : vector<1x16x256xbf16> to vector<16x256xbf16>
    %cst_192 = arith.constant dense<0.000000e+00> : vector<16x2xf32>
    %178 = tpu.matmul %177, %175, %cst_192 {dimension_numbers = #tpu.dot_dimension_numbers<[1], [0], [0], [1], [0, 0, 1, 1], [], []>} : vector<16x256xbf16>, vector<256x2xbf16>, vector<16x2xf32> -> vector<16x2xf32>
    %179 = arith.addf %171, %178 : vector<16x2xf32>
    %c2_193 = arith.constant 2 : index
    %c0_194 = arith.constant 0 : index
    %c0_195 = arith.constant 0 : index
    %180 = vector.load %arg6[%c2_193, %c0_194, %c0_195] : memref<4x128x2xbf16, #tpu.memory_space<vmem>>, vector<1x128x2xbf16>
    %181 = vector.shape_cast %180 : vector<1x128x2xbf16> to vector<128x2xbf16>
    %cst_196 = arith.constant dense<0.000000e+00> : vector<256x2xf32>
    %182 = tpu.matmul %164, %181, %cst_196 {dimension_numbers = #tpu.dot_dimension_numbers<[1], [0], [0], [1], [0, 0, 1, 1], [], []>} : vector<256x128xbf16>, vector<128x2xbf16>, vector<256x2xf32> -> vector<256x2xf32>
    %183 = arith.truncf %182 : vector<256x2xf32> to vector<256x2xbf16>
    %c2_197 = arith.constant 2 : index
    %c0_198 = arith.constant 0 : index
    %c0_199 = arith.constant 0 : index
    %184 = vector.load %arg5[%c2_197, %c0_198, %c0_199] : memref<4x16x256xbf16, #tpu.memory_space<vmem>>, vector<1x16x256xbf16>
    %185 = vector.shape_cast %184 : vector<1x16x256xbf16> to vector<16x256xbf16>
    %cst_200 = arith.constant dense<0.000000e+00> : vector<16x2xf32>
    %186 = tpu.matmul %185, %183, %cst_200 {dimension_numbers = #tpu.dot_dimension_numbers<[1], [0], [0], [1], [0, 0, 1, 1], [], []>} : vector<16x256xbf16>, vector<256x2xbf16>, vector<16x2xf32> -> vector<16x2xf32>
    %187 = arith.addf %179, %186 : vector<16x2xf32>
    %c3_201 = arith.constant 3 : index
    %c0_202 = arith.constant 0 : index
    %c0_203 = arith.constant 0 : index
    %188 = vector.load %arg6[%c3_201, %c0_202, %c0_203] : memref<4x128x2xbf16, #tpu.memory_space<vmem>>, vector<1x128x2xbf16>
    %189 = vector.shape_cast %188 : vector<1x128x2xbf16> to vector<128x2xbf16>
    %cst_204 = arith.constant dense<0.000000e+00> : vector<256x2xf32>
    %190 = tpu.matmul %164, %189, %cst_204 {dimension_numbers = #tpu.dot_dimension_numbers<[1], [0], [0], [1], [0, 0, 1, 1], [], []>} : vector<256x128xbf16>, vector<128x2xbf16>, vector<256x2xf32> -> vector<256x2xf32>
    %191 = arith.truncf %190 : vector<256x2xf32> to vector<256x2xbf16>
    %c3_205 = arith.constant 3 : index
    %c0_206 = arith.constant 0 : index
    %c0_207 = arith.constant 0 : index
    %192 = vector.load %arg5[%c3_205, %c0_206, %c0_207] : memref<4x16x256xbf16, #tpu.memory_space<vmem>>, vector<1x16x256xbf16>
    %193 = vector.shape_cast %192 : vector<1x16x256xbf16> to vector<16x256xbf16>
    %cst_208 = arith.constant dense<0.000000e+00> : vector<16x2xf32>
    %194 = tpu.matmul %193, %191, %cst_208 {dimension_numbers = #tpu.dot_dimension_numbers<[1], [0], [0], [1], [0, 0, 1, 1], [], []>} : vector<16x256xbf16>, vector<256x2xbf16>, vector<16x2xf32> -> vector<16x2xf32>
    %195 = arith.addf %187, %194 : vector<16x2xf32>
    %c0_209 = arith.constant 0 : index
    %c0_210 = arith.constant 0 : index
    %196 = vector.load %arg7[%c0_209, %c0_210] : memref<16x1xf32, #tpu.memory_space<vmem>>, vector<16x1xf32>
    %197 = vector.broadcast %196 : vector<16x1xf32> to vector<16x2xf32>
    %198 = arith.addf %195, %197 : vector<16x2xf32>
    %c0_211 = arith.constant 0 : index
    %c0_212 = arith.constant 0 : index
    %199 = vector.load %arg8[%c0_211, %c0_212] : memref<16x2xf32, #tpu.memory_space<vmem>>, vector<16x2xf32>
    tpu.vector_store %arg8[%c0_211, %c0_212], %198 {strides = array<i32>} : memref<16x2xf32, #tpu.memory_space<vmem>>, vector<16x2xf32>,
    return
  }
  func.func @transform_0(%arg0: i32) -> (i32, i32) {
    %c0_i32 = arith.constant 0 : i32
    %c0_i32_0 = arith.constant 0 : i32
    %c0_i32_1 = arith.constant 0 : i32
    return %c0_i32, %c0_i32_0 : i32, i32
  }
  func.func @transform_1(%arg0: i32) -> (i32, i32, i32, i32) {
    %c0_i32 = arith.constant 0 : i32
    %c0_i32_0 = arith.constant 0 : i32
    %c0_i32_1 = arith.constant 0 : i32
    %c0_i32_2 = arith.constant 0 : i32
    %c0_i32_3 = arith.constant 0 : i32
    return %c0_i32, %c0_i32_0, %c0_i32_1, %c0_i32_2 : i32, i32, i32, i32
  }
  func.func @transform_2(%arg0: i32) -> (i32, i32, i32, i32) {
    %c0_i32 = arith.constant 0 : i32
    %c0_i32_0 = arith.constant 0 : i32
    %c0_i32_1 = arith.constant 0 : i32
    %c0_i32_2 = arith.constant 0 : i32
    %c0_i32_3 = arith.constant 0 : i32
    return %c0_i32, %c0_i32_0, %c0_i32_1, %c0_i32_2 : i32, i32, i32, i32
  }
  func.func @transform_3(%arg0: i32) -> (i32, i32, i32) {
    %c0_i32 = arith.constant 0 : i32
    %c0_i32_0 = arith.constant 0 : i32
    %c0_i32_1 = arith.constant 0 : i32
    %c0_i32_2 = arith.constant 0 : i32
    return %c0_i32, %c0_i32_0, %c0_i32_1 : i32, i32, i32
  }
  func.func @transform_4(%arg0: i32) -> (i32, i32, i32) {
    %c0_i32 = arith.constant 0 : i32
    %c0_i32_0 = arith.constant 0 : i32
    %c0_i32_1 = arith.constant 0 : i32
    %c0_i32_2 = arith.constant 0 : i32
    return %c0_i32, %c0_i32_0, %c0_i32_1 : i32, i32, i32
  }
  func.func @transform_5(%arg0: i32) -> (i32, i32, i32) {
    %c0_i32 = arith.constant 0 : i32
    %c0_i32_0 = arith.constant 0 : i32
    %c0_i32_1 = arith.constant 0 : i32
    %c0_i32_2 = arith.constant 0 : i32
    return %c0_i32, %c0_i32_0, %c0_i32_1 : i32, i32, i32
  }
  func.func @transform_6(%arg0: i32) -> (i32, i32) {
    %c0_i32 = arith.constant 0 : i32
    %c0_i32_0 = arith.constant 0 : i32
    %c0_i32_1 = arith.constant 0 : i32
    return %c0_i32, %c0_i32_0 : i32, i32
  }
  func.func @transform_7(%arg0: i32) -> (i32, i32) {
    %c0_i32 = arith.constant 0 : i32
    %c0_i32_0 = arith.constant 0 : i32
    %c0_i32_1 = arith.constant 0 : i32
    return %c0_i32, %c0_i32_0 : i32, i32
  }
}

</mosaic_0001>

<llo_original>
// kernel: encoder_forward.1
$region0: #{encoder_forward.1}
  #allocation0 [shape = 'u32[]', space=smem, size = 0x4, offset = 0x4, fixed_abs, tag = 'smem constant byte address 0x4 - core index']
  #allocation1 [shape = 'u32[144,128]{1,0:T(1,128)}', space=vmem, size = 0x12000, scoped, tag = 'internal scratch']
  %s0 = inlined_call_operand.vmem [shape: bf16[256,128], index: 0, kind: input, shape index: {}]
  %s1 = inlined_call_operand.hbm [shape: bf16[4,4,256,256], index: 1, kind: input, shape index: {}]
  %s2 = inlined_call_operand.hbm [shape: bf16[4,4,128,128], index: 2, kind: input, shape index: {}]
  %s3 = inlined_call_operand.vmem [shape: f32[4,256,1], index: 3, kind: input, shape index: {}]
  %s4 = inlined_call_operand.hbm [shape: bf16[4,16,256], index: 4, kind: input, shape index: {}]
  %s5 = inlined_call_operand.vmem [shape: bf16[4,128,2], index: 5, kind: input, shape index: {}]
  %s6 = inlined_call_operand.vmem [shape: f32[16,1], index: 6, kind: input, shape index: {}]
  %s7 = inlined_call_operand.vmem [shape: f32[16,2], index: 7, kind: output, shape index: {}]
  %s8 = sld [smem:[#allocation0]]
  $region50: #{encoder_forward.1} parent=0
    _
  %s10 = ssub.s32 1, %s8
  %s11 = scalar_select 0, %s10, %s8
  $region1: #{encoder_forward.1} parent=0
    #allocation2 [shape = 'u8[2097152]{0}', space=vmem, size = 0x200000, scoped, tag = 'input window, operand 1, single buffered']
    #allocation3 [shape = 's32[1]{0}', space=sflag, size = 0x4, scoped, tag = 'scoped memory for encoder_forward.1']
    #allocation4 [shape = 'u8[524288]{0}', space=vmem, size = 0x80000, scoped, tag = 'input window, operand 2, single buffered']
    #allocation5 [shape = 's32[1]{0}', space=sflag, size = 0x4, scoped, tag = 'scoped memory for encoder_forward.1']
    #allocation6 [shape = 'u8[32768]{0}', space=vmem, size = 0x8000, scoped, tag = 'input window, operand 4, single buffered']
    %12 = vsyncpa [#allocation3], 0
    %13 = vsyncpa [#allocation5], 0
    // Predicated region
    $region2: #{encoder_forward.1} parent=1 // pred_check
      _
    $region3: #{encoder_forward.1} parent=1 // pred_check_branch
      %15 = sbr.rel (0) target = $region5
    $region4: #{encoder_forward.1} parent=1 // pred_region
      _
    $region5: #{encoder_forward.1} parent=1 // pred_fallthru
      _
    // Predicated region
    $region6: #{encoder_forward.1} parent=1 // pred_check
      _
    $region7: #{encoder_forward.1} parent=1 // pred_check_branch
      %17 = sbr.rel (0) target = $region9
    $region8: #{encoder_forward.1} parent=1 // pred_region
      %s19 = ssub.s32 65536, 65536
      %20 = vsyncadd [#allocation3], %s19
      %s21 = sshll.u32 [#allocation2], 4
      %s22 = int_to_ptr.vmem [resolvable:$true] %s21
      %27 = dma.hbm_to_vmem [thread:$0]  %s1, 65536, %s22, [#allocation3], 128, 128, 8
    $region9: #{encoder_forward.1} parent=1 // pred_fallthru
      _
    // Predicated region
    $region10: #{encoder_forward.1} parent=1 // pred_check
      _
    $region11: #{encoder_forward.1} parent=1 // pred_check_branch
      %29 = sbr.rel (0) target = $region13
    $region12: #{encoder_forward.1} parent=1 // pred_region
      %s31 = ssub.s32 16384, 16384
      %32 = vsyncadd [#allocation5], %s31
      %s33 = sshll.u32 [#allocation4], 4
      %s34 = int_to_ptr.vmem [resolvable:$true] %s33
      %39 = dma.hbm_to_vmem [thread:$0]  %s2, 16384, %s34, [#allocation5], 64, 64, 4
    $region13: #{encoder_forward.1} parent=1 // pred_fallthru
      _
    // Predicated region
    $region14: #{encoder_forward.1} parent=1 // pred_check
      _
    $region15: #{encoder_forward.1} parent=1 // pred_check_branch
      %41 = sbr.rel (0) target = $region17
    $region16: #{encoder_forward.1} parent=1 // pred_region
      _
    $region17: #{encoder_forward.1} parent=1 // pred_fallthru
      _
    // Predicated region
    $region18: #{encoder_forward.1} parent=1 // pred_check
      _
    $region19: #{encoder_forward.1} parent=1 // pred_check_branch
      %43 = sbr.rel (0) target = $region21
    $region20: #{encoder_forward.1} parent=1 // pred_region
      %s45 = ssub.s32 1024, 1024
      %46 = vsyncadd [#allocation5], %s45
      %s47 = sshll.u32 [#allocation6], 4
      %s48 = int_to_ptr.vmem [resolvable:$true] %s47
      %53 = dma.hbm_to_vmem [thread:$0]  %s4, 1024, %s48, [#allocation5], 128, 128, 8
    $region21: #{encoder_forward.1} parent=1 // pred_fallthru
      _
    // Predicated region
    $region22: #{encoder_forward.1} parent=1 // pred_check
      _
    $region23: #{encoder_forward.1} parent=1 // pred_check_branch
      %55 = sbr.rel (0) target = $region25
    $region24: #{encoder_forward.1} parent=1 // pred_region
      _
    $region25: #{encoder_forward.1} parent=1 // pred_fallthru
      _
    // Predicated region
    $region26: #{encoder_forward.1} parent=1 // pred_check
      _
    $region27: #{encoder_forward.1} parent=1 // pred_check_branch
      %57 = sbr.rel (0) target = $region29
    $region28: #{encoder_forward.1} parent=1 // pred_region
      _
    $region29: #{encoder_forward.1} parent=1 // pred_fallthru
      _
    // Predicated region
    $region30: #{encoder_forward.1} parent=1 // pred_check
      _
    $region31: #{encoder_forward.1} parent=1 // pred_check_branch
      %59 = sbr.rel (0) target = $region33
    $region32: #{encoder_forward.1} parent=1 // pred_region
      %60 = dma.done [#allocation3], 65536
    $region33: #{encoder_forward.1} parent=1 // pred_fallthru
      _
    // Predicated region
    $region34: #{encoder_forward.1} parent=1 // pred_check
      _
    $region35: #{encoder_forward.1} parent=1 // pred_check_branch
      %62 = sbr.rel (0) target = $region37
    $region36: #{encoder_forward.1} parent=1 // pred_region
      %63 = dma.done [#allocation5], 16384
    $region37: #{encoder_forward.1} parent=1 // pred_fallthru
      _
    // Predicated region
    $region38: #{encoder_forward.1} parent=1 // pred_check
      _
    $region39: #{encoder_forward.1} parent=1 // pred_check_branch
      %65 = sbr.rel (0) target = $region41
    $region40: #{encoder_forward.1} parent=1 // pred_region
      %66 = dma.done [#allocation5], 1024
    $region41: #{encoder_forward.1} parent=1 // pred_fallthru
      _
    %v68 = vld [vmem:[%s0] sm:$0xf]
    %v69 = vld [vmem:[%s0 + $0x4] sm:$0xf]
    %v70 = vld [vmem:[%s0 + $0x8] sm:$0xf]
    %v71 = vld [vmem:[%s0 + $0xc] sm:$0xf]
    %v72 = vld [vmem:[%s0 + $0x10] sm:$0xf]
    %v73 = vld [vmem:[%s0 + $0x14] sm:$0xf]
    %v74 = vld [vmem:[%s0 + $0x18] sm:$0xf]
    %v75 = vld [vmem:[%s0 + $0x1c] sm:$0xf]
    %v76 = vld [vmem:[%s0 + $0x20] sm:$0xf]
    %v77 = vld [vmem:[%s0 + $0x24] sm:$0xf]
    %v78 = vld [vmem:[%s0 + $0x28] sm:$0xf]
    %v79 = vld [vmem:[%s0 + $0x2c] sm:$0xf]
    %v80 = vld [vmem:[%s0 + $0x30] sm:$0xf]
    %v81 = vld [vmem:[%s0 + $0x34] sm:$0xf]
    %v82 = vld [vmem:[%s0 + $0x38] sm:$0xf]
    %v83 = vld [vmem:[%s0 + $0x3c] sm:$0xf]
    %v84 = vld [vmem:[%s0 + $0x40] sm:$0xf]
    %v85 = vld [vmem:[%s0 + $0x44] sm:$0xf]
    %v86 = vld [vmem:[%s0 + $0x48] sm:$0xf]
    %v87 = vld [vmem:[%s0 + $0x4c] sm:$0xf]
    %v88 = vld [vmem:[%s0 + $0x50] sm:$0xf]
    %v89 = vld [vmem:[%s0 + $0x54] sm:$0xf]
    %v90 = vld [vmem:[%s0 + $0x58] sm:$0xf]
    %v91 = vld [vmem:[%s0 + $0x5c] sm:$0xf]
    %v92 = vld [vmem:[%s0 + $0x60] sm:$0xf]
    %v93 = vld [vmem:[%s0 + $0x64] sm:$0xf]
    %v94 = vld [vmem:[%s0 + $0x68] sm:$0xf]
    %v95 = vld [vmem:[%s0 + $0x6c] sm:$0xf]
    %v96 = vld [vmem:[%s0 + $0x70] sm:$0xf]
    %v97 = vld [vmem:[%s0 + $0x74] sm:$0xf]
    %v98 = vld [vmem:[%s0 + $0x78] sm:$0xf]
    %v99 = vld [vmem:[%s0 + $0x7c] sm:$0xf]
    %v100 = vld [vmem:[#allocation4] sm:$0xf]
    %v101 = vld [vmem:[#allocation4 + $0x4] sm:$0xf]
    %v102 = vld [vmem:[#allocation4 + $0x8] sm:$0xf]
    %v103 = vld [vmem:[#allocation4 + $0xc] sm:$0xf]
    %v104 = vld [vmem:[#allocation4 + $0x10] sm:$0xf]
    %v105 = vld [vmem:[#allocation4 + $0x14] sm:$0xf]
    %v106 = vld [vmem:[#allocation4 + $0x18] sm:$0xf]
    %v107 = vld [vmem:[#allocation4 + $0x1c] sm:$0xf]
    %v108 = vld [vmem:[#allocation4 + $0x20] sm:$0xf]
    %v109 = vld [vmem:[#allocation4 + $0x24] sm:$0xf]
    %v110 = vld [vmem:[#allocation4 + $0x28] sm:$0xf]
    %v111 = vld [vmem:[#allocation4 + $0x2c] sm:$0xf]
    %v112 = vld [vmem:[#allocation4 + $0x30] sm:$0xf]
    %v113 = vld [vmem:[#allocation4 + $0x34] sm:$0xf]
    %v114 = vld [vmem:[#allocation4 + $0x38] sm:$0xf]
    %v115 = vld [vmem:[#allocation4 + $0x3c] sm:$0xf]
    %v148 = vunpack.c.l.b16 %v68
    %v149 = vunpack.c.l.b16 %v69
    %v150 = vunpack.c.l.b16 %v70
    %v151 = vunpack.c.l.b16 %v71
    %v152 = vunpack.c.l.b16 %v72
    %v153 = vunpack.c.l.b16 %v73
    %v154 = vunpack.c.l.b16 %v74
    %v155 = vunpack.c.l.b16 %v75
    %v156 = vunpack.c.l.b16 %v76
    %v157 = vunpack.c.l.b16 %v77
    %v158 = vunpack.c.l.b16 %v78
    %v159 = vunpack.c.l.b16 %v79
    %v160 = vunpack.c.l.b16 %v80
    %v161 = vunpack.c.l.b16 %v81
    %v162 = vunpack.c.l.b16 %v82
    %v163 = vunpack.c.l.b16 %v83
    %v164 = vunpack.c.l.b16 %v84
    %v165 = vunpack.c.l.b16 %v85
    %v166 = vunpack.c.l.b16 %v86
    %v167 = vunpack.c.l.b16 %v87
    %v168 = vunpack.c.l.b16 %v88
    %v169 = vunpack.c.l.b16 %v89
    %v170 = vunpack.c.l.b16 %v90
    %v171 = vunpack.c.l.b16 %v91
    %v172 = vunpack.c.l.b16 %v92
    %v173 = vunpack.c.l.b16 %v93
    %v174 = vunpack.c.l.b16 %v94
    %v175 = vunpack.c.l.b16 %v95
    %v176 = vunpack.c.l.b16 %v96
    %v177 = vunpack.c.l.b16 %v97
    %v178 = vunpack.c.l.b16 %v98
    %v179 = vunpack.c.l.b16 %v99
    %v180 = vpack.c.b16 %v149, %v148
    %v181 = vpack.c.b16 %v151, %v150
    %v182 = vpack.c.b16 %v153, %v152
    %v183 = vpack.c.b16 %v155, %v154
    %v184 = vpack.c.b16 %v157, %v156
    %v185 = vpack.c.b16 %v159, %v158
    %v186 = vpack.c.b16 %v161, %v160
    %v187 = vpack.c.b16 %v163, %v162
    %v188 = vpack.c.b16 %v165, %v164
    %v189 = vpack.c.b16 %v167, %v166
    %v190 = vpack.c.b16 %v169, %v168
    %v191 = vpack.c.b16 %v171, %v170
    %v192 = vpack.c.b16 %v173, %v172
    %v193 = vpack.c.b16 %v175, %v174
    %v194 = vpack.c.b16 %v177, %v176
    %v195 = vpack.c.b16 %v179, %v178
    %v228 = vunpack.c.l.b16 %v100
    %v229 = vunpack.c.l.b16 %v101
    %v230 = vunpack.c.l.b16 %v102
    %v231 = vunpack.c.l.b16 %v103
    %v232 = vunpack.c.l.b16 %v104
    %v233 = vunpack.c.l.b16 %v105
    %v234 = vunpack.c.l.b16 %v106
    %v235 = vunpack.c.l.b16 %v107
    %v236 = vunpack.c.l.b16 %v108
    %v237 = vunpack.c.l.b16 %v109
    %v238 = vunpack.c.l.b16 %v110
    %v239 = vunpack.c.l.b16 %v111
    %v240 = vunpack.c.l.b16 %v112
    %v241 = vunpack.c.l.b16 %v113
    %v242 = vunpack.c.l.b16 %v114
    %v243 = vunpack.c.l.b16 %v115
    %v244 = vpack.c.b16 %v229, %v228
    %v245 = vpack.c.b16 %v231, %v230
    %v246 = vpack.c.b16 %v233, %v232
    %v247 = vpack.c.b16 %v235, %v234
    %v248 = vpack.c.b16 %v237, %v236
    %v249 = vpack.c.b16 %v239, %v238
    %v250 = vpack.c.b16 %v241, %v240
    %v251 = vpack.c.b16 %v243, %v242
    %260 = vmatprep.subr.bf16.mxu0 0
    %261 = vmatpush1.bf16.msra.mxu0 %v251
    %262 = vmatprep.subr.bf16.mxu0 0
    %263 = vmatpush1.bf16.msra.mxu0 %v250
    %264 = vmatprep.subr.bf16.mxu0 0
    %265 = vmatpush1.bf16.msra.mxu0 %v249
    %266 = vmatprep.subr.bf16.mxu0 0
    %267 = vmatpush1.bf16.msra.mxu0 %v248
    %268 = vmatprep.subr.bf16.mxu0 0
    %269 = vmatpush1.bf16.msra.mxu0 %v247
    %270 = vmatprep.subr.bf16.mxu0 0
    %271 = vmatpush1.bf16.msra.mxu0 %v246
    %272 = vmatprep.subr.bf16.mxu0 0
    %273 = vmatpush1.bf16.msra.mxu0 %v245
    %274 = vmatprep.subr.bf16.mxu0 0
    %275 = vmatpush1.bf16.msra.mxu0 %v244
    %276 = vmatprep.subr.bf16.mxu0 0
    %277 = vmatpush2.bf16.msra.mxu0 0
    %278 = vmatprep.subr.bf16.mxu0 0
    %279 = vmatpush2.bf16.msra.mxu0 0
    %280 = vmatprep.subr.bf16.mxu0 0
    %281 = vmatpush2.bf16.msra.mxu0 0
    %282 = vmatprep.subr.bf16.mxu0 0
    %283 = vmatpush2.bf16.msra.mxu0 0
    %284 = vmatprep.subr.bf16.mxu0 0
    %285 = vmatpush2.bf16.msra.mxu0 0
    %286 = vmatprep.subr.bf16.mxu0 0
    %287 = vmatpush2.bf16.msra.mxu0 0
    %288 = vmatprep.subr.bf16.mxu0 0
    %289 = vmatpush2.bf16.msra.mxu0 0
    %290 = vmatprep.subr.bf16.mxu0 0
    %291 = vmatpush2.bf16.msra.mxu0 0
    %292 = vmatprep.mubr.bf16.mxu0 0
    %293 = vmatmul.mubr.bf16.gmra.mxu0 %v180
    %v294 = vpop.f32.mrf.mxu0
    %v295 = vadd.f32 0.0, %v294
    %v296 = vpop.f32.mrf.mxu0
    %v297 = vpop.f32.mrf.mxu0
    %v298 = vadd.f32 0.0, %v297
    %v299 = vpop.f32.mrf.mxu0
    %300 = vmatprep.mubr.bf16.mxu0 0
    %301 = vmatmul.mubr.bf16.gmra.mxu0 %v181
    %v302 = vpop.f32.mrf.mxu0
    %v303 = vadd.f32 0.0, %v302
    %v304 = vpop.f32.mrf.mxu0
    %v305 = vpop.f32.mrf.mxu0
    %v306 = vadd.f32 0.0, %v305
    %v307 = vpop.f32.mrf.mxu0
    %308 = vmatprep.mubr.bf16.mxu0 0
    %309 = vmatmul.mubr.bf16.gmra.mxu0 %v182
    %v310 = vpop.f32.mrf.mxu0
    %v311 = vadd.f32 0.0, %v310
    %v312 = vpop.f32.mrf.mxu0
    %v313 = vpop.f32.mrf.mxu0
    %v314 = vadd.f32 0.0, %v313
    %v315 = vpop.f32.mrf.mxu0
    %316 = vmatprep.mubr.bf16.mxu0 0
    %317 = vmatmul.mubr.bf16.gmra.mxu0 %v183
    %v318 = vpop.f32.mrf.mxu0
    %v319 = vadd.f32 0.0, %v318
    %v320 = vpop.f32.mrf.mxu0
    %v321 = vpop.f32.mrf.mxu0
    %v322 = vadd.f32 0.0, %v321
    %v323 = vpop.f32.mrf.mxu0
    %324 = vmatprep.mubr.bf16.mxu0 0
    %325 = vmatmul.mubr.bf16.gmra.mxu0 %v184
    %v326 = vpop.f32.mrf.mxu0
    %v327 = vadd.f32 0.0, %v326
    %v328 = vpop.f32.mrf.mxu0
    %v329 = vpop.f32.mrf.mxu0
    %v330 = vadd.f32 0.0, %v329
    %v331 = vpop.f32.mrf.mxu0
    %332 = vmatprep.mubr.bf16.mxu0 0
    %333 = vmatmul.mubr.bf16.gmra.mxu0 %v185
    %v334 = vpop.f32.mrf.mxu0
    %v335 = vadd.f32 0.0, %v334
    %v336 = vpop.f32.mrf.mxu0
    %v337 = vpop.f32.mrf.mxu0
    %v338 = vadd.f32 0.0, %v337
    %v339 = vpop.f32.mrf.mxu0
    %340 = vmatprep.mubr.bf16.mxu0 0
    %341 = vmatmul.mubr.bf16.gmra.mxu0 %v186
    %v342 = vpop.f32.mrf.mxu0
    %v343 = vadd.f32 0.0, %v342
    %v344 = vpop.f32.mrf.mxu0
    %v345 = vpop.f32.mrf.mxu0
    %v346 = vadd.f32 0.0, %v345
    %v347 = vpop.f32.mrf.mxu0
    %348 = vmatprep.mubr.bf16.mxu0 0
    %349 = vmatmul.mubr.bf16.gmra.mxu0 %v187
    %v350 = vpop.f32.mrf.mxu0
    %v351 = vadd.f32 0.0, %v350
    %v352 = vpop.f32.mrf.mxu0
    %v353 = vpop.f32.mrf.mxu0
    %v354 = vadd.f32 0.0, %v353
    %v355 = vpop.f32.mrf.mxu0
    %356 = vmatprep.mubr.bf16.mxu0 0
    %357 = vmatmul.mubr.bf16.gmra.mxu0 %v188
    %v358 = vpop.f32.mrf.mxu0
    %v359 = vadd.f32 0.0, %v358
    %v360 = vpop.f32.mrf.mxu0
    %v361 = vpop.f32.mrf.mxu0
    %v362 = vadd.f32 0.0, %v361
    %v363 = vpop.f32.mrf.mxu0
    %364 = vmatprep.mubr.bf16.mxu0 0
    %365 = vmatmul.mubr.bf16.gmra.mxu0 %v189
    %v366 = vpop.f32.mrf.mxu0
    %v367 = vadd.f32 0.0, %v366
    %v368 = vpop.f32.mrf.mxu0
    %v369 = vpop.f32.mrf.mxu0
    %v370 = vadd.f32 0.0, %v369
    %v371 = vpop.f32.mrf.mxu0
    %372 = vmatprep.mubr.bf16.mxu0 0
    %373 = vmatmul.mubr.bf16.gmra.mxu0 %v190
    %v374 = vpop.f32.mrf.mxu0
    %v375 = vadd.f32 0.0, %v374
    %v376 = vpop.f32.mrf.mxu0
    %v377 = vpop.f32.mrf.mxu0
    %v378 = vadd.f32 0.0, %v377
    %v379 = vpop.f32.mrf.mxu0
    %380 = vmatprep.mubr.bf16.mxu0 0
    %381 = vmatmul.mubr.bf16.gmra.mxu0 %v191
    %v382 = vpop.f32.mrf.mxu0
    %v383 = vadd.f32 0.0, %v382
    %v384 = vpop.f32.mrf.mxu0
    %v385 = vpop.f32.mrf.mxu0
    %v386 = vadd.f32 0.0, %v385
    %v387 = vpop.f32.mrf.mxu0
    %388 = vmatprep.mubr.bf16.mxu0 0
    %389 = vmatmul.mubr.bf16.gmra.mxu0 %v192
    %v390 = vpop.f32.mrf.mxu0
    %v391 = vadd.f32 0.0, %v390
    %v392 = vpop.f32.mrf.mxu0
    %v393 = vpop.f32.mrf.mxu0
    %v394 = vadd.f32 0.0, %v393
    %v395 = vpop.f32.mrf.mxu0
    %396 = vmatprep.mubr.bf16.mxu0 0
    %397 = vmatmul.mubr.bf16.gmra.mxu0 %v193
    %v398 = vpop.f32.mrf.mxu0
    %v399 = vadd.f32 0.0, %v398
    %v400 = vpop.f32.mrf.mxu0
    %v401 = vpop.f32.mrf.mxu0
    %v402 = vadd.f32 0.0, %v401
    %v403 = vpop.f32.mrf.mxu0
    %404 = vmatprep.mubr.bf16.mxu0 0
    %405 = vmatmul.mubr.bf16.gmra.mxu0 %v194
    %v406 = vpop.f32.mrf.mxu0
    %v407 = vadd.f32 0.0, %v406
    %v408 = vpop.f32.mrf.mxu0
    %v409 = vpop.f32.mrf.mxu0
    %v410 = vadd.f32 0.0, %v409
    %v411 = vpop.f32.mrf.mxu0
    %412 = vmatprep.mubr.bf16.mxu0 0
    %413 = vmatmul.mubr.bf16.gmra.mxu0 %v195
    %v414 = vpop.f32.mrf.mxu0
    %v415 = vadd.f32 0.0, %v414
    %v416 = vpop.f32.mrf.mxu0
    %v417 = vpop.f32.mrf.mxu0
    %v418 = vadd.f32 0.0, %v417
    %v419 = vpop.f32.mrf.mxu0
    %420 = vdwg.mxu0
    %v421 = vpack.c.bf16 %v298, %v295
    %v422 = vpack.c.bf16 %v306, %v303
    %v423 = vpack.c.bf16 %v314, %v311
    %v424 = vpack.c.bf16 %v322, %v319
    %v425 = vpack.c.bf16 %v330, %v327
    %v426 = vpack.c.bf16 %v338, %v335
    %v427 = vpack.c.bf16 %v346, %v343
    %v428 = vpack.c.bf16 %v354, %v351
    %v429 = vpack.c.bf16 %v362, %v359
    %v430 = vpack.c.bf16 %v370, %v367
    %v431 = vpack.c.bf16 %v378, %v375
    %v432 = vpack.c.bf16 %v386, %v383
    %v433 = vpack.c.bf16 %v394, %v391
    %v434 = vpack.c.bf16 %v402, %v399
    %v435 = vpack.c.bf16 %v410, %v407
    %v436 = vpack.c.bf16 %v418, %v415
    %v437 = vld [vmem:[#allocation2] sm:$0xff]
    %v438 = vld [vmem:[#allocation2 + $0x8] sm:$0xff]
    %v439 = vld [vmem:[#allocation2 + $0x10] sm:$0xff]
    %v440 = vld [vmem:[#allocation2 + $0x18] sm:$0xff]
    %v441 = vld [vmem:[#allocation2 + $0x20] sm:$0xff]
    %v442 = vld [vmem:[#allocation2 + $0x28] sm:$0xff]
    %v443 = vld [vmem:[#allocation2 + $0x30] sm:$0xff]
    %v444 = vld [vmem:[#allocation2 + $0x38] sm:$0xff]
    %v445 = vld [vmem:[#allocation2 + $0x40] sm:$0xff]
    %v446 = vld [vmem:[#allocation2 + $0x48] sm:$0xff]
    %v447 = vld [vmem:[#allocation2 + $0x50] sm:$0xff]
    %v448 = vld [vmem:[#allocation2 + $0x58] sm:$0xff]
    %v449 = vld [vmem:[#allocation2 + $0x60] sm:$0xff]
    %v450 = vld [vmem:[#allocation2 + $0x68] sm:$0xff]
    %v451 = vld [vmem:[#allocation2 + $0x70] sm:$0xff]
    %v452 = vld [vmem:[#allocation2 + $0x78] sm:$0xff]
    %v453 = vld [vmem:[#allocation2 + $0x80] sm:$0xff]
    %v454 = vld [vmem:[#allocation2 + $0x88] sm:$0xff]
    %v455 = vld [vmem:[#allocation2 + $0x90] sm:$0xff]
    %v456 = vld [vmem:[#allocation2 + $0x98] sm:$0xff]
    %v457 = vld [vmem:[#allocation2 + $0xa0] sm:$0xff]
    %v458 = vld [vmem:[#allocation2 + $0xa8] sm:$0xff]
    %v459 = vld [vmem:[#allocation2 + $0xb0] sm:$0xff]
    %v460 = vld [vmem:[#allocation2 + $0xb8] sm:$0xff]
    %v461 = vld [vmem:[#allocation2 + $0xc0] sm:$0xff]
    %v462 = vld [vmem:[#allocation2 + $0xc8] sm:$0xff]
    %v463 = vld [vmem:[#allocation2 + $0xd0] sm:$0xff]
    %v464 = vld [vmem:[#allocation2 + $0xd8] sm:$0xff]
    %v465 = vld [vmem:[#allocation2 + $0xe0] sm:$0xff]
    %v466 = vld [vmem:[#allocation2 + $0xe8] sm:$0xff]
    %v467 = vld [vmem:[#allocation2 + $0xf0] sm:$0xff]
    %v468 = vld [vmem:[#allocation2 + $0xf8] sm:$0xff]
    %s469 = scalar_lea.vmem [#allocation4], 64
    %v470 = vld [vmem:[%s469] sm:$0xf]
    %v471 = vld [vmem:[%s469 + $0x4] sm:$0xf]
    %v472 = vld [vmem:[%s469 + $0x8] sm:$0xf]
    %v473 = vld [vmem:[%s469 + $0xc] sm:$0xf]
    %v474 = vld [vmem:[%s469 + $0x10] sm:$0xf]
    %v475 = vld [vmem:[%s469 + $0x14] sm:$0xf]
    %v476 = vld [vmem:[%s469 + $0x18] sm:$0xf]
    %v477 = vld [vmem:[%s469 + $0x1c] sm:$0xf]
    %v478 = vld [vmem:[%s469 + $0x20] sm:$0xf]
    %v479 = vld [vmem:[%s469 + $0x24] sm:$0xf]
    %v480 = vld [vmem:[%s469 + $0x28] sm:$0xf]
    %v481 = vld [vmem:[%s469 + $0x2c] sm:$0xf]
    %v482 = vld [vmem:[%s469 + $0x30] sm:$0xf]
    %v483 = vld [vmem:[%s469 + $0x34] sm:$0xf]
    %v484 = vld [vmem:[%s469 + $0x38] sm:$0xf]
    %v485 = vld [vmem:[%s469 + $0x3c] sm:$0xf]
    %v502 = vunpack.c.l.b16 %v470
    %v503 = vunpack.c.l.b16 %v471
    %v504 = vunpack.c.l.b16 %v472
    %v505 = vunpack.c.l.b16 %v473
    %v506 = vunpack.c.l.b16 %v474
    %v507 = vunpack.c.l.b16 %v475
    %v508 = vunpack.c.l.b16 %v476
    %v509 = vunpack.c.l.b16 %v477
    %v510 = vunpack.c.l.b16 %v478
    %v511 = vunpack.c.l.b16 %v479
    %v512 = vunpack.c.l.b16 %v480
    %v513 = vunpack.c.l.b16 %v481
    %v514 = vunpack.c.l.b16 %v482
    %v515 = vunpack.c.l.b16 %v483
    %v516 = vunpack.c.l.b16 %v484
    %v517 = vunpack.c.l.b16 %v485
    %v518 = vpack.c.b16 %v503, %v502
    %v519 = vpack.c.b16 %v505, %v504
    %v520 = vpack.c.b16 %v507, %v506
    %v521 = vpack.c.b16 %v509, %v508
    %v522 = vpack.c.b16 %v511, %v510
    %v523 = vpack.c.b16 %v513, %v512
    %v524 = vpack.c.b16 %v515, %v514
    %v525 = vpack.c.b16 %v517, %v516
    %534 = vmatprep.subr.bf16.mxu0 0
    %535 = vmatpush1.bf16.msra.mxu0 %v525
    %536 = vmatprep.subr.bf16.mxu0 0
    %537 = vmatpush1.bf16.msra.mxu0 %v524
    %538 = vmatprep.subr.bf16.mxu0 0
    %539 = vmatpush1.bf16.msra.mxu0 %v523
    %540 = vmatprep.subr.bf16.mxu0 0
    %541 = vmatpush1.bf16.msra.mxu0 %v522
    %542 = vmatprep.subr.bf16.mxu0 0
    %543 = vmatpush1.bf16.msra.mxu0 %v521
    %544 = vmatprep.subr.bf16.mxu0 0
    %545 = vmatpush1.bf16.msra.mxu0 %v520
    %546 = vmatprep.subr.bf16.mxu0 0
    %547 = vmatpush1.bf16.msra.mxu0 %v519
    %548 = vmatprep.subr.bf16.mxu0 0
    %549 = vmatpush1.bf16.msra.mxu0 %v518
    %550 = vmatprep.subr.bf16.mxu0 0
    %551 = vmatpush2.bf16.msra.mxu0 0
    %552 = vmatprep.subr.bf16.mxu0 0
    %553 = vmatpush2.bf16.msra.mxu0 0
    %554 = vmatprep.subr.bf16.mxu0 0
    %555 = vmatpush2.bf16.msra.mxu0 0
    %556 = vmatprep.subr.bf16.mxu0 0
    %557 = vmatpush2.bf16.msra.mxu0 0
    %558 = vmatprep.subr.bf16.mxu0 0
    %559 = vmatpush2.bf16.msra.mxu0 0
    %560 = vmatprep.subr.bf16.mxu0 0
    %561 = vmatpush2.bf16.msra.mxu0 0
    %562 = vmatprep.subr.bf16.mxu0 0
    %563 = vmatpush2.bf16.msra.mxu0 0
    %564 = vmatprep.subr.bf16.mxu0 0
    %565 = vmatpush2.bf16.msra.mxu0 0
    %566 = vmatprep.mubr.bf16.mxu0 0
    %567 = vmatmul.mubr.bf16.gmra.mxu0 %v180
    %v568 = vpop.f32.mrf.mxu0
    %v569 = vadd.f32 0.0, %v568
    %v570 = vpop.f32.mrf.mxu0
    %v571 = vpop.f32.mrf.mxu0
    %v572 = vadd.f32 0.0, %v571
    %v573 = vpop.f32.mrf.mxu0
    %574 = vmatprep.mubr.bf16.mxu0 0
    %575 = vmatmul.mubr.bf16.gmra.mxu0 %v181
    %v576 = vpop.f32.mrf.mxu0
    %v577 = vadd.f32 0.0, %v576
    %v578 = vpop.f32.mrf.mxu0
    %v579 = vpop.f32.mrf.mxu0
    %v580 = vadd.f32 0.0, %v579
    %v581 = vpop.f32.mrf.mxu0
    %582 = vmatprep.mubr.bf16.mxu0 0
    %583 = vmatmul.mubr.bf16.gmra.mxu0 %v182
    %v584 = vpop.f32.mrf.mxu0
    %v585 = vadd.f32 0.0, %v584
    %v586 = vpop.f32.mrf.mxu0
    %v587 = vpop.f32.mrf.mxu0
    %v588 = vadd.f32 0.0, %v587
    %v589 = vpop.f32.mrf.mxu0
    %590 = vmatprep.mubr.bf16.mxu0 0
    %591 = vmatmul.mubr.bf16.gmra.mxu0 %v183
    %v592 = vpop.f32.mrf.mxu0
    %v593 = vadd.f32 0.0, %v592
    %v594 = vpop.f32.mrf.mxu0
    %v595 = vpop.f32.mrf.mxu0
    %v596 = vadd.f32 0.0, %v595
    %v597 = vpop.f32.mrf.mxu0
    %598 = vmatprep.mubr.bf16.mxu0 0
    %599 = vmatmul.mubr.bf16.gmra.mxu0 %v184
    %v600 = vpop.f32.mrf.mxu0
    %v601 = vadd.f32 0.0, %v600
    %v602 = vpop.f32.mrf.mxu0
    %v603 = vpop.f32.mrf.mxu0
    %v604 = vadd.f32 0.0, %v603
    %v605 = vpop.f32.mrf.mxu0
    %606 = vmatprep.mubr.bf16.mxu0 0
    %607 = vmatmul.mubr.bf16.gmra.mxu0 %v185
    %v608 = vpop.f32.mrf.mxu0
    %v609 = vadd.f32 0.0, %v608
    %v610 = vpop.f32.mrf.mxu0
    %v611 = vpop.f32.mrf.mxu0
    %v612 = vadd.f32 0.0, %v611
    %v613 = vpop.f32.mrf.mxu0
    %614 = vmatprep.mubr.bf16.mxu0 0
    %615 = vmatmul.mubr.bf16.gmra.mxu0 %v186
    %v616 = vpop.f32.mrf.mxu0
    %v617 = vadd.f32 0.0, %v616
    %v618 = vpop.f32.mrf.mxu0
    %v619 = vpop.f32.mrf.mxu0
    %v620 = vadd.f32 0.0, %v619
    %v621 = vpop.f32.mrf.mxu0
    %622 = vmatprep.mubr.bf16.mxu0 0
    %623 = vmatmul.mubr.bf16.gmra.mxu0 %v187
    %v624 = vpop.f32.mrf.mxu0
    %v625 = vadd.f32 0.0, %v624
    %v626 = vpop.f32.mrf.mxu0
    %v627 = vpop.f32.mrf.mxu0
    %v628 = vadd.f32 0.0, %v627
    %v629 = vpop.f32.mrf.mxu0
    %630 = vmatprep.mubr.bf16.mxu0 0
    %631 = vmatmul.mubr.bf16.gmra.mxu0 %v188
    %v632 = vpop.f32.mrf.mxu0
    %v633 = vadd.f32 0.0, %v632
    %v634 = vpop.f32.mrf.mxu0
    %v635 = vpop.f32.mrf.mxu0
    %v636 = vadd.f32 0.0, %v635
    %v637 = vpop.f32.mrf.mxu0
    %638 = vmatprep.mubr.bf16.mxu0 0
    %639 = vmatmul.mubr.bf16.gmra.mxu0 %v189
    %v640 = vpop.f32.mrf.mxu0
    %v641 = vadd.f32 0.0, %v640
    %v642 = vpop.f32.mrf.mxu0
    %v643 = vpop.f32.mrf.mxu0
    %v644 = vadd.f32 0.0, %v643
    %v645 = vpop.f32.mrf.mxu0
    %646 = vmatprep.mubr.bf16.mxu0 0
    %647 = vmatmul.mubr.bf16.gmra.mxu0 %v190
    %v648 = vpop.f32.mrf.mxu0
    %v649 = vadd.f32 0.0, %v648
    %v650 = vpop.f32.mrf.mxu0
    %v651 = vpop.f32.mrf.mxu0
    %v652 = vadd.f32 0.0, %v651
    %v653 = vpop.f32.mrf.mxu0
    %654 = vmatprep.mubr.bf16.mxu0 0
    %655 = vmatmul.mubr.bf16.gmra.mxu0 %v191
    %v656 = vpop.f32.mrf.mxu0
    %v657 = vadd.f32 0.0, %v656
    %v658 = vpop.f32.mrf.mxu0
    %v659 = vpop.f32.mrf.mxu0
    %v660 = vadd.f32 0.0, %v659
    %v661 = vpop.f32.mrf.mxu0
    %662 = vmatprep.mubr.bf16.mxu0 0
    %663 = vmatmul.mubr.bf16.gmra.mxu0 %v192
    %v664 = vpop.f32.mrf.mxu0
    %v665 = vadd.f32 0.0, %v664
    %v666 = vpop.f32.mrf.mxu0
    %v667 = vpop.f32.mrf.mxu0
    %v668 = vadd.f32 0.0, %v667
    %v669 = vpop.f32.mrf.mxu0
    %670 = vmatprep.mubr.bf16.mxu0 0
    %671 = vmatmul.mubr.bf16.gmra.mxu0 %v193
    %v672 = vpop.f32.mrf.mxu0
    %v673 = vadd.f32 0.0, %v672
    %v674 = vpop.f32.mrf.mxu0
    %v675 = vpop.f32.mrf.mxu0
    %v676 = vadd.f32 0.0, %v675
    %v677 = vpop.f32.mrf.mxu0
    %678 = vmatprep.mubr.bf16.mxu0 0
    %679 = vmatmul.mubr.bf16.gmra.mxu0 %v194
    %v680 = vpop.f32.mrf.mxu0
    %v681 = vadd.f32 0.0, %v680
    %v682 = vpop.f32.mrf.mxu0
    %v683 = vpop.f32.mrf.mxu0
    %v684 = vadd.f32 0.0, %v683
    %v685 = vpop.f32.mrf.mxu0
    %686 = vmatprep.mubr.bf16.mxu0 0
    %687 = vmatmul.mubr.bf16.gmra.mxu0 %v195
    %v688 = vpop.f32.mrf.mxu0
    %v689 = vadd.f32 0.0, %v688
    %v690 = vpop.f32.mrf.mxu0
    %v691 = vpop.f32.mrf.mxu0
    %v692 = vadd.f32 0.0, %v691
    %v693 = vpop.f32.mrf.mxu0
    %694 = vdwg.mxu0
    %v695 = vpack.c.bf16 %v572, %v569
    %v696 = vpack.c.bf16 %v580, %v577
    %v697 = vpack.c.bf16 %v588, %v585
    %v698 = vpack.c.bf16 %v596, %v593
    %v699 = vpack.c.bf16 %v604, %v601
    %v700 = vpack.c.bf16 %v612, %v609
    %v701 = vpack.c.bf16 %v620, %v617
    %v702 = vpack.c.bf16 %v628, %v625
    %v703 = vpack.c.bf16 %v636, %v633
    %v704 = vpack.c.bf16 %v644, %v641
    %v705 = vpack.c.bf16 %v652, %v649
    %v706 = vpack.c.bf16 %v660, %v657
    %v707 = vpack.c.bf16 %v668, %v665
    %v708 = vpack.c.bf16 %v676, %v673
    %v709 = vpack.c.bf16 %v684, %v681
    %v710 = vpack.c.bf16 %v692, %v689
    %s711 = scalar_lea.vmem [#allocation2], 256
    %v712 = vld [vmem:[%s711] sm:$0xff]
    %v713 = vld [vmem:[%s711 + $0x8] sm:$0xff]
    %v714 = vld [vmem:[%s711 + $0x10] sm:$0xff]
    %v715 = vld [vmem:[%s711 + $0x18] sm:$0xff]
    %v716 = vld [vmem:[%s711 + $0x20] sm:$0xff]
    %v717 = vld [vmem:[%s711 + $0x28] sm:$0xff]
    %v718 = vld [vmem:[%s711 + $0x30] sm:$0xff]
    %v719 = vld [vmem:[%s711 + $0x38] sm:$0xff]
    %v720 = vld [vmem:[%s711 + $0x40] sm:$0xff]
    %v721 = vld [vmem:[%s711 + $0x48] sm:$0xff]
    %v722 = vld [vmem:[%s711 + $0x50] sm:$0xff]
    %v723 = vld [vmem:[%s711 + $0x58] sm:$0xff]
    %v724 = vld [vmem:[%s711 + $0x60] sm:$0xff]
    %v725 = vld [vmem:[%s711 + $0x68] sm:$0xff]
    %v726 = vld [vmem:[%s711 + $0x70] sm:$0xff]
    %v727 = vld [vmem:[%s711 + $0x78] sm:$0xff]
    %v728 = vld [vmem:[%s711 + $0x80] sm:$0xff]
    %v729 = vld [vmem:[%s711 + $0x88] sm:$0xff]
    %v730 = vld [vmem:[%s711 + $0x90] sm:$0xff]
    %v731 = vld [vmem:[%s711 + $0x98] sm:$0xff]
    %v732 = vld [vmem:[%s711 + $0xa0] sm:$0xff]
    %v733 = vld [vmem:[%s711 + $0xa8] sm:$0xff]
    %v734 = vld [vmem:[%s711 + $0xb0] sm:$0xff]
    %v735 = vld [vmem:[%s711 + $0xb8] sm:$0xff]
    %v736 = vld [vmem:[%s711 + $0xc0] sm:$0xff]
    %v737 = vld [vmem:[%s711 + $0xc8] sm:$0xff]
    %v738 = vld [vmem:[%s711 + $0xd0] sm:$0xff]
    %v739 = vld [vmem:[%s711 + $0xd8] sm:$0xff]
    %v740 = vld [vmem:[%s711 + $0xe0] sm:$0xff]
    %v741 = vld [vmem:[%s711 + $0xe8] sm:$0xff]
    %v742 = vld [vmem:[%s711 + $0xf0] sm:$0xff]
    %v743 = vld [vmem:[%s711 + $0xf8] sm:$0xff]
    %v776 = vunpack.c.l.b16 %v712
    %v777 = vunpack.c.h.b16 %v712
    %v778 = vunpack.c.l.b16 %v713
    %v779 = vunpack.c.h.b16 %v713
    %v780 = vunpack.c.l.b16 %v714
    %v781 = vunpack.c.h.b16 %v714
    %v782 = vunpack.c.l.b16 %v715
    %v783 = vunpack.c.h.b16 %v715
    %v784 = vunpack.c.l.b16 %v716
    %v785 = vunpack.c.h.b16 %v716
    %v786 = vunpack.c.l.b16 %v717
    %v787 = vunpack.c.h.b16 %v717
    %v788 = vunpack.c.l.b16 %v718
    %v789 = vunpack.c.h.b16 %v718
    %v790 = vunpack.c.l.b16 %v719
    %v791 = vunpack.c.h.b16 %v719
    %v792 = vunpack.c.l.b16 %v720
    %v793 = vunpack.c.h.b16 %v720
    %v794 = vunpack.c.l.b16 %v721
    %v795 = vunpack.c.h.b16 %v721
    %v796 = vunpack.c.l.b16 %v722
    %v797 = vunpack.c.h.b16 %v722
    %v798 = vunpack.c.l.b16 %v723
    %v799 = vunpack.c.h.b16 %v723
    %v800 = vunpack.c.l.b16 %v724
    %v801 = vunpack.c.h.b16 %v724
    %v802 = vunpack.c.l.b16 %v725
    %v803 = vunpack.c.h.b16 %v725
    %v804 = vunpack.c.l.b16 %v726
    %v805 = vunpack.c.h.b16 %v726
    %v806 = vunpack.c.l.b16 %v727
    %v807 = vunpack.c.h.b16 %v727
    %v808 = vunpack.c.l.b16 %v728
    %v809 = vunpack.c.h.b16 %v728
    %v810 = vunpack.c.l.b16 %v729
    %v811 = vunpack.c.h.b16 %v729
    %v812 = vunpack.c.l.b16 %v730
    %v813 = vunpack.c.h.b16 %v730
    %v814 = vunpack.c.l.b16 %v731
    %v815 = vunpack.c.h.b16 %v731
    %v816 = vunpack.c.l.b16 %v732
    %v817 = vunpack.c.h.b16 %v732
    %v818 = vunpack.c.l.b16 %v733
    %v819 = vunpack.c.h.b16 %v733
    %v820 = vunpack.c.l.b16 %v734
    %v821 = vunpack.c.h.b16 %v734
    %v822 = vunpack.c.l.b16 %v735
    %v823 = vunpack.c.h.b16 %v735
    %v824 = vunpack.c.l.b16 %v736
    %v825 = vunpack.c.h.b16 %v736
    %v826 = vunpack.c.l.b16 %v737
    %v827 = vunpack.c.h.b16 %v737
    %v828 = vunpack.c.l.b16 %v738
    %v829 = vunpack.c.h.b16 %v738
    %v830 = vunpack.c.l.b16 %v739
    %v831 = vunpack.c.h.b16 %v739
    %v832 = vunpack.c.l.b16 %v740
    %v833 = vunpack.c.h.b16 %v740
    %v834 = vunpack.c.l.b16 %v741
    %v835 = vunpack.c.h.b16 %v741
    %v836 = vunpack.c.l.b16 %v742
    %v837 = vunpack.c.h.b16 %v742
    %v838 = vunpack.c.l.b16 %v743
    %v839 = vunpack.c.h.b16 %v743
    %v840 = vpack.c.b16 %v778, %v776
    %v841 = vpack.c.b16 %v779, %v777
    %v842 = vpack.c.b16 %v782, %v780
    %v843 = vpack.c.b16 %v783, %v781
    %v844 = vpack.c.b16 %v786, %v784
    %v845 = vpack.c.b16 %v787, %v785
    %v846 = vpack.c.b16 %v790, %v788
    %v847 = vpack.c.b16 %v791, %v789
    %v848 = vpack.c.b16 %v794, %v792
    %v849 = vpack.c.b16 %v795, %v793
    %v850 = vpack.c.b16 %v798, %v796
    %v851 = vpack.c.b16 %v799, %v797
    %v852 = vpack.c.b16 %v802, %v800
    %v853 = vpack.c.b16 %v803, %v801
    %v854 = vpack.c.b16 %v806, %v804
    %v855 = vpack.c.b16 %v807, %v805
    %v856 = vpack.c.b16 %v810, %v808
    %v857 = vpack.c.b16 %v811, %v809
    %v858 = vpack.c.b16 %v814, %v812
    %v859 = vpack.c.b16 %v815, %v813
    %v860 = vpack.c.b16 %v818, %v816
    %v861 = vpack.c.b16 %v819, %v817
    %v862 = vpack.c.b16 %v822, %v820
    %v863 = vpack.c.b16 %v823, %v821
    %v864 = vpack.c.b16 %v826, %v824
    %v865 = vpack.c.b16 %v827, %v825
    %v866 = vpack.c.b16 %v830, %v828
    %v867 = vpack.c.b16 %v831, %v829
    %v868 = vpack.c.b16 %v834, %v832
    %v869 = vpack.c.b16 %v835, %v833
    %v870 = vpack.c.b16 %v838, %v836
    %v871 = vpack.c.b16 %v839, %v837
    %904 = vmatprep.subr.bf16.mxu0 0
    %905 = vmatpush1.bf16.msra.mxu0 %v702
    %906 = vmatprep.subr.bf16.mxu0 0
    %907 = vmatpush1.bf16.msra.mxu0 %v701
    %908 = vmatprep.subr.bf16.mxu0 0
    %909 = vmatpush1.bf16.msra.mxu0 %v700
    %910 = vmatprep.subr.bf16.mxu0 0
    %911 = vmatpush1.bf16.msra.mxu0 %v699
    %912 = vmatprep.subr.bf16.mxu0 0
    %913 = vmatpush1.bf16.msra.mxu0 %v698
    %914 = vmatprep.subr.bf16.mxu0 0
    %915 = vmatpush1.bf16.msra.mxu0 %v697
    %916 = vmatprep.subr.bf16.mxu0 0
    %917 = vmatpush1.bf16.msra.mxu0 %v696
    %918 = vmatprep.subr.bf16.mxu0 0
    %919 = vmatpush1.bf16.msra.mxu0 %v695
    %920 = vmatprep.subr.bf16.mxu0 0
    %921 = vmatpush2.bf16.msra.mxu0 %v710
    %922 = vmatprep.subr.bf16.mxu0 0
    %923 = vmatpush2.bf16.msra.mxu0 %v709
    %924 = vmatprep.subr.bf16.mxu0 0
    %925 = vmatpush2.bf16.msra.mxu0 %v708
    %926 = vmatprep.subr.bf16.mxu0 0
    %927 = vmatpush2.bf16.msra.mxu0 %v707
    %928 = vmatprep.subr.bf16.mxu0 0
    %929 = vmatpush2.bf16.msra.mxu0 %v706
    %930 = vmatprep.subr.bf16.mxu0 0
    %931 = vmatpush2.bf16.msra.mxu0 %v705
    %932 = vmatprep.subr.bf16.mxu0 0
    %933 = vmatpush2.bf16.msra.mxu0 %v704
    %934 = vmatprep.subr.bf16.mxu0 0
    %935 = vmatpush2.bf16.msra.mxu0 %v703
    %936 = vmatprep.mubr.bf16.mxu0 %v841
    %937 = vmatmul.mubr.bf16.gmra.mxu0 %v840
    %v938 = vpop.f32.mrf.mxu0
    %v939 = vadd.f32 0.0, %v938
    %v940 = vpop.f32.mrf.mxu0
    %v941 = vpop.f32.mrf.mxu0
    %v942 = vadd.f32 0.0, %v941
    %v943 = vpop.f32.mrf.mxu0
    %944 = vmatprep.mubr.bf16.mxu0 %v843
    %945 = vmatmul.mubr.bf16.gmra.mxu0 %v842
    %v946 = vpop.f32.mrf.mxu0
    %v947 = vadd.f32 0.0, %v946
    %v948 = vpop.f32.mrf.mxu0
    %v949 = vpop.f32.mrf.mxu0
    %v950 = vadd.f32 0.0, %v949
    %v951 = vpop.f32.mrf.mxu0
    %952 = vmatprep.mubr.bf16.mxu0 %v845
    %953 = vmatmul.mubr.bf16.gmra.mxu0 %v844
    %v954 = vpop.f32.mrf.mxu0
    %v955 = vadd.f32 0.0, %v954
    %v956 = vpop.f32.mrf.mxu0
    %v957 = vpop.f32.mrf.mxu0
    %v958 = vadd.f32 0.0, %v957
    %v959 = vpop.f32.mrf.mxu0
    %960 = vmatprep.mubr.bf16.mxu0 %v847
    %961 = vmatmul.mubr.bf16.gmra.mxu0 %v846
    %v962 = vpop.f32.mrf.mxu0
    %v963 = vadd.f32 0.0, %v962
    %v964 = vpop.f32.mrf.mxu0
    %v965 = vpop.f32.mrf.mxu0
    %v966 = vadd.f32 0.0, %v965
    %v967 = vpop.f32.mrf.mxu0
    %968 = vmatprep.mubr.bf16.mxu0 %v849
    %969 = vmatmul.mubr.bf16.gmra.mxu0 %v848
    %v970 = vpop.f32.mrf.mxu0
    %v971 = vadd.f32 0.0, %v970
    %v972 = vpop.f32.mrf.mxu0
    %v973 = vpop.f32.mrf.mxu0
    %v974 = vadd.f32 0.0, %v973
    %v975 = vpop.f32.mrf.mxu0
    %976 = vmatprep.mubr.bf16.mxu0 %v851
    %977 = vmatmul.mubr.bf16.gmra.mxu0 %v850
    %v978 = vpop.f32.mrf.mxu0
    %v979 = vadd.f32 0.0, %v978
    %v980 = vpop.f32.mrf.mxu0
    %v981 = vpop.f32.mrf.mxu0
    %v982 = vadd.f32 0.0, %v981
    %v983 = vpop.f32.mrf.mxu0
    %984 = vmatprep.mubr.bf16.mxu0 %v853
    %985 = vmatmul.mubr.bf16.gmra.mxu0 %v852
    %v986 = vpop.f32.mrf.mxu0
    %v987 = vadd.f32 0.0, %v986
    %v988 = vpop.f32.mrf.mxu0
    %v989 = vpop.f32.mrf.mxu0
    %v990 = vadd.f32 0.0, %v989
    %v991 = vpop.f32.mrf.mxu0
    %992 = vmatprep.mubr.bf16.mxu0 %v855
    %993 = vmatmul.mubr.bf16.gmra.mxu0 %v854
    %v994 = vpop.f32.mrf.mxu0
    %v995 = vadd.f32 0.0, %v994
    %v996 = vpop.f32.mrf.mxu0
    %v997 = vpop.f32.mrf.mxu0
    %v998 = vadd.f32 0.0, %v997
    %v999 = vpop.f32.mrf.mxu0
    %1000 = vmatprep.mubr.bf16.mxu0 %v857
    %1001 = vmatmul.mubr.bf16.gmra.mxu0 %v856
    %v1002 = vpop.f32.mrf.mxu0
    %v1003 = vadd.f32 0.0, %v1002
    %v1004 = vpop.f32.mrf.mxu0
    %v1005 = vpop.f32.mrf.mxu0
    %v1006 = vadd.f32 0.0, %v1005
    %v1007 = vpop.f32.mrf.mxu0
    %1008 = vmatprep.mubr.bf16.mxu0 %v859
    %1009 = vmatmul.mubr.bf16.gmra.mxu0 %v858
    %v1010 = vpop.f32.mrf.mxu0
    %v1011 = vadd.f32 0.0, %v1010
    %v1012 = vpop.f32.mrf.mxu0
    %v1013 = vpop.f32.mrf.mxu0
    %v1014 = vadd.f32 0.0, %v1013
    %v1015 = vpop.f32.mrf.mxu0
    %1016 = vmatprep.mubr.bf16.mxu0 %v861
    %1017 = vmatmul.mubr.bf16.gmra.mxu0 %v860
    %v1018 = vpop.f32.mrf.mxu0
    %v1019 = vadd.f32 0.0, %v1018
    %v1020 = vpop.f32.mrf.mxu0
    %v1021 = vpop.f32.mrf.mxu0
    %v1022 = vadd.f32 0.0, %v1021
    %v1023 = vpop.f32.mrf.mxu0
    %1024 = vmatprep.mubr.bf16.mxu0 %v863
    %1025 = vmatmul.mubr.bf16.gmra.mxu0 %v862
    %v1026 = vpop.f32.mrf.mxu0
    %v1027 = vadd.f32 0.0, %v1026
    %v1028 = vpop.f32.mrf.mxu0
    %v1029 = vpop.f32.mrf.mxu0
    %v1030 = vadd.f32 0.0, %v1029
    %v1031 = vpop.f32.mrf.mxu0
    %1032 = vmatprep.mubr.bf16.mxu0 %v865
    %1033 = vmatmul.mubr.bf16.gmra.mxu0 %v864
    %v1034 = vpop.f32.mrf.mxu0
    %v1035 = vadd.f32 0.0, %v1034
    %v1036 = vpop.f32.mrf.mxu0
    %v1037 = vpop.f32.mrf.mxu0
    %v1038 = vadd.f32 0.0, %v1037
    %v1039 = vpop.f32.mrf.mxu0
    %1040 = vmatprep.mubr.bf16.mxu0 %v867
    %1041 = vmatmul.mubr.bf16.gmra.mxu0 %v866
    %v1042 = vpop.f32.mrf.mxu0
    %v1043 = vadd.f32 0.0, %v1042
    %v1044 = vpop.f32.mrf.mxu0
    %v1045 = vpop.f32.mrf.mxu0
    %v1046 = vadd.f32 0.0, %v1045
    %v1047 = vpop.f32.mrf.mxu0
    %1048 = vmatprep.mubr.bf16.mxu0 %v869
    %1049 = vmatmul.mubr.bf16.gmra.mxu0 %v868
    %v1050 = vpop.f32.mrf.mxu0
    %v1051 = vadd.f32 0.0, %v1050
    %v1052 = vpop.f32.mrf.mxu0
    %v1053 = vpop.f32.mrf.mxu0
    %v1054 = vadd.f32 0.0, %v1053
    %v1055 = vpop.f32.mrf.mxu0
    %1056 = vmatprep.mubr.bf16.mxu0 %v871
    %1057 = vmatmul.mubr.bf16.gmra.mxu0 %v870
    %v1058 = vpop.f32.mrf.mxu0
    %v1059 = vadd.f32 0.0, %v1058
    %v1060 = vpop.f32.mrf.mxu0
    %v1061 = vpop.f32.mrf.mxu0
    %v1062 = vadd.f32 0.0, %v1061
    %v1063 = vpop.f32.mrf.mxu0
    %1064 = vdwg.mxu0
    %v1097 = vunpack.c.l.b16 %v437
    %v1098 = vunpack.c.h.b16 %v437
    %v1099 = vunpack.c.l.b16 %v438
    %v1100 = vunpack.c.h.b16 %v438
    %v1101 = vunpack.c.l.b16 %v439
    %v1102 = vunpack.c.h.b16 %v439
    %v1103 = vunpack.c.l.b16 %v440
    %v1104 = vunpack.c.h.b16 %v440
    %v1105 = vunpack.c.l.b16 %v441
    %v1106 = vunpack.c.h.b16 %v441
    %v1107 = vunpack.c.l.b16 %v442
    %v1108 = vunpack.c.h.b16 %v442
    %v1109 = vunpack.c.l.b16 %v443
    %v1110 = vunpack.c.h.b16 %v443
    %v1111 = vunpack.c.l.b16 %v444
    %v1112 = vunpack.c.h.b16 %v444
    %v1113 = vunpack.c.l.b16 %v445
    %v1114 = vunpack.c.h.b16 %v445
    %v1115 = vunpack.c.l.b16 %v446
    %v1116 = vunpack.c.h.b16 %v446
    %v1117 = vunpack.c.l.b16 %v447
    %v1118 = vunpack.c.h.b16 %v447
    %v1119 = vunpack.c.l.b16 %v448
    %v1120 = vunpack.c.h.b16 %v448
    %v1121 = vunpack.c.l.b16 %v449
    %v1122 = vunpack.c.h.b16 %v449
    %v1123 = vunpack.c.l.b16 %v450
    %v1124 = vunpack.c.h.b16 %v450
    %v1125 = vunpack.c.l.b16 %v451
    %v1126 = vunpack.c.h.b16 %v451
    %v1127 = vunpack.c.l.b16 %v452
    %v1128 = vunpack.c.h.b16 %v452
    %v1129 = vunpack.c.l.b16 %v453
    %v1130 = vunpack.c.h.b16 %v453
    %v1131 = vunpack.c.l.b16 %v454
    %v1132 = vunpack.c.h.b16 %v454
    %v1133 = vunpack.c.l.b16 %v455
    %v1134 = vunpack.c.h.b16 %v455
    %v1135 = vunpack.c.l.b16 %v456
    %v1136 = vunpack.c.h.b16 %v456
    %v1137 = vunpack.c.l.b16 %v457
    %v1138 = vunpack.c.h.b16 %v457
    %v1139 = vunpack.c.l.b16 %v458
    %v1140 = vunpack.c.h.b16 %v458
    %v1141 = vunpack.c.l.b16 %v459
    %v1142 = vunpack.c.h.b16 %v459
    %v1143 = vunpack.c.l.b16 %v460
    %v1144 = vunpack.c.h.b16 %v460
    %v1145 = vunpack.c.l.b16 %v461
    %v1146 = vunpack.c.h.b16 %v461
    %v1147 = vunpack.c.l.b16 %v462
    %v1148 = vunpack.c.h.b16 %v462
    %v1149 = vunpack.c.l.b16 %v463
    %v1150 = vunpack.c.h.b16 %v463
    %v1151 = vunpack.c.l.b16 %v464
    %v1152 = vunpack.c.h.b16 %v464
    %v1153 = vunpack.c.l.b16 %v465
    %v1154 = vunpack.c.h.b16 %v465
    %v1155 = vunpack.c.l.b16 %v466
    %v1156 = vunpack.c.h.b16 %v466
    %v1157 = vunpack.c.l.b16 %v467
    %v1158 = vunpack.c.h.b16 %v467
    %v1159 = vunpack.c.l.b16 %v468
    %v1160 = vunpack.c.h.b16 %v468
    %v1161 = vpack.c.b16 %v1099, %v1097
    %v1162 = vpack.c.b16 %v1100, %v1098
    %v1163 = vpack.c.b16 %v1103, %v1101
    %v1164 = vpack.c.b16 %v1104, %v1102
    %v1165 = vpack.c.b16 %v1107, %v1105
    %v1166 = vpack.c.b16 %v1108, %v1106
    %v1167 = vpack.c.b16 %v1111, %v1109
    %v1168 = vpack.c.b16 %v1112, %v1110
    %v1169 = vpack.c.b16 %v1115, %v1113
    %v1170 = vpack.c.b16 %v1116, %v1114
    %v1171 = vpack.c.b16 %v1119, %v1117
    %v1172 = vpack.c.b16 %v1120, %v1118
    %v1173 = vpack.c.b16 %v1123, %v1121
    %v1174 = vpack.c.b16 %v1124, %v1122
    %v1175 = vpack.c.b16 %v1127, %v1125
    %v1176 = vpack.c.b16 %v1128, %v1126
    %v1177 = vpack.c.b16 %v1131, %v1129
    %v1178 = vpack.c.b16 %v1132, %v1130
    %v1179 = vpack.c.b16 %v1135, %v1133
    %v1180 = vpack.c.b16 %v1136, %v1134
    %v1181 = vpack.c.b16 %v1139, %v1137
    %v1182 = vpack.c.b16 %v1140, %v1138
    %v1183 = vpack.c.b16 %v1143, %v1141
    %v1184 = vpack.c.b16 %v1144, %v1142
    %v1185 = vpack.c.b16 %v1147, %v1145
    %v1186 = vpack.c.b16 %v1148, %v1146
    %v1187 = vpack.c.b16 %v1151, %v1149
    %v1188 = vpack.c.b16 %v1152, %v1150
    %v1189 = vpack.c.b16 %v1155, %v1153
    %v1190 = vpack.c.b16 %v1156, %v1154
    %v1191 = vpack.c.b16 %v1159, %v1157
    %v1192 = vpack.c.b16 %v1160, %v1158
    %1225 = vmatprep.subr.bf16.mxu0 0
    %1226 = vmatpush1.bf16.msra.mxu0 %v428
    %1227 = vmatprep.subr.bf16.mxu0 0
    %1228 = vmatpush1.bf16.msra.mxu0 %v427
    %1229 = vmatprep.subr.bf16.mxu0 0
    %1230 = vmatpush1.bf16.msra.mxu0 %v426
    %1231 = vmatprep.subr.bf16.mxu0 0
    %1232 = vmatpush1.bf16.msra.mxu0 %v425
    %1233 = vmatprep.subr.bf16.mxu0 0
    %1234 = vmatpush1.bf16.msra.mxu0 %v424
    %1235 = vmatprep.subr.bf16.mxu0 0
    %1236 = vmatpush1.bf16.msra.mxu0 %v423
    %1237 = vmatprep.subr.bf16.mxu0 0
    %1238 = vmatpush1.bf16.msra.mxu0 %v422
    %1239 = vmatprep.subr.bf16.mxu0 0
    %1240 = vmatpush1.bf16.msra.mxu0 %v421
    %1241 = vmatprep.subr.bf16.mxu0 0
    %1242 = vmatpush2.bf16.msra.mxu0 %v436
    %1243 = vmatprep.subr.bf16.mxu0 0
    %1244 = vmatpush2.bf16.msra.mxu0 %v435
    %1245 = vmatprep.subr.bf16.mxu0 0
    %1246 = vmatpush2.bf16.msra.mxu0 %v434
    %1247 = vmatprep.subr.bf16.mxu0 0
    %1248 = vmatpush2.bf16.msra.mxu0 %v433
    %1249 = vmatprep.subr.bf16.mxu0 0
    %1250 = vmatpush2.bf16.msra.mxu0 %v432
    %1251 = vmatprep.subr.bf16.mxu0 0
    %1252 = vmatpush2.bf16.msra.mxu0 %v431
    %1253 = vmatprep.subr.bf16.mxu0 0
    %1254 = vmatpush2.bf16.msra.mxu0 %v430
    %1255 = vmatprep.subr.bf16.mxu0 0
    %1256 = vmatpush2.bf16.msra.mxu0 %v429
    %1257 = vmatprep.mubr.bf16.mxu0 %v1162
    %1258 = vmatmul.mubr.bf16.gmra.mxu0 %v1161
    %v1259 = vpop.f32.mrf.mxu0
    %v1260 = vadd.f32 %v939, %v1259
    %v1261 = vpop.f32.mrf.mxu0
    %v1262 = vpop.f32.mrf.mxu0
    %v1263 = vadd.f32 %v942, %v1262
    %v1264 = vpop.f32.mrf.mxu0
    %1265 = vmatprep.mubr.bf16.mxu0 %v1164
    %1266 = vmatmul.mubr.bf16.gmra.mxu0 %v1163
    %v1267 = vpop.f32.mrf.mxu0
    %v1268 = vadd.f32 %v947, %v1267
    %v1269 = vpop.f32.mrf.mxu0
    %v1270 = vpop.f32.mrf.mxu0
    %v1271 = vadd.f32 %v950, %v1270
    %v1272 = vpop.f32.mrf.mxu0
    %1273 = vmatprep.mubr.bf16.mxu0 %v1166
    %1274 = vmatmul.mubr.bf16.gmra.mxu0 %v1165
    %v1275 = vpop.f32.mrf.mxu0
    %v1276 = vadd.f32 %v955, %v1275
    %v1277 = vpop.f32.mrf.mxu0
    %v1278 = vpop.f32.mrf.mxu0
    %v1279 = vadd.f32 %v958, %v1278
    %v1280 = vpop.f32.mrf.mxu0
    %1281 = vmatprep.mubr.bf16.mxu0 %v1168
    %1282 = vmatmul.mubr.bf16.gmra.mxu0 %v1167
    %v1283 = vpop.f32.mrf.mxu0
    %v1284 = vadd.f32 %v963, %v1283
    %v1285 = vpop.f32.mrf.mxu0
    %v1286 = vpop.f32.mrf.mxu0
    %v1287 = vadd.f32 %v966, %v1286
    %v1288 = vpop.f32.mrf.mxu0
    %1289 = vmatprep.mubr.bf16.mxu0 %v1170
    %1290 = vmatmul.mubr.bf16.gmra.mxu0 %v1169
    %v1291 = vpop.f32.mrf.mxu0
    %v1292 = vadd.f32 %v971, %v1291
    %v1293 = vpop.f32.mrf.mxu0
    %v1294 = vpop.f32.mrf.mxu0
    %v1295 = vadd.f32 %v974, %v1294
    %v1296 = vpop.f32.mrf.mxu0
    %1297 = vmatprep.mubr.bf16.mxu0 %v1172
    %1298 = vmatmul.mubr.bf16.gmra.mxu0 %v1171
    %v1299 = vpop.f32.mrf.mxu0
    %v1300 = vadd.f32 %v979, %v1299
    %v1301 = vpop.f32.mrf.mxu0
    %v1302 = vpop.f32.mrf.mxu0
    %v1303 = vadd.f32 %v982, %v1302
    %v1304 = vpop.f32.mrf.mxu0
    %1305 = vmatprep.mubr.bf16.mxu0 %v1174
    %1306 = vmatmul.mubr.bf16.gmra.mxu0 %v1173
    %v1307 = vpop.f32.mrf.mxu0
    %v1308 = vadd.f32 %v987, %v1307
    %v1309 = vpop.f32.mrf.mxu0
    %v1310 = vpop.f32.mrf.mxu0
    %v1311 = vadd.f32 %v990, %v1310
    %v1312 = vpop.f32.mrf.mxu0
    %1313 = vmatprep.mubr.bf16.mxu0 %v1176
    %1314 = vmatmul.mubr.bf16.gmra.mxu0 %v1175
    %v1315 = vpop.f32.mrf.mxu0
    %v1316 = vadd.f32 %v995, %v1315
    %v1317 = vpop.f32.mrf.mxu0
    %v1318 = vpop.f32.mrf.mxu0
    %v1319 = vadd.f32 %v998, %v1318
    %v1320 = vpop.f32.mrf.mxu0
    %1321 = vmatprep.mubr.bf16.mxu0 %v1178
    %1322 = vmatmul.mubr.bf16.gmra.mxu0 %v1177
    %v1323 = vpop.f32.mrf.mxu0
    %v1324 = vadd.f32 %v1003, %v1323
    %v1325 = vpop.f32.mrf.mxu0
    %v1326 = vpop.f32.mrf.mxu0
    %v1327 = vadd.f32 %v1006, %v1326
    %v1328 = vpop.f32.mrf.mxu0
    %1329 = vmatprep.mubr.bf16.mxu0 %v1180
    %1330 = vmatmul.mubr.bf16.gmra.mxu0 %v1179
    %v1331 = vpop.f32.mrf.mxu0
    %v1332 = vadd.f32 %v1011, %v1331
    %v1333 = vpop.f32.mrf.mxu0
    %v1334 = vpop.f32.mrf.mxu0
    %v1335 = vadd.f32 %v1014, %v1334
    %v1336 = vpop.f32.mrf.mxu0
    %1337 = vmatprep.mubr.bf16.mxu0 %v1182
    %1338 = vmatmul.mubr.bf16.gmra.mxu0 %v1181
    %v1339 = vpop.f32.mrf.mxu0
    %v1340 = vadd.f32 %v1019, %v1339
    %v1341 = vpop.f32.mrf.mxu0
    %v1342 = vpop.f32.mrf.mxu0
    %v1343 = vadd.f32 %v1022, %v1342
    %v1344 = vpop.f32.mrf.mxu0
    %1345 = vmatprep.mubr.bf16.mxu0 %v1184
    %1346 = vmatmul.mubr.bf16.gmra.mxu0 %v1183
    %v1347 = vpop.f32.mrf.mxu0
    %v1348 = vadd.f32 %v1027, %v1347
    %v1349 = vpop.f32.mrf.mxu0
    %v1350 = vpop.f32.mrf.mxu0
    %v1351 = vadd.f32 %v1030, %v1350
    %v1352 = vpop.f32.mrf.mxu0
    %1353 = vmatprep.mubr.bf16.mxu0 %v1186
    %1354 = vmatmul.mubr.bf16.gmra.mxu0 %v1185
    %v1355 = vpop.f32.mrf.mxu0
    %v1356 = vadd.f32 %v1035, %v1355
    %v1357 = vpop.f32.mrf.mxu0
    %v1358 = vpop.f32.mrf.mxu0
    %v1359 = vadd.f32 %v1038, %v1358
    %v1360 = vpop.f32.mrf.mxu0
    %1361 = vmatprep.mubr.bf16.mxu0 %v1188
    %1362 = vmatmul.mubr.bf16.gmra.mxu0 %v1187
    %v1363 = vpop.f32.mrf.mxu0
    %v1364 = vadd.f32 %v1043, %v1363
    %v1365 = vpop.f32.mrf.mxu0
    %v1366 = vpop.f32.mrf.mxu0
    %v1367 = vadd.f32 %v1046, %v1366
    %v1368 = vpop.f32.mrf.mxu0
    %1369 = vmatprep.mubr.bf16.mxu0 %v1190
    %1370 = vmatmul.mubr.bf16.gmra.mxu0 %v1189
    %v1371 = vpop.f32.mrf.mxu0
    %v1372 = vadd.f32 %v1051, %v1371
    %v1373 = vpop.f32.mrf.mxu0
    %v1374 = vpop.f32.mrf.mxu0
    %v1375 = vadd.f32 %v1054, %v1374
    %v1376 = vpop.f32.mrf.mxu0
    %1377 = vmatprep.mubr.bf16.mxu0 %v1192
    %1378 = vmatmul.mubr.bf16.gmra.mxu0 %v1191
    %v1379 = vpop.f32.mrf.mxu0
    %v1380 = vadd.f32 %v1059, %v1379
    %v1381 = vpop.f32.mrf.mxu0
    %v1382 = vpop.f32.mrf.mxu0
    %v1383 = vadd.f32 %v1062, %v1382
    %v1384 = vpop.f32.mrf.mxu0
    %1385 = vdwg.mxu0
    %s1386 = scalar_lea.vmem [#allocation4], 128
    %v1387 = vld [vmem:[%s1386] sm:$0xf]
    %v1388 = vld [vmem:[%s1386 + $0x4] sm:$0xf]
    %v1389 = vld [vmem:[%s1386 + $0x8] sm:$0xf]
    %v1390 = vld [vmem:[%s1386 + $0xc] sm:$0xf]
    %v1391 = vld [vmem:[%s1386 + $0x10] sm:$0xf]
    %v1392 = vld [vmem:[%s1386 + $0x14] sm:$0xf]
    %v1393 = vld [vmem:[%s1386 + $0x18] sm:$0xf]
    %v1394 = vld [vmem:[%s1386 + $0x1c] sm:$0xf]
    %v1395 = vld [vmem:[%s1386 + $0x20] sm:$0xf]
    %v1396 = vld [vmem:[%s1386 + $0x24] sm:$0xf]
    %v1397 = vld [vmem:[%s1386 + $0x28] sm:$0xf]
    %v1398 = vld [vmem:[%s1386 + $0x2c] sm:$0xf]
    %v1399 = vld [vmem:[%s1386 + $0x30] sm:$0xf]
    %v1400 = vld [vmem:[%s1386 + $0x34] sm:$0xf]
    %v1401 = vld [vmem:[%s1386 + $0x38] sm:$0xf]
    %v1402 = vld [vmem:[%s1386 + $0x3c] sm:$0xf]
    %v1419 = vunpack.c.l.b16 %v1387
    %v1420 = vunpack.c.l.b16 %v1388
    %v1421 = vunpack.c.l.b16 %v1389
    %v1422 = vunpack.c.l.b16 %v1390
    %v1423 = vunpack.c.l.b16 %v1391
    %v1424 = vunpack.c.l.b16 %v1392
    %v1425 = vunpack.c.l.b16 %v1393
    %v1426 = vunpack.c.l.b16 %v1394
    %v1427 = vunpack.c.l.b16 %v1395
    %v1428 = vunpack.c.l.b16 %v1396
    %v1429 = vunpack.c.l.b16 %v1397
    %v1430 = vunpack.c.l.b16 %v1398
    %v1431 = vunpack.c.l.b16 %v1399
    %v1432 = vunpack.c.l.b16 %v1400
    %v1433 = vunpack.c.l.b16 %v1401
    %v1434 = vunpack.c.l.b16 %v1402
    %v1435 = vpack.c.b16 %v1420, %v1419
    %v1436 = vpack.c.b16 %v1422, %v1421
    %v1437 = vpack.c.b16 %v1424, %v1423
    %v1438 = vpack.c.b16 %v1426, %v1425
    %v1439 = vpack.c.b16 %v1428, %v1427
    %v1440 = vpack.c.b16 %v1430, %v1429
    %v1441 = vpack.c.b16 %v1432, %v1431
    %v1442 = vpack.c.b16 %v1434, %v1433
    %1451 = vmatprep.subr.bf16.mxu0 0
    %1452 = vmatpush1.bf16.msra.mxu0 %v1442
    %1453 = vmatprep.subr.bf16.mxu0 0
    %1454 = vmatpush1.bf16.msra.mxu0 %v1441
    %1455 = vmatprep.subr.bf16.mxu0 0
    %1456 = vmatpush1.bf16.msra.mxu0 %v1440
    %1457 = vmatprep.subr.bf16.mxu0 0
    %1458 = vmatpush1.bf16.msra.mxu0 %v1439
    %1459 = vmatprep.subr.bf16.mxu0 0
    %1460 = vmatpush1.bf16.msra.mxu0 %v1438
    %1461 = vmatprep.subr.bf16.mxu0 0
    %1462 = vmatpush1.bf16.msra.mxu0 %v1437
    %1463 = vmatprep.subr.bf16.mxu0 0
    %1464 = vmatpush1.bf16.msra.mxu0 %v1436
    %1465 = vmatprep.subr.bf16.mxu0 0
    %1466 = vmatpush1.bf16.msra.mxu0 %v1435
    %1467 = vmatprep.subr.bf16.mxu0 0
    %1468 = vmatpush2.bf16.msra.mxu0 0
    %1469 = vmatprep.subr.bf16.mxu0 0
    %1470 = vmatpush2.bf16.msra.mxu0 0
    %1471 = vmatprep.subr.bf16.mxu0 0
    %1472 = vmatpush2.bf16.msra.mxu0 0
    %1473 = vmatprep.subr.bf16.mxu0 0
    %1474 = vmatpush2.bf16.msra.mxu0 0
    %1475 = vmatprep.subr.bf16.mxu0 0
    %1476 = vmatpush2.bf16.msra.mxu0 0
    %1477 = vmatprep.subr.bf16.mxu0 0
    %1478 = vmatpush2.bf16.msra.mxu0 0
    %1479 = vmatprep.subr.bf16.mxu0 0
    %1480 = vmatpush2.bf16.msra.mxu0 0
    %1481 = vmatprep.subr.bf16.mxu0 0
    %1482 = vmatpush2.bf16.msra.mxu0 0
    %1483 = vmatprep.mubr.bf16.mxu0 0
    %1484 = vmatmul.mubr.bf16.gmra.mxu0 %v180
    %v1485 = vpop.f32.mrf.mxu0
    %v1486 = vadd.f32 0.0, %v1485
    %v1487 = vpop.f32.mrf.mxu0
    %v1488 = vpop.f32.mrf.mxu0
    %v1489 = vadd.f32 0.0, %v1488
    %v1490 = vpop.f32.mrf.mxu0
    %1491 = vmatprep.mubr.bf16.mxu0 0
    %1492 = vmatmul.mubr.bf16.gmra.mxu0 %v181
    %v1493 = vpop.f32.mrf.mxu0
    %v1494 = vadd.f32 0.0, %v1493
    %v1495 = vpop.f32.mrf.mxu0
    %v1496 = vpop.f32.mrf.mxu0
    %v1497 = vadd.f32 0.0, %v1496
    %v1498 = vpop.f32.mrf.mxu0
    %1499 = vmatprep.mubr.bf16.mxu0 0
    %1500 = vmatmul.mubr.bf16.gmra.mxu0 %v182
    %v1501 = vpop.f32.mrf.mxu0
    %v1502 = vadd.f32 0.0, %v1501
    %v1503 = vpop.f32.mrf.mxu0
    %v1504 = vpop.f32.mrf.mxu0
    %v1505 = vadd.f32 0.0, %v1504
    %v1506 = vpop.f32.mrf.mxu0
    %1507 = vmatprep.mubr.bf16.mxu0 0
    %1508 = vmatmul.mubr.bf16.gmra.mxu0 %v183
    %v1509 = vpop.f32.mrf.mxu0
    %v1510 = vadd.f32 0.0, %v1509
    %v1511 = vpop.f32.mrf.mxu0
    %v1512 = vpop.f32.mrf.mxu0
    %v1513 = vadd.f32 0.0, %v1512
    %v1514 = vpop.f32.mrf.mxu0
    %1515 = vmatprep.mubr.bf16.mxu0 0
    %1516 = vmatmul.mubr.bf16.gmra.mxu0 %v184
    %v1517 = vpop.f32.mrf.mxu0
    %v1518 = vadd.f32 0.0, %v1517
    %v1519 = vpop.f32.mrf.mxu0
    %v1520 = vpop.f32.mrf.mxu0
    %v1521 = vadd.f32 0.0, %v1520
    %v1522 = vpop.f32.mrf.mxu0
    %1523 = vmatprep.mubr.bf16.mxu0 0
    %1524 = vmatmul.mubr.bf16.gmra.mxu0 %v185
    %v1525 = vpop.f32.mrf.mxu0
    %v1526 = vadd.f32 0.0, %v1525
    %v1527 = vpop.f32.mrf.mxu0
    %v1528 = vpop.f32.mrf.mxu0
    %v1529 = vadd.f32 0.0, %v1528
    %v1530 = vpop.f32.mrf.mxu0
    %1531 = vmatprep.mubr.bf16.mxu0 0
    %1532 = vmatmul.mubr.bf16.gmra.mxu0 %v186
    %v1533 = vpop.f32.mrf.mxu0
    %v1534 = vadd.f32 0.0, %v1533
    %v1535 = vpop.f32.mrf.mxu0
    %v1536 = vpop.f32.mrf.mxu0
    %v1537 = vadd.f32 0.0, %v1536
    %v1538 = vpop.f32.mrf.mxu0
    %1539 = vmatprep.mubr.bf16.mxu0 0
    %1540 = vmatmul.mubr.bf16.gmra.mxu0 %v187
    %v1541 = vpop.f32.mrf.mxu0
    %v1542 = vadd.f32 0.0, %v1541
    %v1543 = vpop.f32.mrf.mxu0
    %v1544 = vpop.f32.mrf.mxu0
    %v1545 = vadd.f32 0.0, %v1544
    %v1546 = vpop.f32.mrf.mxu0
    %1547 = vmatprep.mubr.bf16.mxu0 0
    %1548 = vmatmul.mubr.bf16.gmra.mxu0 %v188
    %v1549 = vpop.f32.mrf.mxu0
    %v1550 = vadd.f32 0.0, %v1549
    %v1551 = vpop.f32.mrf.mxu0
    %v1552 = vpop.f32.mrf.mxu0
    %v1553 = vadd.f32 0.0, %v1552
    %v1554 = vpop.f32.mrf.mxu0
    %1555 = vmatprep.mubr.bf16.mxu0 0
    %1556 = vmatmul.mubr.bf16.gmra.mxu0 %v189
    %v1557 = vpop.f32.mrf.mxu0
    %v1558 = vadd.f32 0.0, %v1557
    %v1559 = vpop.f32.mrf.mxu0
    %v1560 = vpop.f32.mrf.mxu0
    %v1561 = vadd.f32 0.0, %v1560
    %v1562 = vpop.f32.mrf.mxu0
    %1563 = vmatprep.mubr.bf16.mxu0 0
    %1564 = vmatmul.mubr.bf16.gmra.mxu0 %v190
    %v1565 = vpop.f32.mrf.mxu0
    %v1566 = vadd.f32 0.0, %v1565
    %v1567 = vpop.f32.mrf.mxu0
    %v1568 = vpop.f32.mrf.mxu0
    %v1569 = vadd.f32 0.0, %v1568
    %v1570 = vpop.f32.mrf.mxu0
    %1571 = vmatprep.mubr.bf16.mxu0 0
    %1572 = vmatmul.mubr.bf16.gmra.mxu0 %v191
    %v1573 = vpop.f32.mrf.mxu0
    %v1574 = vadd.f32 0.0, %v1573
    %v1575 = vpop.f32.mrf.mxu0
    %v1576 = vpop.f32.mrf.mxu0
    %v1577 = vadd.f32 0.0, %v1576
    %v1578 = vpop.f32.mrf.mxu0
    %1579 = vmatprep.mubr.bf16.mxu0 0
    %1580 = vmatmul.mubr.bf16.gmra.mxu0 %v192
    %v1581 = vpop.f32.mrf.mxu0
    %v1582 = vadd.f32 0.0, %v1581
    %v1583 = vpop.f32.mrf.mxu0
    %v1584 = vpop.f32.mrf.mxu0
    %v1585 = vadd.f32 0.0, %v1584
    %v1586 = vpop.f32.mrf.mxu0
    %1587 = vmatprep.mubr.bf16.mxu0 0
    %1588 = vmatmul.mubr.bf16.gmra.mxu0 %v193
    %v1589 = vpop.f32.mrf.mxu0
    %v1590 = vadd.f32 0.0, %v1589
    %v1591 = vpop.f32.mrf.mxu0
    %v1592 = vpop.f32.mrf.mxu0
    %v1593 = vadd.f32 0.0, %v1592
    %v1594 = vpop.f32.mrf.mxu0
    %1595 = vmatprep.mubr.bf16.mxu0 0
    %1596 = vmatmul.mubr.bf16.gmra.mxu0 %v194
    %v1597 = vpop.f32.mrf.mxu0
    %v1598 = vadd.f32 0.0, %v1597
    %v1599 = vpop.f32.mrf.mxu0
    %v1600 = vpop.f32.mrf.mxu0
    %v1601 = vadd.f32 0.0, %v1600
    %v1602 = vpop.f32.mrf.mxu0
    %1603 = vmatprep.mubr.bf16.mxu0 0
    %1604 = vmatmul.mubr.bf16.gmra.mxu0 %v195
    %v1605 = vpop.f32.mrf.mxu0
    %v1606 = vadd.f32 0.0, %v1605
    %v1607 = vpop.f32.mrf.mxu0
    %v1608 = vpop.f32.mrf.mxu0
    %v1609 = vadd.f32 0.0, %v1608
    %v1610 = vpop.f32.mrf.mxu0
    %1611 = vdwg.mxu0
    %v1612 = vpack.c.bf16 %v1489, %v1486
    %v1613 = vpack.c.bf16 %v1497, %v1494
    %v1614 = vpack.c.bf16 %v1505, %v1502
    %v1615 = vpack.c.bf16 %v1513, %v1510
    %v1616 = vpack.c.bf16 %v1521, %v1518
    %v1617 = vpack.c.bf16 %v1529, %v1526
    %v1618 = vpack.c.bf16 %v1537, %v1534
    %v1619 = vpack.c.bf16 %v1545, %v1542
    %v1620 = vpack.c.bf16 %v1553, %v1550
    %v1621 = vpack.c.bf16 %v1561, %v1558
    %v1622 = vpack.c.bf16 %v1569, %v1566
    %v1623 = vpack.c.bf16 %v1577, %v1574
    %v1624 = vpack.c.bf16 %v1585, %v1582
    %v1625 = vpack.c.bf16 %v1593, %v1590
    %v1626 = vpack.c.bf16 %v1601, %v1598
    %v1627 = vpack.c.bf16 %v1609, %v1606
    %s1628 = scalar_lea.vmem [#allocation2], 512
    %v1629 = vld [vmem:[%s1628] sm:$0xff]
    %v1630 = vld [vmem:[%s1628 + $0x8] sm:$0xff]
    %v1631 = vld [vmem:[%s1628 + $0x10] sm:$0xff]
    %v1632 = vld [vmem:[%s1628 + $0x18] sm:$0xff]
    %v1633 = vld [vmem:[%s1628 + $0x20] sm:$0xff]
    %v1634 = vld [vmem:[%s1628 + $0x28] sm:$0xff]
    %v1635 = vld [vmem:[%s1628 + $0x30] sm:$0xff]
    %v1636 = vld [vmem:[%s1628 + $0x38] sm:$0xff]
    %v1637 = vld [vmem:[%s1628 + $0x40] sm:$0xff]
    %v1638 = vld [vmem:[%s1628 + $0x48] sm:$0xff]
    %v1639 = vld [vmem:[%s1628 + $0x50] sm:$0xff]
    %v1640 = vld [vmem:[%s1628 + $0x58] sm:$0xff]
    %v1641 = vld [vmem:[%s1628 + $0x60] sm:$0xff]
    %v1642 = vld [vmem:[%s1628 + $0x68] sm:$0xff]
    %v1643 = vld [vmem:[%s1628 + $0x70] sm:$0xff]
    %v1644 = vld [vmem:[%s1628 + $0x78] sm:$0xff]
    %v1645 = vld [vmem:[%s1628 + $0x80] sm:$0xff]
    %v1646 = vld [vmem:[%s1628 + $0x88] sm:$0xff]
    %v1647 = vld [vmem:[%s1628 + $0x90] sm:$0xff]
    %v1648 = vld [vmem:[%s1628 + $0x98] sm:$0xff]
    %v1649 = vld [vmem:[%s1628 + $0xa0] sm:$0xff]
    %v1650 = vld [vmem:[%s1628 + $0xa8] sm:$0xff]
    %v1651 = vld [vmem:[%s1628 + $0xb0] sm:$0xff]
    %v1652 = vld [vmem:[%s1628 + $0xb8] sm:$0xff]
    %v1653 = vld [vmem:[%s1628 + $0xc0] sm:$0xff]
    %v1654 = vld [vmem:[%s1628 + $0xc8] sm:$0xff]
    %v1655 = vld [vmem:[%s1628 + $0xd0] sm:$0xff]
    %v1656 = vld [vmem:[%s1628 + $0xd8] sm:$0xff]
    %v1657 = vld [vmem:[%s1628 + $0xe0] sm:$0xff]
    %v1658 = vld [vmem:[%s1628 + $0xe8] sm:$0xff]
    %v1659 = vld [vmem:[%s1628 + $0xf0] sm:$0xff]
    %v1660 = vld [vmem:[%s1628 + $0xf8] sm:$0xff]
    %v1693 = vunpack.c.l.b16 %v1629
    %v1694 = vunpack.c.h.b16 %v1629
    %v1695 = vunpack.c.l.b16 %v1630
    %v1696 = vunpack.c.h.b16 %v1630
    %v1697 = vunpack.c.l.b16 %v1631
    %v1698 = vunpack.c.h.b16 %v1631
    %v1699 = vunpack.c.l.b16 %v1632
    %v1700 = vunpack.c.h.b16 %v1632
    %v1701 = vunpack.c.l.b16 %v1633
    %v1702 = vunpack.c.h.b16 %v1633
    %v1703 = vunpack.c.l.b16 %v1634
    %v1704 = vunpack.c.h.b16 %v1634
    %v1705 = vunpack.c.l.b16 %v1635
    %v1706 = vunpack.c.h.b16 %v1635
    %v1707 = vunpack.c.l.b16 %v1636
    %v1708 = vunpack.c.h.b16 %v1636
    %v1709 = vunpack.c.l.b16 %v1637
    %v1710 = vunpack.c.h.b16 %v1637
    %v1711 = vunpack.c.l.b16 %v1638
    %v1712 = vunpack.c.h.b16 %v1638
    %v1713 = vunpack.c.l.b16 %v1639
    %v1714 = vunpack.c.h.b16 %v1639
    %v1715 = vunpack.c.l.b16 %v1640
    %v1716 = vunpack.c.h.b16 %v1640
    %v1717 = vunpack.c.l.b16 %v1641
    %v1718 = vunpack.c.h.b16 %v1641
    %v1719 = vunpack.c.l.b16 %v1642
    %v1720 = vunpack.c.h.b16 %v1642
    %v1721 = vunpack.c.l.b16 %v1643
    %v1722 = vunpack.c.h.b16 %v1643
    %v1723 = vunpack.c.l.b16 %v1644
    %v1724 = vunpack.c.h.b16 %v1644
    %v1725 = vunpack.c.l.b16 %v1645
    %v1726 = vunpack.c.h.b16 %v1645
    %v1727 = vunpack.c.l.b16 %v1646
    %v1728 = vunpack.c.h.b16 %v1646
    %v1729 = vunpack.c.l.b16 %v1647
    %v1730 = vunpack.c.h.b16 %v1647
    %v1731 = vunpack.c.l.b16 %v1648
    %v1732 = vunpack.c.h.b16 %v1648
    %v1733 = vunpack.c.l.b16 %v1649
    %v1734 = vunpack.c.h.b16 %v1649
    %v1735 = vunpack.c.l.b16 %v1650
    %v1736 = vunpack.c.h.b16 %v1650
    %v1737 = vunpack.c.l.b16 %v1651
    %v1738 = vunpack.c.h.b16 %v1651
    %v1739 = vunpack.c.l.b16 %v1652
    %v1740 = vunpack.c.h.b16 %v1652
    %v1741 = vunpack.c.l.b16 %v1653
    %v1742 = vunpack.c.h.b16 %v1653
    %v1743 = vunpack.c.l.b16 %v1654
    %v1744 = vunpack.c.h.b16 %v1654
    %v1745 = vunpack.c.l.b16 %v1655
    %v1746 = vunpack.c.h.b16 %v1655
    %v1747 = vunpack.c.l.b16 %v1656
    %v1748 = vunpack.c.h.b16 %v1656
    %v1749 = vunpack.c.l.b16 %v1657
    %v1750 = vunpack.c.h.b16 %v1657
    %v1751 = vunpack.c.l.b16 %v1658
    %v1752 = vunpack.c.h.b16 %v1658
    %v1753 = vunpack.c.l.b16 %v1659
    %v1754 = vunpack.c.h.b16 %v1659
    %v1755 = vunpack.c.l.b16 %v1660
    %v1756 = vunpack.c.h.b16 %v1660
    %v1757 = vpack.c.b16 %v1695, %v1693
    %v1758 = vpack.c.b16 %v1696, %v1694
    %v1759 = vpack.c.b16 %v1699, %v1697
    %v1760 = vpack.c.b16 %v1700, %v1698
    %v1761 = vpack.c.b16 %v1703, %v1701
    %v1762 = vpack.c.b16 %v1704, %v1702
    %v1763 = vpack.c.b16 %v1707, %v1705
    %v1764 = vpack.c.b16 %v1708, %v1706
    %v1765 = vpack.c.b16 %v1711, %v1709
    %v1766 = vpack.c.b16 %v1712, %v1710
    %v1767 = vpack.c.b16 %v1715, %v1713
    %v1768 = vpack.c.b16 %v1716, %v1714
    %v1769 = vpack.c.b16 %v1719, %v1717
    %v1770 = vpack.c.b16 %v1720, %v1718
    %v1771 = vpack.c.b16 %v1723, %v1721
    %v1772 = vpack.c.b16 %v1724, %v1722
    %v1773 = vpack.c.b16 %v1727, %v1725
    %v1774 = vpack.c.b16 %v1728, %v1726
    %v1775 = vpack.c.b16 %v1731, %v1729
    %v1776 = vpack.c.b16 %v1732, %v1730
    %v1777 = vpack.c.b16 %v1735, %v1733
    %v1778 = vpack.c.b16 %v1736, %v1734
    %v1779 = vpack.c.b16 %v1739, %v1737
    %v1780 = vpack.c.b16 %v1740, %v1738
    %v1781 = vpack.c.b16 %v1743, %v1741
    %v1782 = vpack.c.b16 %v1744, %v1742
    %v1783 = vpack.c.b16 %v1747, %v1745
    %v1784 = vpack.c.b16 %v1748, %v1746
    %v1785 = vpack.c.b16 %v1751, %v1749
    %v1786 = vpack.c.b16 %v1752, %v1750
    %v1787 = vpack.c.b16 %v1755, %v1753
    %v1788 = vpack.c.b16 %v1756, %v1754
    %1821 = vmatprep.subr.bf16.mxu0 0
    %1822 = vmatpush1.bf16.msra.mxu0 %v1619
    %1823 = vmatprep.subr.bf16.mxu0 0
    %1824 = vmatpush1.bf16.msra.mxu0 %v1618
    %1825 = vmatprep.subr.bf16.mxu0 0
    %1826 = vmatpush1.bf16.msra.mxu0 %v1617
    %1827 = vmatprep.subr.bf16.mxu0 0
    %1828 = vmatpush1.bf16.msra.mxu0 %v1616
    %1829 = vmatprep.subr.bf16.mxu0 0
    %1830 = vmatpush1.bf16.msra.mxu0 %v1615
    %1831 = vmatprep.subr.bf16.mxu0 0
    %1832 = vmatpush1.bf16.msra.mxu0 %v1614
    %1833 = vmatprep.subr.bf16.mxu0 0
    %1834 = vmatpush1.bf16.msra.mxu0 %v1613
    %1835 = vmatprep.subr.bf16.mxu0 0
    %1836 = vmatpush1.bf16.msra.mxu0 %v1612
    %1837 = vmatprep.subr.bf16.mxu0 0
    %1838 = vmatpush2.bf16.msra.mxu0 %v1627
    %1839 = vmatprep.subr.bf16.mxu0 0
    %1840 = vmatpush2.bf16.msra.mxu0 %v1626
    %1841 = vmatprep.subr.bf16.mxu0 0
    %1842 = vmatpush2.bf16.msra.mxu0 %v1625
    %1843 = vmatprep.subr.bf16.mxu0 0
    %1844 = vmatpush2.bf16.msra.mxu0 %v1624
    %1845 = vmatprep.subr.bf16.mxu0 0
    %1846 = vmatpush2.bf16.msra.mxu0 %v1623
    %1847 = vmatprep.subr.bf16.mxu0 0
    %1848 = vmatpush2.bf16.msra.mxu0 %v1622
    %1849 = vmatprep.subr.bf16.mxu0 0
    %1850 = vmatpush2.bf16.msra.mxu0 %v1621
    %1851 = vmatprep.subr.bf16.mxu0 0
    %1852 = vmatpush2.bf16.msra.mxu0 %v1620
    %1853 = vmatprep.mubr.bf16.mxu0 %v1758
    %1854 = vmatmul.mubr.bf16.gmra.mxu0 %v1757
    %v1855 = vpop.f32.mrf.mxu0
    %v1856 = vadd.f32 0.0, %v1855
    %v1857 = vpop.f32.mrf.mxu0
    %v1858 = vpop.f32.mrf.mxu0
    %v1859 = vadd.f32 0.0, %v1858
    %v1860 = vpop.f32.mrf.mxu0
    %1861 = vmatprep.mubr.bf16.mxu0 %v1760
    %1862 = vmatmul.mubr.bf16.gmra.mxu0 %v1759
    %v1863 = vpop.f32.mrf.mxu0
    %v1864 = vadd.f32 0.0, %v1863
    %v1865 = vpop.f32.mrf.mxu0
    %v1866 = vpop.f32.mrf.mxu0
    %v1867 = vadd.f32 0.0, %v1866
    %v1868 = vpop.f32.mrf.mxu0
    %1869 = vmatprep.mubr.bf16.mxu0 %v1762
    %1870 = vmatmul.mubr.bf16.gmra.mxu0 %v1761
    %v1871 = vpop.f32.mrf.mxu0
    %v1872 = vadd.f32 0.0, %v1871
    %v1873 = vpop.f32.mrf.mxu0
    %v1874 = vpop.f32.mrf.mxu0
    %v1875 = vadd.f32 0.0, %v1874
    %v1876 = vpop.f32.mrf.mxu0
    %1877 = vmatprep.mubr.bf16.mxu0 %v1764
    %1878 = vmatmul.mubr.bf16.gmra.mxu0 %v1763
    %v1879 = vpop.f32.mrf.mxu0
    %v1880 = vadd.f32 0.0, %v1879
    %v1881 = vpop.f32.mrf.mxu0
    %v1882 = vpop.f32.mrf.mxu0
    %v1883 = vadd.f32 0.0, %v1882
    %v1884 = vpop.f32.mrf.mxu0
    %1885 = vmatprep.mubr.bf16.mxu0 %v1766
    %1886 = vmatmul.mubr.bf16.gmra.mxu0 %v1765
    %v1887 = vpop.f32.mrf.mxu0
    %v1888 = vadd.f32 0.0, %v1887
    %v1889 = vpop.f32.mrf.mxu0
    %v1890 = vpop.f32.mrf.mxu0
    %v1891 = vadd.f32 0.0, %v1890
    %v1892 = vpop.f32.mrf.mxu0
    %1893 = vmatprep.mubr.bf16.mxu0 %v1768
    %1894 = vmatmul.mubr.bf16.gmra.mxu0 %v1767
    %v1895 = vpop.f32.mrf.mxu0
    %v1896 = vadd.f32 0.0, %v1895
    %v1897 = vpop.f32.mrf.mxu0
    %v1898 = vpop.f32.mrf.mxu0
    %v1899 = vadd.f32 0.0, %v1898
    %v1900 = vpop.f32.mrf.mxu0
    %1901 = vmatprep.mubr.bf16.mxu0 %v1770
    %1902 = vmatmul.mubr.bf16.gmra.mxu0 %v1769
    %v1903 = vpop.f32.mrf.mxu0
    %v1904 = vadd.f32 0.0, %v1903
    %v1905 = vpop.f32.mrf.mxu0
    %v1906 = vpop.f32.mrf.mxu0
    %v1907 = vadd.f32 0.0, %v1906
    %v1908 = vpop.f32.mrf.mxu0
    %1909 = vmatprep.mubr.bf16.mxu0 %v1772
    %1910 = vmatmul.mubr.bf16.gmra.mxu0 %v1771
    %v1911 = vpop.f32.mrf.mxu0
    %v1912 = vadd.f32 0.0, %v1911
    %v1913 = vpop.f32.mrf.mxu0
    %v1914 = vpop.f32.mrf.mxu0
    %v1915 = vadd.f32 0.0, %v1914
    %v1916 = vpop.f32.mrf.mxu0
    %1917 = vmatprep.mubr.bf16.mxu0 %v1774
    %1918 = vmatmul.mubr.bf16.gmra.mxu0 %v1773
    %v1919 = vpop.f32.mrf.mxu0
    %v1920 = vadd.f32 0.0, %v1919
    %v1921 = vpop.f32.mrf.mxu0
    %v1922 = vpop.f32.mrf.mxu0
    %v1923 = vadd.f32 0.0, %v1922
    %v1924 = vpop.f32.mrf.mxu0
    %1925 = vmatprep.mubr.bf16.mxu0 %v1776
    %1926 = vmatmul.mubr.bf16.gmra.mxu0 %v1775
    %v1927 = vpop.f32.mrf.mxu0
    %v1928 = vadd.f32 0.0, %v1927
    %v1929 = vpop.f32.mrf.mxu0
    %v1930 = vpop.f32.mrf.mxu0
    %v1931 = vadd.f32 0.0, %v1930
    %v1932 = vpop.f32.mrf.mxu0
    %1933 = vmatprep.mubr.bf16.mxu0 %v1778
    %1934 = vmatmul.mubr.bf16.gmra.mxu0 %v1777
    %v1935 = vpop.f32.mrf.mxu0
    %v1936 = vadd.f32 0.0, %v1935
    %v1937 = vpop.f32.mrf.mxu0
    %v1938 = vpop.f32.mrf.mxu0
    %v1939 = vadd.f32 0.0, %v1938
    %v1940 = vpop.f32.mrf.mxu0
    %1941 = vmatprep.mubr.bf16.mxu0 %v1780
    %1942 = vmatmul.mubr.bf16.gmra.mxu0 %v1779
    %v1943 = vpop.f32.mrf.mxu0
    %v1944 = vadd.f32 0.0, %v1943
    %v1945 = vpop.f32.mrf.mxu0
    %v1946 = vpop.f32.mrf.mxu0
    %v1947 = vadd.f32 0.0, %v1946
    %v1948 = vpop.f32.mrf.mxu0
    %1949 = vmatprep.mubr.bf16.mxu0 %v1782
    %1950 = vmatmul.mubr.bf16.gmra.mxu0 %v1781
    %v1951 = vpop.f32.mrf.mxu0
    %v1952 = vadd.f32 0.0, %v1951
    %v1953 = vpop.f32.mrf.mxu0
    %v1954 = vpop.f32.mrf.mxu0
    %v1955 = vadd.f32 0.0, %v1954
    %v1956 = vpop.f32.mrf.mxu0
    %1957 = vmatprep.mubr.bf16.mxu0 %v1784
    %1958 = vmatmul.mubr.bf16.gmra.mxu0 %v1783
    %v1959 = vpop.f32.mrf.mxu0
    %v1960 = vadd.f32 0.0, %v1959
    %v1961 = vpop.f32.mrf.mxu0
    %v1962 = vpop.f32.mrf.mxu0
    %v1963 = vadd.f32 0.0, %v1962
    %v1964 = vpop.f32.mrf.mxu0
    %1965 = vmatprep.mubr.bf16.mxu0 %v1786
    %1966 = vmatmul.mubr.bf16.gmra.mxu0 %v1785
    %v1967 = vpop.f32.mrf.mxu0
    %v1968 = vadd.f32 0.0, %v1967
    %v1969 = vpop.f32.mrf.mxu0
    %v1970 = vpop.f32.mrf.mxu0
    %v1971 = vadd.f32 0.0, %v1970
    %v1972 = vpop.f32.mrf.mxu0
    %1973 = vmatprep.mubr.bf16.mxu0 %v1788
    %1974 = vmatmul.mubr.bf16.gmra.mxu0 %v1787
    %v1975 = vpop.f32.mrf.mxu0
    %v1976 = vadd.f32 0.0, %v1975
    %v1977 = vpop.f32.mrf.mxu0
    %v1978 = vpop.f32.mrf.mxu0
    %v1979 = vadd.f32 0.0, %v1978
    %v1980 = vpop.f32.mrf.mxu0
    %1981 = vdwg.mxu0
    %v1982 = vadd.f32 %v1260, %v1856
    %v1983 = vadd.f32 %v1263, %v1859
    %v1984 = vadd.f32 %v1268, %v1864
    %v1985 = vadd.f32 %v1271, %v1867
    %v1986 = vadd.f32 %v1276, %v1872
    %v1987 = vadd.f32 %v1279, %v1875
    %v1988 = vadd.f32 %v1284, %v1880
    %v1989 = vadd.f32 %v1287, %v1883
    %v1990 = vadd.f32 %v1292, %v1888
    %v1991 = vadd.f32 %v1295, %v1891
    %v1992 = vadd.f32 %v1300, %v1896
    %v1993 = vadd.f32 %v1303, %v1899
    %v1994 = vadd.f32 %v1308, %v1904
    %v1995 = vadd.f32 %v1311, %v1907
    %v1996 = vadd.f32 %v1316, %v1912
    %v1997 = vadd.f32 %v1319, %v1915
    %v1998 = vadd.f32 %v1324, %v1920
    %v1999 = vadd.f32 %v1327, %v1923
    %v2000 = vadd.f32 %v1332, %v1928
    %v2001 = vadd.f32 %v1335, %v1931
    %v2002 = vadd.f32 %v1340, %v1936
    %v2003 = vadd.f32 %v1343, %v1939
    %v2004 = vadd.f32 %v1348, %v1944
    %v2005 = vadd.f32 %v1351, %v1947
    %v2006 = vadd.f32 %v1356, %v1952
    %v2007 = vadd.f32 %v1359, %v1955
    %v2008 = vadd.f32 %v1364, %v1960
    %v2009 = vadd.f32 %v1367, %v1963
    %v2010 = vadd.f32 %v1372, %v1968
    %v2011 = vadd.f32 %v1375, %v1971
    %v2012 = vadd.f32 %v1380, %v1976
    %v2013 = vadd.f32 %v1383, %v1979
    %s2014 = scalar_lea.vmem [#allocation4], 192
    %v2015 = vld [vmem:[%s2014] sm:$0xf]
    %v2016 = vld [vmem:[%s2014 + $0x4] sm:$0xf]
    %v2017 = vld [vmem:[%s2014 + $0x8] sm:$0xf]
    %v2018 = vld [vmem:[%s2014 + $0xc] sm:$0xf]
    %v2019 = vld [vmem:[%s2014 + $0x10] sm:$0xf]
    %v2020 = vld [vmem:[%s2014 + $0x14] sm:$0xf]
    %v2021 = vld [vmem:[%s2014 + $0x18] sm:$0xf]
    %v2022 = vld [vmem:[%s2014 + $0x1c] sm:$0xf]
    %v2023 = vld [vmem:[%s2014 + $0x20] sm:$0xf]
    %v2024 = vld [vmem:[%s2014 + $0x24] sm:$0xf]
    %v2025 = vld [vmem:[%s2014 + $0x28] sm:$0xf]
    %v2026 = vld [vmem:[%s2014 + $0x2c] sm:$0xf]
    %v2027 = vld [vmem:[%s2014 + $0x30] sm:$0xf]
    %v2028 = vld [vmem:[%s2014 + $0x34] sm:$0xf]
    %v2029 = vld [vmem:[%s2014 + $0x38] sm:$0xf]
    %v2030 = vld [vmem:[%s2014 + $0x3c] sm:$0xf]
    %v2047 = vunpack.c.l.b16 %v2015
    %v2048 = vunpack.c.l.b16 %v2016
    %v2049 = vunpack.c.l.b16 %v2017
    %v2050 = vunpack.c.l.b16 %v2018
    %v2051 = vunpack.c.l.b16 %v2019
    %v2052 = vunpack.c.l.b16 %v2020
    %v2053 = vunpack.c.l.b16 %v2021
    %v2054 = vunpack.c.l.b16 %v2022
    %v2055 = vunpack.c.l.b16 %v2023
    %v2056 = vunpack.c.l.b16 %v2024
    %v2057 = vunpack.c.l.b16 %v2025
    %v2058 = vunpack.c.l.b16 %v2026
    %v2059 = vunpack.c.l.b16 %v2027
    %v2060 = vunpack.c.l.b16 %v2028
    %v2061 = vunpack.c.l.b16 %v2029
    %v2062 = vunpack.c.l.b16 %v2030
    %v2063 = vpack.c.b16 %v2048, %v2047
    %v2064 = vpack.c.b16 %v2050, %v2049
    %v2065 = vpack.c.b16 %v2052, %v2051
    %v2066 = vpack.c.b16 %v2054, %v2053
    %v2067 = vpack.c.b16 %v2056, %v2055
    %v2068 = vpack.c.b16 %v2058, %v2057
    %v2069 = vpack.c.b16 %v2060, %v2059
    %v2070 = vpack.c.b16 %v2062, %v2061
    %2079 = vmatprep.subr.bf16.mxu0 0
    %2080 = vmatpush1.bf16.msra.mxu0 %v2070
    %2081 = vmatprep.subr.bf16.mxu0 0
    %2082 = vmatpush1.bf16.msra.mxu0 %v2069
    %2083 = vmatprep.subr.bf16.mxu0 0
    %2084 = vmatpush1.bf16.msra.mxu0 %v2068
    %2085 = vmatprep.subr.bf16.mxu0 0
    %2086 = vmatpush1.bf16.msra.mxu0 %v2067
    %2087 = vmatprep.subr.bf16.mxu0 0
    %2088 = vmatpush1.bf16.msra.mxu0 %v2066
    %2089 = vmatprep.subr.bf16.mxu0 0
    %2090 = vmatpush1.bf16.msra.mxu0 %v2065
    %2091 = vmatprep.subr.bf16.mxu0 0
    %2092 = vmatpush1.bf16.msra.mxu0 %v2064
    %2093 = vmatprep.subr.bf16.mxu0 0
    %2094 = vmatpush1.bf16.msra.mxu0 %v2063
    %2095 = vmatprep.subr.bf16.mxu0 0
    %2096 = vmatpush2.bf16.msra.mxu0 0
    %2097 = vmatprep.subr.bf16.mxu0 0
    %2098 = vmatpush2.bf16.msra.mxu0 0
    %2099 = vmatprep.subr.bf16.mxu0 0
    %2100 = vmatpush2.bf16.msra.mxu0 0
    %2101 = vmatprep.subr.bf16.mxu0 0
    %2102 = vmatpush2.bf16.msra.mxu0 0
    %2103 = vmatprep.subr.bf16.mxu0 0
    %2104 = vmatpush2.bf16.msra.mxu0 0
    %2105 = vmatprep.subr.bf16.mxu0 0
    %2106 = vmatpush2.bf16.msra.mxu0 0
    %2107 = vmatprep.subr.bf16.mxu0 0
    %2108 = vmatpush2.bf16.msra.mxu0 0
    %2109 = vmatprep.subr.bf16.mxu0 0
    %2110 = vmatpush2.bf16.msra.mxu0 0
    %2111 = vmatprep.mubr.bf16.mxu0 0
    %2112 = vmatmul.mubr.bf16.gmra.mxu0 %v180
    %v2113 = vpop.f32.mrf.mxu0
    %v2114 = vadd.f32 0.0, %v2113
    %v2115 = vpop.f32.mrf.mxu0
    %v2116 = vpop.f32.mrf.mxu0
    %v2117 = vadd.f32 0.0, %v2116
    %v2118 = vpop.f32.mrf.mxu0
    %2119 = vmatprep.mubr.bf16.mxu0 0
    %2120 = vmatmul.mubr.bf16.gmra.mxu0 %v181
    %v2121 = vpop.f32.mrf.mxu0
    %v2122 = vadd.f32 0.0, %v2121
    %v2123 = vpop.f32.mrf.mxu0
    %v2124 = vpop.f32.mrf.mxu0
    %v2125 = vadd.f32 0.0, %v2124
    %v2126 = vpop.f32.mrf.mxu0
    %2127 = vmatprep.mubr.bf16.mxu0 0
    %2128 = vmatmul.mubr.bf16.gmra.mxu0 %v182
    %v2129 = vpop.f32.mrf.mxu0
    %v2130 = vadd.f32 0.0, %v2129
    %v2131 = vpop.f32.mrf.mxu0
    %v2132 = vpop.f32.mrf.mxu0
    %v2133 = vadd.f32 0.0, %v2132
    %v2134 = vpop.f32.mrf.mxu0
    %2135 = vmatprep.mubr.bf16.mxu0 0
    %2136 = vmatmul.mubr.bf16.gmra.mxu0 %v183
    %v2137 = vpop.f32.mrf.mxu0
    %v2138 = vadd.f32 0.0, %v2137
    %v2139 = vpop.f32.mrf.mxu0
    %v2140 = vpop.f32.mrf.mxu0
    %v2141 = vadd.f32 0.0, %v2140
    %v2142 = vpop.f32.mrf.mxu0
    %2143 = vmatprep.mubr.bf16.mxu0 0
    %2144 = vmatmul.mubr.bf16.gmra.mxu0 %v184
    %v2145 = vpop.f32.mrf.mxu0
    %v2146 = vadd.f32 0.0, %v2145
    %v2147 = vpop.f32.mrf.mxu0
    %v2148 = vpop.f32.mrf.mxu0
    %v2149 = vadd.f32 0.0, %v2148
    %v2150 = vpop.f32.mrf.mxu0
    %2151 = vmatprep.mubr.bf16.mxu0 0
    %2152 = vmatmul.mubr.bf16.gmra.mxu0 %v185
    %v2153 = vpop.f32.mrf.mxu0
    %v2154 = vadd.f32 0.0, %v2153
    %v2155 = vpop.f32.mrf.mxu0
    %v2156 = vpop.f32.mrf.mxu0
    %v2157 = vadd.f32 0.0, %v2156
    %v2158 = vpop.f32.mrf.mxu0
    %2159 = vmatprep.mubr.bf16.mxu0 0
    %2160 = vmatmul.mubr.bf16.gmra.mxu0 %v186
    %v2161 = vpop.f32.mrf.mxu0
    %v2162 = vadd.f32 0.0, %v2161
    %v2163 = vpop.f32.mrf.mxu0
    %v2164 = vpop.f32.mrf.mxu0
    %v2165 = vadd.f32 0.0, %v2164
    %v2166 = vpop.f32.mrf.mxu0
    %2167 = vmatprep.mubr.bf16.mxu0 0
    %2168 = vmatmul.mubr.bf16.gmra.mxu0 %v187
    %v2169 = vpop.f32.mrf.mxu0
    %v2170 = vadd.f32 0.0, %v2169
    %v2171 = vpop.f32.mrf.mxu0
    %v2172 = vpop.f32.mrf.mxu0
    %v2173 = vadd.f32 0.0, %v2172
    %v2174 = vpop.f32.mrf.mxu0
    %2175 = vmatprep.mubr.bf16.mxu0 0
    %2176 = vmatmul.mubr.bf16.gmra.mxu0 %v188
    %v2177 = vpop.f32.mrf.mxu0
    %v2178 = vadd.f32 0.0, %v2177
    %v2179 = vpop.f32.mrf.mxu0
    %v2180 = vpop.f32.mrf.mxu0
    %v2181 = vadd.f32 0.0, %v2180
    %v2182 = vpop.f32.mrf.mxu0
    %2183 = vmatprep.mubr.bf16.mxu0 0
    %2184 = vmatmul.mubr.bf16.gmra.mxu0 %v189
    %v2185 = vpop.f32.mrf.mxu0
    %v2186 = vadd.f32 0.0, %v2185
    %v2187 = vpop.f32.mrf.mxu0
    %v2188 = vpop.f32.mrf.mxu0
    %v2189 = vadd.f32 0.0, %v2188
    %v2190 = vpop.f32.mrf.mxu0
    %2191 = vmatprep.mubr.bf16.mxu0 0
    %2192 = vmatmul.mubr.bf16.gmra.mxu0 %v190
    %v2193 = vpop.f32.mrf.mxu0
    %v2194 = vadd.f32 0.0, %v2193
    %v2195 = vpop.f32.mrf.mxu0
    %v2196 = vpop.f32.mrf.mxu0
    %v2197 = vadd.f32 0.0, %v2196
    %v2198 = vpop.f32.mrf.mxu0
    %2199 = vmatprep.mubr.bf16.mxu0 0
    %2200 = vmatmul.mubr.bf16.gmra.mxu0 %v191
    %v2201 = vpop.f32.mrf.mxu0
    %v2202 = vadd.f32 0.0, %v2201
    %v2203 = vpop.f32.mrf.mxu0
    %v2204 = vpop.f32.mrf.mxu0
    %v2205 = vadd.f32 0.0, %v2204
    %v2206 = vpop.f32.mrf.mxu0
    %2207 = vmatprep.mubr.bf16.mxu0 0
    %2208 = vmatmul.mubr.bf16.gmra.mxu0 %v192
    %v2209 = vpop.f32.mrf.mxu0
    %v2210 = vadd.f32 0.0, %v2209
    %v2211 = vpop.f32.mrf.mxu0
    %v2212 = vpop.f32.mrf.mxu0
    %v2213 = vadd.f32 0.0, %v2212
    %v2214 = vpop.f32.mrf.mxu0
    %2215 = vmatprep.mubr.bf16.mxu0 0
    %2216 = vmatmul.mubr.bf16.gmra.mxu0 %v193
    %v2217 = vpop.f32.mrf.mxu0
    %v2218 = vadd.f32 0.0, %v2217
    %v2219 = vpop.f32.mrf.mxu0
    %v2220 = vpop.f32.mrf.mxu0
    %v2221 = vadd.f32 0.0, %v2220
    %v2222 = vpop.f32.mrf.mxu0
    %2223 = vmatprep.mubr.bf16.mxu0 0
    %2224 = vmatmul.mubr.bf16.gmra.mxu0 %v194
    %v2225 = vpop.f32.mrf.mxu0
    %v2226 = vadd.f32 0.0, %v2225
    %v2227 = vpop.f32.mrf.mxu0
    %v2228 = vpop.f32.mrf.mxu0
    %v2229 = vadd.f32 0.0, %v2228
    %v2230 = vpop.f32.mrf.mxu0
    %2231 = vmatprep.mubr.bf16.mxu0 0
    %2232 = vmatmul.mubr.bf16.gmra.mxu0 %v195
    %v2233 = vpop.f32.mrf.mxu0
    %v2234 = vadd.f32 0.0, %v2233
    %v2235 = vpop.f32.mrf.mxu0
    %v2236 = vpop.f32.mrf.mxu0
    %v2237 = vadd.f32 0.0, %v2236
    %v2238 = vpop.f32.mrf.mxu0
    %2239 = vdwg.mxu0
    %v2240 = vpack.c.bf16 %v2117, %v2114
    %v2241 = vpack.c.bf16 %v2125, %v2122
    %v2242 = vpack.c.bf16 %v2133, %v2130
    %v2243 = vpack.c.bf16 %v2141, %v2138
    %v2244 = vpack.c.bf16 %v2149, %v2146
    %v2245 = vpack.c.bf16 %v2157, %v2154
    %v2246 = vpack.c.bf16 %v2165, %v2162
    %v2247 = vpack.c.bf16 %v2173, %v2170
    %v2248 = vpack.c.bf16 %v2181, %v2178
    %v2249 = vpack.c.bf16 %v2189, %v2186
    %v2250 = vpack.c.bf16 %v2197, %v2194
    %v2251 = vpack.c.bf16 %v2205, %v2202
    %v2252 = vpack.c.bf16 %v2213, %v2210
    %v2253 = vpack.c.bf16 %v2221, %v2218
    %v2254 = vpack.c.bf16 %v2229, %v2226
    %v2255 = vpack.c.bf16 %v2237, %v2234
    %s2256 = scalar_lea.vmem [#allocation2], 768
    %v2257 = vld [vmem:[%s2256] sm:$0xff]
    %v2258 = vld [vmem:[%s2256 + $0x8] sm:$0xff]
    %v2259 = vld [vmem:[%s2256 + $0x10] sm:$0xff]
    %v2260 = vld [vmem:[%s2256 + $0x18] sm:$0xff]
    %v2261 = vld [vmem:[%s2256 + $0x20] sm:$0xff]
    %v2262 = vld [vmem:[%s2256 + $0x28] sm:$0xff]
    %v2263 = vld [vmem:[%s2256 + $0x30] sm:$0xff]
    %v2264 = vld [vmem:[%s2256 + $0x38] sm:$0xff]
    %v2265 = vld [vmem:[%s2256 + $0x40] sm:$0xff]
    %v2266 = vld [vmem:[%s2256 + $0x48] sm:$0xff]
    %v2267 = vld [vmem:[%s2256 + $0x50] sm:$0xff]
    %v2268 = vld [vmem:[%s2256 + $0x58] sm:$0xff]
    %v2269 = vld [vmem:[%s2256 + $0x60] sm:$0xff]
    %v2270 = vld [vmem:[%s2256 + $0x68] sm:$0xff]
    %v2271 = vld [vmem:[%s2256 + $0x70] sm:$0xff]
    %v2272 = vld [vmem:[%s2256 + $0x78] sm:$0xff]
    %v2273 = vld [vmem:[%s2256 + $0x80] sm:$0xff]
    %v2274 = vld [vmem:[%s2256 + $0x88] sm:$0xff]
    %v2275 = vld [vmem:[%s2256 + $0x90] sm:$0xff]
    %v2276 = vld [vmem:[%s2256 + $0x98] sm:$0xff]
    %v2277 = vld [vmem:[%s2256 + $0xa0] sm:$0xff]
    %v2278 = vld [vmem:[%s2256 + $0xa8] sm:$0xff]
    %v2279 = vld [vmem:[%s2256 + $0xb0] sm:$0xff]
    %v2280 = vld [vmem:[%s2256 + $0xb8] sm:$0xff]
    %v2281 = vld [vmem:[%s2256 + $0xc0] sm:$0xff]
    %v2282 = vld [vmem:[%s2256 + $0xc8] sm:$0xff]
    %v2283 = vld [vmem:[%s2256 + $0xd0] sm:$0xff]
    %v2284 = vld [vmem:[%s2256 + $0xd8] sm:$0xff]
    %v2285 = vld [vmem:[%s2256 + $0xe0] sm:$0xff]
    %v2286 = vld [vmem:[%s2256 + $0xe8] sm:$0xff]
    %v2287 = vld [vmem:[%s2256 + $0xf0] sm:$0xff]
    %v2288 = vld [vmem:[%s2256 + $0xf8] sm:$0xff]
    %v2321 = vunpack.c.l.b16 %v2257
    %v2322 = vunpack.c.h.b16 %v2257
    %v2323 = vunpack.c.l.b16 %v2258
    %v2324 = vunpack.c.h.b16 %v2258
    %v2325 = vunpack.c.l.b16 %v2259
    %v2326 = vunpack.c.h.b16 %v2259
    %v2327 = vunpack.c.l.b16 %v2260
    %v2328 = vunpack.c.h.b16 %v2260
    %v2329 = vunpack.c.l.b16 %v2261
    %v2330 = vunpack.c.h.b16 %v2261
    %v2331 = vunpack.c.l.b16 %v2262
    %v2332 = vunpack.c.h.b16 %v2262
    %v2333 = vunpack.c.l.b16 %v2263
    %v2334 = vunpack.c.h.b16 %v2263
    %v2335 = vunpack.c.l.b16 %v2264
    %v2336 = vunpack.c.h.b16 %v2264
    %v2337 = vunpack.c.l.b16 %v2265
    %v2338 = vunpack.c.h.b16 %v2265
    %v2339 = vunpack.c.l.b16 %v2266
    %v2340 = vunpack.c.h.b16 %v2266
    %v2341 = vunpack.c.l.b16 %v2267
    %v2342 = vunpack.c.h.b16 %v2267
    %v2343 = vunpack.c.l.b16 %v2268
    %v2344 = vunpack.c.h.b16 %v2268
    %v2345 = vunpack.c.l.b16 %v2269
    %v2346 = vunpack.c.h.b16 %v2269
    %v2347 = vunpack.c.l.b16 %v2270
    %v2348 = vunpack.c.h.b16 %v2270
    %v2349 = vunpack.c.l.b16 %v2271
    %v2350 = vunpack.c.h.b16 %v2271
    %v2351 = vunpack.c.l.b16 %v2272
    %v2352 = vunpack.c.h.b16 %v2272
    %v2353 = vunpack.c.l.b16 %v2273
    %v2354 = vunpack.c.h.b16 %v2273
    %v2355 = vunpack.c.l.b16 %v2274
    %v2356 = vunpack.c.h.b16 %v2274
    %v2357 = vunpack.c.l.b16 %v2275
    %v2358 = vunpack.c.h.b16 %v2275
    %v2359 = vunpack.c.l.b16 %v2276
    %v2360 = vunpack.c.h.b16 %v2276
    %v2361 = vunpack.c.l.b16 %v2277
    %v2362 = vunpack.c.h.b16 %v2277
    %v2363 = vunpack.c.l.b16 %v2278
    %v2364 = vunpack.c.h.b16 %v2278
    %v2365 = vunpack.c.l.b16 %v2279
    %v2366 = vunpack.c.h.b16 %v2279
    %v2367 = vunpack.c.l.b16 %v2280
    %v2368 = vunpack.c.h.b16 %v2280
    %v2369 = vunpack.c.l.b16 %v2281
    %v2370 = vunpack.c.h.b16 %v2281
    %v2371 = vunpack.c.l.b16 %v2282
    %v2372 = vunpack.c.h.b16 %v2282
    %v2373 = vunpack.c.l.b16 %v2283
    %v2374 = vunpack.c.h.b16 %v2283
    %v2375 = vunpack.c.l.b16 %v2284
    %v2376 = vunpack.c.h.b16 %v2284
    %v2377 = vunpack.c.l.b16 %v2285
    %v2378 = vunpack.c.h.b16 %v2285
    %v2379 = vunpack.c.l.b16 %v2286
    %v2380 = vunpack.c.h.b16 %v2286
    %v2381 = vunpack.c.l.b16 %v2287
    %v2382 = vunpack.c.h.b16 %v2287
    %v2383 = vunpack.c.l.b16 %v2288
    %v2384 = vunpack.c.h.b16 %v2288
    %v2385 = vpack.c.b16 %v2323, %v2321
    %v2386 = vpack.c.b16 %v2324, %v2322
    %v2387 = vpack.c.b16 %v2327, %v2325
    %v2388 = vpack.c.b16 %v2328, %v2326
    %v2389 = vpack.c.b16 %v2331, %v2329
    %v2390 = vpack.c.b16 %v2332, %v2330
    %v2391 = vpack.c.b16 %v2335, %v2333
    %v2392 = vpack.c.b16 %v2336, %v2334
    %v2393 = vpack.c.b16 %v2339, %v2337
    %v2394 = vpack.c.b16 %v2340, %v2338
    %v2395 = vpack.c.b16 %v2343, %v2341
    %v2396 = vpack.c.b16 %v2344, %v2342
    %v2397 = vpack.c.b16 %v2347, %v2345
    %v2398 = vpack.c.b16 %v2348, %v2346
    %v2399 = vpack.c.b16 %v2351, %v2349
    %v2400 = vpack.c.b16 %v2352, %v2350
    %v2401 = vpack.c.b16 %v2355, %v2353
    %v2402 = vpack.c.b16 %v2356, %v2354
    %v2403 = vpack.c.b16 %v2359, %v2357
    %v2404 = vpack.c.b16 %v2360, %v2358
    %v2405 = vpack.c.b16 %v2363, %v2361
    %v2406 = vpack.c.b16 %v2364, %v2362
    %v2407 = vpack.c.b16 %v2367, %v2365
    %v2408 = vpack.c.b16 %v2368, %v2366
    %v2409 = vpack.c.b16 %v2371, %v2369
    %v2410 = vpack.c.b16 %v2372, %v2370
    %v2411 = vpack.c.b16 %v2375, %v2373
    %v2412 = vpack.c.b16 %v2376, %v2374
    %v2413 = vpack.c.b16 %v2379, %v2377
    %v2414 = vpack.c.b16 %v2380, %v2378
    %v2415 = vpack.c.b16 %v2383, %v2381
    %v2416 = vpack.c.b16 %v2384, %v2382
    %2449 = vmatprep.subr.bf16.mxu0 0
    %2450 = vmatpush1.bf16.msra.mxu0 %v2247
    %2451 = vmatprep.subr.bf16.mxu0 0
    %2452 = vmatpush1.bf16.msra.mxu0 %v2246
    %2453 = vmatprep.subr.bf16.mxu0 0
    %2454 = vmatpush1.bf16.msra.mxu0 %v2245
    %2455 = vmatprep.subr.bf16.mxu0 0
    %2456 = vmatpush1.bf16.msra.mxu0 %v2244
    %2457 = vmatprep.subr.bf16.mxu0 0
    %2458 = vmatpush1.bf16.msra.mxu0 %v2243
    %2459 = vmatprep.subr.bf16.mxu0 0
    %2460 = vmatpush1.bf16.msra.mxu0 %v2242
    %2461 = vmatprep.subr.bf16.mxu0 0
    %2462 = vmatpush1.bf16.msra.mxu0 %v2241
    %2463 = vmatprep.subr.bf16.mxu0 0
    %2464 = vmatpush1.bf16.msra.mxu0 %v2240
    %2465 = vmatprep.subr.bf16.mxu0 0
    %2466 = vmatpush2.bf16.msra.mxu0 %v2255
    %2467 = vmatprep.subr.bf16.mxu0 0
    %2468 = vmatpush2.bf16.msra.mxu0 %v2254
    %2469 = vmatprep.subr.bf16.mxu0 0
    %2470 = vmatpush2.bf16.msra.mxu0 %v2253
    %2471 = vmatprep.subr.bf16.mxu0 0
    %2472 = vmatpush2.bf16.msra.mxu0 %v2252
    %2473 = vmatprep.subr.bf16.mxu0 0
    %2474 = vmatpush2.bf16.msra.mxu0 %v2251
    %2475 = vmatprep.subr.bf16.mxu0 0
    %2476 = vmatpush2.bf16.msra.mxu0 %v2250
    %2477 = vmatprep.subr.bf16.mxu0 0
    %2478 = vmatpush2.bf16.msra.mxu0 %v2249
    %2479 = vmatprep.subr.bf16.mxu0 0
    %2480 = vmatpush2.bf16.msra.mxu0 %v2248
    %2481 = vmatprep.mubr.bf16.mxu0 %v2386
    %2482 = vmatmul.mubr.bf16.gmra.mxu0 %v2385
    %v2483 = vpop.f32.mrf.mxu0
    %v2484 = vadd.f32 0.0, %v2483
    %v2485 = vpop.f32.mrf.mxu0
    %v2486 = vpop.f32.mrf.mxu0
    %v2487 = vadd.f32 0.0, %v2486
    %v2488 = vpop.f32.mrf.mxu0
    %2489 = vmatprep.mubr.bf16.mxu0 %v2388
    %2490 = vmatmul.mubr.bf16.gmra.mxu0 %v2387
    %v2491 = vpop.f32.mrf.mxu0
    %v2492 = vadd.f32 0.0, %v2491
    %v2493 = vpop.f32.mrf.mxu0
    %v2494 = vpop.f32.mrf.mxu0
    %v2495 = vadd.f32 0.0, %v2494
    %v2496 = vpop.f32.mrf.mxu0
    %2497 = vmatprep.mubr.bf16.mxu0 %v2390
    %2498 = vmatmul.mubr.bf16.gmra.mxu0 %v2389
    %v2499 = vpop.f32.mrf.mxu0
    %v2500 = vadd.f32 0.0, %v2499
    %v2501 = vpop.f32.mrf.mxu0
    %v2502 = vpop.f32.mrf.mxu0
    %v2503 = vadd.f32 0.0, %v2502
    %v2504 = vpop.f32.mrf.mxu0
    %2505 = vmatprep.mubr.bf16.mxu0 %v2392
    %2506 = vmatmul.mubr.bf16.gmra.mxu0 %v2391
    %v2507 = vpop.f32.mrf.mxu0
    %v2508 = vadd.f32 0.0, %v2507
    %v2509 = vpop.f32.mrf.mxu0
    %v2510 = vpop.f32.mrf.mxu0
    %v2511 = vadd.f32 0.0, %v2510
    %v2512 = vpop.f32.mrf.mxu0
    %2513 = vmatprep.mubr.bf16.mxu0 %v2394
    %2514 = vmatmul.mubr.bf16.gmra.mxu0 %v2393
    %v2515 = vpop.f32.mrf.mxu0
    %v2516 = vadd.f32 0.0, %v2515
    %v2517 = vpop.f32.mrf.mxu0
    %v2518 = vpop.f32.mrf.mxu0
    %v2519 = vadd.f32 0.0, %v2518
    %v2520 = vpop.f32.mrf.mxu0
    %2521 = vmatprep.mubr.bf16.mxu0 %v2396
    %2522 = vmatmul.mubr.bf16.gmra.mxu0 %v2395
    %v2523 = vpop.f32.mrf.mxu0
    %v2524 = vadd.f32 0.0, %v2523
    %v2525 = vpop.f32.mrf.mxu0
    %v2526 = vpop.f32.mrf.mxu0
    %v2527 = vadd.f32 0.0, %v2526
    %v2528 = vpop.f32.mrf.mxu0
    %2529 = vmatprep.mubr.bf16.mxu0 %v2398
    %2530 = vmatmul.mubr.bf16.gmra.mxu0 %v2397
    %v2531 = vpop.f32.mrf.mxu0
    %v2532 = vadd.f32 0.0, %v2531
    %v2533 = vpop.f32.mrf.mxu0
    %v2534 = vpop.f32.mrf.mxu0
    %v2535 = vadd.f32 0.0, %v2534
    %v2536 = vpop.f32.mrf.mxu0
    %2537 = vmatprep.mubr.bf16.mxu0 %v2400
    %2538 = vmatmul.mubr.bf16.gmra.mxu0 %v2399
    %v2539 = vpop.f32.mrf.mxu0
    %v2540 = vadd.f32 0.0, %v2539
    %v2541 = vpop.f32.mrf.mxu0
    %v2542 = vpop.f32.mrf.mxu0
    %v2543 = vadd.f32 0.0, %v2542
    %v2544 = vpop.f32.mrf.mxu0
    %2545 = vmatprep.mubr.bf16.mxu0 %v2402
    %2546 = vmatmul.mubr.bf16.gmra.mxu0 %v2401
    %v2547 = vpop.f32.mrf.mxu0
    %v2548 = vadd.f32 0.0, %v2547
    %v2549 = vpop.f32.mrf.mxu0
    %v2550 = vpop.f32.mrf.mxu0
    %v2551 = vadd.f32 0.0, %v2550
    %v2552 = vpop.f32.mrf.mxu0
    %2553 = vmatprep.mubr.bf16.mxu0 %v2404
    %2554 = vmatmul.mubr.bf16.gmra.mxu0 %v2403
    %v2555 = vpop.f32.mrf.mxu0
    %v2556 = vadd.f32 0.0, %v2555
    %v2557 = vpop.f32.mrf.mxu0
    %v2558 = vpop.f32.mrf.mxu0
    %v2559 = vadd.f32 0.0, %v2558
    %v2560 = vpop.f32.mrf.mxu0
    %2561 = vmatprep.mubr.bf16.mxu0 %v2406
    %2562 = vmatmul.mubr.bf16.gmra.mxu0 %v2405
    %v2563 = vpop.f32.mrf.mxu0
    %v2564 = vadd.f32 0.0, %v2563
    %v2565 = vpop.f32.mrf.mxu0
    %v2566 = vpop.f32.mrf.mxu0
    %v2567 = vadd.f32 0.0, %v2566
    %v2568 = vpop.f32.mrf.mxu0
    %2569 = vmatprep.mubr.bf16.mxu0 %v2408
    %2570 = vmatmul.mubr.bf16.gmra.mxu0 %v2407
    %v2571 = vpop.f32.mrf.mxu0
    %v2572 = vadd.f32 0.0, %v2571
    %v2573 = vpop.f32.mrf.mxu0
    %v2574 = vpop.f32.mrf.mxu0
    %v2575 = vadd.f32 0.0, %v2574
    %v2576 = vpop.f32.mrf.mxu0
    %2577 = vmatprep.mubr.bf16.mxu0 %v2410
    %2578 = vmatmul.mubr.bf16.gmra.mxu0 %v2409
    %v2579 = vpop.f32.mrf.mxu0
    %v2580 = vadd.f32 0.0, %v2579
    %v2581 = vpop.f32.mrf.mxu0
    %v2582 = vpop.f32.mrf.mxu0
    %v2583 = vadd.f32 0.0, %v2582
    %v2584 = vpop.f32.mrf.mxu0
    %2585 = vmatprep.mubr.bf16.mxu0 %v2412
    %2586 = vmatmul.mubr.bf16.gmra.mxu0 %v2411
    %v2587 = vpop.f32.mrf.mxu0
    %v2588 = vadd.f32 0.0, %v2587
    %v2589 = vpop.f32.mrf.mxu0
    %v2590 = vpop.f32.mrf.mxu0
    %v2591 = vadd.f32 0.0, %v2590
    %v2592 = vpop.f32.mrf.mxu0
    %2593 = vmatprep.mubr.bf16.mxu0 %v2414
    %2594 = vmatmul.mubr.bf16.gmra.mxu0 %v2413
    %v2595 = vpop.f32.mrf.mxu0
    %v2596 = vadd.f32 0.0, %v2595
    %v2597 = vpop.f32.mrf.mxu0
    %v2598 = vpop.f32.mrf.mxu0
    %v2599 = vadd.f32 0.0, %v2598
    %v2600 = vpop.f32.mrf.mxu0
    %2601 = vmatprep.mubr.bf16.mxu0 %v2416
    %2602 = vmatmul.mubr.bf16.gmra.mxu0 %v2415
    %v2603 = vpop.f32.mrf.mxu0
    %v2604 = vadd.f32 0.0, %v2603
    %v2605 = vpop.f32.mrf.mxu0
    %v2606 = vpop.f32.mrf.mxu0
    %v2607 = vadd.f32 0.0, %v2606
    %v2608 = vpop.f32.mrf.mxu0
    %2609 = vdwg.mxu0
    %v2610 = vadd.f32 %v1982, %v2484
    %v2611 = vadd.f32 %v1983, %v2487
    %v2612 = vadd.f32 %v1984, %v2492
    %v2613 = vadd.f32 %v1985, %v2495
    %v2614 = vadd.f32 %v1986, %v2500
    %v2615 = vadd.f32 %v1987, %v2503
    %v2616 = vadd.f32 %v1988, %v2508
    %v2617 = vadd.f32 %v1989, %v2511
    %v2618 = vadd.f32 %v1990, %v2516
    %v2619 = vadd.f32 %v1991, %v2519
    %v2620 = vadd.f32 %v1992, %v2524
    %v2621 = vadd.f32 %v1993, %v2527
    %v2622 = vadd.f32 %v1994, %v2532
    %v2623 = vadd.f32 %v1995, %v2535
    %v2624 = vadd.f32 %v1996, %v2540
    %v2625 = vadd.f32 %v1997, %v2543
    %v2626 = vadd.f32 %v1998, %v2548
    %v2627 = vadd.f32 %v1999, %v2551
    %v2628 = vadd.f32 %v2000, %v2556
    %v2629 = vadd.f32 %v2001, %v2559
    %v2630 = vadd.f32 %v2002, %v2564
    %v2631 = vadd.f32 %v2003, %v2567
    %v2632 = vadd.f32 %v2004, %v2572
    %v2633 = vadd.f32 %v2005, %v2575
    %v2634 = vadd.f32 %v2006, %v2580
    %v2635 = vadd.f32 %v2007, %v2583
    %v2636 = vadd.f32 %v2008, %v2588
    %v2637 = vadd.f32 %v2009, %v2591
    %v2638 = vadd.f32 %v2010, %v2596
    %v2639 = vadd.f32 %v2011, %v2599
    %v2640 = vadd.f32 %v2012, %v2604
    %v2641 = vadd.f32 %v2013, %v2607
    %v2642 = vld [vmem:[%s3] sm:$0xff]
    %v2643 = vld [vmem:[%s3 + $0x8] sm:$0xff]
    %v2644 = vld [vmem:[%s3 + $0x10] sm:$0xff]
    %v2645 = vld [vmem:[%s3 + $0x18] sm:$0xff]
    %v2646 = vld [vmem:[%s3 + $0x20] sm:$0xff]
    %v2647 = vld [vmem:[%s3 + $0x28] sm:$0xff]
    %v2648 = vld [vmem:[%s3 + $0x30] sm:$0xff]
    %v2649 = vld [vmem:[%s3 + $0x38] sm:$0xff]
    %v2650 = vld [vmem:[%s3 + $0x40] sm:$0xff]
    %v2651 = vld [vmem:[%s3 + $0x48] sm:$0xff]
    %v2652 = vld [vmem:[%s3 + $0x50] sm:$0xff]
    %v2653 = vld [vmem:[%s3 + $0x58] sm:$0xff]
    %v2654 = vld [vmem:[%s3 + $0x60] sm:$0xff]
    %v2655 = vld [vmem:[%s3 + $0x68] sm:$0xff]
    %v2656 = vld [vmem:[%s3 + $0x70] sm:$0xff]
    %v2657 = vld [vmem:[%s3 + $0x78] sm:$0xff]
    %v2658 = vld [vmem:[%s3 + $0x80] sm:$0xff]
    %v2659 = vld [vmem:[%s3 + $0x88] sm:$0xff]
    %v2660 = vld [vmem:[%s3 + $0x90] sm:$0xff]
    %v2661 = vld [vmem:[%s3 + $0x98] sm:$0xff]
    %v2662 = vld [vmem:[%s3 + $0xa0] sm:$0xff]
    %v2663 = vld [vmem:[%s3 + $0xa8] sm:$0xff]
    %v2664 = vld [vmem:[%s3 + $0xb0] sm:$0xff]
    %v2665 = vld [vmem:[%s3 + $0xb8] sm:$0xff]
    %v2666 = vld [vmem:[%s3 + $0xc0] sm:$0xff]
    %v2667 = vld [vmem:[%s3 + $0xc8] sm:$0xff]
    %v2668 = vld [vmem:[%s3 + $0xd0] sm:$0xff]
    %v2669 = vld [vmem:[%s3 + $0xd8] sm:$0xff]
    %v2670 = vld [vmem:[%s3 + $0xe0] sm:$0xff]
    %v2671 = vld [vmem:[%s3 + $0xe8] sm:$0xff]
    %v2672 = vld [vmem:[%s3 + $0xf0] sm:$0xff]
    %v2673 = vld [vmem:[%s3 + $0xf8] sm:$0xff]
    %2675 = vset.pattern.permute.xlu0 0
    %2676 = vperm.xlu0 %2675, %v2642
    %v2677 = vpop.permute.xlu0 %2676
    %2680 = vset.pattern.permute.xlu0 0
    %2681 = vperm.xlu0 %2680, %v2643
    %v2682 = vpop.permute.xlu0 %2681
    %2685 = vset.pattern.permute.xlu0 0
    %2686 = vperm.xlu0 %2685, %v2644
    %v2687 = vpop.permute.xlu0 %2686
    %2690 = vset.pattern.permute.xlu0 0
    %2691 = vperm.xlu0 %2690, %v2645
    %v2692 = vpop.permute.xlu0 %2691
    %2695 = vset.pattern.permute.xlu0 0
    %2696 = vperm.xlu0 %2695, %v2646
    %v2697 = vpop.permute.xlu0 %2696
    %2700 = vset.pattern.permute.xlu0 0
    %2701 = vperm.xlu0 %2700, %v2647
    %v2702 = vpop.permute.xlu0 %2701
    %2705 = vset.pattern.permute.xlu0 0
    %2706 = vperm.xlu0 %2705, %v2648
    %v2707 = vpop.permute.xlu0 %2706
    %2710 = vset.pattern.permute.xlu0 0
    %2711 = vperm.xlu0 %2710, %v2649
    %v2712 = vpop.permute.xlu0 %2711
    %2715 = vset.pattern.permute.xlu0 0
    %2716 = vperm.xlu0 %2715, %v2650
    %v2717 = vpop.permute.xlu0 %2716
    %2720 = vset.pattern.permute.xlu0 0
    %2721 = vperm.xlu0 %2720, %v2651
    %v2722 = vpop.permute.xlu0 %2721
    %2725 = vset.pattern.permute.xlu0 0
    %2726 = vperm.xlu0 %2725, %v2652
    %v2727 = vpop.permute.xlu0 %2726
    %2730 = vset.pattern.permute.xlu0 0
    %2731 = vperm.xlu0 %2730, %v2653
    %v2732 = vpop.permute.xlu0 %2731
    %2735 = vset.pattern.permute.xlu0 0
    %2736 = vperm.xlu0 %2735, %v2654
    %v2737 = vpop.permute.xlu0 %2736
    %2740 = vset.pattern.permute.xlu0 0
    %2741 = vperm.xlu0 %2740, %v2655
    %v2742 = vpop.permute.xlu0 %2741
    %2745 = vset.pattern.permute.xlu0 0
    %2746 = vperm.xlu0 %2745, %v2656
    %v2747 = vpop.permute.xlu0 %2746
    %2750 = vset.pattern.permute.xlu0 0
    %2751 = vperm.xlu0 %2750, %v2657
    %v2752 = vpop.permute.xlu0 %2751
    %2755 = vset.pattern.permute.xlu0 0
    %2756 = vperm.xlu0 %2755, %v2658
    %v2757 = vpop.permute.xlu0 %2756
    %2760 = vset.pattern.permute.xlu0 0
    %2761 = vperm.xlu0 %2760, %v2659
    %v2762 = vpop.permute.xlu0 %2761
    %2765 = vset.pattern.permute.xlu0 0
    %2766 = vperm.xlu0 %2765, %v2660
    %v2767 = vpop.permute.xlu0 %2766
    %2770 = vset.pattern.permute.xlu0 0
    %2771 = vperm.xlu0 %2770, %v2661
    %v2772 = vpop.permute.xlu0 %2771
    %2775 = vset.pattern.permute.xlu0 0
    %2776 = vperm.xlu0 %2775, %v2662
    %v2777 = vpop.permute.xlu0 %2776
    %2780 = vset.pattern.permute.xlu0 0
    %2781 = vperm.xlu0 %2780, %v2663
    %v2782 = vpop.permute.xlu0 %2781
    %2785 = vset.pattern.permute.xlu0 0
    %2786 = vperm.xlu0 %2785, %v2664
    %v2787 = vpop.permute.xlu0 %2786
    %2790 = vset.pattern.permute.xlu0 0
    %2791 = vperm.xlu0 %2790, %v2665
    %v2792 = vpop.permute.xlu0 %2791
    %2795 = vset.pattern.permute.xlu0 0
    %2796 = vperm.xlu0 %2795, %v2666
    %v2797 = vpop.permute.xlu0 %2796
    %2800 = vset.pattern.permute.xlu0 0
    %2801 = vperm.xlu0 %2800, %v2667
    %v2802 = vpop.permute.xlu0 %2801
    %2805 = vset.pattern.permute.xlu0 0
    %2806 = vperm.xlu0 %2805, %v2668
    %v2807 = vpop.permute.xlu0 %2806
    %2810 = vset.pattern.permute.xlu0 0
    %2811 = vperm.xlu0 %2810, %v2669
    %v2812 = vpop.permute.xlu0 %2811
    %2815 = vset.pattern.permute.xlu0 0
    %2816 = vperm.xlu0 %2815, %v2670
    %v2817 = vpop.permute.xlu0 %2816
    %2820 = vset.pattern.permute.xlu0 0
    %2821 = vperm.xlu0 %2820, %v2671
    %v2822 = vpop.permute.xlu0 %2821
    %2825 = vset.pattern.permute.xlu0 0
    %2826 = vperm.xlu0 %2825, %v2672
    %v2827 = vpop.permute.xlu0 %2826
    %2830 = vset.pattern.permute.xlu0 0
    %2831 = vperm.xlu0 %2830, %v2673
    %v2832 = vpop.permute.xlu0 %2831
    %v2834 = vadd.f32 %v2610, %v2677
    %v2835 = vadd.f32 %v2611, %v2682
    %v2836 = vadd.f32 %v2612, %v2687
    %v2837 = vadd.f32 %v2613, %v2692
    %v2838 = vadd.f32 %v2614, %v2697
    %v2839 = vadd.f32 %v2615, %v2702
    %v2840 = vadd.f32 %v2616, %v2707
    %v2841 = vadd.f32 %v2617, %v2712
    %v2842 = vadd.f32 %v2618, %v2717
    %v2843 = vadd.f32 %v2619, %v2722
    %v2844 = vadd.f32 %v2620, %v2727
    %v2845 = vadd.f32 %v2621, %v2732
    %v2846 = vadd.f32 %v2622, %v2737
    %v2847 = vadd.f32 %v2623, %v2742
    %v2848 = vadd.f32 %v2624, %v2747
    %v2849 = vadd.f32 %v2625, %v2752
    %v2850 = vadd.f32 %v2626, %v2757
    %v2851 = vadd.f32 %v2627, %v2762
    %v2852 = vadd.f32 %v2628, %v2767
    %v2853 = vadd.f32 %v2629, %v2772
    %v2854 = vadd.f32 %v2630, %v2777
    %v2855 = vadd.f32 %v2631, %v2782
    %v2856 = vadd.f32 %v2632, %v2787
    %v2857 = vadd.f32 %v2633, %v2792
    %v2858 = vadd.f32 %v2634, %v2797
    %v2859 = vadd.f32 %v2635, %v2802
    %v2860 = vadd.f32 %v2636, %v2807
    %v2861 = vadd.f32 %v2637, %v2812
    %v2862 = vadd.f32 %v2638, %v2817
    %v2863 = vadd.f32 %v2639, %v2822
    %v2864 = vadd.f32 %v2640, %v2827
    %v2865 = vadd.f32 %v2641, %v2832
    %vm2866 = vcmp.gt.f32.partialorder %v2834, 0.0
    %vm2867 = vcmp.gt.f32.partialorder %v2835, 0.0
    %vm2868 = vcmp.gt.f32.partialorder %v2836, 0.0
    %vm2869 = vcmp.gt.f32.partialorder %v2837, 0.0
    %vm2870 = vcmp.gt.f32.partialorder %v2838, 0.0
    %vm2871 = vcmp.gt.f32.partialorder %v2839, 0.0
    %vm2872 = vcmp.gt.f32.partialorder %v2840, 0.0
    %vm2873 = vcmp.gt.f32.partialorder %v2841, 0.0
    %vm2874 = vcmp.gt.f32.partialorder %v2842, 0.0
    %vm2875 = vcmp.gt.f32.partialorder %v2843, 0.0
    %vm2876 = vcmp.gt.f32.partialorder %v2844, 0.0
    %vm2877 = vcmp.gt.f32.partialorder %v2845, 0.0
    %vm2878 = vcmp.gt.f32.partialorder %v2846, 0.0
    %vm2879 = vcmp.gt.f32.partialorder %v2847, 0.0
    %vm2880 = vcmp.gt.f32.partialorder %v2848, 0.0
    %vm2881 = vcmp.gt.f32.partialorder %v2849, 0.0
    %vm2882 = vcmp.gt.f32.partialorder %v2850, 0.0
    %vm2883 = vcmp.gt.f32.partialorder %v2851, 0.0
    %vm2884 = vcmp.gt.f32.partialorder %v2852, 0.0
    %vm2885 = vcmp.gt.f32.partialorder %v2853, 0.0
    %vm2886 = vcmp.gt.f32.partialorder %v2854, 0.0
    %vm2887 = vcmp.gt.f32.partialorder %v2855, 0.0
    %vm2888 = vcmp.gt.f32.partialorder %v2856, 0.0
    %vm2889 = vcmp.gt.f32.partialorder %v2857, 0.0
    %vm2890 = vcmp.gt.f32.partialorder %v2858, 0.0
    %vm2891 = vcmp.gt.f32.partialorder %v2859, 0.0
    %vm2892 = vcmp.gt.f32.partialorder %v2860, 0.0
    %vm2893 = vcmp.gt.f32.partialorder %v2861, 0.0
    %vm2894 = vcmp.gt.f32.partialorder %v2862, 0.0
    %vm2895 = vcmp.gt.f32.partialorder %v2863, 0.0
    %vm2896 = vcmp.gt.f32.partialorder %v2864, 0.0
    %vm2897 = vcmp.gt.f32.partialorder %v2865, 0.0
    %v2898 = vmul.f32 %v2834, 0.2
    %v2899 = vmul.f32 %v2835, 0.2
    %v2900 = vmul.f32 %v2836, 0.2
    %v2901 = vmul.f32 %v2837, 0.2
    %v2902 = vmul.f32 %v2838, 0.2
    %v2903 = vmul.f32 %v2839, 0.2
    %v2904 = vmul.f32 %v2840, 0.2
    %v2905 = vmul.f32 %v2841, 0.2
    %v2906 = vmul.f32 %v2842, 0.2
    %v2907 = vmul.f32 %v2843, 0.2
    %v2908 = vmul.f32 %v2844, 0.2
    %v2909 = vmul.f32 %v2845, 0.2
    %v2910 = vmul.f32 %v2846, 0.2
    %v2911 = vmul.f32 %v2847, 0.2
    %v2912 = vmul.f32 %v2848, 0.2
    %v2913 = vmul.f32 %v2849, 0.2
    %v2914 = vmul.f32 %v2850, 0.2
    %v2915 = vmul.f32 %v2851, 0.2
    %v2916 = vmul.f32 %v2852, 0.2
    %v2917 = vmul.f32 %v2853, 0.2
    %v2918 = vmul.f32 %v2854, 0.2
    %v2919 = vmul.f32 %v2855, 0.2
    %v2920 = vmul.f32 %v2856, 0.2
    %v2921 = vmul.f32 %v2857, 0.2
    %v2922 = vmul.f32 %v2858, 0.2
    %v2923 = vmul.f32 %v2859, 0.2
    %v2924 = vmul.f32 %v2860, 0.2
    %v2925 = vmul.f32 %v2861, 0.2
    %v2926 = vmul.f32 %v2862, 0.2
    %v2927 = vmul.f32 %v2863, 0.2
    %v2928 = vmul.f32 %v2864, 0.2
    %v2929 = vmul.f32 %v2865, 0.2
    %v2930 = vsel %vm2866, %v2834, %v2898
    %v2931 = vsel %vm2867, %v2835, %v2899
    %v2932 = vsel %vm2868, %v2836, %v2900
    %v2933 = vsel %vm2869, %v2837, %v2901
    %v2934 = vsel %vm2870, %v2838, %v2902
    %v2935 = vsel %vm2871, %v2839, %v2903
    %v2936 = vsel %vm2872, %v2840, %v2904
    %v2937 = vsel %vm2873, %v2841, %v2905
    %v2938 = vsel %vm2874, %v2842, %v2906
    %v2939 = vsel %vm2875, %v2843, %v2907
    %v2940 = vsel %vm2876, %v2844, %v2908
    %v2941 = vsel %vm2877, %v2845, %v2909
    %v2942 = vsel %vm2878, %v2846, %v2910
    %v2943 = vsel %vm2879, %v2847, %v2911
    %v2944 = vsel %vm2880, %v2848, %v2912
    %v2945 = vsel %vm2881, %v2849, %v2913
    %v2946 = vsel %vm2882, %v2850, %v2914
    %v2947 = vsel %vm2883, %v2851, %v2915
    %v2948 = vsel %vm2884, %v2852, %v2916
    %v2949 = vsel %vm2885, %v2853, %v2917
    %v2950 = vsel %vm2886, %v2854, %v2918
    %v2951 = vsel %vm2887, %v2855, %v2919
    %v2952 = vsel %vm2888, %v2856, %v2920
    %v2953 = vsel %vm2889, %v2857, %v2921
    %v2954 = vsel %vm2890, %v2858, %v2922
    %v2955 = vsel %vm2891, %v2859, %v2923
    %v2956 = vsel %vm2892, %v2860, %v2924
    %v2957 = vsel %vm2893, %v2861, %v2925
    %v2958 = vsel %vm2894, %v2862, %v2926
    %v2959 = vsel %vm2895, %v2863, %v2927
    %v2960 = vsel %vm2896, %v2864, %v2928
    %v2961 = vsel %vm2897, %v2865, %v2929
    %v2962 = vpack.c.bf16 %v2931, %v2930
    %v2963 = vpack.c.bf16 %v2933, %v2932
    %v2964 = vpack.c.bf16 %v2935, %v2934
    %v2965 = vpack.c.bf16 %v2937, %v2936
    %v2966 = vpack.c.bf16 %v2939, %v2938
    %v2967 = vpack.c.bf16 %v2941, %v2940
    %v2968 = vpack.c.bf16 %v2943, %v2942
    %v2969 = vpack.c.bf16 %v2945, %v2944
    %v2970 = vpack.c.bf16 %v2947, %v2946
    %v2971 = vpack.c.bf16 %v2949, %v2948
    %v2972 = vpack.c.bf16 %v2951, %v2950
    %v2973 = vpack.c.bf16 %v2953, %v2952
    %v2974 = vpack.c.bf16 %v2955, %v2954
    %v2975 = vpack.c.bf16 %v2957, %v2956
    %v2976 = vpack.c.bf16 %v2959, %v2958
    %v2977 = vpack.c.bf16 %v2961, %v2960
    %s2978 = scalar_lea.vmem [#allocation4], 256
    %v2979 = vld [vmem:[%s2978] sm:$0xf]
    %v2980 = vld [vmem:[%s2978 + $0x4] sm:$0xf]
    %v2981 = vld [vmem:[%s2978 + $0x8] sm:$0xf]
    %v2982 = vld [vmem:[%s2978 + $0xc] sm:$0xf]
    %v2983 = vld [vmem:[%s2978 + $0x10] sm:$0xf]
    %v2984 = vld [vmem:[%s2978 + $0x14] sm:$0xf]
    %v2985 = vld [vmem:[%s2978 + $0x18] sm:$0xf]
    %v2986 = vld [vmem:[%s2978 + $0x1c] sm:$0xf]
    %v2987 = vld [vmem:[%s2978 + $0x20] sm:$0xf]
    %v2988 = vld [vmem:[%s2978 + $0x24] sm:$0xf]
    %v2989 = vld [vmem:[%s2978 + $0x28] sm:$0xf]
    %v2990 = vld [vmem:[%s2978 + $0x2c] sm:$0xf]
    %v2991 = vld [vmem:[%s2978 + $0x30] sm:$0xf]
    %v2992 = vld [vmem:[%s2978 + $0x34] sm:$0xf]
    %v2993 = vld [vmem:[%s2978 + $0x38] sm:$0xf]
    %v2994 = vld [vmem:[%s2978 + $0x3c] sm:$0xf]
    %v3011 = vunpack.c.l.b16 %v2979
    %v3012 = vunpack.c.l.b16 %v2980
    %v3013 = vunpack.c.l.b16 %v2981
    %v3014 = vunpack.c.l.b16 %v2982
    %v3015 = vunpack.c.l.b16 %v2983
    %v3016 = vunpack.c.l.b16 %v2984
    %v3017 = vunpack.c.l.b16 %v2985
    %v3018 = vunpack.c.l.b16 %v2986
    %v3019 = vunpack.c.l.b16 %v2987
    %v3020 = vunpack.c.l.b16 %v2988
    %v3021 = vunpack.c.l.b16 %v2989
    %v3022 = vunpack.c.l.b16 %v2990
    %v3023 = vunpack.c.l.b16 %v2991
    %v3024 = vunpack.c.l.b16 %v2992
    %v3025 = vunpack.c.l.b16 %v2993
    %v3026 = vunpack.c.l.b16 %v2994
    %v3027 = vpack.c.b16 %v3012, %v3011
    %v3028 = vpack.c.b16 %v3014, %v3013
    %v3029 = vpack.c.b16 %v3016, %v3015
    %v3030 = vpack.c.b16 %v3018, %v3017
    %v3031 = vpack.c.b16 %v3020, %v3019
    %v3032 = vpack.c.b16 %v3022, %v3021
    %v3033 = vpack.c.b16 %v3024, %v3023
    %v3034 = vpack.c.b16 %v3026, %v3025
    %3043 = vmatprep.subr.bf16.mxu0 0
    %3044 = vmatpush1.bf16.msra.mxu0 %v3034
    %3045 = vmatprep.subr.bf16.mxu0 0
    %3046 = vmatpush1.bf16.msra.mxu0 %v3033
    %3047 = vmatprep.subr.bf16.mxu0 0
    %3048 = vmatpush1.bf16.msra.mxu0 %v3032
    %3049 = vmatprep.subr.bf16.mxu0 0
    %3050 = vmatpush1.bf16.msra.mxu0 %v3031
    %3051 = vmatprep.subr.bf16.mxu0 0
    %3052 = vmatpush1.bf16.msra.mxu0 %v3030
    %3053 = vmatprep.subr.bf16.mxu0 0
    %3054 = vmatpush1.bf16.msra.mxu0 %v3029
    %3055 = vmatprep.subr.bf16.mxu0 0
    %3056 = vmatpush1.bf16.msra.mxu0 %v3028
    %3057 = vmatprep.subr.bf16.mxu0 0
    %3058 = vmatpush1.bf16.msra.mxu0 %v3027
    %3059 = vmatprep.subr.bf16.mxu0 0
    %3060 = vmatpush2.bf16.msra.mxu0 0
    %3061 = vmatprep.subr.bf16.mxu0 0
    %3062 = vmatpush2.bf16.msra.mxu0 0
    %3063 = vmatprep.subr.bf16.mxu0 0
    %3064 = vmatpush2.bf16.msra.mxu0 0
    %3065 = vmatprep.subr.bf16.mxu0 0
    %3066 = vmatpush2.bf16.msra.mxu0 0
    %3067 = vmatprep.subr.bf16.mxu0 0
    %3068 = vmatpush2.bf16.msra.mxu0 0
    %3069 = vmatprep.subr.bf16.mxu0 0
    %3070 = vmatpush2.bf16.msra.mxu0 0
    %3071 = vmatprep.subr.bf16.mxu0 0
    %3072 = vmatpush2.bf16.msra.mxu0 0
    %3073 = vmatprep.subr.bf16.mxu0 0
    %3074 = vmatpush2.bf16.msra.mxu0 0
    %3075 = vmatprep.mubr.bf16.mxu0 0
    %3076 = vmatmul.mubr.bf16.gmra.mxu0 %v2962
    %v3077 = vpop.f32.mrf.mxu0
    %v3078 = vadd.f32 0.0, %v3077
    %v3079 = vpop.f32.mrf.mxu0
    %v3080 = vpop.f32.mrf.mxu0
    %v3081 = vadd.f32 0.0, %v3080
    %v3082 = vpop.f32.mrf.mxu0
    %3083 = vmatprep.mubr.bf16.mxu0 0
    %3084 = vmatmul.mubr.bf16.gmra.mxu0 %v2963
    %v3085 = vpop.f32.mrf.mxu0
    %v3086 = vadd.f32 0.0, %v3085
    %v3087 = vpop.f32.mrf.mxu0
    %v3088 = vpop.f32.mrf.mxu0
    %v3089 = vadd.f32 0.0, %v3088
    %v3090 = vpop.f32.mrf.mxu0
    %3091 = vmatprep.mubr.bf16.mxu0 0
    %3092 = vmatmul.mubr.bf16.gmra.mxu0 %v2964
    %v3093 = vpop.f32.mrf.mxu0
    %v3094 = vadd.f32 0.0, %v3093
    %v3095 = vpop.f32.mrf.mxu0
    %v3096 = vpop.f32.mrf.mxu0
    %v3097 = vadd.f32 0.0, %v3096
    %v3098 = vpop.f32.mrf.mxu0
    %3099 = vmatprep.mubr.bf16.mxu0 0
    %3100 = vmatmul.mubr.bf16.gmra.mxu0 %v2965
    %v3101 = vpop.f32.mrf.mxu0
    %v3102 = vadd.f32 0.0, %v3101
    %v3103 = vpop.f32.mrf.mxu0
    %v3104 = vpop.f32.mrf.mxu0
    %v3105 = vadd.f32 0.0, %v3104
    %v3106 = vpop.f32.mrf.mxu0
    %3107 = vmatprep.mubr.bf16.mxu0 0
    %3108 = vmatmul.mubr.bf16.gmra.mxu0 %v2966
    %v3109 = vpop.f32.mrf.mxu0
    %v3110 = vadd.f32 0.0, %v3109
    %v3111 = vpop.f32.mrf.mxu0
    %v3112 = vpop.f32.mrf.mxu0
    %v3113 = vadd.f32 0.0, %v3112
    %v3114 = vpop.f32.mrf.mxu0
    %3115 = vmatprep.mubr.bf16.mxu0 0
    %3116 = vmatmul.mubr.bf16.gmra.mxu0 %v2967
    %v3117 = vpop.f32.mrf.mxu0
    %v3118 = vadd.f32 0.0, %v3117
    %v3119 = vpop.f32.mrf.mxu0
    %v3120 = vpop.f32.mrf.mxu0
    %v3121 = vadd.f32 0.0, %v3120
    %v3122 = vpop.f32.mrf.mxu0
    %3123 = vmatprep.mubr.bf16.mxu0 0
    %3124 = vmatmul.mubr.bf16.gmra.mxu0 %v2968
    %v3125 = vpop.f32.mrf.mxu0
    %v3126 = vadd.f32 0.0, %v3125
    %v3127 = vpop.f32.mrf.mxu0
    %v3128 = vpop.f32.mrf.mxu0
    %v3129 = vadd.f32 0.0, %v3128
    %v3130 = vpop.f32.mrf.mxu0
    %3131 = vmatprep.mubr.bf16.mxu0 0
    %3132 = vmatmul.mubr.bf16.gmra.mxu0 %v2969
    %v3133 = vpop.f32.mrf.mxu0
    %v3134 = vadd.f32 0.0, %v3133
    %v3135 = vpop.f32.mrf.mxu0
    %v3136 = vpop.f32.mrf.mxu0
    %v3137 = vadd.f32 0.0, %v3136
    %v3138 = vpop.f32.mrf.mxu0
    %3139 = vmatprep.mubr.bf16.mxu0 0
    %3140 = vmatmul.mubr.bf16.gmra.mxu0 %v2970
    %v3141 = vpop.f32.mrf.mxu0
    %v3142 = vadd.f32 0.0, %v3141
    %v3143 = vpop.f32.mrf.mxu0
    %v3144 = vpop.f32.mrf.mxu0
    %v3145 = vadd.f32 0.0, %v3144
    %v3146 = vpop.f32.mrf.mxu0
    %3147 = vmatprep.mubr.bf16.mxu0 0
    %3148 = vmatmul.mubr.bf16.gmra.mxu0 %v2971
    %v3149 = vpop.f32.mrf.mxu0
    %v3150 = vadd.f32 0.0, %v3149
    %v3151 = vpop.f32.mrf.mxu0
    %v3152 = vpop.f32.mrf.mxu0
    %v3153 = vadd.f32 0.0, %v3152
    %v3154 = vpop.f32.mrf.mxu0
    %3155 = vmatprep.mubr.bf16.mxu0 0
    %3156 = vmatmul.mubr.bf16.gmra.mxu0 %v2972
    %v3157 = vpop.f32.mrf.mxu0
    %v3158 = vadd.f32 0.0, %v3157
    %v3159 = vpop.f32.mrf.mxu0
    %v3160 = vpop.f32.mrf.mxu0
    %v3161 = vadd.f32 0.0, %v3160
    %v3162 = vpop.f32.mrf.mxu0
    %3163 = vmatprep.mubr.bf16.mxu0 0
    %3164 = vmatmul.mubr.bf16.gmra.mxu0 %v2973
    %v3165 = vpop.f32.mrf.mxu0
    %v3166 = vadd.f32 0.0, %v3165
    %v3167 = vpop.f32.mrf.mxu0
    %v3168 = vpop.f32.mrf.mxu0
    %v3169 = vadd.f32 0.0, %v3168
    %v3170 = vpop.f32.mrf.mxu0
    %3171 = vmatprep.mubr.bf16.mxu0 0
    %3172 = vmatmul.mubr.bf16.gmra.mxu0 %v2974
    %v3173 = vpop.f32.mrf.mxu0
    %v3174 = vadd.f32 0.0, %v3173
    %v3175 = vpop.f32.mrf.mxu0
    %v3176 = vpop.f32.mrf.mxu0
    %v3177 = vadd.f32 0.0, %v3176
    %v3178 = vpop.f32.mrf.mxu0
    %3179 = vmatprep.mubr.bf16.mxu0 0
    %3180 = vmatmul.mubr.bf16.gmra.mxu0 %v2975
    %v3181 = vpop.f32.mrf.mxu0
    %v3182 = vadd.f32 0.0, %v3181
    %v3183 = vpop.f32.mrf.mxu0
    %v3184 = vpop.f32.mrf.mxu0
    %v3185 = vadd.f32 0.0, %v3184
    %v3186 = vpop.f32.mrf.mxu0
    %3187 = vmatprep.mubr.bf16.mxu0 0
    %3188 = vmatmul.mubr.bf16.gmra.mxu0 %v2976
    %v3189 = vpop.f32.mrf.mxu0
    %v3190 = vadd.f32 0.0, %v3189
    %v3191 = vpop.f32.mrf.mxu0
    %v3192 = vpop.f32.mrf.mxu0
    %v3193 = vadd.f32 0.0, %v3192
    %v3194 = vpop.f32.mrf.mxu0
    %3195 = vmatprep.mubr.bf16.mxu0 0
    %3196 = vmatmul.mubr.bf16.gmra.mxu0 %v2977
    %v3197 = vpop.f32.mrf.mxu0
    %v3198 = vadd.f32 0.0, %v3197
    %v3199 = vpop.f32.mrf.mxu0
    %v3200 = vpop.f32.mrf.mxu0
    %v3201 = vadd.f32 0.0, %v3200
    %v3202 = vpop.f32.mrf.mxu0
    %3203 = vdwg.mxu0
    %v3204 = vpack.c.bf16 %v3081, %v3078
    %v3205 = vpack.c.bf16 %v3089, %v3086
    %v3206 = vpack.c.bf16 %v3097, %v3094
    %v3207 = vpack.c.bf16 %v3105, %v3102
    %v3208 = vpack.c.bf16 %v3113, %v3110
    %v3209 = vpack.c.bf16 %v3121, %v3118
    %v3210 = vpack.c.bf16 %v3129, %v3126
    %v3211 = vpack.c.bf16 %v3137, %v3134
    %v3212 = vpack.c.bf16 %v3145, %v3142
    %v3213 = vpack.c.bf16 %v3153, %v3150
    %v3214 = vpack.c.bf16 %v3161, %v3158
    %v3215 = vpack.c.bf16 %v3169, %v3166
    %v3216 = vpack.c.bf16 %v3177, %v3174
    %v3217 = vpack.c.bf16 %v3185, %v3182
    %v3218 = vpack.c.bf16 %v3193, %v3190
    %v3219 = vpack.c.bf16 %v3201, %v3198
    %s3220 = scalar_lea.vmem [#allocation2], 1024
    %v3221 = vld [vmem:[%s3220] sm:$0xff]
    %v3222 = vld [vmem:[%s3220 + $0x8] sm:$0xff]
    %v3223 = vld [vmem:[%s3220 + $0x10] sm:$0xff]
    %v3224 = vld [vmem:[%s3220 + $0x18] sm:$0xff]
    %v3225 = vld [vmem:[%s3220 + $0x20] sm:$0xff]
    %v3226 = vld [vmem:[%s3220 + $0x28] sm:$0xff]
    %v3227 = vld [vmem:[%s3220 + $0x30] sm:$0xff]
    %v3228 = vld [vmem:[%s3220 + $0x38] sm:$0xff]
    %v3229 = vld [vmem:[%s3220 + $0x40] sm:$0xff]
    %v3230 = vld [vmem:[%s3220 + $0x48] sm:$0xff]
    %v3231 = vld [vmem:[%s3220 + $0x50] sm:$0xff]
    %v3232 = vld [vmem:[%s3220 + $0x58] sm:$0xff]
    %v3233 = vld [vmem:[%s3220 + $0x60] sm:$0xff]
    %v3234 = vld [vmem:[%s3220 + $0x68] sm:$0xff]
    %v3235 = vld [vmem:[%s3220 + $0x70] sm:$0xff]
    %v3236 = vld [vmem:[%s3220 + $0x78] sm:$0xff]
    %v3237 = vld [vmem:[%s3220 + $0x80] sm:$0xff]
    %v3238 = vld [vmem:[%s3220 + $0x88] sm:$0xff]
    %v3239 = vld [vmem:[%s3220 + $0x90] sm:$0xff]
    %v3240 = vld [vmem:[%s3220 + $0x98] sm:$0xff]
    %v3241 = vld [vmem:[%s3220 + $0xa0] sm:$0xff]
    %v3242 = vld [vmem:[%s3220 + $0xa8] sm:$0xff]
    %v3243 = vld [vmem:[%s3220 + $0xb0] sm:$0xff]
    %v3244 = vld [vmem:[%s3220 + $0xb8] sm:$0xff]
    %v3245 = vld [vmem:[%s3220 + $0xc0] sm:$0xff]
    %v3246 = vld [vmem:[%s3220 + $0xc8] sm:$0xff]
    %v3247 = vld [vmem:[%s3220 + $0xd0] sm:$0xff]
    %v3248 = vld [vmem:[%s3220 + $0xd8] sm:$0xff]
    %v3249 = vld [vmem:[%s3220 + $0xe0] sm:$0xff]
    %v3250 = vld [vmem:[%s3220 + $0xe8] sm:$0xff]
    %v3251 = vld [vmem:[%s3220 + $0xf0] sm:$0xff]
    %v3252 = vld [vmem:[%s3220 + $0xf8] sm:$0xff]
    %s3253 = scalar_lea.vmem [#allocation4], 320
    %v3254 = vld [vmem:[%s3253] sm:$0xf]
    %v3255 = vld [vmem:[%s3253 + $0x4] sm:$0xf]
    %v3256 = vld [vmem:[%s3253 + $0x8] sm:$0xf]
    %v3257 = vld [vmem:[%s3253 + $0xc] sm:$0xf]
    %v3258 = vld [vmem:[%s3253 + $0x10] sm:$0xf]
    %v3259 = vld [vmem:[%s3253 + $0x14] sm:$0xf]
    %v3260 = vld [vmem:[%s3253 + $0x18] sm:$0xf]
    %v3261 = vld [vmem:[%s3253 + $0x1c] sm:$0xf]
    %v3262 = vld [vmem:[%s3253 + $0x20] sm:$0xf]
    %v3263 = vld [vmem:[%s3253 + $0x24] sm:$0xf]
    %v3264 = vld [vmem:[%s3253 + $0x28] sm:$0xf]
    %v3265 = vld [vmem:[%s3253 + $0x2c] sm:$0xf]
    %v3266 = vld [vmem:[%s3253 + $0x30] sm:$0xf]
    %v3267 = vld [vmem:[%s3253 + $0x34] sm:$0xf]
    %v3268 = vld [vmem:[%s3253 + $0x38] sm:$0xf]
    %v3269 = vld [vmem:[%s3253 + $0x3c] sm:$0xf]
    %v3286 = vunpack.c.l.b16 %v3254
    %v3287 = vunpack.c.l.b16 %v3255
    %v3288 = vunpack.c.l.b16 %v3256
    %v3289 = vunpack.c.l.b16 %v3257
    %v3290 = vunpack.c.l.b16 %v3258
    %v3291 = vunpack.c.l.b16 %v3259
    %v3292 = vunpack.c.l.b16 %v3260
    %v3293 = vunpack.c.l.b16 %v3261
    %v3294 = vunpack.c.l.b16 %v3262
    %v3295 = vunpack.c.l.b16 %v3263
    %v3296 = vunpack.c.l.b16 %v3264
    %v3297 = vunpack.c.l.b16 %v3265
    %v3298 = vunpack.c.l.b16 %v3266
    %v3299 = vunpack.c.l.b16 %v3267
    %v3300 = vunpack.c.l.b16 %v3268
    %v3301 = vunpack.c.l.b16 %v3269
    %v3302 = vpack.c.b16 %v3287, %v3286
    %v3303 = vpack.c.b16 %v3289, %v3288
    %v3304 = vpack.c.b16 %v3291, %v3290
    %v3305 = vpack.c.b16 %v3293, %v3292
    %v3306 = vpack.c.b16 %v3295, %v3294
    %v3307 = vpack.c.b16 %v3297, %v3296
    %v3308 = vpack.c.b16 %v3299, %v3298
    %v3309 = vpack.c.b16 %v3301, %v3300
    %3318 = vmatprep.subr.bf16.mxu0 0
    %3319 = vmatpush1.bf16.msra.mxu0 %v3309
    %3320 = vmatprep.subr.bf16.mxu0 0
    %3321 = vmatpush1.bf16.msra.mxu0 %v3308
    %3322 = vmatprep.subr.bf16.mxu0 0
    %3323 = vmatpush1.bf16.msra.mxu0 %v3307
    %3324 = vmatprep.subr.bf16.mxu0 0
    %3325 = vmatpush1.bf16.msra.mxu0 %v3306
    %3326 = vmatprep.subr.bf16.mxu0 0
    %3327 = vmatpush1.bf16.msra.mxu0 %v3305
    %3328 = vmatprep.subr.bf16.mxu0 0
    %3329 = vmatpush1.bf16.msra.mxu0 %v3304
    %3330 = vmatprep.subr.bf16.mxu0 0
    %3331 = vmatpush1.bf16.msra.mxu0 %v3303
    %3332 = vmatprep.subr.bf16.mxu0 0
    %3333 = vmatpush1.bf16.msra.mxu0 %v3302
    %3334 = vmatprep.subr.bf16.mxu0 0
    %3335 = vmatpush2.bf16.msra.mxu0 0
    %3336 = vmatprep.subr.bf16.mxu0 0
    %3337 = vmatpush2.bf16.msra.mxu0 0
    %3338 = vmatprep.subr.bf16.mxu0 0
    %3339 = vmatpush2.bf16.msra.mxu0 0
    %3340 = vmatprep.subr.bf16.mxu0 0
    %3341 = vmatpush2.bf16.msra.mxu0 0
    %3342 = vmatprep.subr.bf16.mxu0 0
    %3343 = vmatpush2.bf16.msra.mxu0 0
    %3344 = vmatprep.subr.bf16.mxu0 0
    %3345 = vmatpush2.bf16.msra.mxu0 0
    %3346 = vmatprep.subr.bf16.mxu0 0
    %3347 = vmatpush2.bf16.msra.mxu0 0
    %3348 = vmatprep.subr.bf16.mxu0 0
    %3349 = vmatpush2.bf16.msra.mxu0 0
    %3350 = vmatprep.mubr.bf16.mxu0 0
    %3351 = vmatmul.mubr.bf16.gmra.mxu0 %v2962
    %v3352 = vpop.f32.mrf.mxu0
    %v3353 = vadd.f32 0.0, %v3352
    %v3354 = vpop.f32.mrf.mxu0
    %v3355 = vpop.f32.mrf.mxu0
    %v3356 = vadd.f32 0.0, %v3355
    %v3357 = vpop.f32.mrf.mxu0
    %3358 = vmatprep.mubr.bf16.mxu0 0
    %3359 = vmatmul.mubr.bf16.gmra.mxu0 %v2963
    %v3360 = vpop.f32.mrf.mxu0
    %v3361 = vadd.f32 0.0, %v3360
    %v3362 = vpop.f32.mrf.mxu0
    %v3363 = vpop.f32.mrf.mxu0
    %v3364 = vadd.f32 0.0, %v3363
    %v3365 = vpop.f32.mrf.mxu0
    %3366 = vmatprep.mubr.bf16.mxu0 0
    %3367 = vmatmul.mubr.bf16.gmra.mxu0 %v2964
    %v3368 = vpop.f32.mrf.mxu0
    %v3369 = vadd.f32 0.0, %v3368
    %v3370 = vpop.f32.mrf.mxu0
    %v3371 = vpop.f32.mrf.mxu0
    %v3372 = vadd.f32 0.0, %v3371
    %v3373 = vpop.f32.mrf.mxu0
    %3374 = vmatprep.mubr.bf16.mxu0 0
    %3375 = vmatmul.mubr.bf16.gmra.mxu0 %v2965
    %v3376 = vpop.f32.mrf.mxu0
    %v3377 = vadd.f32 0.0, %v3376
    %v3378 = vpop.f32.mrf.mxu0
    %v3379 = vpop.f32.mrf.mxu0
    %v3380 = vadd.f32 0.0, %v3379
    %v3381 = vpop.f32.mrf.mxu0
    %3382 = vmatprep.mubr.bf16.mxu0 0
    %3383 = vmatmul.mubr.bf16.gmra.mxu0 %v2966
    %v3384 = vpop.f32.mrf.mxu0
    %v3385 = vadd.f32 0.0, %v3384
    %v3386 = vpop.f32.mrf.mxu0
    %v3387 = vpop.f32.mrf.mxu0
    %v3388 = vadd.f32 0.0, %v3387
    %v3389 = vpop.f32.mrf.mxu0
    %3390 = vmatprep.mubr.bf16.mxu0 0
    %3391 = vmatmul.mubr.bf16.gmra.mxu0 %v2967
    %v3392 = vpop.f32.mrf.mxu0
    %v3393 = vadd.f32 0.0, %v3392
    %v3394 = vpop.f32.mrf.mxu0
    %v3395 = vpop.f32.mrf.mxu0
    %v3396 = vadd.f32 0.0, %v3395
    %v3397 = vpop.f32.mrf.mxu0
    %3398 = vmatprep.mubr.bf16.mxu0 0
    %3399 = vmatmul.mubr.bf16.gmra.mxu0 %v2968
    %v3400 = vpop.f32.mrf.mxu0
    %v3401 = vadd.f32 0.0, %v3400
    %v3402 = vpop.f32.mrf.mxu0
    %v3403 = vpop.f32.mrf.mxu0
    %v3404 = vadd.f32 0.0, %v3403
    %v3405 = vpop.f32.mrf.mxu0
    %3406 = vmatprep.mubr.bf16.mxu0 0
    %3407 = vmatmul.mubr.bf16.gmra.mxu0 %v2969
    %v3408 = vpop.f32.mrf.mxu0
    %v3409 = vadd.f32 0.0, %v3408
    %v3410 = vpop.f32.mrf.mxu0
    %v3411 = vpop.f32.mrf.mxu0
    %v3412 = vadd.f32 0.0, %v3411
    %v3413 = vpop.f32.mrf.mxu0
    %3414 = vmatprep.mubr.bf16.mxu0 0
    %3415 = vmatmul.mubr.bf16.gmra.mxu0 %v2970
    %v3416 = vpop.f32.mrf.mxu0
    %v3417 = vadd.f32 0.0, %v3416
    %v3418 = vpop.f32.mrf.mxu0
    %v3419 = vpop.f32.mrf.mxu0
    %v3420 = vadd.f32 0.0, %v3419
    %v3421 = vpop.f32.mrf.mxu0
    %3422 = vmatprep.mubr.bf16.mxu0 0
    %3423 = vmatmul.mubr.bf16.gmra.mxu0 %v2971
    %v3424 = vpop.f32.mrf.mxu0
    %v3425 = vadd.f32 0.0, %v3424
    %v3426 = vpop.f32.mrf.mxu0
    %v3427 = vpop.f32.mrf.mxu0
    %v3428 = vadd.f32 0.0, %v3427
    %v3429 = vpop.f32.mrf.mxu0
    %3430 = vmatprep.mubr.bf16.mxu0 0
    %3431 = vmatmul.mubr.bf16.gmra.mxu0 %v2972
    %v3432 = vpop.f32.mrf.mxu0
    %v3433 = vadd.f32 0.0, %v3432
    %v3434 = vpop.f32.mrf.mxu0
    %v3435 = vpop.f32.mrf.mxu0
    %v3436 = vadd.f32 0.0, %v3435
    %v3437 = vpop.f32.mrf.mxu0
    %3438 = vmatprep.mubr.bf16.mxu0 0
    %3439 = vmatmul.mubr.bf16.gmra.mxu0 %v2973
    %v3440 = vpop.f32.mrf.mxu0
    %v3441 = vadd.f32 0.0, %v3440
    %v3442 = vpop.f32.mrf.mxu0
    %v3443 = vpop.f32.mrf.mxu0
    %v3444 = vadd.f32 0.0, %v3443
    %v3445 = vpop.f32.mrf.mxu0
    %3446 = vmatprep.mubr.bf16.mxu0 0
    %3447 = vmatmul.mubr.bf16.gmra.mxu0 %v2974
    %v3448 = vpop.f32.mrf.mxu0
    %v3449 = vadd.f32 0.0, %v3448
    %v3450 = vpop.f32.mrf.mxu0
    %v3451 = vpop.f32.mrf.mxu0
    %v3452 = vadd.f32 0.0, %v3451
    %v3453 = vpop.f32.mrf.mxu0
    %3454 = vmatprep.mubr.bf16.mxu0 0
    %3455 = vmatmul.mubr.bf16.gmra.mxu0 %v2975
    %v3456 = vpop.f32.mrf.mxu0
    %v3457 = vadd.f32 0.0, %v3456
    %v3458 = vpop.f32.mrf.mxu0
    %v3459 = vpop.f32.mrf.mxu0
    %v3460 = vadd.f32 0.0, %v3459
    %v3461 = vpop.f32.mrf.mxu0
    %3462 = vmatprep.mubr.bf16.mxu0 0
    %3463 = vmatmul.mubr.bf16.gmra.mxu0 %v2976
    %v3464 = vpop.f32.mrf.mxu0
    %v3465 = vadd.f32 0.0, %v3464
    %v3466 = vpop.f32.mrf.mxu0
    %v3467 = vpop.f32.mrf.mxu0
    %v3468 = vadd.f32 0.0, %v3467
    %v3469 = vpop.f32.mrf.mxu0
    %3470 = vmatprep.mubr.bf16.mxu0 0
    %3471 = vmatmul.mubr.bf16.gmra.mxu0 %v2977
    %v3472 = vpop.f32.mrf.mxu0
    %v3473 = vadd.f32 0.0, %v3472
    %v3474 = vpop.f32.mrf.mxu0
    %v3475 = vpop.f32.mrf.mxu0
    %v3476 = vadd.f32 0.0, %v3475
    %v3477 = vpop.f32.mrf.mxu0
    %3478 = vdwg.mxu0
    %v3479 = vpack.c.bf16 %v3356, %v3353
    %v3480 = vpack.c.bf16 %v3364, %v3361
    %v3481 = vpack.c.bf16 %v3372, %v3369
    %v3482 = vpack.c.bf16 %v3380, %v3377
    %v3483 = vpack.c.bf16 %v3388, %v3385
    %v3484 = vpack.c.bf16 %v3396, %v3393
    %v3485 = vpack.c.bf16 %v3404, %v3401
    %v3486 = vpack.c.bf16 %v3412, %v3409
    %v3487 = vpack.c.bf16 %v3420, %v3417
    %v3488 = vpack.c.bf16 %v3428, %v3425
    %v3489 = vpack.c.bf16 %v3436, %v3433
    %v3490 = vpack.c.bf16 %v3444, %v3441
    %v3491 = vpack.c.bf16 %v3452, %v3449
    %v3492 = vpack.c.bf16 %v3460, %v3457
    %v3493 = vpack.c.bf16 %v3468, %v3465
    %v3494 = vpack.c.bf16 %v3476, %v3473
    %s3495 = scalar_lea.vmem [#allocation2], 1280
    %v3496 = vld [vmem:[%s3495] sm:$0xff]
    %v3497 = vld [vmem:[%s3495 + $0x8] sm:$0xff]
    %v3498 = vld [vmem:[%s3495 + $0x10] sm:$0xff]
    %v3499 = vld [vmem:[%s3495 + $0x18] sm:$0xff]
    %v3500 = vld [vmem:[%s3495 + $0x20] sm:$0xff]
    %v3501 = vld [vmem:[%s3495 + $0x28] sm:$0xff]
    %v3502 = vld [vmem:[%s3495 + $0x30] sm:$0xff]
    %v3503 = vld [vmem:[%s3495 + $0x38] sm:$0xff]
    %v3504 = vld [vmem:[%s3495 + $0x40] sm:$0xff]
    %v3505 = vld [vmem:[%s3495 + $0x48] sm:$0xff]
    %v3506 = vld [vmem:[%s3495 + $0x50] sm:$0xff]
    %v3507 = vld [vmem:[%s3495 + $0x58] sm:$0xff]
    %v3508 = vld [vmem:[%s3495 + $0x60] sm:$0xff]
    %v3509 = vld [vmem:[%s3495 + $0x68] sm:$0xff]
    %v3510 = vld [vmem:[%s3495 + $0x70] sm:$0xff]
    %v3511 = vld [vmem:[%s3495 + $0x78] sm:$0xff]
    %v3512 = vld [vmem:[%s3495 + $0x80] sm:$0xff]
    %v3513 = vld [vmem:[%s3495 + $0x88] sm:$0xff]
    %v3514 = vld [vmem:[%s3495 + $0x90] sm:$0xff]
    %v3515 = vld [vmem:[%s3495 + $0x98] sm:$0xff]
    %v3516 = vld [vmem:[%s3495 + $0xa0] sm:$0xff]
    %v3517 = vld [vmem:[%s3495 + $0xa8] sm:$0xff]
    %v3518 = vld [vmem:[%s3495 + $0xb0] sm:$0xff]
    %v3519 = vld [vmem:[%s3495 + $0xb8] sm:$0xff]
    %v3520 = vld [vmem:[%s3495 + $0xc0] sm:$0xff]
    %v3521 = vld [vmem:[%s3495 + $0xc8] sm:$0xff]
    %v3522 = vld [vmem:[%s3495 + $0xd0] sm:$0xff]
    %v3523 = vld [vmem:[%s3495 + $0xd8] sm:$0xff]
    %v3524 = vld [vmem:[%s3495 + $0xe0] sm:$0xff]
    %v3525 = vld [vmem:[%s3495 + $0xe8] sm:$0xff]
    %v3526 = vld [vmem:[%s3495 + $0xf0] sm:$0xff]
    %v3527 = vld [vmem:[%s3495 + $0xf8] sm:$0xff]
    %v3560 = vunpack.c.l.b16 %v3496
    %v3561 = vunpack.c.h.b16 %v3496
    %v3562 = vunpack.c.l.b16 %v3497
    %v3563 = vunpack.c.h.b16 %v3497
    %v3564 = vunpack.c.l.b16 %v3498
    %v3565 = vunpack.c.h.b16 %v3498
    %v3566 = vunpack.c.l.b16 %v3499
    %v3567 = vunpack.c.h.b16 %v3499
    %v3568 = vunpack.c.l.b16 %v3500
    %v3569 = vunpack.c.h.b16 %v3500
    %v3570 = vunpack.c.l.b16 %v3501
    %v3571 = vunpack.c.h.b16 %v3501
    %v3572 = vunpack.c.l.b16 %v3502
    %v3573 = vunpack.c.h.b16 %v3502
    %v3574 = vunpack.c.l.b16 %v3503
    %v3575 = vunpack.c.h.b16 %v3503
    %v3576 = vunpack.c.l.b16 %v3504
    %v3577 = vunpack.c.h.b16 %v3504
    %v3578 = vunpack.c.l.b16 %v3505
    %v3579 = vunpack.c.h.b16 %v3505
    %v3580 = vunpack.c.l.b16 %v3506
    %v3581 = vunpack.c.h.b16 %v3506
    %v3582 = vunpack.c.l.b16 %v3507
    %v3583 = vunpack.c.h.b16 %v3507
    %v3584 = vunpack.c.l.b16 %v3508
    %v3585 = vunpack.c.h.b16 %v3508
    %v3586 = vunpack.c.l.b16 %v3509
    %v3587 = vunpack.c.h.b16 %v3509
    %v3588 = vunpack.c.l.b16 %v3510
    %v3589 = vunpack.c.h.b16 %v3510
    %v3590 = vunpack.c.l.b16 %v3511
    %v3591 = vunpack.c.h.b16 %v3511
    %v3592 = vunpack.c.l.b16 %v3512
    %v3593 = vunpack.c.h.b16 %v3512
    %v3594 = vunpack.c.l.b16 %v3513
    %v3595 = vunpack.c.h.b16 %v3513
    %v3596 = vunpack.c.l.b16 %v3514
    %v3597 = vunpack.c.h.b16 %v3514
    %v3598 = vunpack.c.l.b16 %v3515
    %v3599 = vunpack.c.h.b16 %v3515
    %v3600 = vunpack.c.l.b16 %v3516
    %v3601 = vunpack.c.h.b16 %v3516
    %v3602 = vunpack.c.l.b16 %v3517
    %v3603 = vunpack.c.h.b16 %v3517
    %v3604 = vunpack.c.l.b16 %v3518
    %v3605 = vunpack.c.h.b16 %v3518
    %v3606 = vunpack.c.l.b16 %v3519
    %v3607 = vunpack.c.h.b16 %v3519
    %v3608 = vunpack.c.l.b16 %v3520
    %v3609 = vunpack.c.h.b16 %v3520
    %v3610 = vunpack.c.l.b16 %v3521
    %v3611 = vunpack.c.h.b16 %v3521
    %v3612 = vunpack.c.l.b16 %v3522
    %v3613 = vunpack.c.h.b16 %v3522
    %v3614 = vunpack.c.l.b16 %v3523
    %v3615 = vunpack.c.h.b16 %v3523
    %v3616 = vunpack.c.l.b16 %v3524
    %v3617 = vunpack.c.h.b16 %v3524
    %v3618 = vunpack.c.l.b16 %v3525
    %v3619 = vunpack.c.h.b16 %v3525
    %v3620 = vunpack.c.l.b16 %v3526
    %v3621 = vunpack.c.h.b16 %v3526
    %v3622 = vunpack.c.l.b16 %v3527
    %v3623 = vunpack.c.h.b16 %v3527
    %v3624 = vpack.c.b16 %v3562, %v3560
    %v3625 = vpack.c.b16 %v3563, %v3561
    %v3626 = vpack.c.b16 %v3566, %v3564
    %v3627 = vpack.c.b16 %v3567, %v3565
    %v3628 = vpack.c.b16 %v3570, %v3568
    %v3629 = vpack.c.b16 %v3571, %v3569
    %v3630 = vpack.c.b16 %v3574, %v3572
    %v3631 = vpack.c.b16 %v3575, %v3573
    %v3632 = vpack.c.b16 %v3578, %v3576
    %v3633 = vpack.c.b16 %v3579, %v3577
    %v3634 = vpack.c.b16 %v3582, %v3580
    %v3635 = vpack.c.b16 %v3583, %v3581
    %v3636 = vpack.c.b16 %v3586, %v3584
    %v3637 = vpack.c.b16 %v3587, %v3585
    %v3638 = vpack.c.b16 %v3590, %v3588
    %v3639 = vpack.c.b16 %v3591, %v3589
    %v3640 = vpack.c.b16 %v3594, %v3592
    %v3641 = vpack.c.b16 %v3595, %v3593
    %v3642 = vpack.c.b16 %v3598, %v3596
    %v3643 = vpack.c.b16 %v3599, %v3597
    %v3644 = vpack.c.b16 %v3602, %v3600
    %v3645 = vpack.c.b16 %v3603, %v3601
    %v3646 = vpack.c.b16 %v3606, %v3604
    %v3647 = vpack.c.b16 %v3607, %v3605
    %v3648 = vpack.c.b16 %v3610, %v3608
    %v3649 = vpack.c.b16 %v3611, %v3609
    %v3650 = vpack.c.b16 %v3614, %v3612
    %v3651 = vpack.c.b16 %v3615, %v3613
    %v3652 = vpack.c.b16 %v3618, %v3616
    %v3653 = vpack.c.b16 %v3619, %v3617
    %v3654 = vpack.c.b16 %v3622, %v3620
    %v3655 = vpack.c.b16 %v3623, %v3621
    %3688 = vmatprep.subr.bf16.mxu0 0
    %3689 = vmatpush1.bf16.msra.mxu0 %v3486
    %3690 = vmatprep.subr.bf16.mxu0 0
    %3691 = vmatpush1.bf16.msra.mxu0 %v3485
    %3692 = vmatprep.subr.bf16.mxu0 0
    %3693 = vmatpush1.bf16.msra.mxu0 %v3484
    %3694 = vmatprep.subr.bf16.mxu0 0
    %3695 = vmatpush1.bf16.msra.mxu0 %v3483
    %3696 = vmatprep.subr.bf16.mxu0 0
    %3697 = vmatpush1.bf16.msra.mxu0 %v3482
    %3698 = vmatprep.subr.bf16.mxu0 0
    %3699 = vmatpush1.bf16.msra.mxu0 %v3481
    %3700 = vmatprep.subr.bf16.mxu0 0
    %3701 = vmatpush1.bf16.msra.mxu0 %v3480
    %3702 = vmatprep.subr.bf16.mxu0 0
    %3703 = vmatpush1.bf16.msra.mxu0 %v3479
    %3704 = vmatprep.subr.bf16.mxu0 0
    %3705 = vmatpush2.bf16.msra.mxu0 %v3494
    %3706 = vmatprep.subr.bf16.mxu0 0
    %3707 = vmatpush2.bf16.msra.mxu0 %v3493
    %3708 = vmatprep.subr.bf16.mxu0 0
    %3709 = vmatpush2.bf16.msra.mxu0 %v3492
    %3710 = vmatprep.subr.bf16.mxu0 0
    %3711 = vmatpush2.bf16.msra.mxu0 %v3491
    %3712 = vmatprep.subr.bf16.mxu0 0
    %3713 = vmatpush2.bf16.msra.mxu0 %v3490
    %3714 = vmatprep.subr.bf16.mxu0 0
    %3715 = vmatpush2.bf16.msra.mxu0 %v3489
    %3716 = vmatprep.subr.bf16.mxu0 0
    %3717 = vmatpush2.bf16.msra.mxu0 %v3488
    %3718 = vmatprep.subr.bf16.mxu0 0
    %3719 = vmatpush2.bf16.msra.mxu0 %v3487
    %3720 = vmatprep.mubr.bf16.mxu0 %v3625
    %3721 = vmatmul.mubr.bf16.gmra.mxu0 %v3624
    %v3722 = vpop.f32.mrf.mxu0
    %v3723 = vadd.f32 0.0, %v3722
    %v3724 = vpop.f32.mrf.mxu0
    %v3725 = vpop.f32.mrf.mxu0
    %v3726 = vadd.f32 0.0, %v3725
    %v3727 = vpop.f32.mrf.mxu0
    %3728 = vmatprep.mubr.bf16.mxu0 %v3627
    %3729 = vmatmul.mubr.bf16.gmra.mxu0 %v3626
    %v3730 = vpop.f32.mrf.mxu0
    %v3731 = vadd.f32 0.0, %v3730
    %v3732 = vpop.f32.mrf.mxu0
    %v3733 = vpop.f32.mrf.mxu0
    %v3734 = vadd.f32 0.0, %v3733
    %v3735 = vpop.f32.mrf.mxu0
    %3736 = vmatprep.mubr.bf16.mxu0 %v3629
    %3737 = vmatmul.mubr.bf16.gmra.mxu0 %v3628
    %v3738 = vpop.f32.mrf.mxu0
    %v3739 = vadd.f32 0.0, %v3738
    %v3740 = vpop.f32.mrf.mxu0
    %v3741 = vpop.f32.mrf.mxu0
    %v3742 = vadd.f32 0.0, %v3741
    %v3743 = vpop.f32.mrf.mxu0
    %3744 = vmatprep.mubr.bf16.mxu0 %v3631
    %3745 = vmatmul.mubr.bf16.gmra.mxu0 %v3630
    %v3746 = vpop.f32.mrf.mxu0
    %v3747 = vadd.f32 0.0, %v3746
    %v3748 = vpop.f32.mrf.mxu0
    %v3749 = vpop.f32.mrf.mxu0
    %v3750 = vadd.f32 0.0, %v3749
    %v3751 = vpop.f32.mrf.mxu0
    %3752 = vmatprep.mubr.bf16.mxu0 %v3633
    %3753 = vmatmul.mubr.bf16.gmra.mxu0 %v3632
    %v3754 = vpop.f32.mrf.mxu0
    %v3755 = vadd.f32 0.0, %v3754
    %v3756 = vpop.f32.mrf.mxu0
    %v3757 = vpop.f32.mrf.mxu0
    %v3758 = vadd.f32 0.0, %v3757
    %v3759 = vpop.f32.mrf.mxu0
    %3760 = vmatprep.mubr.bf16.mxu0 %v3635
    %3761 = vmatmul.mubr.bf16.gmra.mxu0 %v3634
    %v3762 = vpop.f32.mrf.mxu0
    %v3763 = vadd.f32 0.0, %v3762
    %v3764 = vpop.f32.mrf.mxu0
    %v3765 = vpop.f32.mrf.mxu0
    %v3766 = vadd.f32 0.0, %v3765
    %v3767 = vpop.f32.mrf.mxu0
    %3768 = vmatprep.mubr.bf16.mxu0 %v3637
    %3769 = vmatmul.mubr.bf16.gmra.mxu0 %v3636
    %v3770 = vpop.f32.mrf.mxu0
    %v3771 = vadd.f32 0.0, %v3770
    %v3772 = vpop.f32.mrf.mxu0
    %v3773 = vpop.f32.mrf.mxu0
    %v3774 = vadd.f32 0.0, %v3773
    %v3775 = vpop.f32.mrf.mxu0
    %3776 = vmatprep.mubr.bf16.mxu0 %v3639
    %3777 = vmatmul.mubr.bf16.gmra.mxu0 %v3638
    %v3778 = vpop.f32.mrf.mxu0
    %v3779 = vadd.f32 0.0, %v3778
    %v3780 = vpop.f32.mrf.mxu0
    %v3781 = vpop.f32.mrf.mxu0
    %v3782 = vadd.f32 0.0, %v3781
    %v3783 = vpop.f32.mrf.mxu0
    %3784 = vmatprep.mubr.bf16.mxu0 %v3641
    %3785 = vmatmul.mubr.bf16.gmra.mxu0 %v3640
    %v3786 = vpop.f32.mrf.mxu0
    %v3787 = vadd.f32 0.0, %v3786
    %v3788 = vpop.f32.mrf.mxu0
    %v3789 = vpop.f32.mrf.mxu0
    %v3790 = vadd.f32 0.0, %v3789
    %v3791 = vpop.f32.mrf.mxu0
    %3792 = vmatprep.mubr.bf16.mxu0 %v3643
    %3793 = vmatmul.mubr.bf16.gmra.mxu0 %v3642
    %v3794 = vpop.f32.mrf.mxu0
    %v3795 = vadd.f32 0.0, %v3794
    %v3796 = vpop.f32.mrf.mxu0
    %v3797 = vpop.f32.mrf.mxu0
    %v3798 = vadd.f32 0.0, %v3797
    %v3799 = vpop.f32.mrf.mxu0
    %3800 = vmatprep.mubr.bf16.mxu0 %v3645
    %3801 = vmatmul.mubr.bf16.gmra.mxu0 %v3644
    %v3802 = vpop.f32.mrf.mxu0
    %v3803 = vadd.f32 0.0, %v3802
    %v3804 = vpop.f32.mrf.mxu0
    %v3805 = vpop.f32.mrf.mxu0
    %v3806 = vadd.f32 0.0, %v3805
    %v3807 = vpop.f32.mrf.mxu0
    %3808 = vmatprep.mubr.bf16.mxu0 %v3647
    %3809 = vmatmul.mubr.bf16.gmra.mxu0 %v3646
    %v3810 = vpop.f32.mrf.mxu0
    %v3811 = vadd.f32 0.0, %v3810
    %v3812 = vpop.f32.mrf.mxu0
    %v3813 = vpop.f32.mrf.mxu0
    %v3814 = vadd.f32 0.0, %v3813
    %v3815 = vpop.f32.mrf.mxu0
    %3816 = vmatprep.mubr.bf16.mxu0 %v3649
    %3817 = vmatmul.mubr.bf16.gmra.mxu0 %v3648
    %v3818 = vpop.f32.mrf.mxu0
    %v3819 = vadd.f32 0.0, %v3818
    %v3820 = vpop.f32.mrf.mxu0
    %v3821 = vpop.f32.mrf.mxu0
    %v3822 = vadd.f32 0.0, %v3821
    %v3823 = vpop.f32.mrf.mxu0
    %3824 = vmatprep.mubr.bf16.mxu0 %v3651
    %3825 = vmatmul.mubr.bf16.gmra.mxu0 %v3650
    %v3826 = vpop.f32.mrf.mxu0
    %v3827 = vadd.f32 0.0, %v3826
    %v3828 = vpop.f32.mrf.mxu0
    %v3829 = vpop.f32.mrf.mxu0
    %v3830 = vadd.f32 0.0, %v3829
    %v3831 = vpop.f32.mrf.mxu0
    %3832 = vmatprep.mubr.bf16.mxu0 %v3653
    %3833 = vmatmul.mubr.bf16.gmra.mxu0 %v3652
    %v3834 = vpop.f32.mrf.mxu0
    %v3835 = vadd.f32 0.0, %v3834
    %v3836 = vpop.f32.mrf.mxu0
    %v3837 = vpop.f32.mrf.mxu0
    %v3838 = vadd.f32 0.0, %v3837
    %v3839 = vpop.f32.mrf.mxu0
    %3840 = vmatprep.mubr.bf16.mxu0 %v3655
    %3841 = vmatmul.mubr.bf16.gmra.mxu0 %v3654
    %v3842 = vpop.f32.mrf.mxu0
    %v3843 = vadd.f32 0.0, %v3842
    %v3844 = vpop.f32.mrf.mxu0
    %v3845 = vpop.f32.mrf.mxu0
    %v3846 = vadd.f32 0.0, %v3845
    %v3847 = vpop.f32.mrf.mxu0
    %3848 = vdwg.mxu0
    %v3881 = vunpack.c.l.b16 %v3221
    %v3882 = vunpack.c.h.b16 %v3221
    %v3883 = vunpack.c.l.b16 %v3222
    %v3884 = vunpack.c.h.b16 %v3222
    %v3885 = vunpack.c.l.b16 %v3223
    %v3886 = vunpack.c.h.b16 %v3223
    %v3887 = vunpack.c.l.b16 %v3224
    %v3888 = vunpack.c.h.b16 %v3224
    %v3889 = vunpack.c.l.b16 %v3225
    %v3890 = vunpack.c.h.b16 %v3225
    %v3891 = vunpack.c.l.b16 %v3226
    %v3892 = vunpack.c.h.b16 %v3226
    %v3893 = vunpack.c.l.b16 %v3227
    %v3894 = vunpack.c.h.b16 %v3227
    %v3895 = vunpack.c.l.b16 %v3228
    %v3896 = vunpack.c.h.b16 %v3228
    %v3897 = vunpack.c.l.b16 %v3229
    %v3898 = vunpack.c.h.b16 %v3229
    %v3899 = vunpack.c.l.b16 %v3230
    %v3900 = vunpack.c.h.b16 %v3230
    %v3901 = vunpack.c.l.b16 %v3231
    %v3902 = vunpack.c.h.b16 %v3231
    %v3903 = vunpack.c.l.b16 %v3232
    %v3904 = vunpack.c.h.b16 %v3232
    %v3905 = vunpack.c.l.b16 %v3233
    %v3906 = vunpack.c.h.b16 %v3233
    %v3907 = vunpack.c.l.b16 %v3234
    %v3908 = vunpack.c.h.b16 %v3234
    %v3909 = vunpack.c.l.b16 %v3235
    %v3910 = vunpack.c.h.b16 %v3235
    %v3911 = vunpack.c.l.b16 %v3236
    %v3912 = vunpack.c.h.b16 %v3236
    %v3913 = vunpack.c.l.b16 %v3237
    %v3914 = vunpack.c.h.b16 %v3237
    %v3915 = vunpack.c.l.b16 %v3238
    %v3916 = vunpack.c.h.b16 %v3238
    %v3917 = vunpack.c.l.b16 %v3239
    %v3918 = vunpack.c.h.b16 %v3239
    %v3919 = vunpack.c.l.b16 %v3240
    %v3920 = vunpack.c.h.b16 %v3240
    %v3921 = vunpack.c.l.b16 %v3241
    %v3922 = vunpack.c.h.b16 %v3241
    %v3923 = vunpack.c.l.b16 %v3242
    %v3924 = vunpack.c.h.b16 %v3242
    %v3925 = vunpack.c.l.b16 %v3243
    %v3926 = vunpack.c.h.b16 %v3243
    %v3927 = vunpack.c.l.b16 %v3244
    %v3928 = vunpack.c.h.b16 %v3244
    %v3929 = vunpack.c.l.b16 %v3245
    %v3930 = vunpack.c.h.b16 %v3245
    %v3931 = vunpack.c.l.b16 %v3246
    %v3932 = vunpack.c.h.b16 %v3246
    %v3933 = vunpack.c.l.b16 %v3247
    %v3934 = vunpack.c.h.b16 %v3247
    %v3935 = vunpack.c.l.b16 %v3248
    %v3936 = vunpack.c.h.b16 %v3248
    %v3937 = vunpack.c.l.b16 %v3249
    %v3938 = vunpack.c.h.b16 %v3249
    %v3939 = vunpack.c.l.b16 %v3250
    %v3940 = vunpack.c.h.b16 %v3250
    %v3941 = vunpack.c.l.b16 %v3251
    %v3942 = vunpack.c.h.b16 %v3251
    %v3943 = vunpack.c.l.b16 %v3252
    %v3944 = vunpack.c.h.b16 %v3252
    %v3945 = vpack.c.b16 %v3883, %v3881
    %v3946 = vpack.c.b16 %v3884, %v3882
    %v3947 = vpack.c.b16 %v3887, %v3885
    %v3948 = vpack.c.b16 %v3888, %v3886
    %v3949 = vpack.c.b16 %v3891, %v3889
    %v3950 = vpack.c.b16 %v3892, %v3890
    %v3951 = vpack.c.b16 %v3895, %v3893
    %v3952 = vpack.c.b16 %v3896, %v3894
    %v3953 = vpack.c.b16 %v3899, %v3897
    %v3954 = vpack.c.b16 %v3900, %v3898
    %v3955 = vpack.c.b16 %v3903, %v3901
    %v3956 = vpack.c.b16 %v3904, %v3902
    %v3957 = vpack.c.b16 %v3907, %v3905
    %v3958 = vpack.c.b16 %v3908, %v3906
    %v3959 = vpack.c.b16 %v3911, %v3909
    %v3960 = vpack.c.b16 %v3912, %v3910
    %v3961 = vpack.c.b16 %v3915, %v3913
    %v3962 = vpack.c.b16 %v3916, %v3914
    %v3963 = vpack.c.b16 %v3919, %v3917
    %v3964 = vpack.c.b16 %v3920, %v3918
    %v3965 = vpack.c.b16 %v3923, %v3921
    %v3966 = vpack.c.b16 %v3924, %v3922
    %v3967 = vpack.c.b16 %v3927, %v3925
    %v3968 = vpack.c.b16 %v3928, %v3926
    %v3969 = vpack.c.b16 %v3931, %v3929
    %v3970 = vpack.c.b16 %v3932, %v3930
    %v3971 = vpack.c.b16 %v3935, %v3933
    %v3972 = vpack.c.b16 %v3936, %v3934
    %v3973 = vpack.c.b16 %v3939, %v3937
    %v3974 = vpack.c.b16 %v3940, %v3938
    %v3975 = vpack.c.b16 %v3943, %v3941
    %v3976 = vpack.c.b16 %v3944, %v3942
    %4009 = vmatprep.subr.bf16.mxu0 0
    %4010 = vmatpush1.bf16.msra.mxu0 %v3211
    %4011 = vmatprep.subr.bf16.mxu0 0
    %4012 = vmatpush1.bf16.msra.mxu0 %v3210
    %4013 = vmatprep.subr.bf16.mxu0 0
    %4014 = vmatpush1.bf16.msra.mxu0 %v3209
    %4015 = vmatprep.subr.bf16.mxu0 0
    %4016 = vmatpush1.bf16.msra.mxu0 %v3208
    %4017 = vmatprep.subr.bf16.mxu0 0
    %4018 = vmatpush1.bf16.msra.mxu0 %v3207
    %4019 = vmatprep.subr.bf16.mxu0 0
    %4020 = vmatpush1.bf16.msra.mxu0 %v3206
    %4021 = vmatprep.subr.bf16.mxu0 0
    %4022 = vmatpush1.bf16.msra.mxu0 %v3205
    %4023 = vmatprep.subr.bf16.mxu0 0
    %4024 = vmatpush1.bf16.msra.mxu0 %v3204
    %4025 = vmatprep.subr.bf16.mxu0 0
    %4026 = vmatpush2.bf16.msra.mxu0 %v3219
    %4027 = vmatprep.subr.bf16.mxu0 0
    %4028 = vmatpush2.bf16.msra.mxu0 %v3218
    %4029 = vmatprep.subr.bf16.mxu0 0
    %4030 = vmatpush2.bf16.msra.mxu0 %v3217
    %4031 = vmatprep.subr.bf16.mxu0 0
    %4032 = vmatpush2.bf16.msra.mxu0 %v3216
    %4033 = vmatprep.subr.bf16.mxu0 0
    %4034 = vmatpush2.bf16.msra.mxu0 %v3215
    %4035 = vmatprep.subr.bf16.mxu0 0
    %4036 = vmatpush2.bf16.msra.mxu0 %v3214
    %4037 = vmatprep.subr.bf16.mxu0 0
    %4038 = vmatpush2.bf16.msra.mxu0 %v3213
    %4039 = vmatprep.subr.bf16.mxu0 0
    %4040 = vmatpush2.bf16.msra.mxu0 %v3212
    %4041 = vmatprep.mubr.bf16.mxu0 %v3946
    %4042 = vmatmul.mubr.bf16.gmra.mxu0 %v3945
    %v4043 = vpop.f32.mrf.mxu0
    %v4044 = vadd.f32 %v3723, %v4043
    %v4045 = vpop.f32.mrf.mxu0
    %v4046 = vpop.f32.mrf.mxu0
    %v4047 = vadd.f32 %v3726, %v4046
    %v4048 = vpop.f32.mrf.mxu0
    %4049 = vmatprep.mubr.bf16.mxu0 %v3948
    %4050 = vmatmul.mubr.bf16.gmra.mxu0 %v3947
    %v4051 = vpop.f32.mrf.mxu0
    %v4052 = vadd.f32 %v3731, %v4051
    %v4053 = vpop.f32.mrf.mxu0
    %v4054 = vpop.f32.mrf.mxu0
    %v4055 = vadd.f32 %v3734, %v4054
    %v4056 = vpop.f32.mrf.mxu0
    %4057 = vmatprep.mubr.bf16.mxu0 %v3950
    %4058 = vmatmul.mubr.bf16.gmra.mxu0 %v3949
    %v4059 = vpop.f32.mrf.mxu0
    %v4060 = vadd.f32 %v3739, %v4059
    %v4061 = vpop.f32.mrf.mxu0
    %v4062 = vpop.f32.mrf.mxu0
    %v4063 = vadd.f32 %v3742, %v4062
    %v4064 = vpop.f32.mrf.mxu0
    %4065 = vmatprep.mubr.bf16.mxu0 %v3952
    %4066 = vmatmul.mubr.bf16.gmra.mxu0 %v3951
    %v4067 = vpop.f32.mrf.mxu0
    %v4068 = vadd.f32 %v3747, %v4067
    %v4069 = vpop.f32.mrf.mxu0
    %v4070 = vpop.f32.mrf.mxu0
    %v4071 = vadd.f32 %v3750, %v4070
    %v4072 = vpop.f32.mrf.mxu0
    %4073 = vmatprep.mubr.bf16.mxu0 %v3954
    %4074 = vmatmul.mubr.bf16.gmra.mxu0 %v3953
    %v4075 = vpop.f32.mrf.mxu0
    %v4076 = vadd.f32 %v3755, %v4075
    %v4077 = vpop.f32.mrf.mxu0
    %v4078 = vpop.f32.mrf.mxu0
    %v4079 = vadd.f32 %v3758, %v4078
    %v4080 = vpop.f32.mrf.mxu0
    %4081 = vmatprep.mubr.bf16.mxu0 %v3956
    %4082 = vmatmul.mubr.bf16.gmra.mxu0 %v3955
    %v4083 = vpop.f32.mrf.mxu0
    %v4084 = vadd.f32 %v3763, %v4083
    %v4085 = vpop.f32.mrf.mxu0
    %v4086 = vpop.f32.mrf.mxu0
    %v4087 = vadd.f32 %v3766, %v4086
    %v4088 = vpop.f32.mrf.mxu0
    %4089 = vmatprep.mubr.bf16.mxu0 %v3958
    %4090 = vmatmul.mubr.bf16.gmra.mxu0 %v3957
    %v4091 = vpop.f32.mrf.mxu0
    %v4092 = vadd.f32 %v3771, %v4091
    %v4093 = vpop.f32.mrf.mxu0
    %v4094 = vpop.f32.mrf.mxu0
    %v4095 = vadd.f32 %v3774, %v4094
    %v4096 = vpop.f32.mrf.mxu0
    %4097 = vmatprep.mubr.bf16.mxu0 %v3960
    %4098 = vmatmul.mubr.bf16.gmra.mxu0 %v3959
    %v4099 = vpop.f32.mrf.mxu0
    %v4100 = vadd.f32 %v3779, %v4099
    %v4101 = vpop.f32.mrf.mxu0
    %v4102 = vpop.f32.mrf.mxu0
    %v4103 = vadd.f32 %v3782, %v4102
    %v4104 = vpop.f32.mrf.mxu0
    %4105 = vmatprep.mubr.bf16.mxu0 %v3962
    %4106 = vmatmul.mubr.bf16.gmra.mxu0 %v3961
    %v4107 = vpop.f32.mrf.mxu0
    %v4108 = vadd.f32 %v3787, %v4107
    %v4109 = vpop.f32.mrf.mxu0
    %v4110 = vpop.f32.mrf.mxu0
    %v4111 = vadd.f32 %v3790, %v4110
    %v4112 = vpop.f32.mrf.mxu0
    %4113 = vmatprep.mubr.bf16.mxu0 %v3964
    %4114 = vmatmul.mubr.bf16.gmra.mxu0 %v3963
    %v4115 = vpop.f32.mrf.mxu0
    %v4116 = vadd.f32 %v3795, %v4115
    %v4117 = vpop.f32.mrf.mxu0
    %v4118 = vpop.f32.mrf.mxu0
    %v4119 = vadd.f32 %v3798, %v4118
    %v4120 = vpop.f32.mrf.mxu0
    %4121 = vmatprep.mubr.bf16.mxu0 %v3966
    %4122 = vmatmul.mubr.bf16.gmra.mxu0 %v3965
    %v4123 = vpop.f32.mrf.mxu0
    %v4124 = vadd.f32 %v3803, %v4123
    %v4125 = vpop.f32.mrf.mxu0
    %v4126 = vpop.f32.mrf.mxu0
    %v4127 = vadd.f32 %v3806, %v4126
    %v4128 = vpop.f32.mrf.mxu0
    %4129 = vmatprep.mubr.bf16.mxu0 %v3968
    %4130 = vmatmul.mubr.bf16.gmra.mxu0 %v3967
    %v4131 = vpop.f32.mrf.mxu0
    %v4132 = vadd.f32 %v3811, %v4131
    %v4133 = vpop.f32.mrf.mxu0
    %v4134 = vpop.f32.mrf.mxu0
    %v4135 = vadd.f32 %v3814, %v4134
    %v4136 = vpop.f32.mrf.mxu0
    %4137 = vmatprep.mubr.bf16.mxu0 %v3970
    %4138 = vmatmul.mubr.bf16.gmra.mxu0 %v3969
    %v4139 = vpop.f32.mrf.mxu0
    %v4140 = vadd.f32 %v3819, %v4139
    %v4141 = vpop.f32.mrf.mxu0
    %v4142 = vpop.f32.mrf.mxu0
    %v4143 = vadd.f32 %v3822, %v4142
    %v4144 = vpop.f32.mrf.mxu0
    %4145 = vmatprep.mubr.bf16.mxu0 %v3972
    %4146 = vmatmul.mubr.bf16.gmra.mxu0 %v3971
    %v4147 = vpop.f32.mrf.mxu0
    %v4148 = vadd.f32 %v3827, %v4147
    %v4149 = vpop.f32.mrf.mxu0
    %v4150 = vpop.f32.mrf.mxu0
    %v4151 = vadd.f32 %v3830, %v4150
    %v4152 = vpop.f32.mrf.mxu0
    %4153 = vmatprep.mubr.bf16.mxu0 %v3974
    %4154 = vmatmul.mubr.bf16.gmra.mxu0 %v3973
    %v4155 = vpop.f32.mrf.mxu0
    %v4156 = vadd.f32 %v3835, %v4155
    %v4157 = vpop.f32.mrf.mxu0
    %v4158 = vpop.f32.mrf.mxu0
    %v4159 = vadd.f32 %v3838, %v4158
    %v4160 = vpop.f32.mrf.mxu0
    %4161 = vmatprep.mubr.bf16.mxu0 %v3976
    %4162 = vmatmul.mubr.bf16.gmra.mxu0 %v3975
    %v4163 = vpop.f32.mrf.mxu0
    %v4164 = vadd.f32 %v3843, %v4163
    %v4165 = vpop.f32.mrf.mxu0
    %v4166 = vpop.f32.mrf.mxu0
    %v4167 = vadd.f32 %v3846, %v4166
    %v4168 = vpop.f32.mrf.mxu0
    %4169 = vdwg.mxu0
    %s4170 = scalar_lea.vmem [#allocation4], 384
    %v4171 = vld [vmem:[%s4170] sm:$0xf]
    %v4172 = vld [vmem:[%s4170 + $0x4] sm:$0xf]
    %v4173 = vld [vmem:[%s4170 + $0x8] sm:$0xf]
    %v4174 = vld [vmem:[%s4170 + $0xc] sm:$0xf]
    %v4175 = vld [vmem:[%s4170 + $0x10] sm:$0xf]
    %v4176 = vld [vmem:[%s4170 + $0x14] sm:$0xf]
    %v4177 = vld [vmem:[%s4170 + $0x18] sm:$0xf]
    %v4178 = vld [vmem:[%s4170 + $0x1c] sm:$0xf]
    %v4179 = vld [vmem:[%s4170 + $0x20] sm:$0xf]
    %v4180 = vld [vmem:[%s4170 + $0x24] sm:$0xf]
    %v4181 = vld [vmem:[%s4170 + $0x28] sm:$0xf]
    %v4182 = vld [vmem:[%s4170 + $0x2c] sm:$0xf]
    %v4183 = vld [vmem:[%s4170 + $0x30] sm:$0xf]
    %v4184 = vld [vmem:[%s4170 + $0x34] sm:$0xf]
    %v4185 = vld [vmem:[%s4170 + $0x38] sm:$0xf]
    %v4186 = vld [vmem:[%s4170 + $0x3c] sm:$0xf]
    %v4203 = vunpack.c.l.b16 %v4171
    %v4204 = vunpack.c.l.b16 %v4172
    %v4205 = vunpack.c.l.b16 %v4173
    %v4206 = vunpack.c.l.b16 %v4174
    %v4207 = vunpack.c.l.b16 %v4175
    %v4208 = vunpack.c.l.b16 %v4176
    %v4209 = vunpack.c.l.b16 %v4177
    %v4210 = vunpack.c.l.b16 %v4178
    %v4211 = vunpack.c.l.b16 %v4179
    %v4212 = vunpack.c.l.b16 %v4180
    %v4213 = vunpack.c.l.b16 %v4181
    %v4214 = vunpack.c.l.b16 %v4182
    %v4215 = vunpack.c.l.b16 %v4183
    %v4216 = vunpack.c.l.b16 %v4184
    %v4217 = vunpack.c.l.b16 %v4185
    %v4218 = vunpack.c.l.b16 %v4186
    %v4219 = vpack.c.b16 %v4204, %v4203
    %v4220 = vpack.c.b16 %v4206, %v4205
    %v4221 = vpack.c.b16 %v4208, %v4207
    %v4222 = vpack.c.b16 %v4210, %v4209
    %v4223 = vpack.c.b16 %v4212, %v4211
    %v4224 = vpack.c.b16 %v4214, %v4213
    %v4225 = vpack.c.b16 %v4216, %v4215
    %v4226 = vpack.c.b16 %v4218, %v4217
    %4235 = vmatprep.subr.bf16.mxu0 0
    %4236 = vmatpush1.bf16.msra.mxu0 %v4226
    %4237 = vmatprep.subr.bf16.mxu0 0
    %4238 = vmatpush1.bf16.msra.mxu0 %v4225
    %4239 = vmatprep.subr.bf16.mxu0 0
    %4240 = vmatpush1.bf16.msra.mxu0 %v4224
    %4241 = vmatprep.subr.bf16.mxu0 0
    %4242 = vmatpush1.bf16.msra.mxu0 %v4223
    %4243 = vmatprep.subr.bf16.mxu0 0
    %4244 = vmatpush1.bf16.msra.mxu0 %v4222
    %4245 = vmatprep.subr.bf16.mxu0 0
    %4246 = vmatpush1.bf16.msra.mxu0 %v4221
    %4247 = vmatprep.subr.bf16.mxu0 0
    %4248 = vmatpush1.bf16.msra.mxu0 %v4220
    %4249 = vmatprep.subr.bf16.mxu0 0
    %4250 = vmatpush1.bf16.msra.mxu0 %v4219
    %4251 = vmatprep.subr.bf16.mxu0 0
    %4252 = vmatpush2.bf16.msra.mxu0 0
    %4253 = vmatprep.subr.bf16.mxu0 0
    %4254 = vmatpush2.bf16.msra.mxu0 0
    %4255 = vmatprep.subr.bf16.mxu0 0
    %4256 = vmatpush2.bf16.msra.mxu0 0
    %4257 = vmatprep.subr.bf16.mxu0 0
    %4258 = vmatpush2.bf16.msra.mxu0 0
    %4259 = vmatprep.subr.bf16.mxu0 0
    %4260 = vmatpush2.bf16.msra.mxu0 0
    %4261 = vmatprep.subr.bf16.mxu0 0
    %4262 = vmatpush2.bf16.msra.mxu0 0
    %4263 = vmatprep.subr.bf16.mxu0 0
    %4264 = vmatpush2.bf16.msra.mxu0 0
    %4265 = vmatprep.subr.bf16.mxu0 0
    %4266 = vmatpush2.bf16.msra.mxu0 0
    %4267 = vmatprep.mubr.bf16.mxu0 0
    %4268 = vmatmul.mubr.bf16.gmra.mxu0 %v2962
    %v4269 = vpop.f32.mrf.mxu0
    %v4270 = vadd.f32 0.0, %v4269
    %v4271 = vpop.f32.mrf.mxu0
    %v4272 = vpop.f32.mrf.mxu0
    %v4273 = vadd.f32 0.0, %v4272
    %v4274 = vpop.f32.mrf.mxu0
    %4275 = vmatprep.mubr.bf16.mxu0 0
    %4276 = vmatmul.mubr.bf16.gmra.mxu0 %v2963
    %v4277 = vpop.f32.mrf.mxu0
    %v4278 = vadd.f32 0.0, %v4277
    %v4279 = vpop.f32.mrf.mxu0
    %v4280 = vpop.f32.mrf.mxu0
    %v4281 = vadd.f32 0.0, %v4280
    %v4282 = vpop.f32.mrf.mxu0
    %4283 = vmatprep.mubr.bf16.mxu0 0
    %4284 = vmatmul.mubr.bf16.gmra.mxu0 %v2964
    %v4285 = vpop.f32.mrf.mxu0
    %v4286 = vadd.f32 0.0, %v4285
    %v4287 = vpop.f32.mrf.mxu0
    %v4288 = vpop.f32.mrf.mxu0
    %v4289 = vadd.f32 0.0, %v4288
    %v4290 = vpop.f32.mrf.mxu0
    %4291 = vmatprep.mubr.bf16.mxu0 0
    %4292 = vmatmul.mubr.bf16.gmra.mxu0 %v2965
    %v4293 = vpop.f32.mrf.mxu0
    %v4294 = vadd.f32 0.0, %v4293
    %v4295 = vpop.f32.mrf.mxu0
    %v4296 = vpop.f32.mrf.mxu0
    %v4297 = vadd.f32 0.0, %v4296
    %v4298 = vpop.f32.mrf.mxu0
    %4299 = vmatprep.mubr.bf16.mxu0 0
    %4300 = vmatmul.mubr.bf16.gmra.mxu0 %v2966
    %v4301 = vpop.f32.mrf.mxu0
    %v4302 = vadd.f32 0.0, %v4301
    %v4303 = vpop.f32.mrf.mxu0
    %v4304 = vpop.f32.mrf.mxu0
    %v4305 = vadd.f32 0.0, %v4304
    %v4306 = vpop.f32.mrf.mxu0
    %4307 = vmatprep.mubr.bf16.mxu0 0
    %4308 = vmatmul.mubr.bf16.gmra.mxu0 %v2967
    %v4309 = vpop.f32.mrf.mxu0
    %v4310 = vadd.f32 0.0, %v4309
    %v4311 = vpop.f32.mrf.mxu0
    %v4312 = vpop.f32.mrf.mxu0
    %v4313 = vadd.f32 0.0, %v4312
    %v4314 = vpop.f32.mrf.mxu0
    %4315 = vmatprep.mubr.bf16.mxu0 0
    %4316 = vmatmul.mubr.bf16.gmra.mxu0 %v2968
    %v4317 = vpop.f32.mrf.mxu0
    %v4318 = vadd.f32 0.0, %v4317
    %v4319 = vpop.f32.mrf.mxu0
    %v4320 = vpop.f32.mrf.mxu0
    %v4321 = vadd.f32 0.0, %v4320
    %v4322 = vpop.f32.mrf.mxu0
    %4323 = vmatprep.mubr.bf16.mxu0 0
    %4324 = vmatmul.mubr.bf16.gmra.mxu0 %v2969
    %v4325 = vpop.f32.mrf.mxu0
    %v4326 = vadd.f32 0.0, %v4325
    %v4327 = vpop.f32.mrf.mxu0
    %v4328 = vpop.f32.mrf.mxu0
    %v4329 = vadd.f32 0.0, %v4328
    %v4330 = vpop.f32.mrf.mxu0
    %4331 = vmatprep.mubr.bf16.mxu0 0
    %4332 = vmatmul.mubr.bf16.gmra.mxu0 %v2970
    %v4333 = vpop.f32.mrf.mxu0
    %v4334 = vadd.f32 0.0, %v4333
    %v4335 = vpop.f32.mrf.mxu0
    %v4336 = vpop.f32.mrf.mxu0
    %v4337 = vadd.f32 0.0, %v4336
    %v4338 = vpop.f32.mrf.mxu0
    %4339 = vmatprep.mubr.bf16.mxu0 0
    %4340 = vmatmul.mubr.bf16.gmra.mxu0 %v2971
    %v4341 = vpop.f32.mrf.mxu0
    %v4342 = vadd.f32 0.0, %v4341
    %v4343 = vpop.f32.mrf.mxu0
    %v4344 = vpop.f32.mrf.mxu0
    %v4345 = vadd.f32 0.0, %v4344
    %v4346 = vpop.f32.mrf.mxu0
    %4347 = vmatprep.mubr.bf16.mxu0 0
    %4348 = vmatmul.mubr.bf16.gmra.mxu0 %v2972
    %v4349 = vpop.f32.mrf.mxu0
    %v4350 = vadd.f32 0.0, %v4349
    %v4351 = vpop.f32.mrf.mxu0
    %v4352 = vpop.f32.mrf.mxu0
    %v4353 = vadd.f32 0.0, %v4352
    %v4354 = vpop.f32.mrf.mxu0
    %4355 = vmatprep.mubr.bf16.mxu0 0
    %4356 = vmatmul.mubr.bf16.gmra.mxu0 %v2973
    %v4357 = vpop.f32.mrf.mxu0
    %v4358 = vadd.f32 0.0, %v4357
    %v4359 = vpop.f32.mrf.mxu0
    %v4360 = vpop.f32.mrf.mxu0
    %v4361 = vadd.f32 0.0, %v4360
    %v4362 = vpop.f32.mrf.mxu0
    %4363 = vmatprep.mubr.bf16.mxu0 0
    %4364 = vmatmul.mubr.bf16.gmra.mxu0 %v2974
    %v4365 = vpop.f32.mrf.mxu0
    %v4366 = vadd.f32 0.0, %v4365
    %v4367 = vpop.f32.mrf.mxu0
    %v4368 = vpop.f32.mrf.mxu0
    %v4369 = vadd.f32 0.0, %v4368
    %v4370 = vpop.f32.mrf.mxu0
    %4371 = vmatprep.mubr.bf16.mxu0 0
    %4372 = vmatmul.mubr.bf16.gmra.mxu0 %v2975
    %v4373 = vpop.f32.mrf.mxu0
    %v4374 = vadd.f32 0.0, %v4373
    %v4375 = vpop.f32.mrf.mxu0
    %v4376 = vpop.f32.mrf.mxu0
    %v4377 = vadd.f32 0.0, %v4376
    %v4378 = vpop.f32.mrf.mxu0
    %4379 = vmatprep.mubr.bf16.mxu0 0
    %4380 = vmatmul.mubr.bf16.gmra.mxu0 %v2976
    %v4381 = vpop.f32.mrf.mxu0
    %v4382 = vadd.f32 0.0, %v4381
    %v4383 = vpop.f32.mrf.mxu0
    %v4384 = vpop.f32.mrf.mxu0
    %v4385 = vadd.f32 0.0, %v4384
    %v4386 = vpop.f32.mrf.mxu0
    %4387 = vmatprep.mubr.bf16.mxu0 0
    %4388 = vmatmul.mubr.bf16.gmra.mxu0 %v2977
    %v4389 = vpop.f32.mrf.mxu0
    %v4390 = vadd.f32 0.0, %v4389
    %v4391 = vpop.f32.mrf.mxu0
    %v4392 = vpop.f32.mrf.mxu0
    %v4393 = vadd.f32 0.0, %v4392
    %v4394 = vpop.f32.mrf.mxu0
    %4395 = vdwg.mxu0
    %v4396 = vpack.c.bf16 %v4273, %v4270
    %v4397 = vpack.c.bf16 %v4281, %v4278
    %v4398 = vpack.c.bf16 %v4289, %v4286
    %v4399 = vpack.c.bf16 %v4297, %v4294
    %v4400 = vpack.c.bf16 %v4305, %v4302
    %v4401 = vpack.c.bf16 %v4313, %v4310
    %v4402 = vpack.c.bf16 %v4321, %v4318
    %v4403 = vpack.c.bf16 %v4329, %v4326
    %v4404 = vpack.c.bf16 %v4337, %v4334
    %v4405 = vpack.c.bf16 %v4345, %v4342
    %v4406 = vpack.c.bf16 %v4353, %v4350
    %v4407 = vpack.c.bf16 %v4361, %v4358
    %v4408 = vpack.c.bf16 %v4369, %v4366
    %v4409 = vpack.c.bf16 %v4377, %v4374
    %v4410 = vpack.c.bf16 %v4385, %v4382
    %v4411 = vpack.c.bf16 %v4393, %v4390
    %s4412 = scalar_lea.vmem [#allocation2], 1536
    %v4413 = vld [vmem:[%s4412] sm:$0xff]
    %v4414 = vld [vmem:[%s4412 + $0x8] sm:$0xff]
    %v4415 = vld [vmem:[%s4412 + $0x10] sm:$0xff]
    %v4416 = vld [vmem:[%s4412 + $0x18] sm:$0xff]
    %v4417 = vld [vmem:[%s4412 + $0x20] sm:$0xff]
    %v4418 = vld [vmem:[%s4412 + $0x28] sm:$0xff]
    %v4419 = vld [vmem:[%s4412 + $0x30] sm:$0xff]
    %v4420 = vld [vmem:[%s4412 + $0x38] sm:$0xff]
    %v4421 = vld [vmem:[%s4412 + $0x40] sm:$0xff]
    %v4422 = vld [vmem:[%s4412 + $0x48] sm:$0xff]
    %v4423 = vld [vmem:[%s4412 + $0x50] sm:$0xff]
    %v4424 = vld [vmem:[%s4412 + $0x58] sm:$0xff]
    %v4425 = vld [vmem:[%s4412 + $0x60] sm:$0xff]
    %v4426 = vld [vmem:[%s4412 + $0x68] sm:$0xff]
    %v4427 = vld [vmem:[%s4412 + $0x70] sm:$0xff]
    %v4428 = vld [vmem:[%s4412 + $0x78] sm:$0xff]
    %v4429 = vld [vmem:[%s4412 + $0x80] sm:$0xff]
    %v4430 = vld [vmem:[%s4412 + $0x88] sm:$0xff]
    %v4431 = vld [vmem:[%s4412 + $0x90] sm:$0xff]
    %v4432 = vld [vmem:[%s4412 + $0x98] sm:$0xff]
    %v4433 = vld [vmem:[%s4412 + $0xa0] sm:$0xff]
    %v4434 = vld [vmem:[%s4412 + $0xa8] sm:$0xff]
    %v4435 = vld [vmem:[%s4412 + $0xb0] sm:$0xff]
    %v4436 = vld [vmem:[%s4412 + $0xb8] sm:$0xff]
    %v4437 = vld [vmem:[%s4412 + $0xc0] sm:$0xff]
    %v4438 = vld [vmem:[%s4412 + $0xc8] sm:$0xff]
    %v4439 = vld [vmem:[%s4412 + $0xd0] sm:$0xff]
    %v4440 = vld [vmem:[%s4412 + $0xd8] sm:$0xff]
    %v4441 = vld [vmem:[%s4412 + $0xe0] sm:$0xff]
    %v4442 = vld [vmem:[%s4412 + $0xe8] sm:$0xff]
    %v4443 = vld [vmem:[%s4412 + $0xf0] sm:$0xff]
    %v4444 = vld [vmem:[%s4412 + $0xf8] sm:$0xff]
    %v4477 = vunpack.c.l.b16 %v4413
    %v4478 = vunpack.c.h.b16 %v4413
    %v4479 = vunpack.c.l.b16 %v4414
    %v4480 = vunpack.c.h.b16 %v4414
    %v4481 = vunpack.c.l.b16 %v4415
    %v4482 = vunpack.c.h.b16 %v4415
    %v4483 = vunpack.c.l.b16 %v4416
    %v4484 = vunpack.c.h.b16 %v4416
    %v4485 = vunpack.c.l.b16 %v4417
    %v4486 = vunpack.c.h.b16 %v4417
    %v4487 = vunpack.c.l.b16 %v4418
    %v4488 = vunpack.c.h.b16 %v4418
    %v4489 = vunpack.c.l.b16 %v4419
    %v4490 = vunpack.c.h.b16 %v4419
    %v4491 = vunpack.c.l.b16 %v4420
    %v4492 = vunpack.c.h.b16 %v4420
    %v4493 = vunpack.c.l.b16 %v4421
    %v4494 = vunpack.c.h.b16 %v4421
    %v4495 = vunpack.c.l.b16 %v4422
    %v4496 = vunpack.c.h.b16 %v4422
    %v4497 = vunpack.c.l.b16 %v4423
    %v4498 = vunpack.c.h.b16 %v4423
    %v4499 = vunpack.c.l.b16 %v4424
    %v4500 = vunpack.c.h.b16 %v4424
    %v4501 = vunpack.c.l.b16 %v4425
    %v4502 = vunpack.c.h.b16 %v4425
    %v4503 = vunpack.c.l.b16 %v4426
    %v4504 = vunpack.c.h.b16 %v4426
    %v4505 = vunpack.c.l.b16 %v4427
    %v4506 = vunpack.c.h.b16 %v4427
    %v4507 = vunpack.c.l.b16 %v4428
    %v4508 = vunpack.c.h.b16 %v4428
    %v4509 = vunpack.c.l.b16 %v4429
    %v4510 = vunpack.c.h.b16 %v4429
    %v4511 = vunpack.c.l.b16 %v4430
    %v4512 = vunpack.c.h.b16 %v4430
    %v4513 = vunpack.c.l.b16 %v4431
    %v4514 = vunpack.c.h.b16 %v4431
    %v4515 = vunpack.c.l.b16 %v4432
    %v4516 = vunpack.c.h.b16 %v4432
    %v4517 = vunpack.c.l.b16 %v4433
    %v4518 = vunpack.c.h.b16 %v4433
    %v4519 = vunpack.c.l.b16 %v4434
    %v4520 = vunpack.c.h.b16 %v4434
    %v4521 = vunpack.c.l.b16 %v4435
    %v4522 = vunpack.c.h.b16 %v4435
    %v4523 = vunpack.c.l.b16 %v4436
    %v4524 = vunpack.c.h.b16 %v4436
    %v4525 = vunpack.c.l.b16 %v4437
    %v4526 = vunpack.c.h.b16 %v4437
    %v4527 = vunpack.c.l.b16 %v4438
    %v4528 = vunpack.c.h.b16 %v4438
    %v4529 = vunpack.c.l.b16 %v4439
    %v4530 = vunpack.c.h.b16 %v4439
    %v4531 = vunpack.c.l.b16 %v4440
    %v4532 = vunpack.c.h.b16 %v4440
    %v4533 = vunpack.c.l.b16 %v4441
    %v4534 = vunpack.c.h.b16 %v4441
    %v4535 = vunpack.c.l.b16 %v4442
    %v4536 = vunpack.c.h.b16 %v4442
    %v4537 = vunpack.c.l.b16 %v4443
    %v4538 = vunpack.c.h.b16 %v4443
    %v4539 = vunpack.c.l.b16 %v4444
    %v4540 = vunpack.c.h.b16 %v4444
    %v4541 = vpack.c.b16 %v4479, %v4477
    %v4542 = vpack.c.b16 %v4480, %v4478
    %v4543 = vpack.c.b16 %v4483, %v4481
    %v4544 = vpack.c.b16 %v4484, %v4482
    %v4545 = vpack.c.b16 %v4487, %v4485
    %v4546 = vpack.c.b16 %v4488, %v4486
    %v4547 = vpack.c.b16 %v4491, %v4489
    %v4548 = vpack.c.b16 %v4492, %v4490
    %v4549 = vpack.c.b16 %v4495, %v4493
    %v4550 = vpack.c.b16 %v4496, %v4494
    %v4551 = vpack.c.b16 %v4499, %v4497
    %v4552 = vpack.c.b16 %v4500, %v4498
    %v4553 = vpack.c.b16 %v4503, %v4501
    %v4554 = vpack.c.b16 %v4504, %v4502
    %v4555 = vpack.c.b16 %v4507, %v4505
    %v4556 = vpack.c.b16 %v4508, %v4506
    %v4557 = vpack.c.b16 %v4511, %v4509
    %v4558 = vpack.c.b16 %v4512, %v4510
    %v4559 = vpack.c.b16 %v4515, %v4513
    %v4560 = vpack.c.b16 %v4516, %v4514
    %v4561 = vpack.c.b16 %v4519, %v4517
    %v4562 = vpack.c.b16 %v4520, %v4518
    %v4563 = vpack.c.b16 %v4523, %v4521
    %v4564 = vpack.c.b16 %v4524, %v4522
    %v4565 = vpack.c.b16 %v4527, %v4525
    %v4566 = vpack.c.b16 %v4528, %v4526
    %v4567 = vpack.c.b16 %v4531, %v4529
    %v4568 = vpack.c.b16 %v4532, %v4530
    %v4569 = vpack.c.b16 %v4535, %v4533
    %v4570 = vpack.c.b16 %v4536, %v4534
    %v4571 = vpack.c.b16 %v4539, %v4537
    %v4572 = vpack.c.b16 %v4540, %v4538
    %4605 = vmatprep.subr.bf16.mxu0 0
    %4606 = vmatpush1.bf16.msra.mxu0 %v4403
    %4607 = vmatprep.subr.bf16.mxu0 0
    %4608 = vmatpush1.bf16.msra.mxu0 %v4402
    %4609 = vmatprep.subr.bf16.mxu0 0
    %4610 = vmatpush1.bf16.msra.mxu0 %v4401
    %4611 = vmatprep.subr.bf16.mxu0 0
    %4612 = vmatpush1.bf16.msra.mxu0 %v4400
    %4613 = vmatprep.subr.bf16.mxu0 0
    %4614 = vmatpush1.bf16.msra.mxu0 %v4399
    %4615 = vmatprep.subr.bf16.mxu0 0
    %4616 = vmatpush1.bf16.msra.mxu0 %v4398
    %4617 = vmatprep.subr.bf16.mxu0 0
    %4618 = vmatpush1.bf16.msra.mxu0 %v4397
    %4619 = vmatprep.subr.bf16.mxu0 0
    %4620 = vmatpush1.bf16.msra.mxu0 %v4396
    %4621 = vmatprep.subr.bf16.mxu0 0
    %4622 = vmatpush2.bf16.msra.mxu0 %v4411
    %4623 = vmatprep.subr.bf16.mxu0 0
    %4624 = vmatpush2.bf16.msra.mxu0 %v4410
    %4625 = vmatprep.subr.bf16.mxu0 0
    %4626 = vmatpush2.bf16.msra.mxu0 %v4409
    %4627 = vmatprep.subr.bf16.mxu0 0
    %4628 = vmatpush2.bf16.msra.mxu0 %v4408
    %4629 = vmatprep.subr.bf16.mxu0 0
    %4630 = vmatpush2.bf16.msra.mxu0 %v4407
    %4631 = vmatprep.subr.bf16.mxu0 0
    %4632 = vmatpush2.bf16.msra.mxu0 %v4406
    %4633 = vmatprep.subr.bf16.mxu0 0
    %4634 = vmatpush2.bf16.msra.mxu0 %v4405
    %4635 = vmatprep.subr.bf16.mxu0 0
    %4636 = vmatpush2.bf16.msra.mxu0 %v4404
    %4637 = vmatprep.mubr.bf16.mxu0 %v4542
    %4638 = vmatmul.mubr.bf16.gmra.mxu0 %v4541
    %v4639 = vpop.f32.mrf.mxu0
    %v4640 = vadd.f32 0.0, %v4639
    %v4641 = vpop.f32.mrf.mxu0
    %v4642 = vpop.f32.mrf.mxu0
    %v4643 = vadd.f32 0.0, %v4642
    %v4644 = vpop.f32.mrf.mxu0
    %4645 = vmatprep.mubr.bf16.mxu0 %v4544
    %4646 = vmatmul.mubr.bf16.gmra.mxu0 %v4543
    %v4647 = vpop.f32.mrf.mxu0
    %v4648 = vadd.f32 0.0, %v4647
    %v4649 = vpop.f32.mrf.mxu0
    %v4650 = vpop.f32.mrf.mxu0
    %v4651 = vadd.f32 0.0, %v4650
    %v4652 = vpop.f32.mrf.mxu0
    %4653 = vmatprep.mubr.bf16.mxu0 %v4546
    %4654 = vmatmul.mubr.bf16.gmra.mxu0 %v4545
    %v4655 = vpop.f32.mrf.mxu0
    %v4656 = vadd.f32 0.0, %v4655
    %v4657 = vpop.f32.mrf.mxu0
    %v4658 = vpop.f32.mrf.mxu0
    %v4659 = vadd.f32 0.0, %v4658
    %v4660 = vpop.f32.mrf.mxu0
    %4661 = vmatprep.mubr.bf16.mxu0 %v4548
    %4662 = vmatmul.mubr.bf16.gmra.mxu0 %v4547
    %v4663 = vpop.f32.mrf.mxu0
    %v4664 = vadd.f32 0.0, %v4663
    %v4665 = vpop.f32.mrf.mxu0
    %v4666 = vpop.f32.mrf.mxu0
    %v4667 = vadd.f32 0.0, %v4666
    %v4668 = vpop.f32.mrf.mxu0
    %4669 = vmatprep.mubr.bf16.mxu0 %v4550
    %4670 = vmatmul.mubr.bf16.gmra.mxu0 %v4549
    %v4671 = vpop.f32.mrf.mxu0
    %v4672 = vadd.f32 0.0, %v4671
    %v4673 = vpop.f32.mrf.mxu0
    %v4674 = vpop.f32.mrf.mxu0
    %v4675 = vadd.f32 0.0, %v4674
    %v4676 = vpop.f32.mrf.mxu0
    %4677 = vmatprep.mubr.bf16.mxu0 %v4552
    %4678 = vmatmul.mubr.bf16.gmra.mxu0 %v4551
    %v4679 = vpop.f32.mrf.mxu0
    %v4680 = vadd.f32 0.0, %v4679
    %v4681 = vpop.f32.mrf.mxu0
    %v4682 = vpop.f32.mrf.mxu0
    %v4683 = vadd.f32 0.0, %v4682
    %v4684 = vpop.f32.mrf.mxu0
    %4685 = vmatprep.mubr.bf16.mxu0 %v4554
    %4686 = vmatmul.mubr.bf16.gmra.mxu0 %v4553
    %v4687 = vpop.f32.mrf.mxu0
    %v4688 = vadd.f32 0.0, %v4687
    %v4689 = vpop.f32.mrf.mxu0
    %v4690 = vpop.f32.mrf.mxu0
    %v4691 = vadd.f32 0.0, %v4690
    %v4692 = vpop.f32.mrf.mxu0
    %4693 = vmatprep.mubr.bf16.mxu0 %v4556
    %4694 = vmatmul.mubr.bf16.gmra.mxu0 %v4555
    %v4695 = vpop.f32.mrf.mxu0
    %v4696 = vadd.f32 0.0, %v4695
    %v4697 = vpop.f32.mrf.mxu0
    %v4698 = vpop.f32.mrf.mxu0
    %v4699 = vadd.f32 0.0, %v4698
    %v4700 = vpop.f32.mrf.mxu0
    %4701 = vmatprep.mubr.bf16.mxu0 %v4558
    %4702 = vmatmul.mubr.bf16.gmra.mxu0 %v4557
    %v4703 = vpop.f32.mrf.mxu0
    %v4704 = vadd.f32 0.0, %v4703
    %v4705 = vpop.f32.mrf.mxu0
    %v4706 = vpop.f32.mrf.mxu0
    %v4707 = vadd.f32 0.0, %v4706
    %v4708 = vpop.f32.mrf.mxu0
    %4709 = vmatprep.mubr.bf16.mxu0 %v4560
    %4710 = vmatmul.mubr.bf16.gmra.mxu0 %v4559
    %v4711 = vpop.f32.mrf.mxu0
    %v4712 = vadd.f32 0.0, %v4711
    %v4713 = vpop.f32.mrf.mxu0
    %v4714 = vpop.f32.mrf.mxu0
    %v4715 = vadd.f32 0.0, %v4714
    %v4716 = vpop.f32.mrf.mxu0
    %4717 = vmatprep.mubr.bf16.mxu0 %v4562
    %4718 = vmatmul.mubr.bf16.gmra.mxu0 %v4561
    %v4719 = vpop.f32.mrf.mxu0
    %v4720 = vadd.f32 0.0, %v4719
    %v4721 = vpop.f32.mrf.mxu0
    %v4722 = vpop.f32.mrf.mxu0
    %v4723 = vadd.f32 0.0, %v4722
    %v4724 = vpop.f32.mrf.mxu0
    %4725 = vmatprep.mubr.bf16.mxu0 %v4564
    %4726 = vmatmul.mubr.bf16.gmra.mxu0 %v4563
    %v4727 = vpop.f32.mrf.mxu0
    %v4728 = vadd.f32 0.0, %v4727
    %v4729 = vpop.f32.mrf.mxu0
    %v4730 = vpop.f32.mrf.mxu0
    %v4731 = vadd.f32 0.0, %v4730
    %v4732 = vpop.f32.mrf.mxu0
    %4733 = vmatprep.mubr.bf16.mxu0 %v4566
    %4734 = vmatmul.mubr.bf16.gmra.mxu0 %v4565
    %v4735 = vpop.f32.mrf.mxu0
    %v4736 = vadd.f32 0.0, %v4735
    %v4737 = vpop.f32.mrf.mxu0
    %v4738 = vpop.f32.mrf.mxu0
    %v4739 = vadd.f32 0.0, %v4738
    %v4740 = vpop.f32.mrf.mxu0
    %4741 = vmatprep.mubr.bf16.mxu0 %v4568
    %4742 = vmatmul.mubr.bf16.gmra.mxu0 %v4567
    %v4743 = vpop.f32.mrf.mxu0
    %v4744 = vadd.f32 0.0, %v4743
    %v4745 = vpop.f32.mrf.mxu0
    %v4746 = vpop.f32.mrf.mxu0
    %v4747 = vadd.f32 0.0, %v4746
    %v4748 = vpop.f32.mrf.mxu0
    %4749 = vmatprep.mubr.bf16.mxu0 %v4570
    %4750 = vmatmul.mubr.bf16.gmra.mxu0 %v4569
    %v4751 = vpop.f32.mrf.mxu0
    %v4752 = vadd.f32 0.0, %v4751
    %v4753 = vpop.f32.mrf.mxu0
    %v4754 = vpop.f32.mrf.mxu0
    %v4755 = vadd.f32 0.0, %v4754
    %v4756 = vpop.f32.mrf.mxu0
    %4757 = vmatprep.mubr.bf16.mxu0 %v4572
    %4758 = vmatmul.mubr.bf16.gmra.mxu0 %v4571
    %v4759 = vpop.f32.mrf.mxu0
    %v4760 = vadd.f32 0.0, %v4759
    %v4761 = vpop.f32.mrf.mxu0
    %v4762 = vpop.f32.mrf.mxu0
    %v4763 = vadd.f32 0.0, %v4762
    %v4764 = vpop.f32.mrf.mxu0
    %4765 = vdwg.mxu0
    %v4766 = vadd.f32 %v4044, %v4640
    %v4767 = vadd.f32 %v4047, %v4643
    %v4768 = vadd.f32 %v4052, %v4648
    %v4769 = vadd.f32 %v4055, %v4651
    %v4770 = vadd.f32 %v4060, %v4656
    %v4771 = vadd.f32 %v4063, %v4659
    %v4772 = vadd.f32 %v4068, %v4664
    %v4773 = vadd.f32 %v4071, %v4667
    %v4774 = vadd.f32 %v4076, %v4672
    %v4775 = vadd.f32 %v4079, %v4675
    %v4776 = vadd.f32 %v4084, %v4680
    %v4777 = vadd.f32 %v4087, %v4683
    %v4778 = vadd.f32 %v4092, %v4688
    %v4779 = vadd.f32 %v4095, %v4691
    %v4780 = vadd.f32 %v4100, %v4696
    %v4781 = vadd.f32 %v4103, %v4699
    %v4782 = vadd.f32 %v4108, %v4704
    %v4783 = vadd.f32 %v4111, %v4707
    %v4784 = vadd.f32 %v4116, %v4712
    %v4785 = vadd.f32 %v4119, %v4715
    %v4786 = vadd.f32 %v4124, %v4720
    %v4787 = vadd.f32 %v4127, %v4723
    %v4788 = vadd.f32 %v4132, %v4728
    %v4789 = vadd.f32 %v4135, %v4731
    %v4790 = vadd.f32 %v4140, %v4736
    %v4791 = vadd.f32 %v4143, %v4739
    %v4792 = vadd.f32 %v4148, %v4744
    %v4793 = vadd.f32 %v4151, %v4747
    %v4794 = vadd.f32 %v4156, %v4752
    %v4795 = vadd.f32 %v4159, %v4755
    %v4796 = vadd.f32 %v4164, %v4760
    %v4797 = vadd.f32 %v4167, %v4763
    %s4798 = scalar_lea.vmem [#allocation4], 448
    %v4799 = vld [vmem:[%s4798] sm:$0xf]
    %v4800 = vld [vmem:[%s4798 + $0x4] sm:$0xf]
    %v4801 = vld [vmem:[%s4798 + $0x8] sm:$0xf]
    %v4802 = vld [vmem:[%s4798 + $0xc] sm:$0xf]
    %v4803 = vld [vmem:[%s4798 + $0x10] sm:$0xf]
    %v4804 = vld [vmem:[%s4798 + $0x14] sm:$0xf]
    %v4805 = vld [vmem:[%s4798 + $0x18] sm:$0xf]
    %v4806 = vld [vmem:[%s4798 + $0x1c] sm:$0xf]
    %v4807 = vld [vmem:[%s4798 + $0x20] sm:$0xf]
    %v4808 = vld [vmem:[%s4798 + $0x24] sm:$0xf]
    %v4809 = vld [vmem:[%s4798 + $0x28] sm:$0xf]
    %v4810 = vld [vmem:[%s4798 + $0x2c] sm:$0xf]
    %v4811 = vld [vmem:[%s4798 + $0x30] sm:$0xf]
    %v4812 = vld [vmem:[%s4798 + $0x34] sm:$0xf]
    %v4813 = vld [vmem:[%s4798 + $0x38] sm:$0xf]
    %v4814 = vld [vmem:[%s4798 + $0x3c] sm:$0xf]
    %v4831 = vunpack.c.l.b16 %v4799
    %v4832 = vunpack.c.l.b16 %v4800
    %v4833 = vunpack.c.l.b16 %v4801
    %v4834 = vunpack.c.l.b16 %v4802
    %v4835 = vunpack.c.l.b16 %v4803
    %v4836 = vunpack.c.l.b16 %v4804
    %v4837 = vunpack.c.l.b16 %v4805
    %v4838 = vunpack.c.l.b16 %v4806
    %v4839 = vunpack.c.l.b16 %v4807
    %v4840 = vunpack.c.l.b16 %v4808
    %v4841 = vunpack.c.l.b16 %v4809
    %v4842 = vunpack.c.l.b16 %v4810
    %v4843 = vunpack.c.l.b16 %v4811
    %v4844 = vunpack.c.l.b16 %v4812
    %v4845 = vunpack.c.l.b16 %v4813
    %v4846 = vunpack.c.l.b16 %v4814
    %v4847 = vpack.c.b16 %v4832, %v4831
    %v4848 = vpack.c.b16 %v4834, %v4833
    %v4849 = vpack.c.b16 %v4836, %v4835
    %v4850 = vpack.c.b16 %v4838, %v4837
    %v4851 = vpack.c.b16 %v4840, %v4839
    %v4852 = vpack.c.b16 %v4842, %v4841
    %v4853 = vpack.c.b16 %v4844, %v4843
    %v4854 = vpack.c.b16 %v4846, %v4845
    %4863 = vmatprep.subr.bf16.mxu0 0
    %4864 = vmatpush1.bf16.msra.mxu0 %v4854
    %4865 = vmatprep.subr.bf16.mxu0 0
    %4866 = vmatpush1.bf16.msra.mxu0 %v4853
    %4867 = vmatprep.subr.bf16.mxu0 0
    %4868 = vmatpush1.bf16.msra.mxu0 %v4852
    %4869 = vmatprep.subr.bf16.mxu0 0
    %4870 = vmatpush1.bf16.msra.mxu0 %v4851
    %4871 = vmatprep.subr.bf16.mxu0 0
    %4872 = vmatpush1.bf16.msra.mxu0 %v4850
    %4873 = vmatprep.subr.bf16.mxu0 0
    %4874 = vmatpush1.bf16.msra.mxu0 %v4849
    %4875 = vmatprep.subr.bf16.mxu0 0
    %4876 = vmatpush1.bf16.msra.mxu0 %v4848
    %4877 = vmatprep.subr.bf16.mxu0 0
    %4878 = vmatpush1.bf16.msra.mxu0 %v4847
    %4879 = vmatprep.subr.bf16.mxu0 0
    %4880 = vmatpush2.bf16.msra.mxu0 0
    %4881 = vmatprep.subr.bf16.mxu0 0
    %4882 = vmatpush2.bf16.msra.mxu0 0
    %4883 = vmatprep.subr.bf16.mxu0 0
    %4884 = vmatpush2.bf16.msra.mxu0 0
    %4885 = vmatprep.subr.bf16.mxu0 0
    %4886 = vmatpush2.bf16.msra.mxu0 0
    %4887 = vmatprep.subr.bf16.mxu0 0
    %4888 = vmatpush2.bf16.msra.mxu0 0
    %4889 = vmatprep.subr.bf16.mxu0 0
    %4890 = vmatpush2.bf16.msra.mxu0 0
    %4891 = vmatprep.subr.bf16.mxu0 0
    %4892 = vmatpush2.bf16.msra.mxu0 0
    %4893 = vmatprep.subr.bf16.mxu0 0
    %4894 = vmatpush2.bf16.msra.mxu0 0
    %4895 = vmatprep.mubr.bf16.mxu0 0
    %4896 = vmatmul.mubr.bf16.gmra.mxu0 %v2962
    %v4897 = vpop.f32.mrf.mxu0
    %v4898 = vadd.f32 0.0, %v4897
    %v4899 = vpop.f32.mrf.mxu0
    %v4900 = vpop.f32.mrf.mxu0
    %v4901 = vadd.f32 0.0, %v4900
    %v4902 = vpop.f32.mrf.mxu0
    %4903 = vmatprep.mubr.bf16.mxu0 0
    %4904 = vmatmul.mubr.bf16.gmra.mxu0 %v2963
    %v4905 = vpop.f32.mrf.mxu0
    %v4906 = vadd.f32 0.0, %v4905
    %v4907 = vpop.f32.mrf.mxu0
    %v4908 = vpop.f32.mrf.mxu0
    %v4909 = vadd.f32 0.0, %v4908
    %v4910 = vpop.f32.mrf.mxu0
    %4911 = vmatprep.mubr.bf16.mxu0 0
    %4912 = vmatmul.mubr.bf16.gmra.mxu0 %v2964
    %v4913 = vpop.f32.mrf.mxu0
    %v4914 = vadd.f32 0.0, %v4913
    %v4915 = vpop.f32.mrf.mxu0
    %v4916 = vpop.f32.mrf.mxu0
    %v4917 = vadd.f32 0.0, %v4916
    %v4918 = vpop.f32.mrf.mxu0
    %4919 = vmatprep.mubr.bf16.mxu0 0
    %4920 = vmatmul.mubr.bf16.gmra.mxu0 %v2965
    %v4921 = vpop.f32.mrf.mxu0
    %v4922 = vadd.f32 0.0, %v4921
    %v4923 = vpop.f32.mrf.mxu0
    %v4924 = vpop.f32.mrf.mxu0
    %v4925 = vadd.f32 0.0, %v4924
    %v4926 = vpop.f32.mrf.mxu0
    %4927 = vmatprep.mubr.bf16.mxu0 0
    %4928 = vmatmul.mubr.bf16.gmra.mxu0 %v2966
    %v4929 = vpop.f32.mrf.mxu0
    %v4930 = vadd.f32 0.0, %v4929
    %v4931 = vpop.f32.mrf.mxu0
    %v4932 = vpop.f32.mrf.mxu0
    %v4933 = vadd.f32 0.0, %v4932
    %v4934 = vpop.f32.mrf.mxu0
    %4935 = vmatprep.mubr.bf16.mxu0 0
    %4936 = vmatmul.mubr.bf16.gmra.mxu0 %v2967
    %v4937 = vpop.f32.mrf.mxu0
    %v4938 = vadd.f32 0.0, %v4937
    %v4939 = vpop.f32.mrf.mxu0
    %v4940 = vpop.f32.mrf.mxu0
    %v4941 = vadd.f32 0.0, %v4940
    %v4942 = vpop.f32.mrf.mxu0
    %4943 = vmatprep.mubr.bf16.mxu0 0
    %4944 = vmatmul.mubr.bf16.gmra.mxu0 %v2968
    %v4945 = vpop.f32.mrf.mxu0
    %v4946 = vadd.f32 0.0, %v4945
    %v4947 = vpop.f32.mrf.mxu0
    %v4948 = vpop.f32.mrf.mxu0
    %v4949 = vadd.f32 0.0, %v4948
    %v4950 = vpop.f32.mrf.mxu0
    %4951 = vmatprep.mubr.bf16.mxu0 0
    %4952 = vmatmul.mubr.bf16.gmra.mxu0 %v2969
    %v4953 = vpop.f32.mrf.mxu0
    %v4954 = vadd.f32 0.0, %v4953
    %v4955 = vpop.f32.mrf.mxu0
    %v4956 = vpop.f32.mrf.mxu0
    %v4957 = vadd.f32 0.0, %v4956
    %v4958 = vpop.f32.mrf.mxu0
    %4959 = vmatprep.mubr.bf16.mxu0 0
    %4960 = vmatmul.mubr.bf16.gmra.mxu0 %v2970
    %v4961 = vpop.f32.mrf.mxu0
    %v4962 = vadd.f32 0.0, %v4961
    %v4963 = vpop.f32.mrf.mxu0
    %v4964 = vpop.f32.mrf.mxu0
    %v4965 = vadd.f32 0.0, %v4964
    %v4966 = vpop.f32.mrf.mxu0
    %4967 = vmatprep.mubr.bf16.mxu0 0
    %4968 = vmatmul.mubr.bf16.gmra.mxu0 %v2971
    %v4969 = vpop.f32.mrf.mxu0
    %v4970 = vadd.f32 0.0, %v4969
    %v4971 = vpop.f32.mrf.mxu0
    %v4972 = vpop.f32.mrf.mxu0
    %v4973 = vadd.f32 0.0, %v4972
    %v4974 = vpop.f32.mrf.mxu0
    %4975 = vmatprep.mubr.bf16.mxu0 0
    %4976 = vmatmul.mubr.bf16.gmra.mxu0 %v2972
    %v4977 = vpop.f32.mrf.mxu0
    %v4978 = vadd.f32 0.0, %v4977
    %v4979 = vpop.f32.mrf.mxu0
    %v4980 = vpop.f32.mrf.mxu0
    %v4981 = vadd.f32 0.0, %v4980
    %v4982 = vpop.f32.mrf.mxu0
    %4983 = vmatprep.mubr.bf16.mxu0 0
    %4984 = vmatmul.mubr.bf16.gmra.mxu0 %v2973
    %v4985 = vpop.f32.mrf.mxu0
    %v4986 = vadd.f32 0.0, %v4985
    %v4987 = vpop.f32.mrf.mxu0
    %v4988 = vpop.f32.mrf.mxu0
    %v4989 = vadd.f32 0.0, %v4988
    %v4990 = vpop.f32.mrf.mxu0
    %4991 = vmatprep.mubr.bf16.mxu0 0
    %4992 = vmatmul.mubr.bf16.gmra.mxu0 %v2974
    %v4993 = vpop.f32.mrf.mxu0
    %v4994 = vadd.f32 0.0, %v4993
    %v4995 = vpop.f32.mrf.mxu0
    %v4996 = vpop.f32.mrf.mxu0
    %v4997 = vadd.f32 0.0, %v4996
    %v4998 = vpop.f32.mrf.mxu0
    %4999 = vmatprep.mubr.bf16.mxu0 0
    %5000 = vmatmul.mubr.bf16.gmra.mxu0 %v2975
    %v5001 = vpop.f32.mrf.mxu0
    %v5002 = vadd.f32 0.0, %v5001
    %v5003 = vpop.f32.mrf.mxu0
    %v5004 = vpop.f32.mrf.mxu0
    %v5005 = vadd.f32 0.0, %v5004
    %v5006 = vpop.f32.mrf.mxu0
    %5007 = vmatprep.mubr.bf16.mxu0 0
    %5008 = vmatmul.mubr.bf16.gmra.mxu0 %v2976
    %v5009 = vpop.f32.mrf.mxu0
    %v5010 = vadd.f32 0.0, %v5009
    %v5011 = vpop.f32.mrf.mxu0
    %v5012 = vpop.f32.mrf.mxu0
    %v5013 = vadd.f32 0.0, %v5012
    %v5014 = vpop.f32.mrf.mxu0
    %5015 = vmatprep.mubr.bf16.mxu0 0
    %5016 = vmatmul.mubr.bf16.gmra.mxu0 %v2977
    %v5017 = vpop.f32.mrf.mxu0
    %v5018 = vadd.f32 0.0, %v5017
    %v5019 = vpop.f32.mrf.mxu0
    %v5020 = vpop.f32.mrf.mxu0
    %v5021 = vadd.f32 0.0, %v5020
    %v5022 = vpop.f32.mrf.mxu0
    %5023 = vdwg.mxu0
    %v5024 = vpack.c.bf16 %v4901, %v4898
    %v5025 = vpack.c.bf16 %v4909, %v4906
    %v5026 = vpack.c.bf16 %v4917, %v4914
    %v5027 = vpack.c.bf16 %v4925, %v4922
    %v5028 = vpack.c.bf16 %v4933, %v4930
    %v5029 = vpack.c.bf16 %v4941, %v4938
    %v5030 = vpack.c.bf16 %v4949, %v4946
    %v5031 = vpack.c.bf16 %v4957, %v4954
    %v5032 = vpack.c.bf16 %v4965, %v4962
    %v5033 = vpack.c.bf16 %v4973, %v4970
    %v5034 = vpack.c.bf16 %v4981, %v4978
    %v5035 = vpack.c.bf16 %v4989, %v4986
    %v5036 = vpack.c.bf16 %v4997, %v4994
    %v5037 = vpack.c.bf16 %v5005, %v5002
    %v5038 = vpack.c.bf16 %v5013, %v5010
    %v5039 = vpack.c.bf16 %v5021, %v5018
    %s5040 = scalar_lea.vmem [#allocation2], 1792
    %v5041 = vld [vmem:[%s5040] sm:$0xff]
    %v5042 = vld [vmem:[%s5040 + $0x8] sm:$0xff]
    %v5043 = vld [vmem:[%s5040 + $0x10] sm:$0xff]
    %v5044 = vld [vmem:[%s5040 + $0x18] sm:$0xff]
    %v5045 = vld [vmem:[%s5040 + $0x20] sm:$0xff]
    %v5046 = vld [vmem:[%s5040 + $0x28] sm:$0xff]
    %v5047 = vld [vmem:[%s5040 + $0x30] sm:$0xff]
    %v5048 = vld [vmem:[%s5040 + $0x38] sm:$0xff]
    %v5049 = vld [vmem:[%s5040 + $0x40] sm:$0xff]
    %v5050 = vld [vmem:[%s5040 + $0x48] sm:$0xff]
    %v5051 = vld [vmem:[%s5040 + $0x50] sm:$0xff]
    %v5052 = vld [vmem:[%s5040 + $0x58] sm:$0xff]
    %v5053 = vld [vmem:[%s5040 + $0x60] sm:$0xff]
    %v5054 = vld [vmem:[%s5040 + $0x68] sm:$0xff]
    %v5055 = vld [vmem:[%s5040 + $0x70] sm:$0xff]
    %v5056 = vld [vmem:[%s5040 + $0x78] sm:$0xff]
    %v5057 = vld [vmem:[%s5040 + $0x80] sm:$0xff]
    %v5058 = vld [vmem:[%s5040 + $0x88] sm:$0xff]
    %v5059 = vld [vmem:[%s5040 + $0x90] sm:$0xff]
    %v5060 = vld [vmem:[%s5040 + $0x98] sm:$0xff]
    %v5061 = vld [vmem:[%s5040 + $0xa0] sm:$0xff]
    %v5062 = vld [vmem:[%s5040 + $0xa8] sm:$0xff]
    %v5063 = vld [vmem:[%s5040 + $0xb0] sm:$0xff]
    %v5064 = vld [vmem:[%s5040 + $0xb8] sm:$0xff]
    %v5065 = vld [vmem:[%s5040 + $0xc0] sm:$0xff]
    %v5066 = vld [vmem:[%s5040 + $0xc8] sm:$0xff]
    %v5067 = vld [vmem:[%s5040 + $0xd0] sm:$0xff]
    %v5068 = vld [vmem:[%s5040 + $0xd8] sm:$0xff]
    %v5069 = vld [vmem:[%s5040 + $0xe0] sm:$0xff]
    %v5070 = vld [vmem:[%s5040 + $0xe8] sm:$0xff]
    %v5071 = vld [vmem:[%s5040 + $0xf0] sm:$0xff]
    %v5072 = vld [vmem:[%s5040 + $0xf8] sm:$0xff]
    %v5105 = vunpack.c.l.b16 %v5041
    %v5106 = vunpack.c.h.b16 %v5041
    %v5107 = vunpack.c.l.b16 %v5042
    %v5108 = vunpack.c.h.b16 %v5042
    %v5109 = vunpack.c.l.b16 %v5043
    %v5110 = vunpack.c.h.b16 %v5043
    %v5111 = vunpack.c.l.b16 %v5044
    %v5112 = vunpack.c.h.b16 %v5044
    %v5113 = vunpack.c.l.b16 %v5045
    %v5114 = vunpack.c.h.b16 %v5045
    %v5115 = vunpack.c.l.b16 %v5046
    %v5116 = vunpack.c.h.b16 %v5046
    %v5117 = vunpack.c.l.b16 %v5047
    %v5118 = vunpack.c.h.b16 %v5047
    %v5119 = vunpack.c.l.b16 %v5048
    %v5120 = vunpack.c.h.b16 %v5048
    %v5121 = vunpack.c.l.b16 %v5049
    %v5122 = vunpack.c.h.b16 %v5049
    %v5123 = vunpack.c.l.b16 %v5050
    %v5124 = vunpack.c.h.b16 %v5050
    %v5125 = vunpack.c.l.b16 %v5051
    %v5126 = vunpack.c.h.b16 %v5051
    %v5127 = vunpack.c.l.b16 %v5052
    %v5128 = vunpack.c.h.b16 %v5052
    %v5129 = vunpack.c.l.b16 %v5053
    %v5130 = vunpack.c.h.b16 %v5053
    %v5131 = vunpack.c.l.b16 %v5054
    %v5132 = vunpack.c.h.b16 %v5054
    %v5133 = vunpack.c.l.b16 %v5055
    %v5134 = vunpack.c.h.b16 %v5055
    %v5135 = vunpack.c.l.b16 %v5056
    %v5136 = vunpack.c.h.b16 %v5056
    %v5137 = vunpack.c.l.b16 %v5057
    %v5138 = vunpack.c.h.b16 %v5057
    %v5139 = vunpack.c.l.b16 %v5058
    %v5140 = vunpack.c.h.b16 %v5058
    %v5141 = vunpack.c.l.b16 %v5059
    %v5142 = vunpack.c.h.b16 %v5059
    %v5143 = vunpack.c.l.b16 %v5060
    %v5144 = vunpack.c.h.b16 %v5060
    %v5145 = vunpack.c.l.b16 %v5061
    %v5146 = vunpack.c.h.b16 %v5061
    %v5147 = vunpack.c.l.b16 %v5062
    %v5148 = vunpack.c.h.b16 %v5062
    %v5149 = vunpack.c.l.b16 %v5063
    %v5150 = vunpack.c.h.b16 %v5063
    %v5151 = vunpack.c.l.b16 %v5064
    %v5152 = vunpack.c.h.b16 %v5064
    %v5153 = vunpack.c.l.b16 %v5065
    %v5154 = vunpack.c.h.b16 %v5065
    %v5155 = vunpack.c.l.b16 %v5066
    %v5156 = vunpack.c.h.b16 %v5066
    %v5157 = vunpack.c.l.b16 %v5067
    %v5158 = vunpack.c.h.b16 %v5067
    %v5159 = vunpack.c.l.b16 %v5068
    %v5160 = vunpack.c.h.b16 %v5068
    %v5161 = vunpack.c.l.b16 %v5069
    %v5162 = vunpack.c.h.b16 %v5069
    %v5163 = vunpack.c.l.b16 %v5070
    %v5164 = vunpack.c.h.b16 %v5070
    %v5165 = vunpack.c.l.b16 %v5071
    %v5166 = vunpack.c.h.b16 %v5071
    %v5167 = vunpack.c.l.b16 %v5072
    %v5168 = vunpack.c.h.b16 %v5072
    %v5169 = vpack.c.b16 %v5107, %v5105
    %v5170 = vpack.c.b16 %v5108, %v5106
    %v5171 = vpack.c.b16 %v5111, %v5109
    %v5172 = vpack.c.b16 %v5112, %v5110
    %v5173 = vpack.c.b16 %v5115, %v5113
    %v5174 = vpack.c.b16 %v5116, %v5114
    %v5175 = vpack.c.b16 %v5119, %v5117
    %v5176 = vpack.c.b16 %v5120, %v5118
    %v5177 = vpack.c.b16 %v5123, %v5121
    %v5178 = vpack.c.b16 %v5124, %v5122
    %v5179 = vpack.c.b16 %v5127, %v5125
    %v5180 = vpack.c.b16 %v5128, %v5126
    %v5181 = vpack.c.b16 %v5131, %v5129
    %v5182 = vpack.c.b16 %v5132, %v5130
    %v5183 = vpack.c.b16 %v5135, %v5133
    %v5184 = vpack.c.b16 %v5136, %v5134
    %v5185 = vpack.c.b16 %v5139, %v5137
    %v5186 = vpack.c.b16 %v5140, %v5138
    %v5187 = vpack.c.b16 %v5143, %v5141
    %v5188 = vpack.c.b16 %v5144, %v5142
    %v5189 = vpack.c.b16 %v5147, %v5145
    %v5190 = vpack.c.b16 %v5148, %v5146
    %v5191 = vpack.c.b16 %v5151, %v5149
    %v5192 = vpack.c.b16 %v5152, %v5150
    %v5193 = vpack.c.b16 %v5155, %v5153
    %v5194 = vpack.c.b16 %v5156, %v5154
    %v5195 = vpack.c.b16 %v5159, %v5157
    %v5196 = vpack.c.b16 %v5160, %v5158
    %v5197 = vpack.c.b16 %v5163, %v5161
    %v5198 = vpack.c.b16 %v5164, %v5162
    %v5199 = vpack.c.b16 %v5167, %v5165
    %v5200 = vpack.c.b16 %v5168, %v5166
    %5233 = vmatprep.subr.bf16.mxu0 0
    %5234 = vmatpush1.bf16.msra.mxu0 %v5031
    %5235 = vmatprep.subr.bf16.mxu0 0
    %5236 = vmatpush1.bf16.msra.mxu0 %v5030
    %5237 = vmatprep.subr.bf16.mxu0 0
    %5238 = vmatpush1.bf16.msra.mxu0 %v5029
    %5239 = vmatprep.subr.bf16.mxu0 0
    %5240 = vmatpush1.bf16.msra.mxu0 %v5028
    %5241 = vmatprep.subr.bf16.mxu0 0
    %5242 = vmatpush1.bf16.msra.mxu0 %v5027
    %5243 = vmatprep.subr.bf16.mxu0 0
    %5244 = vmatpush1.bf16.msra.mxu0 %v5026
    %5245 = vmatprep.subr.bf16.mxu0 0
    %5246 = vmatpush1.bf16.msra.mxu0 %v5025
    %5247 = vmatprep.subr.bf16.mxu0 0
    %5248 = vmatpush1.bf16.msra.mxu0 %v5024
    %5249 = vmatprep.subr.bf16.mxu0 0
    %5250 = vmatpush2.bf16.msra.mxu0 %v5039
    %5251 = vmatprep.subr.bf16.mxu0 0
    %5252 = vmatpush2.bf16.msra.mxu0 %v5038
    %5253 = vmatprep.subr.bf16.mxu0 0
    %5254 = vmatpush2.bf16.msra.mxu0 %v5037
    %5255 = vmatprep.subr.bf16.mxu0 0
    %5256 = vmatpush2.bf16.msra.mxu0 %v5036
    %5257 = vmatprep.subr.bf16.mxu0 0
    %5258 = vmatpush2.bf16.msra.mxu0 %v5035
    %5259 = vmatprep.subr.bf16.mxu0 0
    %5260 = vmatpush2.bf16.msra.mxu0 %v5034
    %5261 = vmatprep.subr.bf16.mxu0 0
    %5262 = vmatpush2.bf16.msra.mxu0 %v5033
    %5263 = vmatprep.subr.bf16.mxu0 0
    %5264 = vmatpush2.bf16.msra.mxu0 %v5032
    %5265 = vmatprep.mubr.bf16.mxu0 %v5170
    %5266 = vmatmul.mubr.bf16.gmra.mxu0 %v5169
    %v5267 = vpop.f32.mrf.mxu0
    %v5268 = vadd.f32 0.0, %v5267
    %v5269 = vpop.f32.mrf.mxu0
    %v5270 = vpop.f32.mrf.mxu0
    %v5271 = vadd.f32 0.0, %v5270
    %v5272 = vpop.f32.mrf.mxu0
    %5273 = vmatprep.mubr.bf16.mxu0 %v5172
    %5274 = vmatmul.mubr.bf16.gmra.mxu0 %v5171
    %v5275 = vpop.f32.mrf.mxu0
    %v5276 = vadd.f32 0.0, %v5275
    %v5277 = vpop.f32.mrf.mxu0
    %v5278 = vpop.f32.mrf.mxu0
    %v5279 = vadd.f32 0.0, %v5278
    %v5280 = vpop.f32.mrf.mxu0
    %5281 = vmatprep.mubr.bf16.mxu0 %v5174
    %5282 = vmatmul.mubr.bf16.gmra.mxu0 %v5173
    %v5283 = vpop.f32.mrf.mxu0
    %v5284 = vadd.f32 0.0, %v5283
    %v5285 = vpop.f32.mrf.mxu0
    %v5286 = vpop.f32.mrf.mxu0
    %v5287 = vadd.f32 0.0, %v5286
    %v5288 = vpop.f32.mrf.mxu0
    %5289 = vmatprep.mubr.bf16.mxu0 %v5176
    %5290 = vmatmul.mubr.bf16.gmra.mxu0 %v5175
    %v5291 = vpop.f32.mrf.mxu0
    %v5292 = vadd.f32 0.0, %v5291
    %v5293 = vpop.f32.mrf.mxu0
    %v5294 = vpop.f32.mrf.mxu0
    %v5295 = vadd.f32 0.0, %v5294
    %v5296 = vpop.f32.mrf.mxu0
    %5297 = vmatprep.mubr.bf16.mxu0 %v5178
    %5298 = vmatmul.mubr.bf16.gmra.mxu0 %v5177
    %v5299 = vpop.f32.mrf.mxu0
    %v5300 = vadd.f32 0.0, %v5299
    %v5301 = vpop.f32.mrf.mxu0
    %v5302 = vpop.f32.mrf.mxu0
    %v5303 = vadd.f32 0.0, %v5302
    %v5304 = vpop.f32.mrf.mxu0
    %5305 = vmatprep.mubr.bf16.mxu0 %v5180
    %5306 = vmatmul.mubr.bf16.gmra.mxu0 %v5179
    %v5307 = vpop.f32.mrf.mxu0
    %v5308 = vadd.f32 0.0, %v5307
    %v5309 = vpop.f32.mrf.mxu0
    %v5310 = vpop.f32.mrf.mxu0
    %v5311 = vadd.f32 0.0, %v5310
    %v5312 = vpop.f32.mrf.mxu0
    %5313 = vmatprep.mubr.bf16.mxu0 %v5182
    %5314 = vmatmul.mubr.bf16.gmra.mxu0 %v5181
    %v5315 = vpop.f32.mrf.mxu0
    %v5316 = vadd.f32 0.0, %v5315
    %v5317 = vpop.f32.mrf.mxu0
    %v5318 = vpop.f32.mrf.mxu0
    %v5319 = vadd.f32 0.0, %v5318
    %v5320 = vpop.f32.mrf.mxu0
    %5321 = vmatprep.mubr.bf16.mxu0 %v5184
    %5322 = vmatmul.mubr.bf16.gmra.mxu0 %v5183
    %v5323 = vpop.f32.mrf.mxu0
    %v5324 = vadd.f32 0.0, %v5323
    %v5325 = vpop.f32.mrf.mxu0
    %v5326 = vpop.f32.mrf.mxu0
    %v5327 = vadd.f32 0.0, %v5326
    %v5328 = vpop.f32.mrf.mxu0
    %5329 = vmatprep.mubr.bf16.mxu0 %v5186
    %5330 = vmatmul.mubr.bf16.gmra.mxu0 %v5185
    %v5331 = vpop.f32.mrf.mxu0
    %v5332 = vadd.f32 0.0, %v5331
    %v5333 = vpop.f32.mrf.mxu0
    %v5334 = vpop.f32.mrf.mxu0
    %v5335 = vadd.f32 0.0, %v5334
    %v5336 = vpop.f32.mrf.mxu0
    %5337 = vmatprep.mubr.bf16.mxu0 %v5188
    %5338 = vmatmul.mubr.bf16.gmra.mxu0 %v5187
    %v5339 = vpop.f32.mrf.mxu0
    %v5340 = vadd.f32 0.0, %v5339
    %v5341 = vpop.f32.mrf.mxu0
    %v5342 = vpop.f32.mrf.mxu0
    %v5343 = vadd.f32 0.0, %v5342
    %v5344 = vpop.f32.mrf.mxu0
    %5345 = vmatprep.mubr.bf16.mxu0 %v5190
    %5346 = vmatmul.mubr.bf16.gmra.mxu0 %v5189
    %v5347 = vpop.f32.mrf.mxu0
    %v5348 = vadd.f32 0.0, %v5347
    %v5349 = vpop.f32.mrf.mxu0
    %v5350 = vpop.f32.mrf.mxu0
    %v5351 = vadd.f32 0.0, %v5350
    %v5352 = vpop.f32.mrf.mxu0
    %5353 = vmatprep.mubr.bf16.mxu0 %v5192
    %5354 = vmatmul.mubr.bf16.gmra.mxu0 %v5191
    %v5355 = vpop.f32.mrf.mxu0
    %v5356 = vadd.f32 0.0, %v5355
    %v5357 = vpop.f32.mrf.mxu0
    %v5358 = vpop.f32.mrf.mxu0
    %v5359 = vadd.f32 0.0, %v5358
    %v5360 = vpop.f32.mrf.mxu0
    %5361 = vmatprep.mubr.bf16.mxu0 %v5194
    %5362 = vmatmul.mubr.bf16.gmra.mxu0 %v5193
    %v5363 = vpop.f32.mrf.mxu0
    %v5364 = vadd.f32 0.0, %v5363
    %v5365 = vpop.f32.mrf.mxu0
    %v5366 = vpop.f32.mrf.mxu0
    %v5367 = vadd.f32 0.0, %v5366
    %v5368 = vpop.f32.mrf.mxu0
    %5369 = vmatprep.mubr.bf16.mxu0 %v5196
    %5370 = vmatmul.mubr.bf16.gmra.mxu0 %v5195
    %v5371 = vpop.f32.mrf.mxu0
    %v5372 = vadd.f32 0.0, %v5371
    %v5373 = vpop.f32.mrf.mxu0
    %v5374 = vpop.f32.mrf.mxu0
    %v5375 = vadd.f32 0.0, %v5374
    %v5376 = vpop.f32.mrf.mxu0
    %5377 = vmatprep.mubr.bf16.mxu0 %v5198
    %5378 = vmatmul.mubr.bf16.gmra.mxu0 %v5197
    %v5379 = vpop.f32.mrf.mxu0
    %v5380 = vadd.f32 0.0, %v5379
    %v5381 = vpop.f32.mrf.mxu0
    %v5382 = vpop.f32.mrf.mxu0
    %v5383 = vadd.f32 0.0, %v5382
    %v5384 = vpop.f32.mrf.mxu0
    %5385 = vmatprep.mubr.bf16.mxu0 %v5200
    %5386 = vmatmul.mubr.bf16.gmra.mxu0 %v5199
    %v5387 = vpop.f32.mrf.mxu0
    %v5388 = vadd.f32 0.0, %v5387
    %v5389 = vpop.f32.mrf.mxu0
    %v5390 = vpop.f32.mrf.mxu0
    %v5391 = vadd.f32 0.0, %v5390
    %v5392 = vpop.f32.mrf.mxu0
    %5393 = vdwg.mxu0
    %v5394 = vadd.f32 %v4766, %v5268
    %v5395 = vadd.f32 %v4767, %v5271
    %v5396 = vadd.f32 %v4768, %v5276
    %v5397 = vadd.f32 %v4769, %v5279
    %v5398 = vadd.f32 %v4770, %v5284
    %v5399 = vadd.f32 %v4771, %v5287
    %v5400 = vadd.f32 %v4772, %v5292
    %v5401 = vadd.f32 %v4773, %v5295
    %v5402 = vadd.f32 %v4774, %v5300
    %v5403 = vadd.f32 %v4775, %v5303
    %v5404 = vadd.f32 %v4776, %v5308
    %v5405 = vadd.f32 %v4777, %v5311
    %v5406 = vadd.f32 %v4778, %v5316
    %v5407 = vadd.f32 %v4779, %v5319
    %v5408 = vadd.f32 %v4780, %v5324
    %v5409 = vadd.f32 %v4781, %v5327
    %v5410 = vadd.f32 %v4782, %v5332
    %v5411 = vadd.f32 %v4783, %v5335
    %v5412 = vadd.f32 %v4784, %v5340
    %v5413 = vadd.f32 %v4785, %v5343
    %v5414 = vadd.f32 %v4786, %v5348
    %v5415 = vadd.f32 %v4787, %v5351
    %v5416 = vadd.f32 %v4788, %v5356
    %v5417 = vadd.f32 %v4789, %v5359
    %v5418 = vadd.f32 %v4790, %v5364
    %v5419 = vadd.f32 %v4791, %v5367
    %v5420 = vadd.f32 %v4792, %v5372
    %v5421 = vadd.f32 %v4793, %v5375
    %v5422 = vadd.f32 %v4794, %v5380
    %v5423 = vadd.f32 %v4795, %v5383
    %v5424 = vadd.f32 %v4796, %v5388
    %v5425 = vadd.f32 %v4797, %v5391
    %s5426 = scalar_lea.vmem %s3, 256
    %v5427 = vld [vmem:[%s5426] sm:$0xff]
    %v5428 = vld [vmem:[%s5426 + $0x8] sm:$0xff]
    %v5429 = vld [vmem:[%s5426 + $0x10] sm:$0xff]
    %v5430 = vld [vmem:[%s5426 + $0x18] sm:$0xff]
    %v5431 = vld [vmem:[%s5426 + $0x20] sm:$0xff]
    %v5432 = vld [vmem:[%s5426 + $0x28] sm:$0xff]
    %v5433 = vld [vmem:[%s5426 + $0x30] sm:$0xff]
    %v5434 = vld [vmem:[%s5426 + $0x38] sm:$0xff]
    %v5435 = vld [vmem:[%s5426 + $0x40] sm:$0xff]
    %v5436 = vld [vmem:[%s5426 + $0x48] sm:$0xff]
    %v5437 = vld [vmem:[%s5426 + $0x50] sm:$0xff]
    %v5438 = vld [vmem:[%s5426 + $0x58] sm:$0xff]
    %v5439 = vld [vmem:[%s5426 + $0x60] sm:$0xff]
    %v5440 = vld [vmem:[%s5426 + $0x68] sm:$0xff]
    %v5441 = vld [vmem:[%s5426 + $0x70] sm:$0xff]
    %v5442 = vld [vmem:[%s5426 + $0x78] sm:$0xff]
    %v5443 = vld [vmem:[%s5426 + $0x80] sm:$0xff]
    %v5444 = vld [vmem:[%s5426 + $0x88] sm:$0xff]
    %v5445 = vld [vmem:[%s5426 + $0x90] sm:$0xff]
    %v5446 = vld [vmem:[%s5426 + $0x98] sm:$0xff]
    %v5447 = vld [vmem:[%s5426 + $0xa0] sm:$0xff]
    %v5448 = vld [vmem:[%s5426 + $0xa8] sm:$0xff]
    %v5449 = vld [vmem:[%s5426 + $0xb0] sm:$0xff]
    %v5450 = vld [vmem:[%s5426 + $0xb8] sm:$0xff]
    %v5451 = vld [vmem:[%s5426 + $0xc0] sm:$0xff]
    %v5452 = vld [vmem:[%s5426 + $0xc8] sm:$0xff]
    %v5453 = vld [vmem:[%s5426 + $0xd0] sm:$0xff]
    %v5454 = vld [vmem:[%s5426 + $0xd8] sm:$0xff]
    %v5455 = vld [vmem:[%s5426 + $0xe0] sm:$0xff]
    %v5456 = vld [vmem:[%s5426 + $0xe8] sm:$0xff]
    %v5457 = vld [vmem:[%s5426 + $0xf0] sm:$0xff]
    %v5458 = vld [vmem:[%s5426 + $0xf8] sm:$0xff]
    %5460 = vset.pattern.permute.xlu0 0
    %5461 = vperm.xlu0 %5460, %v5427
    %v5462 = vpop.permute.xlu0 %5461
    %5465 = vset.pattern.permute.xlu0 0
    %5466 = vperm.xlu0 %5465, %v5428
    %v5467 = vpop.permute.xlu0 %5466
    %5470 = vset.pattern.permute.xlu0 0
    %5471 = vperm.xlu0 %5470, %v5429
    %v5472 = vpop.permute.xlu0 %5471
    %5475 = vset.pattern.permute.xlu0 0
    %5476 = vperm.xlu0 %5475, %v5430
    %v5477 = vpop.permute.xlu0 %5476
    %5480 = vset.pattern.permute.xlu0 0
    %5481 = vperm.xlu0 %5480, %v5431
    %v5482 = vpop.permute.xlu0 %5481
    %5485 = vset.pattern.permute.xlu0 0
    %5486 = vperm.xlu0 %5485, %v5432
    %v5487 = vpop.permute.xlu0 %5486
    %5490 = vset.pattern.permute.xlu0 0
    %5491 = vperm.xlu0 %5490, %v5433
    %v5492 = vpop.permute.xlu0 %5491
    %5495 = vset.pattern.permute.xlu0 0
    %5496 = vperm.xlu0 %5495, %v5434
    %v5497 = vpop.permute.xlu0 %5496
    %5500 = vset.pattern.permute.xlu0 0
    %5501 = vperm.xlu0 %5500, %v5435
    %v5502 = vpop.permute.xlu0 %5501
    %5505 = vset.pattern.permute.xlu0 0
    %5506 = vperm.xlu0 %5505, %v5436
    %v5507 = vpop.permute.xlu0 %5506
    %5510 = vset.pattern.permute.xlu0 0
    %5511 = vperm.xlu0 %5510, %v5437
    %v5512 = vpop.permute.xlu0 %5511
    %5515 = vset.pattern.permute.xlu0 0
    %5516 = vperm.xlu0 %5515, %v5438
    %v5517 = vpop.permute.xlu0 %5516
    %5520 = vset.pattern.permute.xlu0 0
    %5521 = vperm.xlu0 %5520, %v5439
    %v5522 = vpop.permute.xlu0 %5521
    %5525 = vset.pattern.permute.xlu0 0
    %5526 = vperm.xlu0 %5525, %v5440
    %v5527 = vpop.permute.xlu0 %5526
    %5530 = vset.pattern.permute.xlu0 0
    %5531 = vperm.xlu0 %5530, %v5441
    %v5532 = vpop.permute.xlu0 %5531
    %5535 = vset.pattern.permute.xlu0 0
    %5536 = vperm.xlu0 %5535, %v5442
    %v5537 = vpop.permute.xlu0 %5536
    %5540 = vset.pattern.permute.xlu0 0
    %5541 = vperm.xlu0 %5540, %v5443
    %v5542 = vpop.permute.xlu0 %5541
    %5545 = vset.pattern.permute.xlu0 0
    %5546 = vperm.xlu0 %5545, %v5444
    %v5547 = vpop.permute.xlu0 %5546
    %5550 = vset.pattern.permute.xlu0 0
    %5551 = vperm.xlu0 %5550, %v5445
    %v5552 = vpop.permute.xlu0 %5551
    %5555 = vset.pattern.permute.xlu0 0
    %5556 = vperm.xlu0 %5555, %v5446
    %v5557 = vpop.permute.xlu0 %5556
    %5560 = vset.pattern.permute.xlu0 0
    %5561 = vperm.xlu0 %5560, %v5447
    %v5562 = vpop.permute.xlu0 %5561
    %5565 = vset.pattern.permute.xlu0 0
    %5566 = vperm.xlu0 %5565, %v5448
    %v5567 = vpop.permute.xlu0 %5566
    %5570 = vset.pattern.permute.xlu0 0
    %5571 = vperm.xlu0 %5570, %v5449
    %v5572 = vpop.permute.xlu0 %5571
    %5575 = vset.pattern.permute.xlu0 0
    %5576 = vperm.xlu0 %5575, %v5450
    %v5577 = vpop.permute.xlu0 %5576
    %5580 = vset.pattern.permute.xlu0 0
    %5581 = vperm.xlu0 %5580, %v5451
    %v5582 = vpop.permute.xlu0 %5581
    %5585 = vset.pattern.permute.xlu0 0
    %5586 = vperm.xlu0 %5585, %v5452
    %v5587 = vpop.permute.xlu0 %5586
    %5590 = vset.pattern.permute.xlu0 0
    %5591 = vperm.xlu0 %5590, %v5453
    %v5592 = vpop.permute.xlu0 %5591
    %5595 = vset.pattern.permute.xlu0 0
    %5596 = vperm.xlu0 %5595, %v5454
    %v5597 = vpop.permute.xlu0 %5596
    %5600 = vset.pattern.permute.xlu0 0
    %5601 = vperm.xlu0 %5600, %v5455
    %v5602 = vpop.permute.xlu0 %5601
    %5605 = vset.pattern.permute.xlu0 0
    %5606 = vperm.xlu0 %5605, %v5456
    %v5607 = vpop.permute.xlu0 %5606
    %5610 = vset.pattern.permute.xlu0 0
    %5611 = vperm.xlu0 %5610, %v5457
    %v5612 = vpop.permute.xlu0 %5611
    %5615 = vset.pattern.permute.xlu0 0
    %5616 = vperm.xlu0 %5615, %v5458
    %v5617 = vpop.permute.xlu0 %5616
    %v5619 = vadd.f32 %v5394, %v5462
    %v5620 = vadd.f32 %v5395, %v5467
    %v5621 = vadd.f32 %v5396, %v5472
    %v5622 = vadd.f32 %v5397, %v5477
    %v5623 = vadd.f32 %v5398, %v5482
    %v5624 = vadd.f32 %v5399, %v5487
    %v5625 = vadd.f32 %v5400, %v5492
    %v5626 = vadd.f32 %v5401, %v5497
    %v5627 = vadd.f32 %v5402, %v5502
    %v5628 = vadd.f32 %v5403, %v5507
    %v5629 = vadd.f32 %v5404, %v5512
    %v5630 = vadd.f32 %v5405, %v5517
    %v5631 = vadd.f32 %v5406, %v5522
    %v5632 = vadd.f32 %v5407, %v5527
    %v5633 = vadd.f32 %v5408, %v5532
    %v5634 = vadd.f32 %v5409, %v5537
    %v5635 = vadd.f32 %v5410, %v5542
    %v5636 = vadd.f32 %v5411, %v5547
    %v5637 = vadd.f32 %v5412, %v5552
    %v5638 = vadd.f32 %v5413, %v5557
    %v5639 = vadd.f32 %v5414, %v5562
    %v5640 = vadd.f32 %v5415, %v5567
    %v5641 = vadd.f32 %v5416, %v5572
    %v5642 = vadd.f32 %v5417, %v5577
    %v5643 = vadd.f32 %v5418, %v5582
    %v5644 = vadd.f32 %v5419, %v5587
    %v5645 = vadd.f32 %v5420, %v5592
    %v5646 = vadd.f32 %v5421, %v5597
    %v5647 = vadd.f32 %v5422, %v5602
    %v5648 = vadd.f32 %v5423, %v5607
    %v5649 = vadd.f32 %v5424, %v5612
    %v5650 = vadd.f32 %v5425, %v5617
    %vm5651 = vcmp.gt.f32.partialorder %v5619, 0.0
    %vm5652 = vcmp.gt.f32.partialorder %v5620, 0.0
    %vm5653 = vcmp.gt.f32.partialorder %v5621, 0.0
    %vm5654 = vcmp.gt.f32.partialorder %v5622, 0.0
    %vm5655 = vcmp.gt.f32.partialorder %v5623, 0.0
    %vm5656 = vcmp.gt.f32.partialorder %v5624, 0.0
    %vm5657 = vcmp.gt.f32.partialorder %v5625, 0.0
    %vm5658 = vcmp.gt.f32.partialorder %v5626, 0.0
    %vm5659 = vcmp.gt.f32.partialorder %v5627, 0.0
    %vm5660 = vcmp.gt.f32.partialorder %v5628, 0.0
    %vm5661 = vcmp.gt.f32.partialorder %v5629, 0.0
    %vm5662 = vcmp.gt.f32.partialorder %v5630, 0.0
    %vm5663 = vcmp.gt.f32.partialorder %v5631, 0.0
    %vm5664 = vcmp.gt.f32.partialorder %v5632, 0.0
    %vm5665 = vcmp.gt.f32.partialorder %v5633, 0.0
    %vm5666 = vcmp.gt.f32.partialorder %v5634, 0.0
    %vm5667 = vcmp.gt.f32.partialorder %v5635, 0.0
    %vm5668 = vcmp.gt.f32.partialorder %v5636, 0.0
    %vm5669 = vcmp.gt.f32.partialorder %v5637, 0.0
    %vm5670 = vcmp.gt.f32.partialorder %v5638, 0.0
    %vm5671 = vcmp.gt.f32.partialorder %v5639, 0.0
    %vm5672 = vcmp.gt.f32.partialorder %v5640, 0.0
    %vm5673 = vcmp.gt.f32.partialorder %v5641, 0.0
    %vm5674 = vcmp.gt.f32.partialorder %v5642, 0.0
    %vm5675 = vcmp.gt.f32.partialorder %v5643, 0.0
    %vm5676 = vcmp.gt.f32.partialorder %v5644, 0.0
    %vm5677 = vcmp.gt.f32.partialorder %v5645, 0.0
    %vm5678 = vcmp.gt.f32.partialorder %v5646, 0.0
    %vm5679 = vcmp.gt.f32.partialorder %v5647, 0.0
    %vm5680 = vcmp.gt.f32.partialorder %v5648, 0.0
    %vm5681 = vcmp.gt.f32.partialorder %v5649, 0.0
    %vm5682 = vcmp.gt.f32.partialorder %v5650, 0.0
    %v5683 = vmul.f32 %v5619, 0.2
    %v5684 = vmul.f32 %v5620, 0.2
    %v5685 = vmul.f32 %v5621, 0.2
    %v5686 = vmul.f32 %v5622, 0.2
    %v5687 = vmul.f32 %v5623, 0.2
    %v5688 = vmul.f32 %v5624, 0.2
    %v5689 = vmul.f32 %v5625, 0.2
    %v5690 = vmul.f32 %v5626, 0.2
    %v5691 = vmul.f32 %v5627, 0.2
    %v5692 = vmul.f32 %v5628, 0.2
    %v5693 = vmul.f32 %v5629, 0.2
    %v5694 = vmul.f32 %v5630, 0.2
    %v5695 = vmul.f32 %v5631, 0.2
    %v5696 = vmul.f32 %v5632, 0.2
    %v5697 = vmul.f32 %v5633, 0.2
    %v5698 = vmul.f32 %v5634, 0.2
    %v5699 = vmul.f32 %v5635, 0.2
    %v5700 = vmul.f32 %v5636, 0.2
    %v5701 = vmul.f32 %v5637, 0.2
    %v5702 = vmul.f32 %v5638, 0.2
    %v5703 = vmul.f32 %v5639, 0.2
    %v5704 = vmul.f32 %v5640, 0.2
    %v5705 = vmul.f32 %v5641, 0.2
    %v5706 = vmul.f32 %v5642, 0.2
    %v5707 = vmul.f32 %v5643, 0.2
    %v5708 = vmul.f32 %v5644, 0.2
    %v5709 = vmul.f32 %v5645, 0.2
    %v5710 = vmul.f32 %v5646, 0.2
    %v5711 = vmul.f32 %v5647, 0.2
    %v5712 = vmul.f32 %v5648, 0.2
    %v5713 = vmul.f32 %v5649, 0.2
    %v5714 = vmul.f32 %v5650, 0.2
    %v5715 = vsel %vm5651, %v5619, %v5683
    %v5716 = vsel %vm5652, %v5620, %v5684
    %v5717 = vsel %vm5653, %v5621, %v5685
    %v5718 = vsel %vm5654, %v5622, %v5686
    %v5719 = vsel %vm5655, %v5623, %v5687
    %v5720 = vsel %vm5656, %v5624, %v5688
    %v5721 = vsel %vm5657, %v5625, %v5689
    %v5722 = vsel %vm5658, %v5626, %v5690
    %v5723 = vsel %vm5659, %v5627, %v5691
    %v5724 = vsel %vm5660, %v5628, %v5692
    %v5725 = vsel %vm5661, %v5629, %v5693
    %v5726 = vsel %vm5662, %v5630, %v5694
    %v5727 = vsel %vm5663, %v5631, %v5695
    %v5728 = vsel %vm5664, %v5632, %v5696
    %v5729 = vsel %vm5665, %v5633, %v5697
    %v5730 = vsel %vm5666, %v5634, %v5698
    %v5731 = vsel %vm5667, %v5635, %v5699
    %v5732 = vsel %vm5668, %v5636, %v5700
    %v5733 = vsel %vm5669, %v5637, %v5701
    %v5734 = vsel %vm5670, %v5638, %v5702
    %v5735 = vsel %vm5671, %v5639, %v5703
    %v5736 = vsel %vm5672, %v5640, %v5704
    %v5737 = vsel %vm5673, %v5641, %v5705
    %v5738 = vsel %vm5674, %v5642, %v5706
    %v5739 = vsel %vm5675, %v5643, %v5707
    %v5740 = vsel %vm5676, %v5644, %v5708
    %v5741 = vsel %vm5677, %v5645, %v5709
    %v5742 = vsel %vm5678, %v5646, %v5710
    %v5743 = vsel %vm5679, %v5647, %v5711
    %v5744 = vsel %vm5680, %v5648, %v5712
    %v5745 = vsel %vm5681, %v5649, %v5713
    %v5746 = vsel %vm5682, %v5650, %v5714
    %v5747 = vpack.c.bf16 %v5716, %v5715
    %v5748 = vpack.c.bf16 %v5718, %v5717
    %v5749 = vpack.c.bf16 %v5720, %v5719
    %v5750 = vpack.c.bf16 %v5722, %v5721
    %v5751 = vpack.c.bf16 %v5724, %v5723
    %v5752 = vpack.c.bf16 %v5726, %v5725
    %v5753 = vpack.c.bf16 %v5728, %v5727
    %v5754 = vpack.c.bf16 %v5730, %v5729
    %v5755 = vpack.c.bf16 %v5732, %v5731
    %v5756 = vpack.c.bf16 %v5734, %v5733
    %v5757 = vpack.c.bf16 %v5736, %v5735
    %v5758 = vpack.c.bf16 %v5738, %v5737
    %v5759 = vpack.c.bf16 %v5740, %v5739
    %v5760 = vpack.c.bf16 %v5742, %v5741
    %v5761 = vpack.c.bf16 %v5744, %v5743
    %v5762 = vpack.c.bf16 %v5746, %v5745
    %s5763 = scalar_lea.vmem [#allocation4], 512
    %v5764 = vld [vmem:[%s5763] sm:$0xf]
    %v5765 = vld [vmem:[%s5763 + $0x4] sm:$0xf]
    %v5766 = vld [vmem:[%s5763 + $0x8] sm:$0xf]
    %v5767 = vld [vmem:[%s5763 + $0xc] sm:$0xf]
    %v5768 = vld [vmem:[%s5763 + $0x10] sm:$0xf]
    %v5769 = vld [vmem:[%s5763 + $0x14] sm:$0xf]
    %v5770 = vld [vmem:[%s5763 + $0x18] sm:$0xf]
    %v5771 = vld [vmem:[%s5763 + $0x1c] sm:$0xf]
    %v5772 = vld [vmem:[%s5763 + $0x20] sm:$0xf]
    %v5773 = vld [vmem:[%s5763 + $0x24] sm:$0xf]
    %v5774 = vld [vmem:[%s5763 + $0x28] sm:$0xf]
    %v5775 = vld [vmem:[%s5763 + $0x2c] sm:$0xf]
    %v5776 = vld [vmem:[%s5763 + $0x30] sm:$0xf]
    %v5777 = vld [vmem:[%s5763 + $0x34] sm:$0xf]
    %v5778 = vld [vmem:[%s5763 + $0x38] sm:$0xf]
    %v5779 = vld [vmem:[%s5763 + $0x3c] sm:$0xf]
    %v5796 = vunpack.c.l.b16 %v5764
    %v5797 = vunpack.c.l.b16 %v5765
    %v5798 = vunpack.c.l.b16 %v5766
    %v5799 = vunpack.c.l.b16 %v5767
    %v5800 = vunpack.c.l.b16 %v5768
    %v5801 = vunpack.c.l.b16 %v5769
    %v5802 = vunpack.c.l.b16 %v5770
    %v5803 = vunpack.c.l.b16 %v5771
    %v5804 = vunpack.c.l.b16 %v5772
    %v5805 = vunpack.c.l.b16 %v5773
    %v5806 = vunpack.c.l.b16 %v5774
    %v5807 = vunpack.c.l.b16 %v5775
    %v5808 = vunpack.c.l.b16 %v5776
    %v5809 = vunpack.c.l.b16 %v5777
    %v5810 = vunpack.c.l.b16 %v5778
    %v5811 = vunpack.c.l.b16 %v5779
    %v5812 = vpack.c.b16 %v5797, %v5796
    %v5813 = vpack.c.b16 %v5799, %v5798
    %v5814 = vpack.c.b16 %v5801, %v5800
    %v5815 = vpack.c.b16 %v5803, %v5802
    %v5816 = vpack.c.b16 %v5805, %v5804
    %v5817 = vpack.c.b16 %v5807, %v5806
    %v5818 = vpack.c.b16 %v5809, %v5808
    %v5819 = vpack.c.b16 %v5811, %v5810
    %5828 = vmatprep.subr.bf16.mxu0 0
    %5829 = vmatpush1.bf16.msra.mxu0 %v5819
    %5830 = vmatprep.subr.bf16.mxu0 0
    %5831 = vmatpush1.bf16.msra.mxu0 %v5818
    %5832 = vmatprep.subr.bf16.mxu0 0
    %5833 = vmatpush1.bf16.msra.mxu0 %v5817
    %5834 = vmatprep.subr.bf16.mxu0 0
    %5835 = vmatpush1.bf16.msra.mxu0 %v5816
    %5836 = vmatprep.subr.bf16.mxu0 0
    %5837 = vmatpush1.bf16.msra.mxu0 %v5815
    %5838 = vmatprep.subr.bf16.mxu0 0
    %5839 = vmatpush1.bf16.msra.mxu0 %v5814
    %5840 = vmatprep.subr.bf16.mxu0 0
    %5841 = vmatpush1.bf16.msra.mxu0 %v5813
    %5842 = vmatprep.subr.bf16.mxu0 0
    %5843 = vmatpush1.bf16.msra.mxu0 %v5812
    %5844 = vmatprep.subr.bf16.mxu0 0
    %5845 = vmatpush2.bf16.msra.mxu0 0
    %5846 = vmatprep.subr.bf16.mxu0 0
    %5847 = vmatpush2.bf16.msra.mxu0 0
    %5848 = vmatprep.subr.bf16.mxu0 0
    %5849 = vmatpush2.bf16.msra.mxu0 0
    %5850 = vmatprep.subr.bf16.mxu0 0
    %5851 = vmatpush2.bf16.msra.mxu0 0
    %5852 = vmatprep.subr.bf16.mxu0 0
    %5853 = vmatpush2.bf16.msra.mxu0 0
    %5854 = vmatprep.subr.bf16.mxu0 0
    %5855 = vmatpush2.bf16.msra.mxu0 0
    %5856 = vmatprep.subr.bf16.mxu0 0
    %5857 = vmatpush2.bf16.msra.mxu0 0
    %5858 = vmatprep.subr.bf16.mxu0 0
    %5859 = vmatpush2.bf16.msra.mxu0 0
    %5860 = vmatprep.mubr.bf16.mxu0 0
    %5861 = vmatmul.mubr.bf16.gmra.mxu0 %v5747
    %v5862 = vpop.f32.mrf.mxu0
    %v5863 = vadd.f32 0.0, %v5862
    %v5864 = vpop.f32.mrf.mxu0
    %v5865 = vpop.f32.mrf.mxu0
    %v5866 = vadd.f32 0.0, %v5865
    %v5867 = vpop.f32.mrf.mxu0
    %5868 = vmatprep.mubr.bf16.mxu0 0
    %5869 = vmatmul.mubr.bf16.gmra.mxu0 %v5748
    %v5870 = vpop.f32.mrf.mxu0
    %v5871 = vadd.f32 0.0, %v5870
    %v5872 = vpop.f32.mrf.mxu0
    %v5873 = vpop.f32.mrf.mxu0
    %v5874 = vadd.f32 0.0, %v5873
    %v5875 = vpop.f32.mrf.mxu0
    %5876 = vmatprep.mubr.bf16.mxu0 0
    %5877 = vmatmul.mubr.bf16.gmra.mxu0 %v5749
    %v5878 = vpop.f32.mrf.mxu0
    %v5879 = vadd.f32 0.0, %v5878
    %v5880 = vpop.f32.mrf.mxu0
    %v5881 = vpop.f32.mrf.mxu0
    %v5882 = vadd.f32 0.0, %v5881
    %v5883 = vpop.f32.mrf.mxu0
    %5884 = vmatprep.mubr.bf16.mxu0 0
    %5885 = vmatmul.mubr.bf16.gmra.mxu0 %v5750
    %v5886 = vpop.f32.mrf.mxu0
    %v5887 = vadd.f32 0.0, %v5886
    %v5888 = vpop.f32.mrf.mxu0
    %v5889 = vpop.f32.mrf.mxu0
    %v5890 = vadd.f32 0.0, %v5889
    %v5891 = vpop.f32.mrf.mxu0
    %5892 = vmatprep.mubr.bf16.mxu0 0
    %5893 = vmatmul.mubr.bf16.gmra.mxu0 %v5751
    %v5894 = vpop.f32.mrf.mxu0
    %v5895 = vadd.f32 0.0, %v5894
    %v5896 = vpop.f32.mrf.mxu0
    %v5897 = vpop.f32.mrf.mxu0
    %v5898 = vadd.f32 0.0, %v5897
    %v5899 = vpop.f32.mrf.mxu0
    %5900 = vmatprep.mubr.bf16.mxu0 0
    %5901 = vmatmul.mubr.bf16.gmra.mxu0 %v5752
    %v5902 = vpop.f32.mrf.mxu0
    %v5903 = vadd.f32 0.0, %v5902
    %v5904 = vpop.f32.mrf.mxu0
    %v5905 = vpop.f32.mrf.mxu0
    %v5906 = vadd.f32 0.0, %v5905
    %v5907 = vpop.f32.mrf.mxu0
    %5908 = vmatprep.mubr.bf16.mxu0 0
    %5909 = vmatmul.mubr.bf16.gmra.mxu0 %v5753
    %v5910 = vpop.f32.mrf.mxu0
    %v5911 = vadd.f32 0.0, %v5910
    %v5912 = vpop.f32.mrf.mxu0
    %v5913 = vpop.f32.mrf.mxu0
    %v5914 = vadd.f32 0.0, %v5913
    %v5915 = vpop.f32.mrf.mxu0
    %5916 = vmatprep.mubr.bf16.mxu0 0
    %5917 = vmatmul.mubr.bf16.gmra.mxu0 %v5754
    %v5918 = vpop.f32.mrf.mxu0
    %v5919 = vadd.f32 0.0, %v5918
    %v5920 = vpop.f32.mrf.mxu0
    %v5921 = vpop.f32.mrf.mxu0
    %v5922 = vadd.f32 0.0, %v5921
    %v5923 = vpop.f32.mrf.mxu0
    %5924 = vmatprep.mubr.bf16.mxu0 0
    %5925 = vmatmul.mubr.bf16.gmra.mxu0 %v5755
    %v5926 = vpop.f32.mrf.mxu0
    %v5927 = vadd.f32 0.0, %v5926
    %v5928 = vpop.f32.mrf.mxu0
    %v5929 = vpop.f32.mrf.mxu0
    %v5930 = vadd.f32 0.0, %v5929
    %v5931 = vpop.f32.mrf.mxu0
    %5932 = vmatprep.mubr.bf16.mxu0 0
    %5933 = vmatmul.mubr.bf16.gmra.mxu0 %v5756
    %v5934 = vpop.f32.mrf.mxu0
    %v5935 = vadd.f32 0.0, %v5934
    %v5936 = vpop.f32.mrf.mxu0
    %v5937 = vpop.f32.mrf.mxu0
    %v5938 = vadd.f32 0.0, %v5937
    %v5939 = vpop.f32.mrf.mxu0
    %5940 = vmatprep.mubr.bf16.mxu0 0
    %5941 = vmatmul.mubr.bf16.gmra.mxu0 %v5757
    %v5942 = vpop.f32.mrf.mxu0
    %v5943 = vadd.f32 0.0, %v5942
    %v5944 = vpop.f32.mrf.mxu0
    %v5945 = vpop.f32.mrf.mxu0
    %v5946 = vadd.f32 0.0, %v5945
    %v5947 = vpop.f32.mrf.mxu0
    %5948 = vmatprep.mubr.bf16.mxu0 0
    %5949 = vmatmul.mubr.bf16.gmra.mxu0 %v5758
    %v5950 = vpop.f32.mrf.mxu0
    %v5951 = vadd.f32 0.0, %v5950
    %v5952 = vpop.f32.mrf.mxu0
    %v5953 = vpop.f32.mrf.mxu0
    %v5954 = vadd.f32 0.0, %v5953
    %v5955 = vpop.f32.mrf.mxu0
    %5956 = vmatprep.mubr.bf16.mxu0 0
    %5957 = vmatmul.mubr.bf16.gmra.mxu0 %v5759
    %v5958 = vpop.f32.mrf.mxu0
    %v5959 = vadd.f32 0.0, %v5958
    %v5960 = vpop.f32.mrf.mxu0
    %v5961 = vpop.f32.mrf.mxu0
    %v5962 = vadd.f32 0.0, %v5961
    %v5963 = vpop.f32.mrf.mxu0
    %5964 = vmatprep.mubr.bf16.mxu0 0
    %5965 = vmatmul.mubr.bf16.gmra.mxu0 %v5760
    %v5966 = vpop.f32.mrf.mxu0
    %v5967 = vadd.f32 0.0, %v5966
    %v5968 = vpop.f32.mrf.mxu0
    %v5969 = vpop.f32.mrf.mxu0
    %v5970 = vadd.f32 0.0, %v5969
    %v5971 = vpop.f32.mrf.mxu0
    %5972 = vmatprep.mubr.bf16.mxu0 0
    %5973 = vmatmul.mubr.bf16.gmra.mxu0 %v5761
    %v5974 = vpop.f32.mrf.mxu0
    %v5975 = vadd.f32 0.0, %v5974
    %v5976 = vpop.f32.mrf.mxu0
    %v5977 = vpop.f32.mrf.mxu0
    %v5978 = vadd.f32 0.0, %v5977
    %v5979 = vpop.f32.mrf.mxu0
    %5980 = vmatprep.mubr.bf16.mxu0 0
    %5981 = vmatmul.mubr.bf16.gmra.mxu0 %v5762
    %v5982 = vpop.f32.mrf.mxu0
    %v5983 = vadd.f32 0.0, %v5982
    %v5984 = vpop.f32.mrf.mxu0
    %v5985 = vpop.f32.mrf.mxu0
    %v5986 = vadd.f32 0.0, %v5985
    %v5987 = vpop.f32.mrf.mxu0
    %5988 = vdwg.mxu0
    %v5989 = vpack.c.bf16 %v5866, %v5863
    %v5990 = vpack.c.bf16 %v5874, %v5871
    %v5991 = vpack.c.bf16 %v5882, %v5879
    %v5992 = vpack.c.bf16 %v5890, %v5887
    %v5993 = vpack.c.bf16 %v5898, %v5895
    %v5994 = vpack.c.bf16 %v5906, %v5903
    %v5995 = vpack.c.bf16 %v5914, %v5911
    %v5996 = vpack.c.bf16 %v5922, %v5919
    %v5997 = vpack.c.bf16 %v5930, %v5927
    %v5998 = vpack.c.bf16 %v5938, %v5935
    %v5999 = vpack.c.bf16 %v5946, %v5943
    %v6000 = vpack.c.bf16 %v5954, %v5951
    %v6001 = vpack.c.bf16 %v5962, %v5959
    %v6002 = vpack.c.bf16 %v5970, %v5967
    %v6003 = vpack.c.bf16 %v5978, %v5975
    %v6004 = vpack.c.bf16 %v5986, %v5983
    %s6005 = scalar_lea.vmem [#allocation2], 2048
    %v6006 = vld [vmem:[%s6005] sm:$0xff]
    %v6007 = vld [vmem:[%s6005 + $0x8] sm:$0xff]
    %v6008 = vld [vmem:[%s6005 + $0x10] sm:$0xff]
    %v6009 = vld [vmem:[%s6005 + $0x18] sm:$0xff]
    %v6010 = vld [vmem:[%s6005 + $0x20] sm:$0xff]
    %v6011 = vld [vmem:[%s6005 + $0x28] sm:$0xff]
    %v6012 = vld [vmem:[%s6005 + $0x30] sm:$0xff]
    %v6013 = vld [vmem:[%s6005 + $0x38] sm:$0xff]
    %v6014 = vld [vmem:[%s6005 + $0x40] sm:$0xff]
    %v6015 = vld [vmem:[%s6005 + $0x48] sm:$0xff]
    %v6016 = vld [vmem:[%s6005 + $0x50] sm:$0xff]
    %v6017 = vld [vmem:[%s6005 + $0x58] sm:$0xff]
    %v6018 = vld [vmem:[%s6005 + $0x60] sm:$0xff]
    %v6019 = vld [vmem:[%s6005 + $0x68] sm:$0xff]
    %v6020 = vld [vmem:[%s6005 + $0x70] sm:$0xff]
    %v6021 = vld [vmem:[%s6005 + $0x78] sm:$0xff]
    %v6022 = vld [vmem:[%s6005 + $0x80] sm:$0xff]
    %v6023 = vld [vmem:[%s6005 + $0x88] sm:$0xff]
    %v6024 = vld [vmem:[%s6005 + $0x90] sm:$0xff]
    %v6025 = vld [vmem:[%s6005 + $0x98] sm:$0xff]
    %v6026 = vld [vmem:[%s6005 + $0xa0] sm:$0xff]
    %v6027 = vld [vmem:[%s6005 + $0xa8] sm:$0xff]
    %v6028 = vld [vmem:[%s6005 + $0xb0] sm:$0xff]
    %v6029 = vld [vmem:[%s6005 + $0xb8] sm:$0xff]
    %v6030 = vld [vmem:[%s6005 + $0xc0] sm:$0xff]
    %v6031 = vld [vmem:[%s6005 + $0xc8] sm:$0xff]
    %v6032 = vld [vmem:[%s6005 + $0xd0] sm:$0xff]
    %v6033 = vld [vmem:[%s6005 + $0xd8] sm:$0xff]
    %v6034 = vld [vmem:[%s6005 + $0xe0] sm:$0xff]
    %v6035 = vld [vmem:[%s6005 + $0xe8] sm:$0xff]
    %v6036 = vld [vmem:[%s6005 + $0xf0] sm:$0xff]
    %v6037 = vld [vmem:[%s6005 + $0xf8] sm:$0xff]
    %s6038 = scalar_lea.vmem [#allocation4], 576
    %v6039 = vld [vmem:[%s6038] sm:$0xf]
    %v6040 = vld [vmem:[%s6038 + $0x4] sm:$0xf]
    %v6041 = vld [vmem:[%s6038 + $0x8] sm:$0xf]
    %v6042 = vld [vmem:[%s6038 + $0xc] sm:$0xf]
    %v6043 = vld [vmem:[%s6038 + $0x10] sm:$0xf]
    %v6044 = vld [vmem:[%s6038 + $0x14] sm:$0xf]
    %v6045 = vld [vmem:[%s6038 + $0x18] sm:$0xf]
    %v6046 = vld [vmem:[%s6038 + $0x1c] sm:$0xf]
    %v6047 = vld [vmem:[%s6038 + $0x20] sm:$0xf]
    %v6048 = vld [vmem:[%s6038 + $0x24] sm:$0xf]
    %v6049 = vld [vmem:[%s6038 + $0x28] sm:$0xf]
    %v6050 = vld [vmem:[%s6038 + $0x2c] sm:$0xf]
    %v6051 = vld [vmem:[%s6038 + $0x30] sm:$0xf]
    %v6052 = vld [vmem:[%s6038 + $0x34] sm:$0xf]
    %v6053 = vld [vmem:[%s6038 + $0x38] sm:$0xf]
    %v6054 = vld [vmem:[%s6038 + $0x3c] sm:$0xf]
    %v6071 = vunpack.c.l.b16 %v6039
    %v6072 = vunpack.c.l.b16 %v6040
    %v6073 = vunpack.c.l.b16 %v6041
    %v6074 = vunpack.c.l.b16 %v6042
    %v6075 = vunpack.c.l.b16 %v6043
    %v6076 = vunpack.c.l.b16 %v6044
    %v6077 = vunpack.c.l.b16 %v6045
    %v6078 = vunpack.c.l.b16 %v6046
    %v6079 = vunpack.c.l.b16 %v6047
    %v6080 = vunpack.c.l.b16 %v6048
    %v6081 = vunpack.c.l.b16 %v6049
    %v6082 = vunpack.c.l.b16 %v6050
    %v6083 = vunpack.c.l.b16 %v6051
    %v6084 = vunpack.c.l.b16 %v6052
    %v6085 = vunpack.c.l.b16 %v6053
    %v6086 = vunpack.c.l.b16 %v6054
    %v6087 = vpack.c.b16 %v6072, %v6071
    %v6088 = vpack.c.b16 %v6074, %v6073
    %v6089 = vpack.c.b16 %v6076, %v6075
    %v6090 = vpack.c.b16 %v6078, %v6077
    %v6091 = vpack.c.b16 %v6080, %v6079
    %v6092 = vpack.c.b16 %v6082, %v6081
    %v6093 = vpack.c.b16 %v6084, %v6083
    %v6094 = vpack.c.b16 %v6086, %v6085
    %6103 = vmatprep.subr.bf16.mxu0 0
    %6104 = vmatpush1.bf16.msra.mxu0 %v6094
    %6105 = vmatprep.subr.bf16.mxu0 0
    %6106 = vmatpush1.bf16.msra.mxu0 %v6093
    %6107 = vmatprep.subr.bf16.mxu0 0
    %6108 = vmatpush1.bf16.msra.mxu0 %v6092
    %6109 = vmatprep.subr.bf16.mxu0 0
    %6110 = vmatpush1.bf16.msra.mxu0 %v6091
    %6111 = vmatprep.subr.bf16.mxu0 0
    %6112 = vmatpush1.bf16.msra.mxu0 %v6090
    %6113 = vmatprep.subr.bf16.mxu0 0
    %6114 = vmatpush1.bf16.msra.mxu0 %v6089
    %6115 = vmatprep.subr.bf16.mxu0 0
    %6116 = vmatpush1.bf16.msra.mxu0 %v6088
    %6117 = vmatprep.subr.bf16.mxu0 0
    %6118 = vmatpush1.bf16.msra.mxu0 %v6087
    %6119 = vmatprep.subr.bf16.mxu0 0
    %6120 = vmatpush2.bf16.msra.mxu0 0
    %6121 = vmatprep.subr.bf16.mxu0 0
    %6122 = vmatpush2.bf16.msra.mxu0 0
    %6123 = vmatprep.subr.bf16.mxu0 0
    %6124 = vmatpush2.bf16.msra.mxu0 0
    %6125 = vmatprep.subr.bf16.mxu0 0
    %6126 = vmatpush2.bf16.msra.mxu0 0
    %6127 = vmatprep.subr.bf16.mxu0 0
    %6128 = vmatpush2.bf16.msra.mxu0 0
    %6129 = vmatprep.subr.bf16.mxu0 0
    %6130 = vmatpush2.bf16.msra.mxu0 0
    %6131 = vmatprep.subr.bf16.mxu0 0
    %6132 = vmatpush2.bf16.msra.mxu0 0
    %6133 = vmatprep.subr.bf16.mxu0 0
    %6134 = vmatpush2.bf16.msra.mxu0 0
    %6135 = vmatprep.mubr.bf16.mxu0 0
    %6136 = vmatmul.mubr.bf16.gmra.mxu0 %v5747
    %v6137 = vpop.f32.mrf.mxu0
    %v6138 = vadd.f32 0.0, %v6137
    %v6139 = vpop.f32.mrf.mxu0
    %v6140 = vpop.f32.mrf.mxu0
    %v6141 = vadd.f32 0.0, %v6140
    %v6142 = vpop.f32.mrf.mxu0
    %6143 = vmatprep.mubr.bf16.mxu0 0
    %6144 = vmatmul.mubr.bf16.gmra.mxu0 %v5748
    %v6145 = vpop.f32.mrf.mxu0
    %v6146 = vadd.f32 0.0, %v6145
    %v6147 = vpop.f32.mrf.mxu0
    %v6148 = vpop.f32.mrf.mxu0
    %v6149 = vadd.f32 0.0, %v6148
    %v6150 = vpop.f32.mrf.mxu0
    %6151 = vmatprep.mubr.bf16.mxu0 0
    %6152 = vmatmul.mubr.bf16.gmra.mxu0 %v5749
    %v6153 = vpop.f32.mrf.mxu0
    %v6154 = vadd.f32 0.0, %v6153
    %v6155 = vpop.f32.mrf.mxu0
    %v6156 = vpop.f32.mrf.mxu0
    %v6157 = vadd.f32 0.0, %v6156
    %v6158 = vpop.f32.mrf.mxu0
    %6159 = vmatprep.mubr.bf16.mxu0 0
    %6160 = vmatmul.mubr.bf16.gmra.mxu0 %v5750
    %v6161 = vpop.f32.mrf.mxu0
    %v6162 = vadd.f32 0.0, %v6161
    %v6163 = vpop.f32.mrf.mxu0
    %v6164 = vpop.f32.mrf.mxu0
    %v6165 = vadd.f32 0.0, %v6164
    %v6166 = vpop.f32.mrf.mxu0
    %6167 = vmatprep.mubr.bf16.mxu0 0
    %6168 = vmatmul.mubr.bf16.gmra.mxu0 %v5751
    %v6169 = vpop.f32.mrf.mxu0
    %v6170 = vadd.f32 0.0, %v6169
    %v6171 = vpop.f32.mrf.mxu0
    %v6172 = vpop.f32.mrf.mxu0
    %v6173 = vadd.f32 0.0, %v6172
    %v6174 = vpop.f32.mrf.mxu0
    %6175 = vmatprep.mubr.bf16.mxu0 0
    %6176 = vmatmul.mubr.bf16.gmra.mxu0 %v5752
    %v6177 = vpop.f32.mrf.mxu0
    %v6178 = vadd.f32 0.0, %v6177
    %v6179 = vpop.f32.mrf.mxu0
    %v6180 = vpop.f32.mrf.mxu0
    %v6181 = vadd.f32 0.0, %v6180
    %v6182 = vpop.f32.mrf.mxu0
    %6183 = vmatprep.mubr.bf16.mxu0 0
    %6184 = vmatmul.mubr.bf16.gmra.mxu0 %v5753
    %v6185 = vpop.f32.mrf.mxu0
    %v6186 = vadd.f32 0.0, %v6185
    %v6187 = vpop.f32.mrf.mxu0
    %v6188 = vpop.f32.mrf.mxu0
    %v6189 = vadd.f32 0.0, %v6188
    %v6190 = vpop.f32.mrf.mxu0
    %6191 = vmatprep.mubr.bf16.mxu0 0
    %6192 = vmatmul.mubr.bf16.gmra.mxu0 %v5754
    %v6193 = vpop.f32.mrf.mxu0
    %v6194 = vadd.f32 0.0, %v6193
    %v6195 = vpop.f32.mrf.mxu0
    %v6196 = vpop.f32.mrf.mxu0
    %v6197 = vadd.f32 0.0, %v6196
    %v6198 = vpop.f32.mrf.mxu0
    %6199 = vmatprep.mubr.bf16.mxu0 0
    %6200 = vmatmul.mubr.bf16.gmra.mxu0 %v5755
    %v6201 = vpop.f32.mrf.mxu0
    %v6202 = vadd.f32 0.0, %v6201
    %v6203 = vpop.f32.mrf.mxu0
    %v6204 = vpop.f32.mrf.mxu0
    %v6205 = vadd.f32 0.0, %v6204
    %v6206 = vpop.f32.mrf.mxu0
    %6207 = vmatprep.mubr.bf16.mxu0 0
    %6208 = vmatmul.mubr.bf16.gmra.mxu0 %v5756
    %v6209 = vpop.f32.mrf.mxu0
    %v6210 = vadd.f32 0.0, %v6209
    %v6211 = vpop.f32.mrf.mxu0
    %v6212 = vpop.f32.mrf.mxu0
    %v6213 = vadd.f32 0.0, %v6212
    %v6214 = vpop.f32.mrf.mxu0
    %6215 = vmatprep.mubr.bf16.mxu0 0
    %6216 = vmatmul.mubr.bf16.gmra.mxu0 %v5757
    %v6217 = vpop.f32.mrf.mxu0
    %v6218 = vadd.f32 0.0, %v6217
    %v6219 = vpop.f32.mrf.mxu0
    %v6220 = vpop.f32.mrf.mxu0
    %v6221 = vadd.f32 0.0, %v6220
    %v6222 = vpop.f32.mrf.mxu0
    %6223 = vmatprep.mubr.bf16.mxu0 0
    %6224 = vmatmul.mubr.bf16.gmra.mxu0 %v5758
    %v6225 = vpop.f32.mrf.mxu0
    %v6226 = vadd.f32 0.0, %v6225
    %v6227 = vpop.f32.mrf.mxu0
    %v6228 = vpop.f32.mrf.mxu0
    %v6229 = vadd.f32 0.0, %v6228
    %v6230 = vpop.f32.mrf.mxu0
    %6231 = vmatprep.mubr.bf16.mxu0 0
    %6232 = vmatmul.mubr.bf16.gmra.mxu0 %v5759
    %v6233 = vpop.f32.mrf.mxu0
    %v6234 = vadd.f32 0.0, %v6233
    %v6235 = vpop.f32.mrf.mxu0
    %v6236 = vpop.f32.mrf.mxu0
    %v6237 = vadd.f32 0.0, %v6236
    %v6238 = vpop.f32.mrf.mxu0
    %6239 = vmatprep.mubr.bf16.mxu0 0
    %6240 = vmatmul.mubr.bf16.gmra.mxu0 %v5760
    %v6241 = vpop.f32.mrf.mxu0
    %v6242 = vadd.f32 0.0, %v6241
    %v6243 = vpop.f32.mrf.mxu0
    %v6244 = vpop.f32.mrf.mxu0
    %v6245 = vadd.f32 0.0, %v6244
    %v6246 = vpop.f32.mrf.mxu0
    %6247 = vmatprep.mubr.bf16.mxu0 0
    %6248 = vmatmul.mubr.bf16.gmra.mxu0 %v5761
    %v6249 = vpop.f32.mrf.mxu0
    %v6250 = vadd.f32 0.0, %v6249
    %v6251 = vpop.f32.mrf.mxu0
    %v6252 = vpop.f32.mrf.mxu0
    %v6253 = vadd.f32 0.0, %v6252
    %v6254 = vpop.f32.mrf.mxu0
    %6255 = vmatprep.mubr.bf16.mxu0 0
    %6256 = vmatmul.mubr.bf16.gmra.mxu0 %v5762
    %v6257 = vpop.f32.mrf.mxu0
    %v6258 = vadd.f32 0.0, %v6257
    %v6259 = vpop.f32.mrf.mxu0
    %v6260 = vpop.f32.mrf.mxu0
    %v6261 = vadd.f32 0.0, %v6260
    %v6262 = vpop.f32.mrf.mxu0
    %6263 = vdwg.mxu0
    %v6264 = vpack.c.bf16 %v6141, %v6138
    %v6265 = vpack.c.bf16 %v6149, %v6146
    %v6266 = vpack.c.bf16 %v6157, %v6154
    %v6267 = vpack.c.bf16 %v6165, %v6162
    %v6268 = vpack.c.bf16 %v6173, %v6170
    %v6269 = vpack.c.bf16 %v6181, %v6178
    %v6270 = vpack.c.bf16 %v6189, %v6186
    %v6271 = vpack.c.bf16 %v6197, %v6194
    %v6272 = vpack.c.bf16 %v6205, %v6202
    %v6273 = vpack.c.bf16 %v6213, %v6210
    %v6274 = vpack.c.bf16 %v6221, %v6218
    %v6275 = vpack.c.bf16 %v6229, %v6226
    %v6276 = vpack.c.bf16 %v6237, %v6234
    %v6277 = vpack.c.bf16 %v6245, %v6242
    %v6278 = vpack.c.bf16 %v6253, %v6250
    %v6279 = vpack.c.bf16 %v6261, %v6258
    %s6280 = scalar_lea.vmem [#allocation2], 2304
    %v6281 = vld [vmem:[%s6280] sm:$0xff]
    %v6282 = vld [vmem:[%s6280 + $0x8] sm:$0xff]
    %v6283 = vld [vmem:[%s6280 + $0x10] sm:$0xff]
    %v6284 = vld [vmem:[%s6280 + $0x18] sm:$0xff]
    %v6285 = vld [vmem:[%s6280 + $0x20] sm:$0xff]
    %v6286 = vld [vmem:[%s6280 + $0x28] sm:$0xff]
    %v6287 = vld [vmem:[%s6280 + $0x30] sm:$0xff]
    %v6288 = vld [vmem:[%s6280 + $0x38] sm:$0xff]
    %v6289 = vld [vmem:[%s6280 + $0x40] sm:$0xff]
    %v6290 = vld [vmem:[%s6280 + $0x48] sm:$0xff]
    %v6291 = vld [vmem:[%s6280 + $0x50] sm:$0xff]
    %v6292 = vld [vmem:[%s6280 + $0x58] sm:$0xff]
    %v6293 = vld [vmem:[%s6280 + $0x60] sm:$0xff]
    %v6294 = vld [vmem:[%s6280 + $0x68] sm:$0xff]
    %v6295 = vld [vmem:[%s6280 + $0x70] sm:$0xff]
    %v6296 = vld [vmem:[%s6280 + $0x78] sm:$0xff]
    %v6297 = vld [vmem:[%s6280 + $0x80] sm:$0xff]
    %v6298 = vld [vmem:[%s6280 + $0x88] sm:$0xff]
    %v6299 = vld [vmem:[%s6280 + $0x90] sm:$0xff]
    %v6300 = vld [vmem:[%s6280 + $0x98] sm:$0xff]
    %v6301 = vld [vmem:[%s6280 + $0xa0] sm:$0xff]
    %v6302 = vld [vmem:[%s6280 + $0xa8] sm:$0xff]
    %v6303 = vld [vmem:[%s6280 + $0xb0] sm:$0xff]
    %v6304 = vld [vmem:[%s6280 + $0xb8] sm:$0xff]
    %v6305 = vld [vmem:[%s6280 + $0xc0] sm:$0xff]
    %v6306 = vld [vmem:[%s6280 + $0xc8] sm:$0xff]
    %v6307 = vld [vmem:[%s6280 + $0xd0] sm:$0xff]
    %v6308 = vld [vmem:[%s6280 + $0xd8] sm:$0xff]
    %v6309 = vld [vmem:[%s6280 + $0xe0] sm:$0xff]
    %v6310 = vld [vmem:[%s6280 + $0xe8] sm:$0xff]
    %v6311 = vld [vmem:[%s6280 + $0xf0] sm:$0xff]
    %v6312 = vld [vmem:[%s6280 + $0xf8] sm:$0xff]
    %v6345 = vunpack.c.l.b16 %v6281
    %v6346 = vunpack.c.h.b16 %v6281
    %v6347 = vunpack.c.l.b16 %v6282
    %v6348 = vunpack.c.h.b16 %v6282
    %v6349 = vunpack.c.l.b16 %v6283
    %v6350 = vunpack.c.h.b16 %v6283
    %v6351 = vunpack.c.l.b16 %v6284
    %v6352 = vunpack.c.h.b16 %v6284
    %v6353 = vunpack.c.l.b16 %v6285
    %v6354 = vunpack.c.h.b16 %v6285
    %v6355 = vunpack.c.l.b16 %v6286
    %v6356 = vunpack.c.h.b16 %v6286
    %v6357 = vunpack.c.l.b16 %v6287
    %v6358 = vunpack.c.h.b16 %v6287
    %v6359 = vunpack.c.l.b16 %v6288
    %v6360 = vunpack.c.h.b16 %v6288
    %v6361 = vunpack.c.l.b16 %v6289
    %v6362 = vunpack.c.h.b16 %v6289
    %v6363 = vunpack.c.l.b16 %v6290
    %v6364 = vunpack.c.h.b16 %v6290
    %v6365 = vunpack.c.l.b16 %v6291
    %v6366 = vunpack.c.h.b16 %v6291
    %v6367 = vunpack.c.l.b16 %v6292
    %v6368 = vunpack.c.h.b16 %v6292
    %v6369 = vunpack.c.l.b16 %v6293
    %v6370 = vunpack.c.h.b16 %v6293
    %v6371 = vunpack.c.l.b16 %v6294
    %v6372 = vunpack.c.h.b16 %v6294
    %v6373 = vunpack.c.l.b16 %v6295
    %v6374 = vunpack.c.h.b16 %v6295
    %v6375 = vunpack.c.l.b16 %v6296
    %v6376 = vunpack.c.h.b16 %v6296
    %v6377 = vunpack.c.l.b16 %v6297
    %v6378 = vunpack.c.h.b16 %v6297
    %v6379 = vunpack.c.l.b16 %v6298
    %v6380 = vunpack.c.h.b16 %v6298
    %v6381 = vunpack.c.l.b16 %v6299
    %v6382 = vunpack.c.h.b16 %v6299
    %v6383 = vunpack.c.l.b16 %v6300
    %v6384 = vunpack.c.h.b16 %v6300
    %v6385 = vunpack.c.l.b16 %v6301
    %v6386 = vunpack.c.h.b16 %v6301
    %v6387 = vunpack.c.l.b16 %v6302
    %v6388 = vunpack.c.h.b16 %v6302
    %v6389 = vunpack.c.l.b16 %v6303
    %v6390 = vunpack.c.h.b16 %v6303
    %v6391 = vunpack.c.l.b16 %v6304
    %v6392 = vunpack.c.h.b16 %v6304
    %v6393 = vunpack.c.l.b16 %v6305
    %v6394 = vunpack.c.h.b16 %v6305
    %v6395 = vunpack.c.l.b16 %v6306
    %v6396 = vunpack.c.h.b16 %v6306
    %v6397 = vunpack.c.l.b16 %v6307
    %v6398 = vunpack.c.h.b16 %v6307
    %v6399 = vunpack.c.l.b16 %v6308
    %v6400 = vunpack.c.h.b16 %v6308
    %v6401 = vunpack.c.l.b16 %v6309
    %v6402 = vunpack.c.h.b16 %v6309
    %v6403 = vunpack.c.l.b16 %v6310
    %v6404 = vunpack.c.h.b16 %v6310
    %v6405 = vunpack.c.l.b16 %v6311
    %v6406 = vunpack.c.h.b16 %v6311
    %v6407 = vunpack.c.l.b16 %v6312
    %v6408 = vunpack.c.h.b16 %v6312
    %v6409 = vpack.c.b16 %v6347, %v6345
    %v6410 = vpack.c.b16 %v6348, %v6346
    %v6411 = vpack.c.b16 %v6351, %v6349
    %v6412 = vpack.c.b16 %v6352, %v6350
    %v6413 = vpack.c.b16 %v6355, %v6353
    %v6414 = vpack.c.b16 %v6356, %v6354
    %v6415 = vpack.c.b16 %v6359, %v6357
    %v6416 = vpack.c.b16 %v6360, %v6358
    %v6417 = vpack.c.b16 %v6363, %v6361
    %v6418 = vpack.c.b16 %v6364, %v6362
    %v6419 = vpack.c.b16 %v6367, %v6365
    %v6420 = vpack.c.b16 %v6368, %v6366
    %v6421 = vpack.c.b16 %v6371, %v6369
    %v6422 = vpack.c.b16 %v6372, %v6370
    %v6423 = vpack.c.b16 %v6375, %v6373
    %v6424 = vpack.c.b16 %v6376, %v6374
    %v6425 = vpack.c.b16 %v6379, %v6377
    %v6426 = vpack.c.b16 %v6380, %v6378
    %v6427 = vpack.c.b16 %v6383, %v6381
    %v6428 = vpack.c.b16 %v6384, %v6382
    %v6429 = vpack.c.b16 %v6387, %v6385
    %v6430 = vpack.c.b16 %v6388, %v6386
    %v6431 = vpack.c.b16 %v6391, %v6389
    %v6432 = vpack.c.b16 %v6392, %v6390
    %v6433 = vpack.c.b16 %v6395, %v6393
    %v6434 = vpack.c.b16 %v6396, %v6394
    %v6435 = vpack.c.b16 %v6399, %v6397
    %v6436 = vpack.c.b16 %v6400, %v6398
    %v6437 = vpack.c.b16 %v6403, %v6401
    %v6438 = vpack.c.b16 %v6404, %v6402
    %v6439 = vpack.c.b16 %v6407, %v6405
    %v6440 = vpack.c.b16 %v6408, %v6406
    %6473 = vmatprep.subr.bf16.mxu0 0
    %6474 = vmatpush1.bf16.msra.mxu0 %v6271
    %6475 = vmatprep.subr.bf16.mxu0 0
    %6476 = vmatpush1.bf16.msra.mxu0 %v6270
    %6477 = vmatprep.subr.bf16.mxu0 0
    %6478 = vmatpush1.bf16.msra.mxu0 %v6269
    %6479 = vmatprep.subr.bf16.mxu0 0
    %6480 = vmatpush1.bf16.msra.mxu0 %v6268
    %6481 = vmatprep.subr.bf16.mxu0 0
    %6482 = vmatpush1.bf16.msra.mxu0 %v6267
    %6483 = vmatprep.subr.bf16.mxu0 0
    %6484 = vmatpush1.bf16.msra.mxu0 %v6266
    %6485 = vmatprep.subr.bf16.mxu0 0
    %6486 = vmatpush1.bf16.msra.mxu0 %v6265
    %6487 = vmatprep.subr.bf16.mxu0 0
    %6488 = vmatpush1.bf16.msra.mxu0 %v6264
    %6489 = vmatprep.subr.bf16.mxu0 0
    %6490 = vmatpush2.bf16.msra.mxu0 %v6279
    %6491 = vmatprep.subr.bf16.mxu0 0
    %6492 = vmatpush2.bf16.msra.mxu0 %v6278
    %6493 = vmatprep.subr.bf16.mxu0 0
    %6494 = vmatpush2.bf16.msra.mxu0 %v6277
    %6495 = vmatprep.subr.bf16.mxu0 0
    %6496 = vmatpush2.bf16.msra.mxu0 %v6276
    %6497 = vmatprep.subr.bf16.mxu0 0
    %6498 = vmatpush2.bf16.msra.mxu0 %v6275
    %6499 = vmatprep.subr.bf16.mxu0 0
    %6500 = vmatpush2.bf16.msra.mxu0 %v6274
    %6501 = vmatprep.subr.bf16.mxu0 0
    %6502 = vmatpush2.bf16.msra.mxu0 %v6273
    %6503 = vmatprep.subr.bf16.mxu0 0
    %6504 = vmatpush2.bf16.msra.mxu0 %v6272
    %6505 = vmatprep.mubr.bf16.mxu0 %v6410
    %6506 = vmatmul.mubr.bf16.gmra.mxu0 %v6409
    %v6507 = vpop.f32.mrf.mxu0
    %v6508 = vadd.f32 0.0, %v6507
    %v6509 = vpop.f32.mrf.mxu0
    %v6510 = vpop.f32.mrf.mxu0
    %v6511 = vadd.f32 0.0, %v6510
    %v6512 = vpop.f32.mrf.mxu0
    %6513 = vmatprep.mubr.bf16.mxu0 %v6412
    %6514 = vmatmul.mubr.bf16.gmra.mxu0 %v6411
    %v6515 = vpop.f32.mrf.mxu0
    %v6516 = vadd.f32 0.0, %v6515
    %v6517 = vpop.f32.mrf.mxu0
    %v6518 = vpop.f32.mrf.mxu0
    %v6519 = vadd.f32 0.0, %v6518
    %v6520 = vpop.f32.mrf.mxu0
    %6521 = vmatprep.mubr.bf16.mxu0 %v6414
    %6522 = vmatmul.mubr.bf16.gmra.mxu0 %v6413
    %v6523 = vpop.f32.mrf.mxu0
    %v6524 = vadd.f32 0.0, %v6523
    %v6525 = vpop.f32.mrf.mxu0
    %v6526 = vpop.f32.mrf.mxu0
    %v6527 = vadd.f32 0.0, %v6526
    %v6528 = vpop.f32.mrf.mxu0
    %6529 = vmatprep.mubr.bf16.mxu0 %v6416
    %6530 = vmatmul.mubr.bf16.gmra.mxu0 %v6415
    %v6531 = vpop.f32.mrf.mxu0
    %v6532 = vadd.f32 0.0, %v6531
    %v6533 = vpop.f32.mrf.mxu0
    %v6534 = vpop.f32.mrf.mxu0
    %v6535 = vadd.f32 0.0, %v6534
    %v6536 = vpop.f32.mrf.mxu0
    %6537 = vmatprep.mubr.bf16.mxu0 %v6418
    %6538 = vmatmul.mubr.bf16.gmra.mxu0 %v6417
    %v6539 = vpop.f32.mrf.mxu0
    %v6540 = vadd.f32 0.0, %v6539
    %v6541 = vpop.f32.mrf.mxu0
    %v6542 = vpop.f32.mrf.mxu0
    %v6543 = vadd.f32 0.0, %v6542
    %v6544 = vpop.f32.mrf.mxu0
    %6545 = vmatprep.mubr.bf16.mxu0 %v6420
    %6546 = vmatmul.mubr.bf16.gmra.mxu0 %v6419
    %v6547 = vpop.f32.mrf.mxu0
    %v6548 = vadd.f32 0.0, %v6547
    %v6549 = vpop.f32.mrf.mxu0
    %v6550 = vpop.f32.mrf.mxu0
    %v6551 = vadd.f32 0.0, %v6550
    %v6552 = vpop.f32.mrf.mxu0
    %6553 = vmatprep.mubr.bf16.mxu0 %v6422
    %6554 = vmatmul.mubr.bf16.gmra.mxu0 %v6421
    %v6555 = vpop.f32.mrf.mxu0
    %v6556 = vadd.f32 0.0, %v6555
    %v6557 = vpop.f32.mrf.mxu0
    %v6558 = vpop.f32.mrf.mxu0
    %v6559 = vadd.f32 0.0, %v6558
    %v6560 = vpop.f32.mrf.mxu0
    %6561 = vmatprep.mubr.bf16.mxu0 %v6424
    %6562 = vmatmul.mubr.bf16.gmra.mxu0 %v6423
    %v6563 = vpop.f32.mrf.mxu0
    %v6564 = vadd.f32 0.0, %v6563
    %v6565 = vpop.f32.mrf.mxu0
    %v6566 = vpop.f32.mrf.mxu0
    %v6567 = vadd.f32 0.0, %v6566
    %v6568 = vpop.f32.mrf.mxu0
    %6569 = vmatprep.mubr.bf16.mxu0 %v6426
    %6570 = vmatmul.mubr.bf16.gmra.mxu0 %v6425
    %v6571 = vpop.f32.mrf.mxu0
    %v6572 = vadd.f32 0.0, %v6571
    %v6573 = vpop.f32.mrf.mxu0
    %v6574 = vpop.f32.mrf.mxu0
    %v6575 = vadd.f32 0.0, %v6574
    %v6576 = vpop.f32.mrf.mxu0
    %6577 = vmatprep.mubr.bf16.mxu0 %v6428
    %6578 = vmatmul.mubr.bf16.gmra.mxu0 %v6427
    %v6579 = vpop.f32.mrf.mxu0
    %v6580 = vadd.f32 0.0, %v6579
    %v6581 = vpop.f32.mrf.mxu0
    %v6582 = vpop.f32.mrf.mxu0
    %v6583 = vadd.f32 0.0, %v6582
    %v6584 = vpop.f32.mrf.mxu0
    %6585 = vmatprep.mubr.bf16.mxu0 %v6430
    %6586 = vmatmul.mubr.bf16.gmra.mxu0 %v6429
    %v6587 = vpop.f32.mrf.mxu0
    %v6588 = vadd.f32 0.0, %v6587
    %v6589 = vpop.f32.mrf.mxu0
    %v6590 = vpop.f32.mrf.mxu0
    %v6591 = vadd.f32 0.0, %v6590
    %v6592 = vpop.f32.mrf.mxu0
    %6593 = vmatprep.mubr.bf16.mxu0 %v6432
    %6594 = vmatmul.mubr.bf16.gmra.mxu0 %v6431
    %v6595 = vpop.f32.mrf.mxu0
    %v6596 = vadd.f32 0.0, %v6595
    %v6597 = vpop.f32.mrf.mxu0
    %v6598 = vpop.f32.mrf.mxu0
    %v6599 = vadd.f32 0.0, %v6598
    %v6600 = vpop.f32.mrf.mxu0
    %6601 = vmatprep.mubr.bf16.mxu0 %v6434
    %6602 = vmatmul.mubr.bf16.gmra.mxu0 %v6433
    %v6603 = vpop.f32.mrf.mxu0
    %v6604 = vadd.f32 0.0, %v6603
    %v6605 = vpop.f32.mrf.mxu0
    %v6606 = vpop.f32.mrf.mxu0
    %v6607 = vadd.f32 0.0, %v6606
    %v6608 = vpop.f32.mrf.mxu0
    %6609 = vmatprep.mubr.bf16.mxu0 %v6436
    %6610 = vmatmul.mubr.bf16.gmra.mxu0 %v6435
    %v6611 = vpop.f32.mrf.mxu0
    %v6612 = vadd.f32 0.0, %v6611
    %v6613 = vpop.f32.mrf.mxu0
    %v6614 = vpop.f32.mrf.mxu0
    %v6615 = vadd.f32 0.0, %v6614
    %v6616 = vpop.f32.mrf.mxu0
    %6617 = vmatprep.mubr.bf16.mxu0 %v6438
    %6618 = vmatmul.mubr.bf16.gmra.mxu0 %v6437
    %v6619 = vpop.f32.mrf.mxu0
    %v6620 = vadd.f32 0.0, %v6619
    %v6621 = vpop.f32.mrf.mxu0
    %v6622 = vpop.f32.mrf.mxu0
    %v6623 = vadd.f32 0.0, %v6622
    %v6624 = vpop.f32.mrf.mxu0
    %6625 = vmatprep.mubr.bf16.mxu0 %v6440
    %6626 = vmatmul.mubr.bf16.gmra.mxu0 %v6439
    %v6627 = vpop.f32.mrf.mxu0
    %v6628 = vadd.f32 0.0, %v6627
    %v6629 = vpop.f32.mrf.mxu0
    %v6630 = vpop.f32.mrf.mxu0
    %v6631 = vadd.f32 0.0, %v6630
    %v6632 = vpop.f32.mrf.mxu0
    %6633 = vdwg.mxu0
    %v6666 = vunpack.c.l.b16 %v6006
    %v6667 = vunpack.c.h.b16 %v6006
    %v6668 = vunpack.c.l.b16 %v6007
    %v6669 = vunpack.c.h.b16 %v6007
    %v6670 = vunpack.c.l.b16 %v6008
    %v6671 = vunpack.c.h.b16 %v6008
    %v6672 = vunpack.c.l.b16 %v6009
    %v6673 = vunpack.c.h.b16 %v6009
    %v6674 = vunpack.c.l.b16 %v6010
    %v6675 = vunpack.c.h.b16 %v6010
    %v6676 = vunpack.c.l.b16 %v6011
    %v6677 = vunpack.c.h.b16 %v6011
    %v6678 = vunpack.c.l.b16 %v6012
    %v6679 = vunpack.c.h.b16 %v6012
    %v6680 = vunpack.c.l.b16 %v6013
    %v6681 = vunpack.c.h.b16 %v6013
    %v6682 = vunpack.c.l.b16 %v6014
    %v6683 = vunpack.c.h.b16 %v6014
    %v6684 = vunpack.c.l.b16 %v6015
    %v6685 = vunpack.c.h.b16 %v6015
    %v6686 = vunpack.c.l.b16 %v6016
    %v6687 = vunpack.c.h.b16 %v6016
    %v6688 = vunpack.c.l.b16 %v6017
    %v6689 = vunpack.c.h.b16 %v6017
    %v6690 = vunpack.c.l.b16 %v6018
    %v6691 = vunpack.c.h.b16 %v6018
    %v6692 = vunpack.c.l.b16 %v6019
    %v6693 = vunpack.c.h.b16 %v6019
    %v6694 = vunpack.c.l.b16 %v6020
    %v6695 = vunpack.c.h.b16 %v6020
    %v6696 = vunpack.c.l.b16 %v6021
    %v6697 = vunpack.c.h.b16 %v6021
    %v6698 = vunpack.c.l.b16 %v6022
    %v6699 = vunpack.c.h.b16 %v6022
    %v6700 = vunpack.c.l.b16 %v6023
    %v6701 = vunpack.c.h.b16 %v6023
    %v6702 = vunpack.c.l.b16 %v6024
    %v6703 = vunpack.c.h.b16 %v6024
    %v6704 = vunpack.c.l.b16 %v6025
    %v6705 = vunpack.c.h.b16 %v6025
    %v6706 = vunpack.c.l.b16 %v6026
    %v6707 = vunpack.c.h.b16 %v6026
    %v6708 = vunpack.c.l.b16 %v6027
    %v6709 = vunpack.c.h.b16 %v6027
    %v6710 = vunpack.c.l.b16 %v6028
    %v6711 = vunpack.c.h.b16 %v6028
    %v6712 = vunpack.c.l.b16 %v6029
    %v6713 = vunpack.c.h.b16 %v6029
    %v6714 = vunpack.c.l.b16 %v6030
    %v6715 = vunpack.c.h.b16 %v6030
    %v6716 = vunpack.c.l.b16 %v6031
    %v6717 = vunpack.c.h.b16 %v6031
    %v6718 = vunpack.c.l.b16 %v6032
    %v6719 = vunpack.c.h.b16 %v6032
    %v6720 = vunpack.c.l.b16 %v6033
    %v6721 = vunpack.c.h.b16 %v6033
    %v6722 = vunpack.c.l.b16 %v6034
    %v6723 = vunpack.c.h.b16 %v6034
    %v6724 = vunpack.c.l.b16 %v6035
    %v6725 = vunpack.c.h.b16 %v6035
    %v6726 = vunpack.c.l.b16 %v6036
    %v6727 = vunpack.c.h.b16 %v6036
    %v6728 = vunpack.c.l.b16 %v6037
    %v6729 = vunpack.c.h.b16 %v6037
    %v6730 = vpack.c.b16 %v6668, %v6666
    %v6731 = vpack.c.b16 %v6669, %v6667
    %v6732 = vpack.c.b16 %v6672, %v6670
    %v6733 = vpack.c.b16 %v6673, %v6671
    %v6734 = vpack.c.b16 %v6676, %v6674
    %v6735 = vpack.c.b16 %v6677, %v6675
    %v6736 = vpack.c.b16 %v6680, %v6678
    %v6737 = vpack.c.b16 %v6681, %v6679
    %v6738 = vpack.c.b16 %v6684, %v6682
    %v6739 = vpack.c.b16 %v6685, %v6683
    %v6740 = vpack.c.b16 %v6688, %v6686
    %v6741 = vpack.c.b16 %v6689, %v6687
    %v6742 = vpack.c.b16 %v6692, %v6690
    %v6743 = vpack.c.b16 %v6693, %v6691
    %v6744 = vpack.c.b16 %v6696, %v6694
    %v6745 = vpack.c.b16 %v6697, %v6695
    %v6746 = vpack.c.b16 %v6700, %v6698
    %v6747 = vpack.c.b16 %v6701, %v6699
    %v6748 = vpack.c.b16 %v6704, %v6702
    %v6749 = vpack.c.b16 %v6705, %v6703
    %v6750 = vpack.c.b16 %v6708, %v6706
    %v6751 = vpack.c.b16 %v6709, %v6707
    %v6752 = vpack.c.b16 %v6712, %v6710
    %v6753 = vpack.c.b16 %v6713, %v6711
    %v6754 = vpack.c.b16 %v6716, %v6714
    %v6755 = vpack.c.b16 %v6717, %v6715
    %v6756 = vpack.c.b16 %v6720, %v6718
    %v6757 = vpack.c.b16 %v6721, %v6719
    %v6758 = vpack.c.b16 %v6724, %v6722
    %v6759 = vpack.c.b16 %v6725, %v6723
    %v6760 = vpack.c.b16 %v6728, %v6726
    %v6761 = vpack.c.b16 %v6729, %v6727
    %6794 = vmatprep.subr.bf16.mxu0 0
    %6795 = vmatpush1.bf16.msra.mxu0 %v5996
    %6796 = vmatprep.subr.bf16.mxu0 0
    %6797 = vmatpush1.bf16.msra.mxu0 %v5995
    %6798 = vmatprep.subr.bf16.mxu0 0
    %6799 = vmatpush1.bf16.msra.mxu0 %v5994
    %6800 = vmatprep.subr.bf16.mxu0 0
    %6801 = vmatpush1.bf16.msra.mxu0 %v5993
    %6802 = vmatprep.subr.bf16.mxu0 0
    %6803 = vmatpush1.bf16.msra.mxu0 %v5992
    %6804 = vmatprep.subr.bf16.mxu0 0
    %6805 = vmatpush1.bf16.msra.mxu0 %v5991
    %6806 = vmatprep.subr.bf16.mxu0 0
    %6807 = vmatpush1.bf16.msra.mxu0 %v5990
    %6808 = vmatprep.subr.bf16.mxu0 0
    %6809 = vmatpush1.bf16.msra.mxu0 %v5989
    %6810 = vmatprep.subr.bf16.mxu0 0
    %6811 = vmatpush2.bf16.msra.mxu0 %v6004
    %6812 = vmatprep.subr.bf16.mxu0 0
    %6813 = vmatpush2.bf16.msra.mxu0 %v6003
    %6814 = vmatprep.subr.bf16.mxu0 0
    %6815 = vmatpush2.bf16.msra.mxu0 %v6002
    %6816 = vmatprep.subr.bf16.mxu0 0
    %6817 = vmatpush2.bf16.msra.mxu0 %v6001
    %6818 = vmatprep.subr.bf16.mxu0 0
    %6819 = vmatpush2.bf16.msra.mxu0 %v6000
    %6820 = vmatprep.subr.bf16.mxu0 0
    %6821 = vmatpush2.bf16.msra.mxu0 %v5999
    %6822 = vmatprep.subr.bf16.mxu0 0
    %6823 = vmatpush2.bf16.msra.mxu0 %v5998
    %6824 = vmatprep.subr.bf16.mxu0 0
    %6825 = vmatpush2.bf16.msra.mxu0 %v5997
    %6826 = vmatprep.mubr.bf16.mxu0 %v6731
    %6827 = vmatmul.mubr.bf16.gmra.mxu0 %v6730
    %v6828 = vpop.f32.mrf.mxu0
    %v6829 = vadd.f32 %v6508, %v6828
    %v6830 = vpop.f32.mrf.mxu0
    %v6831 = vpop.f32.mrf.mxu0
    %v6832 = vadd.f32 %v6511, %v6831
    %v6833 = vpop.f32.mrf.mxu0
    %6834 = vmatprep.mubr.bf16.mxu0 %v6733
    %6835 = vmatmul.mubr.bf16.gmra.mxu0 %v6732
    %v6836 = vpop.f32.mrf.mxu0
    %v6837 = vadd.f32 %v6516, %v6836
    %v6838 = vpop.f32.mrf.mxu0
    %v6839 = vpop.f32.mrf.mxu0
    %v6840 = vadd.f32 %v6519, %v6839
    %v6841 = vpop.f32.mrf.mxu0
    %6842 = vmatprep.mubr.bf16.mxu0 %v6735
    %6843 = vmatmul.mubr.bf16.gmra.mxu0 %v6734
    %v6844 = vpop.f32.mrf.mxu0
    %v6845 = vadd.f32 %v6524, %v6844
    %v6846 = vpop.f32.mrf.mxu0
    %v6847 = vpop.f32.mrf.mxu0
    %v6848 = vadd.f32 %v6527, %v6847
    %v6849 = vpop.f32.mrf.mxu0
    %6850 = vmatprep.mubr.bf16.mxu0 %v6737
    %6851 = vmatmul.mubr.bf16.gmra.mxu0 %v6736
    %v6852 = vpop.f32.mrf.mxu0
    %v6853 = vadd.f32 %v6532, %v6852
    %v6854 = vpop.f32.mrf.mxu0
    %v6855 = vpop.f32.mrf.mxu0
    %v6856 = vadd.f32 %v6535, %v6855
    %v6857 = vpop.f32.mrf.mxu0
    %6858 = vmatprep.mubr.bf16.mxu0 %v6739
    %6859 = vmatmul.mubr.bf16.gmra.mxu0 %v6738
    %v6860 = vpop.f32.mrf.mxu0
    %v6861 = vadd.f32 %v6540, %v6860
    %v6862 = vpop.f32.mrf.mxu0
    %v6863 = vpop.f32.mrf.mxu0
    %v6864 = vadd.f32 %v6543, %v6863
    %v6865 = vpop.f32.mrf.mxu0
    %6866 = vmatprep.mubr.bf16.mxu0 %v6741
    %6867 = vmatmul.mubr.bf16.gmra.mxu0 %v6740
    %v6868 = vpop.f32.mrf.mxu0
    %v6869 = vadd.f32 %v6548, %v6868
    %v6870 = vpop.f32.mrf.mxu0
    %v6871 = vpop.f32.mrf.mxu0
    %v6872 = vadd.f32 %v6551, %v6871
    %v6873 = vpop.f32.mrf.mxu0
    %6874 = vmatprep.mubr.bf16.mxu0 %v6743
    %6875 = vmatmul.mubr.bf16.gmra.mxu0 %v6742
    %v6876 = vpop.f32.mrf.mxu0
    %v6877 = vadd.f32 %v6556, %v6876
    %v6878 = vpop.f32.mrf.mxu0
    %v6879 = vpop.f32.mrf.mxu0
    %v6880 = vadd.f32 %v6559, %v6879
    %v6881 = vpop.f32.mrf.mxu0
    %6882 = vmatprep.mubr.bf16.mxu0 %v6745
    %6883 = vmatmul.mubr.bf16.gmra.mxu0 %v6744
    %v6884 = vpop.f32.mrf.mxu0
    %v6885 = vadd.f32 %v6564, %v6884
    %v6886 = vpop.f32.mrf.mxu0
    %v6887 = vpop.f32.mrf.mxu0
    %v6888 = vadd.f32 %v6567, %v6887
    %v6889 = vpop.f32.mrf.mxu0
    %6890 = vmatprep.mubr.bf16.mxu0 %v6747
    %6891 = vmatmul.mubr.bf16.gmra.mxu0 %v6746
    %v6892 = vpop.f32.mrf.mxu0
    %v6893 = vadd.f32 %v6572, %v6892
    %v6894 = vpop.f32.mrf.mxu0
    %v6895 = vpop.f32.mrf.mxu0
    %v6896 = vadd.f32 %v6575, %v6895
    %v6897 = vpop.f32.mrf.mxu0
    %6898 = vmatprep.mubr.bf16.mxu0 %v6749
    %6899 = vmatmul.mubr.bf16.gmra.mxu0 %v6748
    %v6900 = vpop.f32.mrf.mxu0
    %v6901 = vadd.f32 %v6580, %v6900
    %v6902 = vpop.f32.mrf.mxu0
    %v6903 = vpop.f32.mrf.mxu0
    %v6904 = vadd.f32 %v6583, %v6903
    %v6905 = vpop.f32.mrf.mxu0
    %6906 = vmatprep.mubr.bf16.mxu0 %v6751
    %6907 = vmatmul.mubr.bf16.gmra.mxu0 %v6750
    %v6908 = vpop.f32.mrf.mxu0
    %v6909 = vadd.f32 %v6588, %v6908
    %v6910 = vpop.f32.mrf.mxu0
    %v6911 = vpop.f32.mrf.mxu0
    %v6912 = vadd.f32 %v6591, %v6911
    %v6913 = vpop.f32.mrf.mxu0
    %6914 = vmatprep.mubr.bf16.mxu0 %v6753
    %6915 = vmatmul.mubr.bf16.gmra.mxu0 %v6752
    %v6916 = vpop.f32.mrf.mxu0
    %v6917 = vadd.f32 %v6596, %v6916
    %v6918 = vpop.f32.mrf.mxu0
    %v6919 = vpop.f32.mrf.mxu0
    %v6920 = vadd.f32 %v6599, %v6919
    %v6921 = vpop.f32.mrf.mxu0
    %6922 = vmatprep.mubr.bf16.mxu0 %v6755
    %6923 = vmatmul.mubr.bf16.gmra.mxu0 %v6754
    %v6924 = vpop.f32.mrf.mxu0
    %v6925 = vadd.f32 %v6604, %v6924
    %v6926 = vpop.f32.mrf.mxu0
    %v6927 = vpop.f32.mrf.mxu0
    %v6928 = vadd.f32 %v6607, %v6927
    %v6929 = vpop.f32.mrf.mxu0
    %6930 = vmatprep.mubr.bf16.mxu0 %v6757
    %6931 = vmatmul.mubr.bf16.gmra.mxu0 %v6756
    %v6932 = vpop.f32.mrf.mxu0
    %v6933 = vadd.f32 %v6612, %v6932
    %v6934 = vpop.f32.mrf.mxu0
    %v6935 = vpop.f32.mrf.mxu0
    %v6936 = vadd.f32 %v6615, %v6935
    %v6937 = vpop.f32.mrf.mxu0
    %6938 = vmatprep.mubr.bf16.mxu0 %v6759
    %6939 = vmatmul.mubr.bf16.gmra.mxu0 %v6758
    %v6940 = vpop.f32.mrf.mxu0
    %v6941 = vadd.f32 %v6620, %v6940
    %v6942 = vpop.f32.mrf.mxu0
    %v6943 = vpop.f32.mrf.mxu0
    %v6944 = vadd.f32 %v6623, %v6943
    %v6945 = vpop.f32.mrf.mxu0
    %6946 = vmatprep.mubr.bf16.mxu0 %v6761
    %6947 = vmatmul.mubr.bf16.gmra.mxu0 %v6760
    %v6948 = vpop.f32.mrf.mxu0
    %v6949 = vadd.f32 %v6628, %v6948
    %v6950 = vpop.f32.mrf.mxu0
    %v6951 = vpop.f32.mrf.mxu0
    %v6952 = vadd.f32 %v6631, %v6951
    %v6953 = vpop.f32.mrf.mxu0
    %6954 = vdwg.mxu0
    %s6955 = scalar_lea.vmem [#allocation4], 640
    %v6956 = vld [vmem:[%s6955] sm:$0xf]
    %v6957 = vld [vmem:[%s6955 + $0x4] sm:$0xf]
    %v6958 = vld [vmem:[%s6955 + $0x8] sm:$0xf]
    %v6959 = vld [vmem:[%s6955 + $0xc] sm:$0xf]
    %v6960 = vld [vmem:[%s6955 + $0x10] sm:$0xf]
    %v6961 = vld [vmem:[%s6955 + $0x14] sm:$0xf]
    %v6962 = vld [vmem:[%s6955 + $0x18] sm:$0xf]
    %v6963 = vld [vmem:[%s6955 + $0x1c] sm:$0xf]
    %v6964 = vld [vmem:[%s6955 + $0x20] sm:$0xf]
    %v6965 = vld [vmem:[%s6955 + $0x24] sm:$0xf]
    %v6966 = vld [vmem:[%s6955 + $0x28] sm:$0xf]
    %v6967 = vld [vmem:[%s6955 + $0x2c] sm:$0xf]
    %v6968 = vld [vmem:[%s6955 + $0x30] sm:$0xf]
    %v6969 = vld [vmem:[%s6955 + $0x34] sm:$0xf]
    %v6970 = vld [vmem:[%s6955 + $0x38] sm:$0xf]
    %v6971 = vld [vmem:[%s6955 + $0x3c] sm:$0xf]
    %v6988 = vunpack.c.l.b16 %v6956
    %v6989 = vunpack.c.l.b16 %v6957
    %v6990 = vunpack.c.l.b16 %v6958
    %v6991 = vunpack.c.l.b16 %v6959
    %v6992 = vunpack.c.l.b16 %v6960
    %v6993 = vunpack.c.l.b16 %v6961
    %v6994 = vunpack.c.l.b16 %v6962
    %v6995 = vunpack.c.l.b16 %v6963
    %v6996 = vunpack.c.l.b16 %v6964
    %v6997 = vunpack.c.l.b16 %v6965
    %v6998 = vunpack.c.l.b16 %v6966
    %v6999 = vunpack.c.l.b16 %v6967
    %v7000 = vunpack.c.l.b16 %v6968
    %v7001 = vunpack.c.l.b16 %v6969
    %v7002 = vunpack.c.l.b16 %v6970
    %v7003 = vunpack.c.l.b16 %v6971
    %v7004 = vpack.c.b16 %v6989, %v6988
    %v7005 = vpack.c.b16 %v6991, %v6990
    %v7006 = vpack.c.b16 %v6993, %v6992
    %v7007 = vpack.c.b16 %v6995, %v6994
    %v7008 = vpack.c.b16 %v6997, %v6996
    %v7009 = vpack.c.b16 %v6999, %v6998
    %v7010 = vpack.c.b16 %v7001, %v7000
    %v7011 = vpack.c.b16 %v7003, %v7002
    %7020 = vmatprep.subr.bf16.mxu0 0
    %7021 = vmatpush1.bf16.msra.mxu0 %v7011
    %7022 = vmatprep.subr.bf16.mxu0 0
    %7023 = vmatpush1.bf16.msra.mxu0 %v7010
    %7024 = vmatprep.subr.bf16.mxu0 0
    %7025 = vmatpush1.bf16.msra.mxu0 %v7009
    %7026 = vmatprep.subr.bf16.mxu0 0
    %7027 = vmatpush1.bf16.msra.mxu0 %v7008
    %7028 = vmatprep.subr.bf16.mxu0 0
    %7029 = vmatpush1.bf16.msra.mxu0 %v7007
    %7030 = vmatprep.subr.bf16.mxu0 0
    %7031 = vmatpush1.bf16.msra.mxu0 %v7006
    %7032 = vmatprep.subr.bf16.mxu0 0
    %7033 = vmatpush1.bf16.msra.mxu0 %v7005
    %7034 = vmatprep.subr.bf16.mxu0 0
    %7035 = vmatpush1.bf16.msra.mxu0 %v7004
    %7036 = vmatprep.subr.bf16.mxu0 0
    %7037 = vmatpush2.bf16.msra.mxu0 0
    %7038 = vmatprep.subr.bf16.mxu0 0
    %7039 = vmatpush2.bf16.msra.mxu0 0
    %7040 = vmatprep.subr.bf16.mxu0 0
    %7041 = vmatpush2.bf16.msra.mxu0 0
    %7042 = vmatprep.subr.bf16.mxu0 0
    %7043 = vmatpush2.bf16.msra.mxu0 0
    %7044 = vmatprep.subr.bf16.mxu0 0
    %7045 = vmatpush2.bf16.msra.mxu0 0
    %7046 = vmatprep.subr.bf16.mxu0 0
    %7047 = vmatpush2.bf16.msra.mxu0 0
    %7048 = vmatprep.subr.bf16.mxu0 0
    %7049 = vmatpush2.bf16.msra.mxu0 0
    %7050 = vmatprep.subr.bf16.mxu0 0
    %7051 = vmatpush2.bf16.msra.mxu0 0
    %7052 = vmatprep.mubr.bf16.mxu0 0
    %7053 = vmatmul.mubr.bf16.gmra.mxu0 %v5747
    %v7054 = vpop.f32.mrf.mxu0
    %v7055 = vadd.f32 0.0, %v7054
    %v7056 = vpop.f32.mrf.mxu0
    %v7057 = vpop.f32.mrf.mxu0
    %v7058 = vadd.f32 0.0, %v7057
    %v7059 = vpop.f32.mrf.mxu0
    %7060 = vmatprep.mubr.bf16.mxu0 0
    %7061 = vmatmul.mubr.bf16.gmra.mxu0 %v5748
    %v7062 = vpop.f32.mrf.mxu0
    %v7063 = vadd.f32 0.0, %v7062
    %v7064 = vpop.f32.mrf.mxu0
    %v7065 = vpop.f32.mrf.mxu0
    %v7066 = vadd.f32 0.0, %v7065
    %v7067 = vpop.f32.mrf.mxu0
    %7068 = vmatprep.mubr.bf16.mxu0 0
    %7069 = vmatmul.mubr.bf16.gmra.mxu0 %v5749
    %v7070 = vpop.f32.mrf.mxu0
    %v7071 = vadd.f32 0.0, %v7070
    %v7072 = vpop.f32.mrf.mxu0
    %v7073 = vpop.f32.mrf.mxu0
    %v7074 = vadd.f32 0.0, %v7073
    %v7075 = vpop.f32.mrf.mxu0
    %7076 = vmatprep.mubr.bf16.mxu0 0
    %7077 = vmatmul.mubr.bf16.gmra.mxu0 %v5750
    %v7078 = vpop.f32.mrf.mxu0
    %v7079 = vadd.f32 0.0, %v7078
    %v7080 = vpop.f32.mrf.mxu0
    %v7081 = vpop.f32.mrf.mxu0
    %v7082 = vadd.f32 0.0, %v7081
    %v7083 = vpop.f32.mrf.mxu0
    %7084 = vmatprep.mubr.bf16.mxu0 0
    %7085 = vmatmul.mubr.bf16.gmra.mxu0 %v5751
    %v7086 = vpop.f32.mrf.mxu0
    %v7087 = vadd.f32 0.0, %v7086
    %v7088 = vpop.f32.mrf.mxu0
    %v7089 = vpop.f32.mrf.mxu0
    %v7090 = vadd.f32 0.0, %v7089
    %v7091 = vpop.f32.mrf.mxu0
    %7092 = vmatprep.mubr.bf16.mxu0 0
    %7093 = vmatmul.mubr.bf16.gmra.mxu0 %v5752
    %v7094 = vpop.f32.mrf.mxu0
    %v7095 = vadd.f32 0.0, %v7094
    %v7096 = vpop.f32.mrf.mxu0
    %v7097 = vpop.f32.mrf.mxu0
    %v7098 = vadd.f32 0.0, %v7097
    %v7099 = vpop.f32.mrf.mxu0
    %7100 = vmatprep.mubr.bf16.mxu0 0
    %7101 = vmatmul.mubr.bf16.gmra.mxu0 %v5753
    %v7102 = vpop.f32.mrf.mxu0
    %v7103 = vadd.f32 0.0, %v7102
    %v7104 = vpop.f32.mrf.mxu0
    %v7105 = vpop.f32.mrf.mxu0
    %v7106 = vadd.f32 0.0, %v7105
    %v7107 = vpop.f32.mrf.mxu0
    %7108 = vmatprep.mubr.bf16.mxu0 0
    %7109 = vmatmul.mubr.bf16.gmra.mxu0 %v5754
    %v7110 = vpop.f32.mrf.mxu0
    %v7111 = vadd.f32 0.0, %v7110
    %v7112 = vpop.f32.mrf.mxu0
    %v7113 = vpop.f32.mrf.mxu0
    %v7114 = vadd.f32 0.0, %v7113
    %v7115 = vpop.f32.mrf.mxu0
    %7116 = vmatprep.mubr.bf16.mxu0 0
    %7117 = vmatmul.mubr.bf16.gmra.mxu0 %v5755
    %v7118 = vpop.f32.mrf.mxu0
    %v7119 = vadd.f32 0.0, %v7118
    %v7120 = vpop.f32.mrf.mxu0
    %v7121 = vpop.f32.mrf.mxu0
    %v7122 = vadd.f32 0.0, %v7121
    %v7123 = vpop.f32.mrf.mxu0
    %7124 = vmatprep.mubr.bf16.mxu0 0
    %7125 = vmatmul.mubr.bf16.gmra.mxu0 %v5756
    %v7126 = vpop.f32.mrf.mxu0
    %v7127 = vadd.f32 0.0, %v7126
    %v7128 = vpop.f32.mrf.mxu0
    %v7129 = vpop.f32.mrf.mxu0
    %v7130 = vadd.f32 0.0, %v7129
    %v7131 = vpop.f32.mrf.mxu0
    %7132 = vmatprep.mubr.bf16.mxu0 0
    %7133 = vmatmul.mubr.bf16.gmra.mxu0 %v5757
    %v7134 = vpop.f32.mrf.mxu0
    %v7135 = vadd.f32 0.0, %v7134
    %v7136 = vpop.f32.mrf.mxu0
    %v7137 = vpop.f32.mrf.mxu0
    %v7138 = vadd.f32 0.0, %v7137
    %v7139 = vpop.f32.mrf.mxu0
    %7140 = vmatprep.mubr.bf16.mxu0 0
    %7141 = vmatmul.mubr.bf16.gmra.mxu0 %v5758
    %v7142 = vpop.f32.mrf.mxu0
    %v7143 = vadd.f32 0.0, %v7142
    %v7144 = vpop.f32.mrf.mxu0
    %v7145 = vpop.f32.mrf.mxu0
    %v7146 = vadd.f32 0.0, %v7145
    %v7147 = vpop.f32.mrf.mxu0
    %7148 = vmatprep.mubr.bf16.mxu0 0
    %7149 = vmatmul.mubr.bf16.gmra.mxu0 %v5759
    %v7150 = vpop.f32.mrf.mxu0
    %v7151 = vadd.f32 0.0, %v7150
    %v7152 = vpop.f32.mrf.mxu0
    %v7153 = vpop.f32.mrf.mxu0
    %v7154 = vadd.f32 0.0, %v7153
    %v7155 = vpop.f32.mrf.mxu0
    %7156 = vmatprep.mubr.bf16.mxu0 0
    %7157 = vmatmul.mubr.bf16.gmra.mxu0 %v5760
    %v7158 = vpop.f32.mrf.mxu0
    %v7159 = vadd.f32 0.0, %v7158
    %v7160 = vpop.f32.mrf.mxu0
    %v7161 = vpop.f32.mrf.mxu0
    %v7162 = vadd.f32 0.0, %v7161
    %v7163 = vpop.f32.mrf.mxu0
    %7164 = vmatprep.mubr.bf16.mxu0 0
    %7165 = vmatmul.mubr.bf16.gmra.mxu0 %v5761
    %v7166 = vpop.f32.mrf.mxu0
    %v7167 = vadd.f32 0.0, %v7166
    %v7168 = vpop.f32.mrf.mxu0
    %v7169 = vpop.f32.mrf.mxu0
    %v7170 = vadd.f32 0.0, %v7169
    %v7171 = vpop.f32.mrf.mxu0
    %7172 = vmatprep.mubr.bf16.mxu0 0
    %7173 = vmatmul.mubr.bf16.gmra.mxu0 %v5762
    %v7174 = vpop.f32.mrf.mxu0
    %v7175 = vadd.f32 0.0, %v7174
    %v7176 = vpop.f32.mrf.mxu0
    %v7177 = vpop.f32.mrf.mxu0
    %v7178 = vadd.f32 0.0, %v7177
    %v7179 = vpop.f32.mrf.mxu0
    %7180 = vdwg.mxu0
    %v7181 = vpack.c.bf16 %v7058, %v7055
    %v7182 = vpack.c.bf16 %v7066, %v7063
    %v7183 = vpack.c.bf16 %v7074, %v7071
    %v7184 = vpack.c.bf16 %v7082, %v7079
    %v7185 = vpack.c.bf16 %v7090, %v7087
    %v7186 = vpack.c.bf16 %v7098, %v7095
    %v7187 = vpack.c.bf16 %v7106, %v7103
    %v7188 = vpack.c.bf16 %v7114, %v7111
    %v7189 = vpack.c.bf16 %v7122, %v7119
    %v7190 = vpack.c.bf16 %v7130, %v7127
    %v7191 = vpack.c.bf16 %v7138, %v7135
    %v7192 = vpack.c.bf16 %v7146, %v7143
    %v7193 = vpack.c.bf16 %v7154, %v7151
    %v7194 = vpack.c.bf16 %v7162, %v7159
    %v7195 = vpack.c.bf16 %v7170, %v7167
    %v7196 = vpack.c.bf16 %v7178, %v7175
    %s7197 = scalar_lea.vmem [#allocation2], 2560
    %v7198 = vld [vmem:[%s7197] sm:$0xff]
    %v7199 = vld [vmem:[%s7197 + $0x8] sm:$0xff]
    %v7200 = vld [vmem:[%s7197 + $0x10] sm:$0xff]
    %v7201 = vld [vmem:[%s7197 + $0x18] sm:$0xff]
    %v7202 = vld [vmem:[%s7197 + $0x20] sm:$0xff]
    %v7203 = vld [vmem:[%s7197 + $0x28] sm:$0xff]
    %v7204 = vld [vmem:[%s7197 + $0x30] sm:$0xff]
    %v7205 = vld [vmem:[%s7197 + $0x38] sm:$0xff]
    %v7206 = vld [vmem:[%s7197 + $0x40] sm:$0xff]
    %v7207 = vld [vmem:[%s7197 + $0x48] sm:$0xff]
    %v7208 = vld [vmem:[%s7197 + $0x50] sm:$0xff]
    %v7209 = vld [vmem:[%s7197 + $0x58] sm:$0xff]
    %v7210 = vld [vmem:[%s7197 + $0x60] sm:$0xff]
    %v7211 = vld [vmem:[%s7197 + $0x68] sm:$0xff]
    %v7212 = vld [vmem:[%s7197 + $0x70] sm:$0xff]
    %v7213 = vld [vmem:[%s7197 + $0x78] sm:$0xff]
    %v7214 = vld [vmem:[%s7197 + $0x80] sm:$0xff]
    %v7215 = vld [vmem:[%s7197 + $0x88] sm:$0xff]
    %v7216 = vld [vmem:[%s7197 + $0x90] sm:$0xff]
    %v7217 = vld [vmem:[%s7197 + $0x98] sm:$0xff]
    %v7218 = vld [vmem:[%s7197 + $0xa0] sm:$0xff]
    %v7219 = vld [vmem:[%s7197 + $0xa8] sm:$0xff]
    %v7220 = vld [vmem:[%s7197 + $0xb0] sm:$0xff]
    %v7221 = vld [vmem:[%s7197 + $0xb8] sm:$0xff]
    %v7222 = vld [vmem:[%s7197 + $0xc0] sm:$0xff]
    %v7223 = vld [vmem:[%s7197 + $0xc8] sm:$0xff]
    %v7224 = vld [vmem:[%s7197 + $0xd0] sm:$0xff]
    %v7225 = vld [vmem:[%s7197 + $0xd8] sm:$0xff]
    %v7226 = vld [vmem:[%s7197 + $0xe0] sm:$0xff]
    %v7227 = vld [vmem:[%s7197 + $0xe8] sm:$0xff]
    %v7228 = vld [vmem:[%s7197 + $0xf0] sm:$0xff]
    %v7229 = vld [vmem:[%s7197 + $0xf8] sm:$0xff]
    %v7262 = vunpack.c.l.b16 %v7198
    %v7263 = vunpack.c.h.b16 %v7198
    %v7264 = vunpack.c.l.b16 %v7199
    %v7265 = vunpack.c.h.b16 %v7199
    %v7266 = vunpack.c.l.b16 %v7200
    %v7267 = vunpack.c.h.b16 %v7200
    %v7268 = vunpack.c.l.b16 %v7201
    %v7269 = vunpack.c.h.b16 %v7201
    %v7270 = vunpack.c.l.b16 %v7202
    %v7271 = vunpack.c.h.b16 %v7202
    %v7272 = vunpack.c.l.b16 %v7203
    %v7273 = vunpack.c.h.b16 %v7203
    %v7274 = vunpack.c.l.b16 %v7204
    %v7275 = vunpack.c.h.b16 %v7204
    %v7276 = vunpack.c.l.b16 %v7205
    %v7277 = vunpack.c.h.b16 %v7205
    %v7278 = vunpack.c.l.b16 %v7206
    %v7279 = vunpack.c.h.b16 %v7206
    %v7280 = vunpack.c.l.b16 %v7207
    %v7281 = vunpack.c.h.b16 %v7207
    %v7282 = vunpack.c.l.b16 %v7208
    %v7283 = vunpack.c.h.b16 %v7208
    %v7284 = vunpack.c.l.b16 %v7209
    %v7285 = vunpack.c.h.b16 %v7209
    %v7286 = vunpack.c.l.b16 %v7210
    %v7287 = vunpack.c.h.b16 %v7210
    %v7288 = vunpack.c.l.b16 %v7211
    %v7289 = vunpack.c.h.b16 %v7211
    %v7290 = vunpack.c.l.b16 %v7212
    %v7291 = vunpack.c.h.b16 %v7212
    %v7292 = vunpack.c.l.b16 %v7213
    %v7293 = vunpack.c.h.b16 %v7213
    %v7294 = vunpack.c.l.b16 %v7214
    %v7295 = vunpack.c.h.b16 %v7214
    %v7296 = vunpack.c.l.b16 %v7215
    %v7297 = vunpack.c.h.b16 %v7215
    %v7298 = vunpack.c.l.b16 %v7216
    %v7299 = vunpack.c.h.b16 %v7216
    %v7300 = vunpack.c.l.b16 %v7217
    %v7301 = vunpack.c.h.b16 %v7217
    %v7302 = vunpack.c.l.b16 %v7218
    %v7303 = vunpack.c.h.b16 %v7218
    %v7304 = vunpack.c.l.b16 %v7219
    %v7305 = vunpack.c.h.b16 %v7219
    %v7306 = vunpack.c.l.b16 %v7220
    %v7307 = vunpack.c.h.b16 %v7220
    %v7308 = vunpack.c.l.b16 %v7221
    %v7309 = vunpack.c.h.b16 %v7221
    %v7310 = vunpack.c.l.b16 %v7222
    %v7311 = vunpack.c.h.b16 %v7222
    %v7312 = vunpack.c.l.b16 %v7223
    %v7313 = vunpack.c.h.b16 %v7223
    %v7314 = vunpack.c.l.b16 %v7224
    %v7315 = vunpack.c.h.b16 %v7224
    %v7316 = vunpack.c.l.b16 %v7225
    %v7317 = vunpack.c.h.b16 %v7225
    %v7318 = vunpack.c.l.b16 %v7226
    %v7319 = vunpack.c.h.b16 %v7226
    %v7320 = vunpack.c.l.b16 %v7227
    %v7321 = vunpack.c.h.b16 %v7227
    %v7322 = vunpack.c.l.b16 %v7228
    %v7323 = vunpack.c.h.b16 %v7228
    %v7324 = vunpack.c.l.b16 %v7229
    %v7325 = vunpack.c.h.b16 %v7229
    %v7326 = vpack.c.b16 %v7264, %v7262
    %v7327 = vpack.c.b16 %v7265, %v7263
    %v7328 = vpack.c.b16 %v7268, %v7266
    %v7329 = vpack.c.b16 %v7269, %v7267
    %v7330 = vpack.c.b16 %v7272, %v7270
    %v7331 = vpack.c.b16 %v7273, %v7271
    %v7332 = vpack.c.b16 %v7276, %v7274
    %v7333 = vpack.c.b16 %v7277, %v7275
    %v7334 = vpack.c.b16 %v7280, %v7278
    %v7335 = vpack.c.b16 %v7281, %v7279
    %v7336 = vpack.c.b16 %v7284, %v7282
    %v7337 = vpack.c.b16 %v7285, %v7283
    %v7338 = vpack.c.b16 %v7288, %v7286
    %v7339 = vpack.c.b16 %v7289, %v7287
    %v7340 = vpack.c.b16 %v7292, %v7290
    %v7341 = vpack.c.b16 %v7293, %v7291
    %v7342 = vpack.c.b16 %v7296, %v7294
    %v7343 = vpack.c.b16 %v7297, %v7295
    %v7344 = vpack.c.b16 %v7300, %v7298
    %v7345 = vpack.c.b16 %v7301, %v7299
    %v7346 = vpack.c.b16 %v7304, %v7302
    %v7347 = vpack.c.b16 %v7305, %v7303
    %v7348 = vpack.c.b16 %v7308, %v7306
    %v7349 = vpack.c.b16 %v7309, %v7307
    %v7350 = vpack.c.b16 %v7312, %v7310
    %v7351 = vpack.c.b16 %v7313, %v7311
    %v7352 = vpack.c.b16 %v7316, %v7314
    %v7353 = vpack.c.b16 %v7317, %v7315
    %v7354 = vpack.c.b16 %v7320, %v7318
    %v7355 = vpack.c.b16 %v7321, %v7319
    %v7356 = vpack.c.b16 %v7324, %v7322
    %v7357 = vpack.c.b16 %v7325, %v7323
    %7390 = vmatprep.subr.bf16.mxu0 0
    %7391 = vmatpush1.bf16.msra.mxu0 %v7188
    %7392 = vmatprep.subr.bf16.mxu0 0
    %7393 = vmatpush1.bf16.msra.mxu0 %v7187
    %7394 = vmatprep.subr.bf16.mxu0 0
    %7395 = vmatpush1.bf16.msra.mxu0 %v7186
    %7396 = vmatprep.subr.bf16.mxu0 0
    %7397 = vmatpush1.bf16.msra.mxu0 %v7185
    %7398 = vmatprep.subr.bf16.mxu0 0
    %7399 = vmatpush1.bf16.msra.mxu0 %v7184
    %7400 = vmatprep.subr.bf16.mxu0 0
    %7401 = vmatpush1.bf16.msra.mxu0 %v7183
    %7402 = vmatprep.subr.bf16.mxu0 0
    %7403 = vmatpush1.bf16.msra.mxu0 %v7182
    %7404 = vmatprep.subr.bf16.mxu0 0
    %7405 = vmatpush1.bf16.msra.mxu0 %v7181
    %7406 = vmatprep.subr.bf16.mxu0 0
    %7407 = vmatpush2.bf16.msra.mxu0 %v7196
    %7408 = vmatprep.subr.bf16.mxu0 0
    %7409 = vmatpush2.bf16.msra.mxu0 %v7195
    %7410 = vmatprep.subr.bf16.mxu0 0
    %7411 = vmatpush2.bf16.msra.mxu0 %v7194
    %7412 = vmatprep.subr.bf16.mxu0 0
    %7413 = vmatpush2.bf16.msra.mxu0 %v7193
    %7414 = vmatprep.subr.bf16.mxu0 0
    %7415 = vmatpush2.bf16.msra.mxu0 %v7192
    %7416 = vmatprep.subr.bf16.mxu0 0
    %7417 = vmatpush2.bf16.msra.mxu0 %v7191
    %7418 = vmatprep.subr.bf16.mxu0 0
    %7419 = vmatpush2.bf16.msra.mxu0 %v7190
    %7420 = vmatprep.subr.bf16.mxu0 0
    %7421 = vmatpush2.bf16.msra.mxu0 %v7189
    %7422 = vmatprep.mubr.bf16.mxu0 %v7327
    %7423 = vmatmul.mubr.bf16.gmra.mxu0 %v7326
    %v7424 = vpop.f32.mrf.mxu0
    %v7425 = vadd.f32 0.0, %v7424
    %v7426 = vpop.f32.mrf.mxu0
    %v7427 = vpop.f32.mrf.mxu0
    %v7428 = vadd.f32 0.0, %v7427
    %v7429 = vpop.f32.mrf.mxu0
    %7430 = vmatprep.mubr.bf16.mxu0 %v7329
    %7431 = vmatmul.mubr.bf16.gmra.mxu0 %v7328
    %v7432 = vpop.f32.mrf.mxu0
    %v7433 = vadd.f32 0.0, %v7432
    %v7434 = vpop.f32.mrf.mxu0
    %v7435 = vpop.f32.mrf.mxu0
    %v7436 = vadd.f32 0.0, %v7435
    %v7437 = vpop.f32.mrf.mxu0
    %7438 = vmatprep.mubr.bf16.mxu0 %v7331
    %7439 = vmatmul.mubr.bf16.gmra.mxu0 %v7330
    %v7440 = vpop.f32.mrf.mxu0
    %v7441 = vadd.f32 0.0, %v7440
    %v7442 = vpop.f32.mrf.mxu0
    %v7443 = vpop.f32.mrf.mxu0
    %v7444 = vadd.f32 0.0, %v7443
    %v7445 = vpop.f32.mrf.mxu0
    %7446 = vmatprep.mubr.bf16.mxu0 %v7333
    %7447 = vmatmul.mubr.bf16.gmra.mxu0 %v7332
    %v7448 = vpop.f32.mrf.mxu0
    %v7449 = vadd.f32 0.0, %v7448
    %v7450 = vpop.f32.mrf.mxu0
    %v7451 = vpop.f32.mrf.mxu0
    %v7452 = vadd.f32 0.0, %v7451
    %v7453 = vpop.f32.mrf.mxu0
    %7454 = vmatprep.mubr.bf16.mxu0 %v7335
    %7455 = vmatmul.mubr.bf16.gmra.mxu0 %v7334
    %v7456 = vpop.f32.mrf.mxu0
    %v7457 = vadd.f32 0.0, %v7456
    %v7458 = vpop.f32.mrf.mxu0
    %v7459 = vpop.f32.mrf.mxu0
    %v7460 = vadd.f32 0.0, %v7459
    %v7461 = vpop.f32.mrf.mxu0
    %7462 = vmatprep.mubr.bf16.mxu0 %v7337
    %7463 = vmatmul.mubr.bf16.gmra.mxu0 %v7336
    %v7464 = vpop.f32.mrf.mxu0
    %v7465 = vadd.f32 0.0, %v7464
    %v7466 = vpop.f32.mrf.mxu0
    %v7467 = vpop.f32.mrf.mxu0
    %v7468 = vadd.f32 0.0, %v7467
    %v7469 = vpop.f32.mrf.mxu0
    %7470 = vmatprep.mubr.bf16.mxu0 %v7339
    %7471 = vmatmul.mubr.bf16.gmra.mxu0 %v7338
    %v7472 = vpop.f32.mrf.mxu0
    %v7473 = vadd.f32 0.0, %v7472
    %v7474 = vpop.f32.mrf.mxu0
    %v7475 = vpop.f32.mrf.mxu0
    %v7476 = vadd.f32 0.0, %v7475
    %v7477 = vpop.f32.mrf.mxu0
    %7478 = vmatprep.mubr.bf16.mxu0 %v7341
    %7479 = vmatmul.mubr.bf16.gmra.mxu0 %v7340
    %v7480 = vpop.f32.mrf.mxu0
    %v7481 = vadd.f32 0.0, %v7480
    %v7482 = vpop.f32.mrf.mxu0
    %v7483 = vpop.f32.mrf.mxu0
    %v7484 = vadd.f32 0.0, %v7483
    %v7485 = vpop.f32.mrf.mxu0
    %7486 = vmatprep.mubr.bf16.mxu0 %v7343
    %7487 = vmatmul.mubr.bf16.gmra.mxu0 %v7342
    %v7488 = vpop.f32.mrf.mxu0
    %v7489 = vadd.f32 0.0, %v7488
    %v7490 = vpop.f32.mrf.mxu0
    %v7491 = vpop.f32.mrf.mxu0
    %v7492 = vadd.f32 0.0, %v7491
    %v7493 = vpop.f32.mrf.mxu0
    %7494 = vmatprep.mubr.bf16.mxu0 %v7345
    %7495 = vmatmul.mubr.bf16.gmra.mxu0 %v7344
    %v7496 = vpop.f32.mrf.mxu0
    %v7497 = vadd.f32 0.0, %v7496
    %v7498 = vpop.f32.mrf.mxu0
    %v7499 = vpop.f32.mrf.mxu0
    %v7500 = vadd.f32 0.0, %v7499
    %v7501 = vpop.f32.mrf.mxu0
    %7502 = vmatprep.mubr.bf16.mxu0 %v7347
    %7503 = vmatmul.mubr.bf16.gmra.mxu0 %v7346
    %v7504 = vpop.f32.mrf.mxu0
    %v7505 = vadd.f32 0.0, %v7504
    %v7506 = vpop.f32.mrf.mxu0
    %v7507 = vpop.f32.mrf.mxu0
    %v7508 = vadd.f32 0.0, %v7507
    %v7509 = vpop.f32.mrf.mxu0
    %7510 = vmatprep.mubr.bf16.mxu0 %v7349
    %7511 = vmatmul.mubr.bf16.gmra.mxu0 %v7348
    %v7512 = vpop.f32.mrf.mxu0
    %v7513 = vadd.f32 0.0, %v7512
    %v7514 = vpop.f32.mrf.mxu0
    %v7515 = vpop.f32.mrf.mxu0
    %v7516 = vadd.f32 0.0, %v7515
    %v7517 = vpop.f32.mrf.mxu0
    %7518 = vmatprep.mubr.bf16.mxu0 %v7351
    %7519 = vmatmul.mubr.bf16.gmra.mxu0 %v7350
    %v7520 = vpop.f32.mrf.mxu0
    %v7521 = vadd.f32 0.0, %v7520
    %v7522 = vpop.f32.mrf.mxu0
    %v7523 = vpop.f32.mrf.mxu0
    %v7524 = vadd.f32 0.0, %v7523
    %v7525 = vpop.f32.mrf.mxu0
    %7526 = vmatprep.mubr.bf16.mxu0 %v7353
    %7527 = vmatmul.mubr.bf16.gmra.mxu0 %v7352
    %v7528 = vpop.f32.mrf.mxu0
    %v7529 = vadd.f32 0.0, %v7528
    %v7530 = vpop.f32.mrf.mxu0
    %v7531 = vpop.f32.mrf.mxu0
    %v7532 = vadd.f32 0.0, %v7531
    %v7533 = vpop.f32.mrf.mxu0
    %7534 = vmatprep.mubr.bf16.mxu0 %v7355
    %7535 = vmatmul.mubr.bf16.gmra.mxu0 %v7354
    %v7536 = vpop.f32.mrf.mxu0
    %v7537 = vadd.f32 0.0, %v7536
    %v7538 = vpop.f32.mrf.mxu0
    %v7539 = vpop.f32.mrf.mxu0
    %v7540 = vadd.f32 0.0, %v7539
    %v7541 = vpop.f32.mrf.mxu0
    %7542 = vmatprep.mubr.bf16.mxu0 %v7357
    %7543 = vmatmul.mubr.bf16.gmra.mxu0 %v7356
    %v7544 = vpop.f32.mrf.mxu0
    %v7545 = vadd.f32 0.0, %v7544
    %v7546 = vpop.f32.mrf.mxu0
    %v7547 = vpop.f32.mrf.mxu0
    %v7548 = vadd.f32 0.0, %v7547
    %v7549 = vpop.f32.mrf.mxu0
    %7550 = vdwg.mxu0
    %v7551 = vadd.f32 %v6829, %v7425
    %v7552 = vadd.f32 %v6832, %v7428
    %v7553 = vadd.f32 %v6837, %v7433
    %v7554 = vadd.f32 %v6840, %v7436
    %v7555 = vadd.f32 %v6845, %v7441
    %v7556 = vadd.f32 %v6848, %v7444
    %v7557 = vadd.f32 %v6853, %v7449
    %v7558 = vadd.f32 %v6856, %v7452
    %v7559 = vadd.f32 %v6861, %v7457
    %v7560 = vadd.f32 %v6864, %v7460
    %v7561 = vadd.f32 %v6869, %v7465
    %v7562 = vadd.f32 %v6872, %v7468
    %v7563 = vadd.f32 %v6877, %v7473
    %v7564 = vadd.f32 %v6880, %v7476
    %v7565 = vadd.f32 %v6885, %v7481
    %v7566 = vadd.f32 %v6888, %v7484
    %v7567 = vadd.f32 %v6893, %v7489
    %v7568 = vadd.f32 %v6896, %v7492
    %v7569 = vadd.f32 %v6901, %v7497
    %v7570 = vadd.f32 %v6904, %v7500
    %v7571 = vadd.f32 %v6909, %v7505
    %v7572 = vadd.f32 %v6912, %v7508
    %v7573 = vadd.f32 %v6917, %v7513
    %v7574 = vadd.f32 %v6920, %v7516
    %v7575 = vadd.f32 %v6925, %v7521
    %v7576 = vadd.f32 %v6928, %v7524
    %v7577 = vadd.f32 %v6933, %v7529
    %v7578 = vadd.f32 %v6936, %v7532
    %v7579 = vadd.f32 %v6941, %v7537
    %v7580 = vadd.f32 %v6944, %v7540
    %v7581 = vadd.f32 %v6949, %v7545
    %v7582 = vadd.f32 %v6952, %v7548
    %s7583 = scalar_lea.vmem [#allocation4], 704
    %v7584 = vld [vmem:[%s7583] sm:$0xf]
    %v7585 = vld [vmem:[%s7583 + $0x4] sm:$0xf]
    %v7586 = vld [vmem:[%s7583 + $0x8] sm:$0xf]
    %v7587 = vld [vmem:[%s7583 + $0xc] sm:$0xf]
    %v7588 = vld [vmem:[%s7583 + $0x10] sm:$0xf]
    %v7589 = vld [vmem:[%s7583 + $0x14] sm:$0xf]
    %v7590 = vld [vmem:[%s7583 + $0x18] sm:$0xf]
    %v7591 = vld [vmem:[%s7583 + $0x1c] sm:$0xf]
    %v7592 = vld [vmem:[%s7583 + $0x20] sm:$0xf]
    %v7593 = vld [vmem:[%s7583 + $0x24] sm:$0xf]
    %v7594 = vld [vmem:[%s7583 + $0x28] sm:$0xf]
    %v7595 = vld [vmem:[%s7583 + $0x2c] sm:$0xf]
    %v7596 = vld [vmem:[%s7583 + $0x30] sm:$0xf]
    %v7597 = vld [vmem:[%s7583 + $0x34] sm:$0xf]
    %v7598 = vld [vmem:[%s7583 + $0x38] sm:$0xf]
    %v7599 = vld [vmem:[%s7583 + $0x3c] sm:$0xf]
    %v7616 = vunpack.c.l.b16 %v7584
    %v7617 = vunpack.c.l.b16 %v7585
    %v7618 = vunpack.c.l.b16 %v7586
    %v7619 = vunpack.c.l.b16 %v7587
    %v7620 = vunpack.c.l.b16 %v7588
    %v7621 = vunpack.c.l.b16 %v7589
    %v7622 = vunpack.c.l.b16 %v7590
    %v7623 = vunpack.c.l.b16 %v7591
    %v7624 = vunpack.c.l.b16 %v7592
    %v7625 = vunpack.c.l.b16 %v7593
    %v7626 = vunpack.c.l.b16 %v7594
    %v7627 = vunpack.c.l.b16 %v7595
    %v7628 = vunpack.c.l.b16 %v7596
    %v7629 = vunpack.c.l.b16 %v7597
    %v7630 = vunpack.c.l.b16 %v7598
    %v7631 = vunpack.c.l.b16 %v7599
    %v7632 = vpack.c.b16 %v7617, %v7616
    %v7633 = vpack.c.b16 %v7619, %v7618
    %v7634 = vpack.c.b16 %v7621, %v7620
    %v7635 = vpack.c.b16 %v7623, %v7622
    %v7636 = vpack.c.b16 %v7625, %v7624
    %v7637 = vpack.c.b16 %v7627, %v7626
    %v7638 = vpack.c.b16 %v7629, %v7628
    %v7639 = vpack.c.b16 %v7631, %v7630
    %7648 = vmatprep.subr.bf16.mxu0 0
    %7649 = vmatpush1.bf16.msra.mxu0 %v7639
    %7650 = vmatprep.subr.bf16.mxu0 0
    %7651 = vmatpush1.bf16.msra.mxu0 %v7638
    %7652 = vmatprep.subr.bf16.mxu0 0
    %7653 = vmatpush1.bf16.msra.mxu0 %v7637
    %7654 = vmatprep.subr.bf16.mxu0 0
    %7655 = vmatpush1.bf16.msra.mxu0 %v7636
    %7656 = vmatprep.subr.bf16.mxu0 0
    %7657 = vmatpush1.bf16.msra.mxu0 %v7635
    %7658 = vmatprep.subr.bf16.mxu0 0
    %7659 = vmatpush1.bf16.msra.mxu0 %v7634
    %7660 = vmatprep.subr.bf16.mxu0 0
    %7661 = vmatpush1.bf16.msra.mxu0 %v7633
    %7662 = vmatprep.subr.bf16.mxu0 0
    %7663 = vmatpush1.bf16.msra.mxu0 %v7632
    %7664 = vmatprep.subr.bf16.mxu0 0
    %7665 = vmatpush2.bf16.msra.mxu0 0
    %7666 = vmatprep.subr.bf16.mxu0 0
    %7667 = vmatpush2.bf16.msra.mxu0 0
    %7668 = vmatprep.subr.bf16.mxu0 0
    %7669 = vmatpush2.bf16.msra.mxu0 0
    %7670 = vmatprep.subr.bf16.mxu0 0
    %7671 = vmatpush2.bf16.msra.mxu0 0
    %7672 = vmatprep.subr.bf16.mxu0 0
    %7673 = vmatpush2.bf16.msra.mxu0 0
    %7674 = vmatprep.subr.bf16.mxu0 0
    %7675 = vmatpush2.bf16.msra.mxu0 0
    %7676 = vmatprep.subr.bf16.mxu0 0
    %7677 = vmatpush2.bf16.msra.mxu0 0
    %7678 = vmatprep.subr.bf16.mxu0 0
    %7679 = vmatpush2.bf16.msra.mxu0 0
    %7680 = vmatprep.mubr.bf16.mxu0 0
    %7681 = vmatmul.mubr.bf16.gmra.mxu0 %v5747
    %v7682 = vpop.f32.mrf.mxu0
    %v7683 = vadd.f32 0.0, %v7682
    %v7684 = vpop.f32.mrf.mxu0
    %v7685 = vpop.f32.mrf.mxu0
    %v7686 = vadd.f32 0.0, %v7685
    %v7687 = vpop.f32.mrf.mxu0
    %7688 = vmatprep.mubr.bf16.mxu0 0
    %7689 = vmatmul.mubr.bf16.gmra.mxu0 %v5748
    %v7690 = vpop.f32.mrf.mxu0
    %v7691 = vadd.f32 0.0, %v7690
    %v7692 = vpop.f32.mrf.mxu0
    %v7693 = vpop.f32.mrf.mxu0
    %v7694 = vadd.f32 0.0, %v7693
    %v7695 = vpop.f32.mrf.mxu0
    %7696 = vmatprep.mubr.bf16.mxu0 0
    %7697 = vmatmul.mubr.bf16.gmra.mxu0 %v5749
    %v7698 = vpop.f32.mrf.mxu0
    %v7699 = vadd.f32 0.0, %v7698
    %v7700 = vpop.f32.mrf.mxu0
    %v7701 = vpop.f32.mrf.mxu0
    %v7702 = vadd.f32 0.0, %v7701
    %v7703 = vpop.f32.mrf.mxu0
    %7704 = vmatprep.mubr.bf16.mxu0 0
    %7705 = vmatmul.mubr.bf16.gmra.mxu0 %v5750
    %v7706 = vpop.f32.mrf.mxu0
    %v7707 = vadd.f32 0.0, %v7706
    %v7708 = vpop.f32.mrf.mxu0
    %v7709 = vpop.f32.mrf.mxu0
    %v7710 = vadd.f32 0.0, %v7709
    %v7711 = vpop.f32.mrf.mxu0
    %7712 = vmatprep.mubr.bf16.mxu0 0
    %7713 = vmatmul.mubr.bf16.gmra.mxu0 %v5751
    %v7714 = vpop.f32.mrf.mxu0
    %v7715 = vadd.f32 0.0, %v7714
    %v7716 = vpop.f32.mrf.mxu0
    %v7717 = vpop.f32.mrf.mxu0
    %v7718 = vadd.f32 0.0, %v7717
    %v7719 = vpop.f32.mrf.mxu0
    %7720 = vmatprep.mubr.bf16.mxu0 0
    %7721 = vmatmul.mubr.bf16.gmra.mxu0 %v5752
    %v7722 = vpop.f32.mrf.mxu0
    %v7723 = vadd.f32 0.0, %v7722
    %v7724 = vpop.f32.mrf.mxu0
    %v7725 = vpop.f32.mrf.mxu0
    %v7726 = vadd.f32 0.0, %v7725
    %v7727 = vpop.f32.mrf.mxu0
    %7728 = vmatprep.mubr.bf16.mxu0 0
    %7729 = vmatmul.mubr.bf16.gmra.mxu0 %v5753
    %v7730 = vpop.f32.mrf.mxu0
    %v7731 = vadd.f32 0.0, %v7730
    %v7732 = vpop.f32.mrf.mxu0
    %v7733 = vpop.f32.mrf.mxu0
    %v7734 = vadd.f32 0.0, %v7733
    %v7735 = vpop.f32.mrf.mxu0
    %7736 = vmatprep.mubr.bf16.mxu0 0
    %7737 = vmatmul.mubr.bf16.gmra.mxu0 %v5754
    %v7738 = vpop.f32.mrf.mxu0
    %v7739 = vadd.f32 0.0, %v7738
    %v7740 = vpop.f32.mrf.mxu0
    %v7741 = vpop.f32.mrf.mxu0
    %v7742 = vadd.f32 0.0, %v7741
    %v7743 = vpop.f32.mrf.mxu0
    %7744 = vmatprep.mubr.bf16.mxu0 0
    %7745 = vmatmul.mubr.bf16.gmra.mxu0 %v5755
    %v7746 = vpop.f32.mrf.mxu0
    %v7747 = vadd.f32 0.0, %v7746
    %v7748 = vpop.f32.mrf.mxu0
    %v7749 = vpop.f32.mrf.mxu0
    %v7750 = vadd.f32 0.0, %v7749
    %v7751 = vpop.f32.mrf.mxu0
    %7752 = vmatprep.mubr.bf16.mxu0 0
    %7753 = vmatmul.mubr.bf16.gmra.mxu0 %v5756
    %v7754 = vpop.f32.mrf.mxu0
    %v7755 = vadd.f32 0.0, %v7754
    %v7756 = vpop.f32.mrf.mxu0
    %v7757 = vpop.f32.mrf.mxu0
    %v7758 = vadd.f32 0.0, %v7757
    %v7759 = vpop.f32.mrf.mxu0
    %7760 = vmatprep.mubr.bf16.mxu0 0
    %7761 = vmatmul.mubr.bf16.gmra.mxu0 %v5757
    %v7762 = vpop.f32.mrf.mxu0
    %v7763 = vadd.f32 0.0, %v7762
    %v7764 = vpop.f32.mrf.mxu0
    %v7765 = vpop.f32.mrf.mxu0
    %v7766 = vadd.f32 0.0, %v7765
    %v7767 = vpop.f32.mrf.mxu0
    %7768 = vmatprep.mubr.bf16.mxu0 0
    %7769 = vmatmul.mubr.bf16.gmra.mxu0 %v5758
    %v7770 = vpop.f32.mrf.mxu0
    %v7771 = vadd.f32 0.0, %v7770
    %v7772 = vpop.f32.mrf.mxu0
    %v7773 = vpop.f32.mrf.mxu0
    %v7774 = vadd.f32 0.0, %v7773
    %v7775 = vpop.f32.mrf.mxu0
    %7776 = vmatprep.mubr.bf16.mxu0 0
    %7777 = vmatmul.mubr.bf16.gmra.mxu0 %v5759
    %v7778 = vpop.f32.mrf.mxu0
    %v7779 = vadd.f32 0.0, %v7778
    %v7780 = vpop.f32.mrf.mxu0
    %v7781 = vpop.f32.mrf.mxu0
    %v7782 = vadd.f32 0.0, %v7781
    %v7783 = vpop.f32.mrf.mxu0
    %7784 = vmatprep.mubr.bf16.mxu0 0
    %7785 = vmatmul.mubr.bf16.gmra.mxu0 %v5760
    %v7786 = vpop.f32.mrf.mxu0
    %v7787 = vadd.f32 0.0, %v7786
    %v7788 = vpop.f32.mrf.mxu0
    %v7789 = vpop.f32.mrf.mxu0
    %v7790 = vadd.f32 0.0, %v7789
    %v7791 = vpop.f32.mrf.mxu0
    %7792 = vmatprep.mubr.bf16.mxu0 0
    %7793 = vmatmul.mubr.bf16.gmra.mxu0 %v5761
    %v7794 = vpop.f32.mrf.mxu0
    %v7795 = vadd.f32 0.0, %v7794
    %v7796 = vpop.f32.mrf.mxu0
    %v7797 = vpop.f32.mrf.mxu0
    %v7798 = vadd.f32 0.0, %v7797
    %v7799 = vpop.f32.mrf.mxu0
    %7800 = vmatprep.mubr.bf16.mxu0 0
    %7801 = vmatmul.mubr.bf16.gmra.mxu0 %v5762
    %v7802 = vpop.f32.mrf.mxu0
    %v7803 = vadd.f32 0.0, %v7802
    %v7804 = vpop.f32.mrf.mxu0
    %v7805 = vpop.f32.mrf.mxu0
    %v7806 = vadd.f32 0.0, %v7805
    %v7807 = vpop.f32.mrf.mxu0
    %7808 = vdwg.mxu0
    %v7809 = vpack.c.bf16 %v7686, %v7683
    %v7810 = vpack.c.bf16 %v7694, %v7691
    %v7811 = vpack.c.bf16 %v7702, %v7699
    %v7812 = vpack.c.bf16 %v7710, %v7707
    %v7813 = vpack.c.bf16 %v7718, %v7715
    %v7814 = vpack.c.bf16 %v7726, %v7723
    %v7815 = vpack.c.bf16 %v7734, %v7731
    %v7816 = vpack.c.bf16 %v7742, %v7739
    %v7817 = vpack.c.bf16 %v7750, %v7747
    %v7818 = vpack.c.bf16 %v7758, %v7755
    %v7819 = vpack.c.bf16 %v7766, %v7763
    %v7820 = vpack.c.bf16 %v7774, %v7771
    %v7821 = vpack.c.bf16 %v7782, %v7779
    %v7822 = vpack.c.bf16 %v7790, %v7787
    %v7823 = vpack.c.bf16 %v7798, %v7795
    %v7824 = vpack.c.bf16 %v7806, %v7803
    %s7825 = scalar_lea.vmem [#allocation2], 2816
    %v7826 = vld [vmem:[%s7825] sm:$0xff]
    %v7827 = vld [vmem:[%s7825 + $0x8] sm:$0xff]
    %v7828 = vld [vmem:[%s7825 + $0x10] sm:$0xff]
    %v7829 = vld [vmem:[%s7825 + $0x18] sm:$0xff]
    %v7830 = vld [vmem:[%s7825 + $0x20] sm:$0xff]
    %v7831 = vld [vmem:[%s7825 + $0x28] sm:$0xff]
    %v7832 = vld [vmem:[%s7825 + $0x30] sm:$0xff]
    %v7833 = vld [vmem:[%s7825 + $0x38] sm:$0xff]
    %v7834 = vld [vmem:[%s7825 + $0x40] sm:$0xff]
    %v7835 = vld [vmem:[%s7825 + $0x48] sm:$0xff]
    %v7836 = vld [vmem:[%s7825 + $0x50] sm:$0xff]
    %v7837 = vld [vmem:[%s7825 + $0x58] sm:$0xff]
    %v7838 = vld [vmem:[%s7825 + $0x60] sm:$0xff]
    %v7839 = vld [vmem:[%s7825 + $0x68] sm:$0xff]
    %v7840 = vld [vmem:[%s7825 + $0x70] sm:$0xff]
    %v7841 = vld [vmem:[%s7825 + $0x78] sm:$0xff]
    %v7842 = vld [vmem:[%s7825 + $0x80] sm:$0xff]
    %v7843 = vld [vmem:[%s7825 + $0x88] sm:$0xff]
    %v7844 = vld [vmem:[%s7825 + $0x90] sm:$0xff]
    %v7845 = vld [vmem:[%s7825 + $0x98] sm:$0xff]
    %v7846 = vld [vmem:[%s7825 + $0xa0] sm:$0xff]
    %v7847 = vld [vmem:[%s7825 + $0xa8] sm:$0xff]
    %v7848 = vld [vmem:[%s7825 + $0xb0] sm:$0xff]
    %v7849 = vld [vmem:[%s7825 + $0xb8] sm:$0xff]
    %v7850 = vld [vmem:[%s7825 + $0xc0] sm:$0xff]
    %v7851 = vld [vmem:[%s7825 + $0xc8] sm:$0xff]
    %v7852 = vld [vmem:[%s7825 + $0xd0] sm:$0xff]
    %v7853 = vld [vmem:[%s7825 + $0xd8] sm:$0xff]
    %v7854 = vld [vmem:[%s7825 + $0xe0] sm:$0xff]
    %v7855 = vld [vmem:[%s7825 + $0xe8] sm:$0xff]
    %v7856 = vld [vmem:[%s7825 + $0xf0] sm:$0xff]
    %v7857 = vld [vmem:[%s7825 + $0xf8] sm:$0xff]
    %v7890 = vunpack.c.l.b16 %v7826
    %v7891 = vunpack.c.h.b16 %v7826
    %v7892 = vunpack.c.l.b16 %v7827
    %v7893 = vunpack.c.h.b16 %v7827
    %v7894 = vunpack.c.l.b16 %v7828
    %v7895 = vunpack.c.h.b16 %v7828
    %v7896 = vunpack.c.l.b16 %v7829
    %v7897 = vunpack.c.h.b16 %v7829
    %v7898 = vunpack.c.l.b16 %v7830
    %v7899 = vunpack.c.h.b16 %v7830
    %v7900 = vunpack.c.l.b16 %v7831
    %v7901 = vunpack.c.h.b16 %v7831
    %v7902 = vunpack.c.l.b16 %v7832
    %v7903 = vunpack.c.h.b16 %v7832
    %v7904 = vunpack.c.l.b16 %v7833
    %v7905 = vunpack.c.h.b16 %v7833
    %v7906 = vunpack.c.l.b16 %v7834
    %v7907 = vunpack.c.h.b16 %v7834
    %v7908 = vunpack.c.l.b16 %v7835
    %v7909 = vunpack.c.h.b16 %v7835
    %v7910 = vunpack.c.l.b16 %v7836
    %v7911 = vunpack.c.h.b16 %v7836
    %v7912 = vunpack.c.l.b16 %v7837
    %v7913 = vunpack.c.h.b16 %v7837
    %v7914 = vunpack.c.l.b16 %v7838
    %v7915 = vunpack.c.h.b16 %v7838
    %v7916 = vunpack.c.l.b16 %v7839
    %v7917 = vunpack.c.h.b16 %v7839
    %v7918 = vunpack.c.l.b16 %v7840
    %v7919 = vunpack.c.h.b16 %v7840
    %v7920 = vunpack.c.l.b16 %v7841
    %v7921 = vunpack.c.h.b16 %v7841
    %v7922 = vunpack.c.l.b16 %v7842
    %v7923 = vunpack.c.h.b16 %v7842
    %v7924 = vunpack.c.l.b16 %v7843
    %v7925 = vunpack.c.h.b16 %v7843
    %v7926 = vunpack.c.l.b16 %v7844
    %v7927 = vunpack.c.h.b16 %v7844
    %v7928 = vunpack.c.l.b16 %v7845
    %v7929 = vunpack.c.h.b16 %v7845
    %v7930 = vunpack.c.l.b16 %v7846
    %v7931 = vunpack.c.h.b16 %v7846
    %v7932 = vunpack.c.l.b16 %v7847
    %v7933 = vunpack.c.h.b16 %v7847
    %v7934 = vunpack.c.l.b16 %v7848
    %v7935 = vunpack.c.h.b16 %v7848
    %v7936 = vunpack.c.l.b16 %v7849
    %v7937 = vunpack.c.h.b16 %v7849
    %v7938 = vunpack.c.l.b16 %v7850
    %v7939 = vunpack.c.h.b16 %v7850
    %v7940 = vunpack.c.l.b16 %v7851
    %v7941 = vunpack.c.h.b16 %v7851
    %v7942 = vunpack.c.l.b16 %v7852
    %v7943 = vunpack.c.h.b16 %v7852
    %v7944 = vunpack.c.l.b16 %v7853
    %v7945 = vunpack.c.h.b16 %v7853
    %v7946 = vunpack.c.l.b16 %v7854
    %v7947 = vunpack.c.h.b16 %v7854
    %v7948 = vunpack.c.l.b16 %v7855
    %v7949 = vunpack.c.h.b16 %v7855
    %v7950 = vunpack.c.l.b16 %v7856
    %v7951 = vunpack.c.h.b16 %v7856
    %v7952 = vunpack.c.l.b16 %v7857
    %v7953 = vunpack.c.h.b16 %v7857
    %v7954 = vpack.c.b16 %v7892, %v7890
    %v7955 = vpack.c.b16 %v7893, %v7891
    %v7956 = vpack.c.b16 %v7896, %v7894
    %v7957 = vpack.c.b16 %v7897, %v7895
    %v7958 = vpack.c.b16 %v7900, %v7898
    %v7959 = vpack.c.b16 %v7901, %v7899
    %v7960 = vpack.c.b16 %v7904, %v7902
    %v7961 = vpack.c.b16 %v7905, %v7903
    %v7962 = vpack.c.b16 %v7908, %v7906
    %v7963 = vpack.c.b16 %v7909, %v7907
    %v7964 = vpack.c.b16 %v7912, %v7910
    %v7965 = vpack.c.b16 %v7913, %v7911
    %v7966 = vpack.c.b16 %v7916, %v7914
    %v7967 = vpack.c.b16 %v7917, %v7915
    %v7968 = vpack.c.b16 %v7920, %v7918
    %v7969 = vpack.c.b16 %v7921, %v7919
    %v7970 = vpack.c.b16 %v7924, %v7922
    %v7971 = vpack.c.b16 %v7925, %v7923
    %v7972 = vpack.c.b16 %v7928, %v7926
    %v7973 = vpack.c.b16 %v7929, %v7927
    %v7974 = vpack.c.b16 %v7932, %v7930
    %v7975 = vpack.c.b16 %v7933, %v7931
    %v7976 = vpack.c.b16 %v7936, %v7934
    %v7977 = vpack.c.b16 %v7937, %v7935
    %v7978 = vpack.c.b16 %v7940, %v7938
    %v7979 = vpack.c.b16 %v7941, %v7939
    %v7980 = vpack.c.b16 %v7944, %v7942
    %v7981 = vpack.c.b16 %v7945, %v7943
    %v7982 = vpack.c.b16 %v7948, %v7946
    %v7983 = vpack.c.b16 %v7949, %v7947
    %v7984 = vpack.c.b16 %v7952, %v7950
    %v7985 = vpack.c.b16 %v7953, %v7951
    %8018 = vmatprep.subr.bf16.mxu0 0
    %8019 = vmatpush1.bf16.msra.mxu0 %v7816
    %8020 = vmatprep.subr.bf16.mxu0 0
    %8021 = vmatpush1.bf16.msra.mxu0 %v7815
    %8022 = vmatprep.subr.bf16.mxu0 0
    %8023 = vmatpush1.bf16.msra.mxu0 %v7814
    %8024 = vmatprep.subr.bf16.mxu0 0
    %8025 = vmatpush1.bf16.msra.mxu0 %v7813
    %8026 = vmatprep.subr.bf16.mxu0 0
    %8027 = vmatpush1.bf16.msra.mxu0 %v7812
    %8028 = vmatprep.subr.bf16.mxu0 0
    %8029 = vmatpush1.bf16.msra.mxu0 %v7811
    %8030 = vmatprep.subr.bf16.mxu0 0
    %8031 = vmatpush1.bf16.msra.mxu0 %v7810
    %8032 = vmatprep.subr.bf16.mxu0 0
    %8033 = vmatpush1.bf16.msra.mxu0 %v7809
    %8034 = vmatprep.subr.bf16.mxu0 0
    %8035 = vmatpush2.bf16.msra.mxu0 %v7824
    %8036 = vmatprep.subr.bf16.mxu0 0
    %8037 = vmatpush2.bf16.msra.mxu0 %v7823
    %8038 = vmatprep.subr.bf16.mxu0 0
    %8039 = vmatpush2.bf16.msra.mxu0 %v7822
    %8040 = vmatprep.subr.bf16.mxu0 0
    %8041 = vmatpush2.bf16.msra.mxu0 %v7821
    %8042 = vmatprep.subr.bf16.mxu0 0
    %8043 = vmatpush2.bf16.msra.mxu0 %v7820
    %8044 = vmatprep.subr.bf16.mxu0 0
    %8045 = vmatpush2.bf16.msra.mxu0 %v7819
    %8046 = vmatprep.subr.bf16.mxu0 0
    %8047 = vmatpush2.bf16.msra.mxu0 %v7818
    %8048 = vmatprep.subr.bf16.mxu0 0
    %8049 = vmatpush2.bf16.msra.mxu0 %v7817
    %8050 = vmatprep.mubr.bf16.mxu0 %v7955
    %8051 = vmatmul.mubr.bf16.gmra.mxu0 %v7954
    %v8052 = vpop.f32.mrf.mxu0
    %v8053 = vadd.f32 0.0, %v8052
    %v8054 = vpop.f32.mrf.mxu0
    %v8055 = vpop.f32.mrf.mxu0
    %v8056 = vadd.f32 0.0, %v8055
    %v8057 = vpop.f32.mrf.mxu0
    %8058 = vmatprep.mubr.bf16.mxu0 %v7957
    %8059 = vmatmul.mubr.bf16.gmra.mxu0 %v7956
    %v8060 = vpop.f32.mrf.mxu0
    %v8061 = vadd.f32 0.0, %v8060
    %v8062 = vpop.f32.mrf.mxu0
    %v8063 = vpop.f32.mrf.mxu0
    %v8064 = vadd.f32 0.0, %v8063
    %v8065 = vpop.f32.mrf.mxu0
    %8066 = vmatprep.mubr.bf16.mxu0 %v7959
    %8067 = vmatmul.mubr.bf16.gmra.mxu0 %v7958
    %v8068 = vpop.f32.mrf.mxu0
    %v8069 = vadd.f32 0.0, %v8068
    %v8070 = vpop.f32.mrf.mxu0
    %v8071 = vpop.f32.mrf.mxu0
    %v8072 = vadd.f32 0.0, %v8071
    %v8073 = vpop.f32.mrf.mxu0
    %8074 = vmatprep.mubr.bf16.mxu0 %v7961
    %8075 = vmatmul.mubr.bf16.gmra.mxu0 %v7960
    %v8076 = vpop.f32.mrf.mxu0
    %v8077 = vadd.f32 0.0, %v8076
    %v8078 = vpop.f32.mrf.mxu0
    %v8079 = vpop.f32.mrf.mxu0
    %v8080 = vadd.f32 0.0, %v8079
    %v8081 = vpop.f32.mrf.mxu0
    %8082 = vmatprep.mubr.bf16.mxu0 %v7963
    %8083 = vmatmul.mubr.bf16.gmra.mxu0 %v7962
    %v8084 = vpop.f32.mrf.mxu0
    %v8085 = vadd.f32 0.0, %v8084
    %v8086 = vpop.f32.mrf.mxu0
    %v8087 = vpop.f32.mrf.mxu0
    %v8088 = vadd.f32 0.0, %v8087
    %v8089 = vpop.f32.mrf.mxu0
    %8090 = vmatprep.mubr.bf16.mxu0 %v7965
    %8091 = vmatmul.mubr.bf16.gmra.mxu0 %v7964
    %v8092 = vpop.f32.mrf.mxu0
    %v8093 = vadd.f32 0.0, %v8092
    %v8094 = vpop.f32.mrf.mxu0
    %v8095 = vpop.f32.mrf.mxu0
    %v8096 = vadd.f32 0.0, %v8095
    %v8097 = vpop.f32.mrf.mxu0
    %8098 = vmatprep.mubr.bf16.mxu0 %v7967
    %8099 = vmatmul.mubr.bf16.gmra.mxu0 %v7966
    %v8100 = vpop.f32.mrf.mxu0
    %v8101 = vadd.f32 0.0, %v8100
    %v8102 = vpop.f32.mrf.mxu0
    %v8103 = vpop.f32.mrf.mxu0
    %v8104 = vadd.f32 0.0, %v8103
    %v8105 = vpop.f32.mrf.mxu0
    %8106 = vmatprep.mubr.bf16.mxu0 %v7969
    %8107 = vmatmul.mubr.bf16.gmra.mxu0 %v7968
    %v8108 = vpop.f32.mrf.mxu0
    %v8109 = vadd.f32 0.0, %v8108
    %v8110 = vpop.f32.mrf.mxu0
    %v8111 = vpop.f32.mrf.mxu0
    %v8112 = vadd.f32 0.0, %v8111
    %v8113 = vpop.f32.mrf.mxu0
    %8114 = vmatprep.mubr.bf16.mxu0 %v7971
    %8115 = vmatmul.mubr.bf16.gmra.mxu0 %v7970
    %v8116 = vpop.f32.mrf.mxu0
    %v8117 = vadd.f32 0.0, %v8116
    %v8118 = vpop.f32.mrf.mxu0
    %v8119 = vpop.f32.mrf.mxu0
    %v8120 = vadd.f32 0.0, %v8119
    %v8121 = vpop.f32.mrf.mxu0
    %8122 = vmatprep.mubr.bf16.mxu0 %v7973
    %8123 = vmatmul.mubr.bf16.gmra.mxu0 %v7972
    %v8124 = vpop.f32.mrf.mxu0
    %v8125 = vadd.f32 0.0, %v8124
    %v8126 = vpop.f32.mrf.mxu0
    %v8127 = vpop.f32.mrf.mxu0
    %v8128 = vadd.f32 0.0, %v8127
    %v8129 = vpop.f32.mrf.mxu0
    %8130 = vmatprep.mubr.bf16.mxu0 %v7975
    %8131 = vmatmul.mubr.bf16.gmra.mxu0 %v7974
    %v8132 = vpop.f32.mrf.mxu0
    %v8133 = vadd.f32 0.0, %v8132
    %v8134 = vpop.f32.mrf.mxu0
    %v8135 = vpop.f32.mrf.mxu0
    %v8136 = vadd.f32 0.0, %v8135
    %v8137 = vpop.f32.mrf.mxu0
    %8138 = vmatprep.mubr.bf16.mxu0 %v7977
    %8139 = vmatmul.mubr.bf16.gmra.mxu0 %v7976
    %v8140 = vpop.f32.mrf.mxu0
    %v8141 = vadd.f32 0.0, %v8140
    %v8142 = vpop.f32.mrf.mxu0
    %v8143 = vpop.f32.mrf.mxu0
    %v8144 = vadd.f32 0.0, %v8143
    %v8145 = vpop.f32.mrf.mxu0
    %8146 = vmatprep.mubr.bf16.mxu0 %v7979
    %8147 = vmatmul.mubr.bf16.gmra.mxu0 %v7978
    %v8148 = vpop.f32.mrf.mxu0
    %v8149 = vadd.f32 0.0, %v8148
    %v8150 = vpop.f32.mrf.mxu0
    %v8151 = vpop.f32.mrf.mxu0
    %v8152 = vadd.f32 0.0, %v8151
    %v8153 = vpop.f32.mrf.mxu0
    %8154 = vmatprep.mubr.bf16.mxu0 %v7981
    %8155 = vmatmul.mubr.bf16.gmra.mxu0 %v7980
    %v8156 = vpop.f32.mrf.mxu0
    %v8157 = vadd.f32 0.0, %v8156
    %v8158 = vpop.f32.mrf.mxu0
    %v8159 = vpop.f32.mrf.mxu0
    %v8160 = vadd.f32 0.0, %v8159
    %v8161 = vpop.f32.mrf.mxu0
    %8162 = vmatprep.mubr.bf16.mxu0 %v7983
    %8163 = vmatmul.mubr.bf16.gmra.mxu0 %v7982
    %v8164 = vpop.f32.mrf.mxu0
    %v8165 = vadd.f32 0.0, %v8164
    %v8166 = vpop.f32.mrf.mxu0
    %v8167 = vpop.f32.mrf.mxu0
    %v8168 = vadd.f32 0.0, %v8167
    %v8169 = vpop.f32.mrf.mxu0
    %8170 = vmatprep.mubr.bf16.mxu0 %v7985
    %8171 = vmatmul.mubr.bf16.gmra.mxu0 %v7984
    %v8172 = vpop.f32.mrf.mxu0
    %v8173 = vadd.f32 0.0, %v8172
    %v8174 = vpop.f32.mrf.mxu0
    %v8175 = vpop.f32.mrf.mxu0
    %v8176 = vadd.f32 0.0, %v8175
    %v8177 = vpop.f32.mrf.mxu0
    %8178 = vdwg.mxu0
    %v8179 = vadd.f32 %v7551, %v8053
    %v8180 = vadd.f32 %v7552, %v8056
    %v8181 = vadd.f32 %v7553, %v8061
    %v8182 = vadd.f32 %v7554, %v8064
    %v8183 = vadd.f32 %v7555, %v8069
    %v8184 = vadd.f32 %v7556, %v8072
    %v8185 = vadd.f32 %v7557, %v8077
    %v8186 = vadd.f32 %v7558, %v8080
    %v8187 = vadd.f32 %v7559, %v8085
    %v8188 = vadd.f32 %v7560, %v8088
    %v8189 = vadd.f32 %v7561, %v8093
    %v8190 = vadd.f32 %v7562, %v8096
    %v8191 = vadd.f32 %v7563, %v8101
    %v8192 = vadd.f32 %v7564, %v8104
    %v8193 = vadd.f32 %v7565, %v8109
    %v8194 = vadd.f32 %v7566, %v8112
    %v8195 = vadd.f32 %v7567, %v8117
    %v8196 = vadd.f32 %v7568, %v8120
    %v8197 = vadd.f32 %v7569, %v8125
    %v8198 = vadd.f32 %v7570, %v8128
    %v8199 = vadd.f32 %v7571, %v8133
    %v8200 = vadd.f32 %v7572, %v8136
    %v8201 = vadd.f32 %v7573, %v8141
    %v8202 = vadd.f32 %v7574, %v8144
    %v8203 = vadd.f32 %v7575, %v8149
    %v8204 = vadd.f32 %v7576, %v8152
    %v8205 = vadd.f32 %v7577, %v8157
    %v8206 = vadd.f32 %v7578, %v8160
    %v8207 = vadd.f32 %v7579, %v8165
    %v8208 = vadd.f32 %v7580, %v8168
    %v8209 = vadd.f32 %v7581, %v8173
    %v8210 = vadd.f32 %v7582, %v8176
    %s8211 = scalar_lea.vmem %s3, 512
    %v8212 = vld [vmem:[%s8211] sm:$0xff]
    %v8213 = vld [vmem:[%s8211 + $0x8] sm:$0xff]
    %v8214 = vld [vmem:[%s8211 + $0x10] sm:$0xff]
    %v8215 = vld [vmem:[%s8211 + $0x18] sm:$0xff]
    %v8216 = vld [vmem:[%s8211 + $0x20] sm:$0xff]
    %v8217 = vld [vmem:[%s8211 + $0x28] sm:$0xff]
    %v8218 = vld [vmem:[%s8211 + $0x30] sm:$0xff]
    %v8219 = vld [vmem:[%s8211 + $0x38] sm:$0xff]
    %v8220 = vld [vmem:[%s8211 + $0x40] sm:$0xff]
    %v8221 = vld [vmem:[%s8211 + $0x48] sm:$0xff]
    %v8222 = vld [vmem:[%s8211 + $0x50] sm:$0xff]
    %v8223 = vld [vmem:[%s8211 + $0x58] sm:$0xff]
    %v8224 = vld [vmem:[%s8211 + $0x60] sm:$0xff]
    %v8225 = vld [vmem:[%s8211 + $0x68] sm:$0xff]
    %v8226 = vld [vmem:[%s8211 + $0x70] sm:$0xff]
    %v8227 = vld [vmem:[%s8211 + $0x78] sm:$0xff]
    %v8228 = vld [vmem:[%s8211 + $0x80] sm:$0xff]
    %v8229 = vld [vmem:[%s8211 + $0x88] sm:$0xff]
    %v8230 = vld [vmem:[%s8211 + $0x90] sm:$0xff]
    %v8231 = vld [vmem:[%s8211 + $0x98] sm:$0xff]
    %v8232 = vld [vmem:[%s8211 + $0xa0] sm:$0xff]
    %v8233 = vld [vmem:[%s8211 + $0xa8] sm:$0xff]
    %v8234 = vld [vmem:[%s8211 + $0xb0] sm:$0xff]
    %v8235 = vld [vmem:[%s8211 + $0xb8] sm:$0xff]
    %v8236 = vld [vmem:[%s8211 + $0xc0] sm:$0xff]
    %v8237 = vld [vmem:[%s8211 + $0xc8] sm:$0xff]
    %v8238 = vld [vmem:[%s8211 + $0xd0] sm:$0xff]
    %v8239 = vld [vmem:[%s8211 + $0xd8] sm:$0xff]
    %v8240 = vld [vmem:[%s8211 + $0xe0] sm:$0xff]
    %v8241 = vld [vmem:[%s8211 + $0xe8] sm:$0xff]
    %v8242 = vld [vmem:[%s8211 + $0xf0] sm:$0xff]
    %v8243 = vld [vmem:[%s8211 + $0xf8] sm:$0xff]
    %8245 = vset.pattern.permute.xlu0 0
    %8246 = vperm.xlu0 %8245, %v8212
    %v8247 = vpop.permute.xlu0 %8246
    %8250 = vset.pattern.permute.xlu0 0
    %8251 = vperm.xlu0 %8250, %v8213
    %v8252 = vpop.permute.xlu0 %8251
    %8255 = vset.pattern.permute.xlu0 0
    %8256 = vperm.xlu0 %8255, %v8214
    %v8257 = vpop.permute.xlu0 %8256
    %8260 = vset.pattern.permute.xlu0 0
    %8261 = vperm.xlu0 %8260, %v8215
    %v8262 = vpop.permute.xlu0 %8261
    %8265 = vset.pattern.permute.xlu0 0
    %8266 = vperm.xlu0 %8265, %v8216
    %v8267 = vpop.permute.xlu0 %8266
    %8270 = vset.pattern.permute.xlu0 0
    %8271 = vperm.xlu0 %8270, %v8217
    %v8272 = vpop.permute.xlu0 %8271
    %8275 = vset.pattern.permute.xlu0 0
    %8276 = vperm.xlu0 %8275, %v8218
    %v8277 = vpop.permute.xlu0 %8276
    %8280 = vset.pattern.permute.xlu0 0
    %8281 = vperm.xlu0 %8280, %v8219
    %v8282 = vpop.permute.xlu0 %8281
    %8285 = vset.pattern.permute.xlu0 0
    %8286 = vperm.xlu0 %8285, %v8220
    %v8287 = vpop.permute.xlu0 %8286
    %8290 = vset.pattern.permute.xlu0 0
    %8291 = vperm.xlu0 %8290, %v8221
    %v8292 = vpop.permute.xlu0 %8291
    %8295 = vset.pattern.permute.xlu0 0
    %8296 = vperm.xlu0 %8295, %v8222
    %v8297 = vpop.permute.xlu0 %8296
    %8300 = vset.pattern.permute.xlu0 0
    %8301 = vperm.xlu0 %8300, %v8223
    %v8302 = vpop.permute.xlu0 %8301
    %8305 = vset.pattern.permute.xlu0 0
    %8306 = vperm.xlu0 %8305, %v8224
    %v8307 = vpop.permute.xlu0 %8306
    %8310 = vset.pattern.permute.xlu0 0
    %8311 = vperm.xlu0 %8310, %v8225
    %v8312 = vpop.permute.xlu0 %8311
    %8315 = vset.pattern.permute.xlu0 0
    %8316 = vperm.xlu0 %8315, %v8226
    %v8317 = vpop.permute.xlu0 %8316
    %8320 = vset.pattern.permute.xlu0 0
    %8321 = vperm.xlu0 %8320, %v8227
    %v8322 = vpop.permute.xlu0 %8321
    %8325 = vset.pattern.permute.xlu0 0
    %8326 = vperm.xlu0 %8325, %v8228
    %v8327 = vpop.permute.xlu0 %8326
    %8330 = vset.pattern.permute.xlu0 0
    %8331 = vperm.xlu0 %8330, %v8229
    %v8332 = vpop.permute.xlu0 %8331
    %8335 = vset.pattern.permute.xlu0 0
    %8336 = vperm.xlu0 %8335, %v8230
    %v8337 = vpop.permute.xlu0 %8336
    %8340 = vset.pattern.permute.xlu0 0
    %8341 = vperm.xlu0 %8340, %v8231
    %v8342 = vpop.permute.xlu0 %8341
    %8345 = vset.pattern.permute.xlu0 0
    %8346 = vperm.xlu0 %8345, %v8232
    %v8347 = vpop.permute.xlu0 %8346
    %8350 = vset.pattern.permute.xlu0 0
    %8351 = vperm.xlu0 %8350, %v8233
    %v8352 = vpop.permute.xlu0 %8351
    %8355 = vset.pattern.permute.xlu0 0
    %8356 = vperm.xlu0 %8355, %v8234
    %v8357 = vpop.permute.xlu0 %8356
    %8360 = vset.pattern.permute.xlu0 0
    %8361 = vperm.xlu0 %8360, %v8235
    %v8362 = vpop.permute.xlu0 %8361
    %8365 = vset.pattern.permute.xlu0 0
    %8366 = vperm.xlu0 %8365, %v8236
    %v8367 = vpop.permute.xlu0 %8366
    %8370 = vset.pattern.permute.xlu0 0
    %8371 = vperm.xlu0 %8370, %v8237
    %v8372 = vpop.permute.xlu0 %8371
    %8375 = vset.pattern.permute.xlu0 0
    %8376 = vperm.xlu0 %8375, %v8238
    %v8377 = vpop.permute.xlu0 %8376
    %8380 = vset.pattern.permute.xlu0 0
    %8381 = vperm.xlu0 %8380, %v8239
    %v8382 = vpop.permute.xlu0 %8381
    %8385 = vset.pattern.permute.xlu0 0
    %8386 = vperm.xlu0 %8385, %v8240
    %v8387 = vpop.permute.xlu0 %8386
    %8390 = vset.pattern.permute.xlu0 0
    %8391 = vperm.xlu0 %8390, %v8241
    %v8392 = vpop.permute.xlu0 %8391
    %8395 = vset.pattern.permute.xlu0 0
    %8396 = vperm.xlu0 %8395, %v8242
    %v8397 = vpop.permute.xlu0 %8396
    %8400 = vset.pattern.permute.xlu0 0
    %8401 = vperm.xlu0 %8400, %v8243
    %v8402 = vpop.permute.xlu0 %8401
    %v8404 = vadd.f32 %v8179, %v8247
    %v8405 = vadd.f32 %v8180, %v8252
    %v8406 = vadd.f32 %v8181, %v8257
    %v8407 = vadd.f32 %v8182, %v8262
    %v8408 = vadd.f32 %v8183, %v8267
    %v8409 = vadd.f32 %v8184, %v8272
    %v8410 = vadd.f32 %v8185, %v8277
    %v8411 = vadd.f32 %v8186, %v8282
    %v8412 = vadd.f32 %v8187, %v8287
    %v8413 = vadd.f32 %v8188, %v8292
    %v8414 = vadd.f32 %v8189, %v8297
    %v8415 = vadd.f32 %v8190, %v8302
    %v8416 = vadd.f32 %v8191, %v8307
    %v8417 = vadd.f32 %v8192, %v8312
    %v8418 = vadd.f32 %v8193, %v8317
    %v8419 = vadd.f32 %v8194, %v8322
    %v8420 = vadd.f32 %v8195, %v8327
    %v8421 = vadd.f32 %v8196, %v8332
    %v8422 = vadd.f32 %v8197, %v8337
    %v8423 = vadd.f32 %v8198, %v8342
    %v8424 = vadd.f32 %v8199, %v8347
    %v8425 = vadd.f32 %v8200, %v8352
    %v8426 = vadd.f32 %v8201, %v8357
    %v8427 = vadd.f32 %v8202, %v8362
    %v8428 = vadd.f32 %v8203, %v8367
    %v8429 = vadd.f32 %v8204, %v8372
    %v8430 = vadd.f32 %v8205, %v8377
    %v8431 = vadd.f32 %v8206, %v8382
    %v8432 = vadd.f32 %v8207, %v8387
    %v8433 = vadd.f32 %v8208, %v8392
    %v8434 = vadd.f32 %v8209, %v8397
    %v8435 = vadd.f32 %v8210, %v8402
    %vm8436 = vcmp.gt.f32.partialorder %v8404, 0.0
    %vm8437 = vcmp.gt.f32.partialorder %v8405, 0.0
    %vm8438 = vcmp.gt.f32.partialorder %v8406, 0.0
    %vm8439 = vcmp.gt.f32.partialorder %v8407, 0.0
    %vm8440 = vcmp.gt.f32.partialorder %v8408, 0.0
    %vm8441 = vcmp.gt.f32.partialorder %v8409, 0.0
    %vm8442 = vcmp.gt.f32.partialorder %v8410, 0.0
    %vm8443 = vcmp.gt.f32.partialorder %v8411, 0.0
    %vm8444 = vcmp.gt.f32.partialorder %v8412, 0.0
    %vm8445 = vcmp.gt.f32.partialorder %v8413, 0.0
    %vm8446 = vcmp.gt.f32.partialorder %v8414, 0.0
    %vm8447 = vcmp.gt.f32.partialorder %v8415, 0.0
    %vm8448 = vcmp.gt.f32.partialorder %v8416, 0.0
    %vm8449 = vcmp.gt.f32.partialorder %v8417, 0.0
    %vm8450 = vcmp.gt.f32.partialorder %v8418, 0.0
    %vm8451 = vcmp.gt.f32.partialorder %v8419, 0.0
    %vm8452 = vcmp.gt.f32.partialorder %v8420, 0.0
    %vm8453 = vcmp.gt.f32.partialorder %v8421, 0.0
    %vm8454 = vcmp.gt.f32.partialorder %v8422, 0.0
    %vm8455 = vcmp.gt.f32.partialorder %v8423, 0.0
    %vm8456 = vcmp.gt.f32.partialorder %v8424, 0.0
    %vm8457 = vcmp.gt.f32.partialorder %v8425, 0.0
    %vm8458 = vcmp.gt.f32.partialorder %v8426, 0.0
    %vm8459 = vcmp.gt.f32.partialorder %v8427, 0.0
    %vm8460 = vcmp.gt.f32.partialorder %v8428, 0.0
    %vm8461 = vcmp.gt.f32.partialorder %v8429, 0.0
    %vm8462 = vcmp.gt.f32.partialorder %v8430, 0.0
    %vm8463 = vcmp.gt.f32.partialorder %v8431, 0.0
    %vm8464 = vcmp.gt.f32.partialorder %v8432, 0.0
    %vm8465 = vcmp.gt.f32.partialorder %v8433, 0.0
    %vm8466 = vcmp.gt.f32.partialorder %v8434, 0.0
    %vm8467 = vcmp.gt.f32.partialorder %v8435, 0.0
    %v8468 = vmul.f32 %v8404, 0.2
    %v8469 = vmul.f32 %v8405, 0.2
    %v8470 = vmul.f32 %v8406, 0.2
    %v8471 = vmul.f32 %v8407, 0.2
    %v8472 = vmul.f32 %v8408, 0.2
    %v8473 = vmul.f32 %v8409, 0.2
    %v8474 = vmul.f32 %v8410, 0.2
    %v8475 = vmul.f32 %v8411, 0.2
    %v8476 = vmul.f32 %v8412, 0.2
    %v8477 = vmul.f32 %v8413, 0.2
    %v8478 = vmul.f32 %v8414, 0.2
    %v8479 = vmul.f32 %v8415, 0.2
    %v8480 = vmul.f32 %v8416, 0.2
    %v8481 = vmul.f32 %v8417, 0.2
    %v8482 = vmul.f32 %v8418, 0.2
    %v8483 = vmul.f32 %v8419, 0.2
    %v8484 = vmul.f32 %v8420, 0.2
    %v8485 = vmul.f32 %v8421, 0.2
    %v8486 = vmul.f32 %v8422, 0.2
    %v8487 = vmul.f32 %v8423, 0.2
    %v8488 = vmul.f32 %v8424, 0.2
    %v8489 = vmul.f32 %v8425, 0.2
    %v8490 = vmul.f32 %v8426, 0.2
    %v8491 = vmul.f32 %v8427, 0.2
    %v8492 = vmul.f32 %v8428, 0.2
    %v8493 = vmul.f32 %v8429, 0.2
    %v8494 = vmul.f32 %v8430, 0.2
    %v8495 = vmul.f32 %v8431, 0.2
    %v8496 = vmul.f32 %v8432, 0.2
    %v8497 = vmul.f32 %v8433, 0.2
    %v8498 = vmul.f32 %v8434, 0.2
    %v8499 = vmul.f32 %v8435, 0.2
    %v8500 = vsel %vm8436, %v8404, %v8468
    %v8501 = vsel %vm8437, %v8405, %v8469
    %v8502 = vsel %vm8438, %v8406, %v8470
    %v8503 = vsel %vm8439, %v8407, %v8471
    %v8504 = vsel %vm8440, %v8408, %v8472
    %v8505 = vsel %vm8441, %v8409, %v8473
    %v8506 = vsel %vm8442, %v8410, %v8474
    %v8507 = vsel %vm8443, %v8411, %v8475
    %v8508 = vsel %vm8444, %v8412, %v8476
    %v8509 = vsel %vm8445, %v8413, %v8477
    %v8510 = vsel %vm8446, %v8414, %v8478
    %v8511 = vsel %vm8447, %v8415, %v8479
    %v8512 = vsel %vm8448, %v8416, %v8480
    %v8513 = vsel %vm8449, %v8417, %v8481
    %v8514 = vsel %vm8450, %v8418, %v8482
    %v8515 = vsel %vm8451, %v8419, %v8483
    %v8516 = vsel %vm8452, %v8420, %v8484
    %v8517 = vsel %vm8453, %v8421, %v8485
    %v8518 = vsel %vm8454, %v8422, %v8486
    %v8519 = vsel %vm8455, %v8423, %v8487
    %v8520 = vsel %vm8456, %v8424, %v8488
    %v8521 = vsel %vm8457, %v8425, %v8489
    %v8522 = vsel %vm8458, %v8426, %v8490
    %v8523 = vsel %vm8459, %v8427, %v8491
    %v8524 = vsel %vm8460, %v8428, %v8492
    %v8525 = vsel %vm8461, %v8429, %v8493
    %v8526 = vsel %vm8462, %v8430, %v8494
    %v8527 = vsel %vm8463, %v8431, %v8495
    %v8528 = vsel %vm8464, %v8432, %v8496
    %v8529 = vsel %vm8465, %v8433, %v8497
    %v8530 = vsel %vm8466, %v8434, %v8498
    %v8531 = vsel %vm8467, %v8435, %v8499
    %v8532 = vpack.c.bf16 %v8501, %v8500
    %v8533 = vpack.c.bf16 %v8503, %v8502
    %v8534 = vpack.c.bf16 %v8505, %v8504
    %v8535 = vpack.c.bf16 %v8507, %v8506
    %v8536 = vpack.c.bf16 %v8509, %v8508
    %v8537 = vpack.c.bf16 %v8511, %v8510
    %v8538 = vpack.c.bf16 %v8513, %v8512
    %v8539 = vpack.c.bf16 %v8515, %v8514
    %v8540 = vpack.c.bf16 %v8517, %v8516
    %v8541 = vpack.c.bf16 %v8519, %v8518
    %v8542 = vpack.c.bf16 %v8521, %v8520
    %v8543 = vpack.c.bf16 %v8523, %v8522
    %v8544 = vpack.c.bf16 %v8525, %v8524
    %v8545 = vpack.c.bf16 %v8527, %v8526
    %v8546 = vpack.c.bf16 %v8529, %v8528
    %v8547 = vpack.c.bf16 %v8531, %v8530
    %s8548 = scalar_lea.vmem [#allocation4], 768
    %v8549 = vld [vmem:[%s8548] sm:$0xf]
    %v8550 = vld [vmem:[%s8548 + $0x4] sm:$0xf]
    %v8551 = vld [vmem:[%s8548 + $0x8] sm:$0xf]
    %v8552 = vld [vmem:[%s8548 + $0xc] sm:$0xf]
    %v8553 = vld [vmem:[%s8548 + $0x10] sm:$0xf]
    %v8554 = vld [vmem:[%s8548 + $0x14] sm:$0xf]
    %v8555 = vld [vmem:[%s8548 + $0x18] sm:$0xf]
    %v8556 = vld [vmem:[%s8548 + $0x1c] sm:$0xf]
    %v8557 = vld [vmem:[%s8548 + $0x20] sm:$0xf]
    %v8558 = vld [vmem:[%s8548 + $0x24] sm:$0xf]
    %v8559 = vld [vmem:[%s8548 + $0x28] sm:$0xf]
    %v8560 = vld [vmem:[%s8548 + $0x2c] sm:$0xf]
    %v8561 = vld [vmem:[%s8548 + $0x30] sm:$0xf]
    %v8562 = vld [vmem:[%s8548 + $0x34] sm:$0xf]
    %v8563 = vld [vmem:[%s8548 + $0x38] sm:$0xf]
    %v8564 = vld [vmem:[%s8548 + $0x3c] sm:$0xf]
    %v8581 = vunpack.c.l.b16 %v8549
    %v8582 = vunpack.c.l.b16 %v8550
    %v8583 = vunpack.c.l.b16 %v8551
    %v8584 = vunpack.c.l.b16 %v8552
    %v8585 = vunpack.c.l.b16 %v8553
    %v8586 = vunpack.c.l.b16 %v8554
    %v8587 = vunpack.c.l.b16 %v8555
    %v8588 = vunpack.c.l.b16 %v8556
    %v8589 = vunpack.c.l.b16 %v8557
    %v8590 = vunpack.c.l.b16 %v8558
    %v8591 = vunpack.c.l.b16 %v8559
    %v8592 = vunpack.c.l.b16 %v8560
    %v8593 = vunpack.c.l.b16 %v8561
    %v8594 = vunpack.c.l.b16 %v8562
    %v8595 = vunpack.c.l.b16 %v8563
    %v8596 = vunpack.c.l.b16 %v8564
    %v8597 = vpack.c.b16 %v8582, %v8581
    %v8598 = vpack.c.b16 %v8584, %v8583
    %v8599 = vpack.c.b16 %v8586, %v8585
    %v8600 = vpack.c.b16 %v8588, %v8587
    %v8601 = vpack.c.b16 %v8590, %v8589
    %v8602 = vpack.c.b16 %v8592, %v8591
    %v8603 = vpack.c.b16 %v8594, %v8593
    %v8604 = vpack.c.b16 %v8596, %v8595
    %8613 = vmatprep.subr.bf16.mxu0 0
    %8614 = vmatpush1.bf16.msra.mxu0 %v8604
    %8615 = vmatprep.subr.bf16.mxu0 0
    %8616 = vmatpush1.bf16.msra.mxu0 %v8603
    %8617 = vmatprep.subr.bf16.mxu0 0
    %8618 = vmatpush1.bf16.msra.mxu0 %v8602
    %8619 = vmatprep.subr.bf16.mxu0 0
    %8620 = vmatpush1.bf16.msra.mxu0 %v8601
    %8621 = vmatprep.subr.bf16.mxu0 0
    %8622 = vmatpush1.bf16.msra.mxu0 %v8600
    %8623 = vmatprep.subr.bf16.mxu0 0
    %8624 = vmatpush1.bf16.msra.mxu0 %v8599
    %8625 = vmatprep.subr.bf16.mxu0 0
    %8626 = vmatpush1.bf16.msra.mxu0 %v8598
    %8627 = vmatprep.subr.bf16.mxu0 0
    %8628 = vmatpush1.bf16.msra.mxu0 %v8597
    %8629 = vmatprep.subr.bf16.mxu0 0
    %8630 = vmatpush2.bf16.msra.mxu0 0
    %8631 = vmatprep.subr.bf16.mxu0 0
    %8632 = vmatpush2.bf16.msra.mxu0 0
    %8633 = vmatprep.subr.bf16.mxu0 0
    %8634 = vmatpush2.bf16.msra.mxu0 0
    %8635 = vmatprep.subr.bf16.mxu0 0
    %8636 = vmatpush2.bf16.msra.mxu0 0
    %8637 = vmatprep.subr.bf16.mxu0 0
    %8638 = vmatpush2.bf16.msra.mxu0 0
    %8639 = vmatprep.subr.bf16.mxu0 0
    %8640 = vmatpush2.bf16.msra.mxu0 0
    %8641 = vmatprep.subr.bf16.mxu0 0
    %8642 = vmatpush2.bf16.msra.mxu0 0
    %8643 = vmatprep.subr.bf16.mxu0 0
    %8644 = vmatpush2.bf16.msra.mxu0 0
    %8645 = vmatprep.mubr.bf16.mxu0 0
    %8646 = vmatmul.mubr.bf16.gmra.mxu0 %v8532
    %v8647 = vpop.f32.mrf.mxu0
    %v8648 = vadd.f32 0.0, %v8647
    %v8649 = vpop.f32.mrf.mxu0
    %v8650 = vpop.f32.mrf.mxu0
    %v8651 = vadd.f32 0.0, %v8650
    %v8652 = vpop.f32.mrf.mxu0
    %8653 = vmatprep.mubr.bf16.mxu0 0
    %8654 = vmatmul.mubr.bf16.gmra.mxu0 %v8533
    %v8655 = vpop.f32.mrf.mxu0
    %v8656 = vadd.f32 0.0, %v8655
    %v8657 = vpop.f32.mrf.mxu0
    %v8658 = vpop.f32.mrf.mxu0
    %v8659 = vadd.f32 0.0, %v8658
    %v8660 = vpop.f32.mrf.mxu0
    %8661 = vmatprep.mubr.bf16.mxu0 0
    %8662 = vmatmul.mubr.bf16.gmra.mxu0 %v8534
    %v8663 = vpop.f32.mrf.mxu0
    %v8664 = vadd.f32 0.0, %v8663
    %v8665 = vpop.f32.mrf.mxu0
    %v8666 = vpop.f32.mrf.mxu0
    %v8667 = vadd.f32 0.0, %v8666
    %v8668 = vpop.f32.mrf.mxu0
    %8669 = vmatprep.mubr.bf16.mxu0 0
    %8670 = vmatmul.mubr.bf16.gmra.mxu0 %v8535
    %v8671 = vpop.f32.mrf.mxu0
    %v8672 = vadd.f32 0.0, %v8671
    %v8673 = vpop.f32.mrf.mxu0
    %v8674 = vpop.f32.mrf.mxu0
    %v8675 = vadd.f32 0.0, %v8674
    %v8676 = vpop.f32.mrf.mxu0
    %8677 = vmatprep.mubr.bf16.mxu0 0
    %8678 = vmatmul.mubr.bf16.gmra.mxu0 %v8536
    %v8679 = vpop.f32.mrf.mxu0
    %v8680 = vadd.f32 0.0, %v8679
    %v8681 = vpop.f32.mrf.mxu0
    %v8682 = vpop.f32.mrf.mxu0
    %v8683 = vadd.f32 0.0, %v8682
    %v8684 = vpop.f32.mrf.mxu0
    %8685 = vmatprep.mubr.bf16.mxu0 0
    %8686 = vmatmul.mubr.bf16.gmra.mxu0 %v8537
    %v8687 = vpop.f32.mrf.mxu0
    %v8688 = vadd.f32 0.0, %v8687
    %v8689 = vpop.f32.mrf.mxu0
    %v8690 = vpop.f32.mrf.mxu0
    %v8691 = vadd.f32 0.0, %v8690
    %v8692 = vpop.f32.mrf.mxu0
    %8693 = vmatprep.mubr.bf16.mxu0 0
    %8694 = vmatmul.mubr.bf16.gmra.mxu0 %v8538
    %v8695 = vpop.f32.mrf.mxu0
    %v8696 = vadd.f32 0.0, %v8695
    %v8697 = vpop.f32.mrf.mxu0
    %v8698 = vpop.f32.mrf.mxu0
    %v8699 = vadd.f32 0.0, %v8698
    %v8700 = vpop.f32.mrf.mxu0
    %8701 = vmatprep.mubr.bf16.mxu0 0
    %8702 = vmatmul.mubr.bf16.gmra.mxu0 %v8539
    %v8703 = vpop.f32.mrf.mxu0
    %v8704 = vadd.f32 0.0, %v8703
    %v8705 = vpop.f32.mrf.mxu0
    %v8706 = vpop.f32.mrf.mxu0
    %v8707 = vadd.f32 0.0, %v8706
    %v8708 = vpop.f32.mrf.mxu0
    %8709 = vmatprep.mubr.bf16.mxu0 0
    %8710 = vmatmul.mubr.bf16.gmra.mxu0 %v8540
    %v8711 = vpop.f32.mrf.mxu0
    %v8712 = vadd.f32 0.0, %v8711
    %v8713 = vpop.f32.mrf.mxu0
    %v8714 = vpop.f32.mrf.mxu0
    %v8715 = vadd.f32 0.0, %v8714
    %v8716 = vpop.f32.mrf.mxu0
    %8717 = vmatprep.mubr.bf16.mxu0 0
    %8718 = vmatmul.mubr.bf16.gmra.mxu0 %v8541
    %v8719 = vpop.f32.mrf.mxu0
    %v8720 = vadd.f32 0.0, %v8719
    %v8721 = vpop.f32.mrf.mxu0
    %v8722 = vpop.f32.mrf.mxu0
    %v8723 = vadd.f32 0.0, %v8722
    %v8724 = vpop.f32.mrf.mxu0
    %8725 = vmatprep.mubr.bf16.mxu0 0
    %8726 = vmatmul.mubr.bf16.gmra.mxu0 %v8542
    %v8727 = vpop.f32.mrf.mxu0
    %v8728 = vadd.f32 0.0, %v8727
    %v8729 = vpop.f32.mrf.mxu0
    %v8730 = vpop.f32.mrf.mxu0
    %v8731 = vadd.f32 0.0, %v8730
    %v8732 = vpop.f32.mrf.mxu0
    %8733 = vmatprep.mubr.bf16.mxu0 0
    %8734 = vmatmul.mubr.bf16.gmra.mxu0 %v8543
    %v8735 = vpop.f32.mrf.mxu0
    %v8736 = vadd.f32 0.0, %v8735
    %v8737 = vpop.f32.mrf.mxu0
    %v8738 = vpop.f32.mrf.mxu0
    %v8739 = vadd.f32 0.0, %v8738
    %v8740 = vpop.f32.mrf.mxu0
    %8741 = vmatprep.mubr.bf16.mxu0 0
    %8742 = vmatmul.mubr.bf16.gmra.mxu0 %v8544
    %v8743 = vpop.f32.mrf.mxu0
    %v8744 = vadd.f32 0.0, %v8743
    %v8745 = vpop.f32.mrf.mxu0
    %v8746 = vpop.f32.mrf.mxu0
    %v8747 = vadd.f32 0.0, %v8746
    %v8748 = vpop.f32.mrf.mxu0
    %8749 = vmatprep.mubr.bf16.mxu0 0
    %8750 = vmatmul.mubr.bf16.gmra.mxu0 %v8545
    %v8751 = vpop.f32.mrf.mxu0
    %v8752 = vadd.f32 0.0, %v8751
    %v8753 = vpop.f32.mrf.mxu0
    %v8754 = vpop.f32.mrf.mxu0
    %v8755 = vadd.f32 0.0, %v8754
    %v8756 = vpop.f32.mrf.mxu0
    %8757 = vmatprep.mubr.bf16.mxu0 0
    %8758 = vmatmul.mubr.bf16.gmra.mxu0 %v8546
    %v8759 = vpop.f32.mrf.mxu0
    %v8760 = vadd.f32 0.0, %v8759
    %v8761 = vpop.f32.mrf.mxu0
    %v8762 = vpop.f32.mrf.mxu0
    %v8763 = vadd.f32 0.0, %v8762
    %v8764 = vpop.f32.mrf.mxu0
    %8765 = vmatprep.mubr.bf16.mxu0 0
    %8766 = vmatmul.mubr.bf16.gmra.mxu0 %v8547
    %v8767 = vpop.f32.mrf.mxu0
    %v8768 = vadd.f32 0.0, %v8767
    %v8769 = vpop.f32.mrf.mxu0
    %v8770 = vpop.f32.mrf.mxu0
    %v8771 = vadd.f32 0.0, %v8770
    %v8772 = vpop.f32.mrf.mxu0
    %8773 = vdwg.mxu0
    %v8774 = vpack.c.bf16 %v8651, %v8648
    %v8775 = vpack.c.bf16 %v8659, %v8656
    %v8776 = vpack.c.bf16 %v8667, %v8664
    %v8777 = vpack.c.bf16 %v8675, %v8672
    %v8778 = vpack.c.bf16 %v8683, %v8680
    %v8779 = vpack.c.bf16 %v8691, %v8688
    %v8780 = vpack.c.bf16 %v8699, %v8696
    %v8781 = vpack.c.bf16 %v8707, %v8704
    %v8782 = vpack.c.bf16 %v8715, %v8712
    %v8783 = vpack.c.bf16 %v8723, %v8720
    %v8784 = vpack.c.bf16 %v8731, %v8728
    %v8785 = vpack.c.bf16 %v8739, %v8736
    %v8786 = vpack.c.bf16 %v8747, %v8744
    %v8787 = vpack.c.bf16 %v8755, %v8752
    %v8788 = vpack.c.bf16 %v8763, %v8760
    %v8789 = vpack.c.bf16 %v8771, %v8768
    %s8790 = scalar_lea.vmem [#allocation2], 3072
    %v8791 = vld [vmem:[%s8790] sm:$0xff]
    %v8792 = vld [vmem:[%s8790 + $0x8] sm:$0xff]
    %v8793 = vld [vmem:[%s8790 + $0x10] sm:$0xff]
    %v8794 = vld [vmem:[%s8790 + $0x18] sm:$0xff]
    %v8795 = vld [vmem:[%s8790 + $0x20] sm:$0xff]
    %v8796 = vld [vmem:[%s8790 + $0x28] sm:$0xff]
    %v8797 = vld [vmem:[%s8790 + $0x30] sm:$0xff]
    %v8798 = vld [vmem:[%s8790 + $0x38] sm:$0xff]
    %v8799 = vld [vmem:[%s8790 + $0x40] sm:$0xff]
    %v8800 = vld [vmem:[%s8790 + $0x48] sm:$0xff]
    %v8801 = vld [vmem:[%s8790 + $0x50] sm:$0xff]
    %v8802 = vld [vmem:[%s8790 + $0x58] sm:$0xff]
    %v8803 = vld [vmem:[%s8790 + $0x60] sm:$0xff]
    %v8804 = vld [vmem:[%s8790 + $0x68] sm:$0xff]
    %v8805 = vld [vmem:[%s8790 + $0x70] sm:$0xff]
    %v8806 = vld [vmem:[%s8790 + $0x78] sm:$0xff]
    %v8807 = vld [vmem:[%s8790 + $0x80] sm:$0xff]
    %v8808 = vld [vmem:[%s8790 + $0x88] sm:$0xff]
    %v8809 = vld [vmem:[%s8790 + $0x90] sm:$0xff]
    %v8810 = vld [vmem:[%s8790 + $0x98] sm:$0xff]
    %v8811 = vld [vmem:[%s8790 + $0xa0] sm:$0xff]
    %v8812 = vld [vmem:[%s8790 + $0xa8] sm:$0xff]
    %v8813 = vld [vmem:[%s8790 + $0xb0] sm:$0xff]
    %v8814 = vld [vmem:[%s8790 + $0xb8] sm:$0xff]
    %v8815 = vld [vmem:[%s8790 + $0xc0] sm:$0xff]
    %v8816 = vld [vmem:[%s8790 + $0xc8] sm:$0xff]
    %v8817 = vld [vmem:[%s8790 + $0xd0] sm:$0xff]
    %v8818 = vld [vmem:[%s8790 + $0xd8] sm:$0xff]
    %v8819 = vld [vmem:[%s8790 + $0xe0] sm:$0xff]
    %v8820 = vld [vmem:[%s8790 + $0xe8] sm:$0xff]
    %v8821 = vld [vmem:[%s8790 + $0xf0] sm:$0xff]
    %v8822 = vld [vmem:[%s8790 + $0xf8] sm:$0xff]
    %s8823 = scalar_lea.vmem [#allocation4], 832
    %v8824 = vld [vmem:[%s8823] sm:$0xf]
    %v8825 = vld [vmem:[%s8823 + $0x4] sm:$0xf]
    %v8826 = vld [vmem:[%s8823 + $0x8] sm:$0xf]
    %v8827 = vld [vmem:[%s8823 + $0xc] sm:$0xf]
    %v8828 = vld [vmem:[%s8823 + $0x10] sm:$0xf]
    %v8829 = vld [vmem:[%s8823 + $0x14] sm:$0xf]
    %v8830 = vld [vmem:[%s8823 + $0x18] sm:$0xf]
    %v8831 = vld [vmem:[%s8823 + $0x1c] sm:$0xf]
    %v8832 = vld [vmem:[%s8823 + $0x20] sm:$0xf]
    %v8833 = vld [vmem:[%s8823 + $0x24] sm:$0xf]
    %v8834 = vld [vmem:[%s8823 + $0x28] sm:$0xf]
    %v8835 = vld [vmem:[%s8823 + $0x2c] sm:$0xf]
    %v8836 = vld [vmem:[%s8823 + $0x30] sm:$0xf]
    %v8837 = vld [vmem:[%s8823 + $0x34] sm:$0xf]
    %v8838 = vld [vmem:[%s8823 + $0x38] sm:$0xf]
    %v8839 = vld [vmem:[%s8823 + $0x3c] sm:$0xf]
    %v8856 = vunpack.c.l.b16 %v8824
    %v8857 = vunpack.c.l.b16 %v8825
    %v8858 = vunpack.c.l.b16 %v8826
    %v8859 = vunpack.c.l.b16 %v8827
    %v8860 = vunpack.c.l.b16 %v8828
    %v8861 = vunpack.c.l.b16 %v8829
    %v8862 = vunpack.c.l.b16 %v8830
    %v8863 = vunpack.c.l.b16 %v8831
    %v8864 = vunpack.c.l.b16 %v8832
    %v8865 = vunpack.c.l.b16 %v8833
    %v8866 = vunpack.c.l.b16 %v8834
    %v8867 = vunpack.c.l.b16 %v8835
    %v8868 = vunpack.c.l.b16 %v8836
    %v8869 = vunpack.c.l.b16 %v8837
    %v8870 = vunpack.c.l.b16 %v8838
    %v8871 = vunpack.c.l.b16 %v8839
    %v8872 = vpack.c.b16 %v8857, %v8856
    %v8873 = vpack.c.b16 %v8859, %v8858
    %v8874 = vpack.c.b16 %v8861, %v8860
    %v8875 = vpack.c.b16 %v8863, %v8862
    %v8876 = vpack.c.b16 %v8865, %v8864
    %v8877 = vpack.c.b16 %v8867, %v8866
    %v8878 = vpack.c.b16 %v8869, %v8868
    %v8879 = vpack.c.b16 %v8871, %v8870
    %8888 = vmatprep.subr.bf16.mxu0 0
    %8889 = vmatpush1.bf16.msra.mxu0 %v8879
    %8890 = vmatprep.subr.bf16.mxu0 0
    %8891 = vmatpush1.bf16.msra.mxu0 %v8878
    %8892 = vmatprep.subr.bf16.mxu0 0
    %8893 = vmatpush1.bf16.msra.mxu0 %v8877
    %8894 = vmatprep.subr.bf16.mxu0 0
    %8895 = vmatpush1.bf16.msra.mxu0 %v8876
    %8896 = vmatprep.subr.bf16.mxu0 0
    %8897 = vmatpush1.bf16.msra.mxu0 %v8875
    %8898 = vmatprep.subr.bf16.mxu0 0
    %8899 = vmatpush1.bf16.msra.mxu0 %v8874
    %8900 = vmatprep.subr.bf16.mxu0 0
    %8901 = vmatpush1.bf16.msra.mxu0 %v8873
    %8902 = vmatprep.subr.bf16.mxu0 0
    %8903 = vmatpush1.bf16.msra.mxu0 %v8872
    %8904 = vmatprep.subr.bf16.mxu0 0
    %8905 = vmatpush2.bf16.msra.mxu0 0
    %8906 = vmatprep.subr.bf16.mxu0 0
    %8907 = vmatpush2.bf16.msra.mxu0 0
    %8908 = vmatprep.subr.bf16.mxu0 0
    %8909 = vmatpush2.bf16.msra.mxu0 0
    %8910 = vmatprep.subr.bf16.mxu0 0
    %8911 = vmatpush2.bf16.msra.mxu0 0
    %8912 = vmatprep.subr.bf16.mxu0 0
    %8913 = vmatpush2.bf16.msra.mxu0 0
    %8914 = vmatprep.subr.bf16.mxu0 0
    %8915 = vmatpush2.bf16.msra.mxu0 0
    %8916 = vmatprep.subr.bf16.mxu0 0
    %8917 = vmatpush2.bf16.msra.mxu0 0
    %8918 = vmatprep.subr.bf16.mxu0 0
    %8919 = vmatpush2.bf16.msra.mxu0 0
    %8920 = vmatprep.mubr.bf16.mxu0 0
    %8921 = vmatmul.mubr.bf16.gmra.mxu0 %v8532
    %v8922 = vpop.f32.mrf.mxu0
    %v8923 = vadd.f32 0.0, %v8922
    %v8924 = vpop.f32.mrf.mxu0
    %v8925 = vpop.f32.mrf.mxu0
    %v8926 = vadd.f32 0.0, %v8925
    %v8927 = vpop.f32.mrf.mxu0
    %8928 = vmatprep.mubr.bf16.mxu0 0
    %8929 = vmatmul.mubr.bf16.gmra.mxu0 %v8533
    %v8930 = vpop.f32.mrf.mxu0
    %v8931 = vadd.f32 0.0, %v8930
    %v8932 = vpop.f32.mrf.mxu0
    %v8933 = vpop.f32.mrf.mxu0
    %v8934 = vadd.f32 0.0, %v8933
    %v8935 = vpop.f32.mrf.mxu0
    %8936 = vmatprep.mubr.bf16.mxu0 0
    %8937 = vmatmul.mubr.bf16.gmra.mxu0 %v8534
    %v8938 = vpop.f32.mrf.mxu0
    %v8939 = vadd.f32 0.0, %v8938
    %v8940 = vpop.f32.mrf.mxu0
    %v8941 = vpop.f32.mrf.mxu0
    %v8942 = vadd.f32 0.0, %v8941
    %v8943 = vpop.f32.mrf.mxu0
    %8944 = vmatprep.mubr.bf16.mxu0 0
    %8945 = vmatmul.mubr.bf16.gmra.mxu0 %v8535
    %v8946 = vpop.f32.mrf.mxu0
    %v8947 = vadd.f32 0.0, %v8946
    %v8948 = vpop.f32.mrf.mxu0
    %v8949 = vpop.f32.mrf.mxu0
    %v8950 = vadd.f32 0.0, %v8949
    %v8951 = vpop.f32.mrf.mxu0
    %8952 = vmatprep.mubr.bf16.mxu0 0
    %8953 = vmatmul.mubr.bf16.gmra.mxu0 %v8536
    %v8954 = vpop.f32.mrf.mxu0
    %v8955 = vadd.f32 0.0, %v8954
    %v8956 = vpop.f32.mrf.mxu0
    %v8957 = vpop.f32.mrf.mxu0
    %v8958 = vadd.f32 0.0, %v8957
    %v8959 = vpop.f32.mrf.mxu0
    %8960 = vmatprep.mubr.bf16.mxu0 0
    %8961 = vmatmul.mubr.bf16.gmra.mxu0 %v8537
    %v8962 = vpop.f32.mrf.mxu0
    %v8963 = vadd.f32 0.0, %v8962
    %v8964 = vpop.f32.mrf.mxu0
    %v8965 = vpop.f32.mrf.mxu0
    %v8966 = vadd.f32 0.0, %v8965
    %v8967 = vpop.f32.mrf.mxu0
    %8968 = vmatprep.mubr.bf16.mxu0 0
    %8969 = vmatmul.mubr.bf16.gmra.mxu0 %v8538
    %v8970 = vpop.f32.mrf.mxu0
    %v8971 = vadd.f32 0.0, %v8970
    %v8972 = vpop.f32.mrf.mxu0
    %v8973 = vpop.f32.mrf.mxu0
    %v8974 = vadd.f32 0.0, %v8973
    %v8975 = vpop.f32.mrf.mxu0
    %8976 = vmatprep.mubr.bf16.mxu0 0
    %8977 = vmatmul.mubr.bf16.gmra.mxu0 %v8539
    %v8978 = vpop.f32.mrf.mxu0
    %v8979 = vadd.f32 0.0, %v8978
    %v8980 = vpop.f32.mrf.mxu0
    %v8981 = vpop.f32.mrf.mxu0
    %v8982 = vadd.f32 0.0, %v8981
    %v8983 = vpop.f32.mrf.mxu0
    %8984 = vmatprep.mubr.bf16.mxu0 0
    %8985 = vmatmul.mubr.bf16.gmra.mxu0 %v8540
    %v8986 = vpop.f32.mrf.mxu0
    %v8987 = vadd.f32 0.0, %v8986
    %v8988 = vpop.f32.mrf.mxu0
    %v8989 = vpop.f32.mrf.mxu0
    %v8990 = vadd.f32 0.0, %v8989
    %v8991 = vpop.f32.mrf.mxu0
    %8992 = vmatprep.mubr.bf16.mxu0 0
    %8993 = vmatmul.mubr.bf16.gmra.mxu0 %v8541
    %v8994 = vpop.f32.mrf.mxu0
    %v8995 = vadd.f32 0.0, %v8994
    %v8996 = vpop.f32.mrf.mxu0
    %v8997 = vpop.f32.mrf.mxu0
    %v8998 = vadd.f32 0.0, %v8997
    %v8999 = vpop.f32.mrf.mxu0
    %9000 = vmatprep.mubr.bf16.mxu0 0
    %9001 = vmatmul.mubr.bf16.gmra.mxu0 %v8542
    %v9002 = vpop.f32.mrf.mxu0
    %v9003 = vadd.f32 0.0, %v9002
    %v9004 = vpop.f32.mrf.mxu0
    %v9005 = vpop.f32.mrf.mxu0
    %v9006 = vadd.f32 0.0, %v9005
    %v9007 = vpop.f32.mrf.mxu0
    %9008 = vmatprep.mubr.bf16.mxu0 0
    %9009 = vmatmul.mubr.bf16.gmra.mxu0 %v8543
    %v9010 = vpop.f32.mrf.mxu0
    %v9011 = vadd.f32 0.0, %v9010
    %v9012 = vpop.f32.mrf.mxu0
    %v9013 = vpop.f32.mrf.mxu0
    %v9014 = vadd.f32 0.0, %v9013
    %v9015 = vpop.f32.mrf.mxu0
    %9016 = vmatprep.mubr.bf16.mxu0 0
    %9017 = vmatmul.mubr.bf16.gmra.mxu0 %v8544
    %v9018 = vpop.f32.mrf.mxu0
    %v9019 = vadd.f32 0.0, %v9018
    %v9020 = vpop.f32.mrf.mxu0
    %v9021 = vpop.f32.mrf.mxu0
    %v9022 = vadd.f32 0.0, %v9021
    %v9023 = vpop.f32.mrf.mxu0
    %9024 = vmatprep.mubr.bf16.mxu0 0
    %9025 = vmatmul.mubr.bf16.gmra.mxu0 %v8545
    %v9026 = vpop.f32.mrf.mxu0
    %v9027 = vadd.f32 0.0, %v9026
    %v9028 = vpop.f32.mrf.mxu0
    %v9029 = vpop.f32.mrf.mxu0
    %v9030 = vadd.f32 0.0, %v9029
    %v9031 = vpop.f32.mrf.mxu0
    %9032 = vmatprep.mubr.bf16.mxu0 0
    %9033 = vmatmul.mubr.bf16.gmra.mxu0 %v8546
    %v9034 = vpop.f32.mrf.mxu0
    %v9035 = vadd.f32 0.0, %v9034
    %v9036 = vpop.f32.mrf.mxu0
    %v9037 = vpop.f32.mrf.mxu0
    %v9038 = vadd.f32 0.0, %v9037
    %v9039 = vpop.f32.mrf.mxu0
    %9040 = vmatprep.mubr.bf16.mxu0 0
    %9041 = vmatmul.mubr.bf16.gmra.mxu0 %v8547
    %v9042 = vpop.f32.mrf.mxu0
    %v9043 = vadd.f32 0.0, %v9042
    %v9044 = vpop.f32.mrf.mxu0
    %v9045 = vpop.f32.mrf.mxu0
    %v9046 = vadd.f32 0.0, %v9045
    %v9047 = vpop.f32.mrf.mxu0
    %9048 = vdwg.mxu0
    %v9049 = vpack.c.bf16 %v8926, %v8923
    %v9050 = vpack.c.bf16 %v8934, %v8931
    %v9051 = vpack.c.bf16 %v8942, %v8939
    %v9052 = vpack.c.bf16 %v8950, %v8947
    %v9053 = vpack.c.bf16 %v8958, %v8955
    %v9054 = vpack.c.bf16 %v8966, %v8963
    %v9055 = vpack.c.bf16 %v8974, %v8971
    %v9056 = vpack.c.bf16 %v8982, %v8979
    %v9057 = vpack.c.bf16 %v8990, %v8987
    %v9058 = vpack.c.bf16 %v8998, %v8995
    %v9059 = vpack.c.bf16 %v9006, %v9003
    %v9060 = vpack.c.bf16 %v9014, %v9011
    %v9061 = vpack.c.bf16 %v9022, %v9019
    %v9062 = vpack.c.bf16 %v9030, %v9027
    %v9063 = vpack.c.bf16 %v9038, %v9035
    %v9064 = vpack.c.bf16 %v9046, %v9043
    %s9065 = scalar_lea.vmem [#allocation2], 3328
    %v9066 = vld [vmem:[%s9065] sm:$0xff]
    %v9067 = vld [vmem:[%s9065 + $0x8] sm:$0xff]
    %v9068 = vld [vmem:[%s9065 + $0x10] sm:$0xff]
    %v9069 = vld [vmem:[%s9065 + $0x18] sm:$0xff]
    %v9070 = vld [vmem:[%s9065 + $0x20] sm:$0xff]
    %v9071 = vld [vmem:[%s9065 + $0x28] sm:$0xff]
    %v9072 = vld [vmem:[%s9065 + $0x30] sm:$0xff]
    %v9073 = vld [vmem:[%s9065 + $0x38] sm:$0xff]
    %v9074 = vld [vmem:[%s9065 + $0x40] sm:$0xff]
    %v9075 = vld [vmem:[%s9065 + $0x48] sm:$0xff]
    %v9076 = vld [vmem:[%s9065 + $0x50] sm:$0xff]
    %v9077 = vld [vmem:[%s9065 + $0x58] sm:$0xff]
    %v9078 = vld [vmem:[%s9065 + $0x60] sm:$0xff]
    %v9079 = vld [vmem:[%s9065 + $0x68] sm:$0xff]
    %v9080 = vld [vmem:[%s9065 + $0x70] sm:$0xff]
    %v9081 = vld [vmem:[%s9065 + $0x78] sm:$0xff]
    %v9082 = vld [vmem:[%s9065 + $0x80] sm:$0xff]
    %v9083 = vld [vmem:[%s9065 + $0x88] sm:$0xff]
    %v9084 = vld [vmem:[%s9065 + $0x90] sm:$0xff]
    %v9085 = vld [vmem:[%s9065 + $0x98] sm:$0xff]
    %v9086 = vld [vmem:[%s9065 + $0xa0] sm:$0xff]
    %v9087 = vld [vmem:[%s9065 + $0xa8] sm:$0xff]
    %v9088 = vld [vmem:[%s9065 + $0xb0] sm:$0xff]
    %v9089 = vld [vmem:[%s9065 + $0xb8] sm:$0xff]
    %v9090 = vld [vmem:[%s9065 + $0xc0] sm:$0xff]
    %v9091 = vld [vmem:[%s9065 + $0xc8] sm:$0xff]
    %v9092 = vld [vmem:[%s9065 + $0xd0] sm:$0xff]
    %v9093 = vld [vmem:[%s9065 + $0xd8] sm:$0xff]
    %v9094 = vld [vmem:[%s9065 + $0xe0] sm:$0xff]
    %v9095 = vld [vmem:[%s9065 + $0xe8] sm:$0xff]
    %v9096 = vld [vmem:[%s9065 + $0xf0] sm:$0xff]
    %v9097 = vld [vmem:[%s9065 + $0xf8] sm:$0xff]
    %v9130 = vunpack.c.l.b16 %v9066
    %v9131 = vunpack.c.h.b16 %v9066
    %v9132 = vunpack.c.l.b16 %v9067
    %v9133 = vunpack.c.h.b16 %v9067
    %v9134 = vunpack.c.l.b16 %v9068
    %v9135 = vunpack.c.h.b16 %v9068
    %v9136 = vunpack.c.l.b16 %v9069
    %v9137 = vunpack.c.h.b16 %v9069
    %v9138 = vunpack.c.l.b16 %v9070
    %v9139 = vunpack.c.h.b16 %v9070
    %v9140 = vunpack.c.l.b16 %v9071
    %v9141 = vunpack.c.h.b16 %v9071
    %v9142 = vunpack.c.l.b16 %v9072
    %v9143 = vunpack.c.h.b16 %v9072
    %v9144 = vunpack.c.l.b16 %v9073
    %v9145 = vunpack.c.h.b16 %v9073
    %v9146 = vunpack.c.l.b16 %v9074
    %v9147 = vunpack.c.h.b16 %v9074
    %v9148 = vunpack.c.l.b16 %v9075
    %v9149 = vunpack.c.h.b16 %v9075
    %v9150 = vunpack.c.l.b16 %v9076
    %v9151 = vunpack.c.h.b16 %v9076
    %v9152 = vunpack.c.l.b16 %v9077
    %v9153 = vunpack.c.h.b16 %v9077
    %v9154 = vunpack.c.l.b16 %v9078
    %v9155 = vunpack.c.h.b16 %v9078
    %v9156 = vunpack.c.l.b16 %v9079
    %v9157 = vunpack.c.h.b16 %v9079
    %v9158 = vunpack.c.l.b16 %v9080
    %v9159 = vunpack.c.h.b16 %v9080
    %v9160 = vunpack.c.l.b16 %v9081
    %v9161 = vunpack.c.h.b16 %v9081
    %v9162 = vunpack.c.l.b16 %v9082
    %v9163 = vunpack.c.h.b16 %v9082
    %v9164 = vunpack.c.l.b16 %v9083
    %v9165 = vunpack.c.h.b16 %v9083
    %v9166 = vunpack.c.l.b16 %v9084
    %v9167 = vunpack.c.h.b16 %v9084
    %v9168 = vunpack.c.l.b16 %v9085
    %v9169 = vunpack.c.h.b16 %v9085
    %v9170 = vunpack.c.l.b16 %v9086
    %v9171 = vunpack.c.h.b16 %v9086
    %v9172 = vunpack.c.l.b16 %v9087
    %v9173 = vunpack.c.h.b16 %v9087
    %v9174 = vunpack.c.l.b16 %v9088
    %v9175 = vunpack.c.h.b16 %v9088
    %v9176 = vunpack.c.l.b16 %v9089
    %v9177 = vunpack.c.h.b16 %v9089
    %v9178 = vunpack.c.l.b16 %v9090
    %v9179 = vunpack.c.h.b16 %v9090
    %v9180 = vunpack.c.l.b16 %v9091
    %v9181 = vunpack.c.h.b16 %v9091
    %v9182 = vunpack.c.l.b16 %v9092
    %v9183 = vunpack.c.h.b16 %v9092
    %v9184 = vunpack.c.l.b16 %v9093
    %v9185 = vunpack.c.h.b16 %v9093
    %v9186 = vunpack.c.l.b16 %v9094
    %v9187 = vunpack.c.h.b16 %v9094
    %v9188 = vunpack.c.l.b16 %v9095
    %v9189 = vunpack.c.h.b16 %v9095
    %v9190 = vunpack.c.l.b16 %v9096
    %v9191 = vunpack.c.h.b16 %v9096
    %v9192 = vunpack.c.l.b16 %v9097
    %v9193 = vunpack.c.h.b16 %v9097
    %v9194 = vpack.c.b16 %v9132, %v9130
    %v9195 = vpack.c.b16 %v9133, %v9131
    %v9196 = vpack.c.b16 %v9136, %v9134
    %v9197 = vpack.c.b16 %v9137, %v9135
    %v9198 = vpack.c.b16 %v9140, %v9138
    %v9199 = vpack.c.b16 %v9141, %v9139
    %v9200 = vpack.c.b16 %v9144, %v9142
    %v9201 = vpack.c.b16 %v9145, %v9143
    %v9202 = vpack.c.b16 %v9148, %v9146
    %v9203 = vpack.c.b16 %v9149, %v9147
    %v9204 = vpack.c.b16 %v9152, %v9150
    %v9205 = vpack.c.b16 %v9153, %v9151
    %v9206 = vpack.c.b16 %v9156, %v9154
    %v9207 = vpack.c.b16 %v9157, %v9155
    %v9208 = vpack.c.b16 %v9160, %v9158
    %v9209 = vpack.c.b16 %v9161, %v9159
    %v9210 = vpack.c.b16 %v9164, %v9162
    %v9211 = vpack.c.b16 %v9165, %v9163
    %v9212 = vpack.c.b16 %v9168, %v9166
    %v9213 = vpack.c.b16 %v9169, %v9167
    %v9214 = vpack.c.b16 %v9172, %v9170
    %v9215 = vpack.c.b16 %v9173, %v9171
    %v9216 = vpack.c.b16 %v9176, %v9174
    %v9217 = vpack.c.b16 %v9177, %v9175
    %v9218 = vpack.c.b16 %v9180, %v9178
    %v9219 = vpack.c.b16 %v9181, %v9179
    %v9220 = vpack.c.b16 %v9184, %v9182
    %v9221 = vpack.c.b16 %v9185, %v9183
    %v9222 = vpack.c.b16 %v9188, %v9186
    %v9223 = vpack.c.b16 %v9189, %v9187
    %v9224 = vpack.c.b16 %v9192, %v9190
    %v9225 = vpack.c.b16 %v9193, %v9191
    %9258 = vmatprep.subr.bf16.mxu0 0
    %9259 = vmatpush1.bf16.msra.mxu0 %v9056
    %9260 = vmatprep.subr.bf16.mxu0 0
    %9261 = vmatpush1.bf16.msra.mxu0 %v9055
    %9262 = vmatprep.subr.bf16.mxu0 0
    %9263 = vmatpush1.bf16.msra.mxu0 %v9054
    %9264 = vmatprep.subr.bf16.mxu0 0
    %9265 = vmatpush1.bf16.msra.mxu0 %v9053
    %9266 = vmatprep.subr.bf16.mxu0 0
    %9267 = vmatpush1.bf16.msra.mxu0 %v9052
    %9268 = vmatprep.subr.bf16.mxu0 0
    %9269 = vmatpush1.bf16.msra.mxu0 %v9051
    %9270 = vmatprep.subr.bf16.mxu0 0
    %9271 = vmatpush1.bf16.msra.mxu0 %v9050
    %9272 = vmatprep.subr.bf16.mxu0 0
    %9273 = vmatpush1.bf16.msra.mxu0 %v9049
    %9274 = vmatprep.subr.bf16.mxu0 0
    %9275 = vmatpush2.bf16.msra.mxu0 %v9064
    %9276 = vmatprep.subr.bf16.mxu0 0
    %9277 = vmatpush2.bf16.msra.mxu0 %v9063
    %9278 = vmatprep.subr.bf16.mxu0 0
    %9279 = vmatpush2.bf16.msra.mxu0 %v9062
    %9280 = vmatprep.subr.bf16.mxu0 0
    %9281 = vmatpush2.bf16.msra.mxu0 %v9061
    %9282 = vmatprep.subr.bf16.mxu0 0
    %9283 = vmatpush2.bf16.msra.mxu0 %v9060
    %9284 = vmatprep.subr.bf16.mxu0 0
    %9285 = vmatpush2.bf16.msra.mxu0 %v9059
    %9286 = vmatprep.subr.bf16.mxu0 0
    %9287 = vmatpush2.bf16.msra.mxu0 %v9058
    %9288 = vmatprep.subr.bf16.mxu0 0
    %9289 = vmatpush2.bf16.msra.mxu0 %v9057
    %9290 = vmatprep.mubr.bf16.mxu0 %v9195
    %9291 = vmatmul.mubr.bf16.gmra.mxu0 %v9194
    %v9292 = vpop.f32.mrf.mxu0
    %v9293 = vadd.f32 0.0, %v9292
    %v9294 = vpop.f32.mrf.mxu0
    %v9295 = vpop.f32.mrf.mxu0
    %v9296 = vadd.f32 0.0, %v9295
    %v9297 = vpop.f32.mrf.mxu0
    %9298 = vmatprep.mubr.bf16.mxu0 %v9197
    %9299 = vmatmul.mubr.bf16.gmra.mxu0 %v9196
    %v9300 = vpop.f32.mrf.mxu0
    %v9301 = vadd.f32 0.0, %v9300
    %v9302 = vpop.f32.mrf.mxu0
    %v9303 = vpop.f32.mrf.mxu0
    %v9304 = vadd.f32 0.0, %v9303
    %v9305 = vpop.f32.mrf.mxu0
    %9306 = vmatprep.mubr.bf16.mxu0 %v9199
    %9307 = vmatmul.mubr.bf16.gmra.mxu0 %v9198
    %v9308 = vpop.f32.mrf.mxu0
    %v9309 = vadd.f32 0.0, %v9308
    %v9310 = vpop.f32.mrf.mxu0
    %v9311 = vpop.f32.mrf.mxu0
    %v9312 = vadd.f32 0.0, %v9311
    %v9313 = vpop.f32.mrf.mxu0
    %9314 = vmatprep.mubr.bf16.mxu0 %v9201
    %9315 = vmatmul.mubr.bf16.gmra.mxu0 %v9200
    %v9316 = vpop.f32.mrf.mxu0
    %v9317 = vadd.f32 0.0, %v9316
    %v9318 = vpop.f32.mrf.mxu0
    %v9319 = vpop.f32.mrf.mxu0
    %v9320 = vadd.f32 0.0, %v9319
    %v9321 = vpop.f32.mrf.mxu0
    %9322 = vmatprep.mubr.bf16.mxu0 %v9203
    %9323 = vmatmul.mubr.bf16.gmra.mxu0 %v9202
    %v9324 = vpop.f32.mrf.mxu0
    %v9325 = vadd.f32 0.0, %v9324
    %v9326 = vpop.f32.mrf.mxu0
    %v9327 = vpop.f32.mrf.mxu0
    %v9328 = vadd.f32 0.0, %v9327
    %v9329 = vpop.f32.mrf.mxu0
    %9330 = vmatprep.mubr.bf16.mxu0 %v9205
    %9331 = vmatmul.mubr.bf16.gmra.mxu0 %v9204
    %v9332 = vpop.f32.mrf.mxu0
    %v9333 = vadd.f32 0.0, %v9332
    %v9334 = vpop.f32.mrf.mxu0
    %v9335 = vpop.f32.mrf.mxu0
    %v9336 = vadd.f32 0.0, %v9335
    %v9337 = vpop.f32.mrf.mxu0
    %9338 = vmatprep.mubr.bf16.mxu0 %v9207
    %9339 = vmatmul.mubr.bf16.gmra.mxu0 %v9206
    %v9340 = vpop.f32.mrf.mxu0
    %v9341 = vadd.f32 0.0, %v9340
    %v9342 = vpop.f32.mrf.mxu0
    %v9343 = vpop.f32.mrf.mxu0
    %v9344 = vadd.f32 0.0, %v9343
    %v9345 = vpop.f32.mrf.mxu0
    %9346 = vmatprep.mubr.bf16.mxu0 %v9209
    %9347 = vmatmul.mubr.bf16.gmra.mxu0 %v9208
    %v9348 = vpop.f32.mrf.mxu0
    %v9349 = vadd.f32 0.0, %v9348
    %v9350 = vpop.f32.mrf.mxu0
    %v9351 = vpop.f32.mrf.mxu0
    %v9352 = vadd.f32 0.0, %v9351
    %v9353 = vpop.f32.mrf.mxu0
    %9354 = vmatprep.mubr.bf16.mxu0 %v9211
    %9355 = vmatmul.mubr.bf16.gmra.mxu0 %v9210
    %v9356 = vpop.f32.mrf.mxu0
    %v9357 = vadd.f32 0.0, %v9356
    %v9358 = vpop.f32.mrf.mxu0
    %v9359 = vpop.f32.mrf.mxu0
    %v9360 = vadd.f32 0.0, %v9359
    %v9361 = vpop.f32.mrf.mxu0
    %9362 = vmatprep.mubr.bf16.mxu0 %v9213
    %9363 = vmatmul.mubr.bf16.gmra.mxu0 %v9212
    %v9364 = vpop.f32.mrf.mxu0
    %v9365 = vadd.f32 0.0, %v9364
    %v9366 = vpop.f32.mrf.mxu0
    %v9367 = vpop.f32.mrf.mxu0
    %v9368 = vadd.f32 0.0, %v9367
    %v9369 = vpop.f32.mrf.mxu0
    %9370 = vmatprep.mubr.bf16.mxu0 %v9215
    %9371 = vmatmul.mubr.bf16.gmra.mxu0 %v9214
    %v9372 = vpop.f32.mrf.mxu0
    %v9373 = vadd.f32 0.0, %v9372
    %v9374 = vpop.f32.mrf.mxu0
    %v9375 = vpop.f32.mrf.mxu0
    %v9376 = vadd.f32 0.0, %v9375
    %v9377 = vpop.f32.mrf.mxu0
    %9378 = vmatprep.mubr.bf16.mxu0 %v9217
    %9379 = vmatmul.mubr.bf16.gmra.mxu0 %v9216
    %v9380 = vpop.f32.mrf.mxu0
    %v9381 = vadd.f32 0.0, %v9380
    %v9382 = vpop.f32.mrf.mxu0
    %v9383 = vpop.f32.mrf.mxu0
    %v9384 = vadd.f32 0.0, %v9383
    %v9385 = vpop.f32.mrf.mxu0
    %9386 = vmatprep.mubr.bf16.mxu0 %v9219
    %9387 = vmatmul.mubr.bf16.gmra.mxu0 %v9218
    %v9388 = vpop.f32.mrf.mxu0
    %v9389 = vadd.f32 0.0, %v9388
    %v9390 = vpop.f32.mrf.mxu0
    %v9391 = vpop.f32.mrf.mxu0
    %v9392 = vadd.f32 0.0, %v9391
    %v9393 = vpop.f32.mrf.mxu0
    %9394 = vmatprep.mubr.bf16.mxu0 %v9221
    %9395 = vmatmul.mubr.bf16.gmra.mxu0 %v9220
    %v9396 = vpop.f32.mrf.mxu0
    %v9397 = vadd.f32 0.0, %v9396
    %v9398 = vpop.f32.mrf.mxu0
    %v9399 = vpop.f32.mrf.mxu0
    %v9400 = vadd.f32 0.0, %v9399
    %v9401 = vpop.f32.mrf.mxu0
    %9402 = vmatprep.mubr.bf16.mxu0 %v9223
    %9403 = vmatmul.mubr.bf16.gmra.mxu0 %v9222
    %v9404 = vpop.f32.mrf.mxu0
    %v9405 = vadd.f32 0.0, %v9404
    %v9406 = vpop.f32.mrf.mxu0
    %v9407 = vpop.f32.mrf.mxu0
    %v9408 = vadd.f32 0.0, %v9407
    %v9409 = vpop.f32.mrf.mxu0
    %9410 = vmatprep.mubr.bf16.mxu0 %v9225
    %9411 = vmatmul.mubr.bf16.gmra.mxu0 %v9224
    %v9412 = vpop.f32.mrf.mxu0
    %v9413 = vadd.f32 0.0, %v9412
    %v9414 = vpop.f32.mrf.mxu0
    %v9415 = vpop.f32.mrf.mxu0
    %v9416 = vadd.f32 0.0, %v9415
    %v9417 = vpop.f32.mrf.mxu0
    %9418 = vdwg.mxu0
    %v9451 = vunpack.c.l.b16 %v8791
    %v9452 = vunpack.c.h.b16 %v8791
    %v9453 = vunpack.c.l.b16 %v8792
    %v9454 = vunpack.c.h.b16 %v8792
    %v9455 = vunpack.c.l.b16 %v8793
    %v9456 = vunpack.c.h.b16 %v8793
    %v9457 = vunpack.c.l.b16 %v8794
    %v9458 = vunpack.c.h.b16 %v8794
    %v9459 = vunpack.c.l.b16 %v8795
    %v9460 = vunpack.c.h.b16 %v8795
    %v9461 = vunpack.c.l.b16 %v8796
    %v9462 = vunpack.c.h.b16 %v8796
    %v9463 = vunpack.c.l.b16 %v8797
    %v9464 = vunpack.c.h.b16 %v8797
    %v9465 = vunpack.c.l.b16 %v8798
    %v9466 = vunpack.c.h.b16 %v8798
    %v9467 = vunpack.c.l.b16 %v8799
    %v9468 = vunpack.c.h.b16 %v8799
    %v9469 = vunpack.c.l.b16 %v8800
    %v9470 = vunpack.c.h.b16 %v8800
    %v9471 = vunpack.c.l.b16 %v8801
    %v9472 = vunpack.c.h.b16 %v8801
    %v9473 = vunpack.c.l.b16 %v8802
    %v9474 = vunpack.c.h.b16 %v8802
    %v9475 = vunpack.c.l.b16 %v8803
    %v9476 = vunpack.c.h.b16 %v8803
    %v9477 = vunpack.c.l.b16 %v8804
    %v9478 = vunpack.c.h.b16 %v8804
    %v9479 = vunpack.c.l.b16 %v8805
    %v9480 = vunpack.c.h.b16 %v8805
    %v9481 = vunpack.c.l.b16 %v8806
    %v9482 = vunpack.c.h.b16 %v8806
    %v9483 = vunpack.c.l.b16 %v8807
    %v9484 = vunpack.c.h.b16 %v8807
    %v9485 = vunpack.c.l.b16 %v8808
    %v9486 = vunpack.c.h.b16 %v8808
    %v9487 = vunpack.c.l.b16 %v8809
    %v9488 = vunpack.c.h.b16 %v8809
    %v9489 = vunpack.c.l.b16 %v8810
    %v9490 = vunpack.c.h.b16 %v8810
    %v9491 = vunpack.c.l.b16 %v8811
    %v9492 = vunpack.c.h.b16 %v8811
    %v9493 = vunpack.c.l.b16 %v8812
    %v9494 = vunpack.c.h.b16 %v8812
    %v9495 = vunpack.c.l.b16 %v8813
    %v9496 = vunpack.c.h.b16 %v8813
    %v9497 = vunpack.c.l.b16 %v8814
    %v9498 = vunpack.c.h.b16 %v8814
    %v9499 = vunpack.c.l.b16 %v8815
    %v9500 = vunpack.c.h.b16 %v8815
    %v9501 = vunpack.c.l.b16 %v8816
    %v9502 = vunpack.c.h.b16 %v8816
    %v9503 = vunpack.c.l.b16 %v8817
    %v9504 = vunpack.c.h.b16 %v8817
    %v9505 = vunpack.c.l.b16 %v8818
    %v9506 = vunpack.c.h.b16 %v8818
    %v9507 = vunpack.c.l.b16 %v8819
    %v9508 = vunpack.c.h.b16 %v8819
    %v9509 = vunpack.c.l.b16 %v8820
    %v9510 = vunpack.c.h.b16 %v8820
    %v9511 = vunpack.c.l.b16 %v8821
    %v9512 = vunpack.c.h.b16 %v8821
    %v9513 = vunpack.c.l.b16 %v8822
    %v9514 = vunpack.c.h.b16 %v8822
    %v9515 = vpack.c.b16 %v9453, %v9451
    %v9516 = vpack.c.b16 %v9454, %v9452
    %v9517 = vpack.c.b16 %v9457, %v9455
    %v9518 = vpack.c.b16 %v9458, %v9456
    %v9519 = vpack.c.b16 %v9461, %v9459
    %v9520 = vpack.c.b16 %v9462, %v9460
    %v9521 = vpack.c.b16 %v9465, %v9463
    %v9522 = vpack.c.b16 %v9466, %v9464
    %v9523 = vpack.c.b16 %v9469, %v9467
    %v9524 = vpack.c.b16 %v9470, %v9468
    %v9525 = vpack.c.b16 %v9473, %v9471
    %v9526 = vpack.c.b16 %v9474, %v9472
    %v9527 = vpack.c.b16 %v9477, %v9475
    %v9528 = vpack.c.b16 %v9478, %v9476
    %v9529 = vpack.c.b16 %v9481, %v9479
    %v9530 = vpack.c.b16 %v9482, %v9480
    %v9531 = vpack.c.b16 %v9485, %v9483
    %v9532 = vpack.c.b16 %v9486, %v9484
    %v9533 = vpack.c.b16 %v9489, %v9487
    %v9534 = vpack.c.b16 %v9490, %v9488
    %v9535 = vpack.c.b16 %v9493, %v9491
    %v9536 = vpack.c.b16 %v9494, %v9492
    %v9537 = vpack.c.b16 %v9497, %v9495
    %v9538 = vpack.c.b16 %v9498, %v9496
    %v9539 = vpack.c.b16 %v9501, %v9499
    %v9540 = vpack.c.b16 %v9502, %v9500
    %v9541 = vpack.c.b16 %v9505, %v9503
    %v9542 = vpack.c.b16 %v9506, %v9504
    %v9543 = vpack.c.b16 %v9509, %v9507
    %v9544 = vpack.c.b16 %v9510, %v9508
    %v9545 = vpack.c.b16 %v9513, %v9511
    %v9546 = vpack.c.b16 %v9514, %v9512
    %9579 = vmatprep.subr.bf16.mxu0 0
    %9580 = vmatpush1.bf16.msra.mxu0 %v8781
    %9581 = vmatprep.subr.bf16.mxu0 0
    %9582 = vmatpush1.bf16.msra.mxu0 %v8780
    %9583 = vmatprep.subr.bf16.mxu0 0
    %9584 = vmatpush1.bf16.msra.mxu0 %v8779
    %9585 = vmatprep.subr.bf16.mxu0 0
    %9586 = vmatpush1.bf16.msra.mxu0 %v8778
    %9587 = vmatprep.subr.bf16.mxu0 0
    %9588 = vmatpush1.bf16.msra.mxu0 %v8777
    %9589 = vmatprep.subr.bf16.mxu0 0
    %9590 = vmatpush1.bf16.msra.mxu0 %v8776
    %9591 = vmatprep.subr.bf16.mxu0 0
    %9592 = vmatpush1.bf16.msra.mxu0 %v8775
    %9593 = vmatprep.subr.bf16.mxu0 0
    %9594 = vmatpush1.bf16.msra.mxu0 %v8774
    %9595 = vmatprep.subr.bf16.mxu0 0
    %9596 = vmatpush2.bf16.msra.mxu0 %v8789
    %9597 = vmatprep.subr.bf16.mxu0 0
    %9598 = vmatpush2.bf16.msra.mxu0 %v8788
    %9599 = vmatprep.subr.bf16.mxu0 0
    %9600 = vmatpush2.bf16.msra.mxu0 %v8787
    %9601 = vmatprep.subr.bf16.mxu0 0
    %9602 = vmatpush2.bf16.msra.mxu0 %v8786
    %9603 = vmatprep.subr.bf16.mxu0 0
    %9604 = vmatpush2.bf16.msra.mxu0 %v8785
    %9605 = vmatprep.subr.bf16.mxu0 0
    %9606 = vmatpush2.bf16.msra.mxu0 %v8784
    %9607 = vmatprep.subr.bf16.mxu0 0
    %9608 = vmatpush2.bf16.msra.mxu0 %v8783
    %9609 = vmatprep.subr.bf16.mxu0 0
    %9610 = vmatpush2.bf16.msra.mxu0 %v8782
    %9611 = vmatprep.mubr.bf16.mxu0 %v9516
    %9612 = vmatmul.mubr.bf16.gmra.mxu0 %v9515
    %v9613 = vpop.f32.mrf.mxu0
    %v9614 = vadd.f32 %v9293, %v9613
    %v9615 = vpop.f32.mrf.mxu0
    %v9616 = vpop.f32.mrf.mxu0
    %v9617 = vadd.f32 %v9296, %v9616
    %v9618 = vpop.f32.mrf.mxu0
    %9619 = vmatprep.mubr.bf16.mxu0 %v9518
    %9620 = vmatmul.mubr.bf16.gmra.mxu0 %v9517
    %v9621 = vpop.f32.mrf.mxu0
    %v9622 = vadd.f32 %v9301, %v9621
    %v9623 = vpop.f32.mrf.mxu0
    %v9624 = vpop.f32.mrf.mxu0
    %v9625 = vadd.f32 %v9304, %v9624
    %v9626 = vpop.f32.mrf.mxu0
    %9627 = vmatprep.mubr.bf16.mxu0 %v9520
    %9628 = vmatmul.mubr.bf16.gmra.mxu0 %v9519
    %v9629 = vpop.f32.mrf.mxu0
    %v9630 = vadd.f32 %v9309, %v9629
    %v9631 = vpop.f32.mrf.mxu0
    %v9632 = vpop.f32.mrf.mxu0
    %v9633 = vadd.f32 %v9312, %v9632
    %v9634 = vpop.f32.mrf.mxu0
    %9635 = vmatprep.mubr.bf16.mxu0 %v9522
    %9636 = vmatmul.mubr.bf16.gmra.mxu0 %v9521
    %v9637 = vpop.f32.mrf.mxu0
    %v9638 = vadd.f32 %v9317, %v9637
    %v9639 = vpop.f32.mrf.mxu0
    %v9640 = vpop.f32.mrf.mxu0
    %v9641 = vadd.f32 %v9320, %v9640
    %v9642 = vpop.f32.mrf.mxu0
    %9643 = vmatprep.mubr.bf16.mxu0 %v9524
    %9644 = vmatmul.mubr.bf16.gmra.mxu0 %v9523
    %v9645 = vpop.f32.mrf.mxu0
    %v9646 = vadd.f32 %v9325, %v9645
    %v9647 = vpop.f32.mrf.mxu0
    %v9648 = vpop.f32.mrf.mxu0
    %v9649 = vadd.f32 %v9328, %v9648
    %v9650 = vpop.f32.mrf.mxu0
    %9651 = vmatprep.mubr.bf16.mxu0 %v9526
    %9652 = vmatmul.mubr.bf16.gmra.mxu0 %v9525
    %v9653 = vpop.f32.mrf.mxu0
    %v9654 = vadd.f32 %v9333, %v9653
    %v9655 = vpop.f32.mrf.mxu0
    %v9656 = vpop.f32.mrf.mxu0
    %v9657 = vadd.f32 %v9336, %v9656
    %v9658 = vpop.f32.mrf.mxu0
    %9659 = vmatprep.mubr.bf16.mxu0 %v9528
    %9660 = vmatmul.mubr.bf16.gmra.mxu0 %v9527
    %v9661 = vpop.f32.mrf.mxu0
    %v9662 = vadd.f32 %v9341, %v9661
    %v9663 = vpop.f32.mrf.mxu0
    %v9664 = vpop.f32.mrf.mxu0
    %v9665 = vadd.f32 %v9344, %v9664
    %v9666 = vpop.f32.mrf.mxu0
    %9667 = vmatprep.mubr.bf16.mxu0 %v9530
    %9668 = vmatmul.mubr.bf16.gmra.mxu0 %v9529
    %v9669 = vpop.f32.mrf.mxu0
    %v9670 = vadd.f32 %v9349, %v9669
    %v9671 = vpop.f32.mrf.mxu0
    %v9672 = vpop.f32.mrf.mxu0
    %v9673 = vadd.f32 %v9352, %v9672
    %v9674 = vpop.f32.mrf.mxu0
    %9675 = vmatprep.mubr.bf16.mxu0 %v9532
    %9676 = vmatmul.mubr.bf16.gmra.mxu0 %v9531
    %v9677 = vpop.f32.mrf.mxu0
    %v9678 = vadd.f32 %v9357, %v9677
    %v9679 = vpop.f32.mrf.mxu0
    %v9680 = vpop.f32.mrf.mxu0
    %v9681 = vadd.f32 %v9360, %v9680
    %v9682 = vpop.f32.mrf.mxu0
    %9683 = vmatprep.mubr.bf16.mxu0 %v9534
    %9684 = vmatmul.mubr.bf16.gmra.mxu0 %v9533
    %v9685 = vpop.f32.mrf.mxu0
    %v9686 = vadd.f32 %v9365, %v9685
    %v9687 = vpop.f32.mrf.mxu0
    %v9688 = vpop.f32.mrf.mxu0
    %v9689 = vadd.f32 %v9368, %v9688
    %v9690 = vpop.f32.mrf.mxu0
    %9691 = vmatprep.mubr.bf16.mxu0 %v9536
    %9692 = vmatmul.mubr.bf16.gmra.mxu0 %v9535
    %v9693 = vpop.f32.mrf.mxu0
    %v9694 = vadd.f32 %v9373, %v9693
    %v9695 = vpop.f32.mrf.mxu0
    %v9696 = vpop.f32.mrf.mxu0
    %v9697 = vadd.f32 %v9376, %v9696
    %v9698 = vpop.f32.mrf.mxu0
    %9699 = vmatprep.mubr.bf16.mxu0 %v9538
    %9700 = vmatmul.mubr.bf16.gmra.mxu0 %v9537
    %v9701 = vpop.f32.mrf.mxu0
    %v9702 = vadd.f32 %v9381, %v9701
    %v9703 = vpop.f32.mrf.mxu0
    %v9704 = vpop.f32.mrf.mxu0
    %v9705 = vadd.f32 %v9384, %v9704
    %v9706 = vpop.f32.mrf.mxu0
    %9707 = vmatprep.mubr.bf16.mxu0 %v9540
    %9708 = vmatmul.mubr.bf16.gmra.mxu0 %v9539
    %v9709 = vpop.f32.mrf.mxu0
    %v9710 = vadd.f32 %v9389, %v9709
    %v9711 = vpop.f32.mrf.mxu0
    %v9712 = vpop.f32.mrf.mxu0
    %v9713 = vadd.f32 %v9392, %v9712
    %v9714 = vpop.f32.mrf.mxu0
    %9715 = vmatprep.mubr.bf16.mxu0 %v9542
    %9716 = vmatmul.mubr.bf16.gmra.mxu0 %v9541
    %v9717 = vpop.f32.mrf.mxu0
    %v9718 = vadd.f32 %v9397, %v9717
    %v9719 = vpop.f32.mrf.mxu0
    %v9720 = vpop.f32.mrf.mxu0
    %v9721 = vadd.f32 %v9400, %v9720
    %v9722 = vpop.f32.mrf.mxu0
    %9723 = vmatprep.mubr.bf16.mxu0 %v9544
    %9724 = vmatmul.mubr.bf16.gmra.mxu0 %v9543
    %v9725 = vpop.f32.mrf.mxu0
    %v9726 = vadd.f32 %v9405, %v9725
    %v9727 = vpop.f32.mrf.mxu0
    %v9728 = vpop.f32.mrf.mxu0
    %v9729 = vadd.f32 %v9408, %v9728
    %v9730 = vpop.f32.mrf.mxu0
    %9731 = vmatprep.mubr.bf16.mxu0 %v9546
    %9732 = vmatmul.mubr.bf16.gmra.mxu0 %v9545
    %v9733 = vpop.f32.mrf.mxu0
    %v9734 = vadd.f32 %v9413, %v9733
    %v9735 = vpop.f32.mrf.mxu0
    %v9736 = vpop.f32.mrf.mxu0
    %v9737 = vadd.f32 %v9416, %v9736
    %v9738 = vpop.f32.mrf.mxu0
    %9739 = vdwg.mxu0
    %s9740 = scalar_lea.vmem [#allocation4], 896
    %v9741 = vld [vmem:[%s9740] sm:$0xf]
    %v9742 = vld [vmem:[%s9740 + $0x4] sm:$0xf]
    %v9743 = vld [vmem:[%s9740 + $0x8] sm:$0xf]
    %v9744 = vld [vmem:[%s9740 + $0xc] sm:$0xf]
    %v9745 = vld [vmem:[%s9740 + $0x10] sm:$0xf]
    %v9746 = vld [vmem:[%s9740 + $0x14] sm:$0xf]
    %v9747 = vld [vmem:[%s9740 + $0x18] sm:$0xf]
    %v9748 = vld [vmem:[%s9740 + $0x1c] sm:$0xf]
    %v9749 = vld [vmem:[%s9740 + $0x20] sm:$0xf]
    %v9750 = vld [vmem:[%s9740 + $0x24] sm:$0xf]
    %v9751 = vld [vmem:[%s9740 + $0x28] sm:$0xf]
    %v9752 = vld [vmem:[%s9740 + $0x2c] sm:$0xf]
    %v9753 = vld [vmem:[%s9740 + $0x30] sm:$0xf]
    %v9754 = vld [vmem:[%s9740 + $0x34] sm:$0xf]
    %v9755 = vld [vmem:[%s9740 + $0x38] sm:$0xf]
    %v9756 = vld [vmem:[%s9740 + $0x3c] sm:$0xf]
    %v9773 = vunpack.c.l.b16 %v9741
    %v9774 = vunpack.c.l.b16 %v9742
    %v9775 = vunpack.c.l.b16 %v9743
    %v9776 = vunpack.c.l.b16 %v9744
    %v9777 = vunpack.c.l.b16 %v9745
    %v9778 = vunpack.c.l.b16 %v9746
    %v9779 = vunpack.c.l.b16 %v9747
    %v9780 = vunpack.c.l.b16 %v9748
    %v9781 = vunpack.c.l.b16 %v9749
    %v9782 = vunpack.c.l.b16 %v9750
    %v9783 = vunpack.c.l.b16 %v9751
    %v9784 = vunpack.c.l.b16 %v9752
    %v9785 = vunpack.c.l.b16 %v9753
    %v9786 = vunpack.c.l.b16 %v9754
    %v9787 = vunpack.c.l.b16 %v9755
    %v9788 = vunpack.c.l.b16 %v9756
    %v9789 = vpack.c.b16 %v9774, %v9773
    %v9790 = vpack.c.b16 %v9776, %v9775
    %v9791 = vpack.c.b16 %v9778, %v9777
    %v9792 = vpack.c.b16 %v9780, %v9779
    %v9793 = vpack.c.b16 %v9782, %v9781
    %v9794 = vpack.c.b16 %v9784, %v9783
    %v9795 = vpack.c.b16 %v9786, %v9785
    %v9796 = vpack.c.b16 %v9788, %v9787
    %9805 = vmatprep.subr.bf16.mxu0 0
    %9806 = vmatpush1.bf16.msra.mxu0 %v9796
    %9807 = vmatprep.subr.bf16.mxu0 0
    %9808 = vmatpush1.bf16.msra.mxu0 %v9795
    %9809 = vmatprep.subr.bf16.mxu0 0
    %9810 = vmatpush1.bf16.msra.mxu0 %v9794
    %9811 = vmatprep.subr.bf16.mxu0 0
    %9812 = vmatpush1.bf16.msra.mxu0 %v9793
    %9813 = vmatprep.subr.bf16.mxu0 0
    %9814 = vmatpush1.bf16.msra.mxu0 %v9792
    %9815 = vmatprep.subr.bf16.mxu0 0
    %9816 = vmatpush1.bf16.msra.mxu0 %v9791
    %9817 = vmatprep.subr.bf16.mxu0 0
    %9818 = vmatpush1.bf16.msra.mxu0 %v9790
    %9819 = vmatprep.subr.bf16.mxu0 0
    %9820 = vmatpush1.bf16.msra.mxu0 %v9789
    %9821 = vmatprep.subr.bf16.mxu0 0
    %9822 = vmatpush2.bf16.msra.mxu0 0
    %9823 = vmatprep.subr.bf16.mxu0 0
    %9824 = vmatpush2.bf16.msra.mxu0 0
    %9825 = vmatprep.subr.bf16.mxu0 0
    %9826 = vmatpush2.bf16.msra.mxu0 0
    %9827 = vmatprep.subr.bf16.mxu0 0
    %9828 = vmatpush2.bf16.msra.mxu0 0
    %9829 = vmatprep.subr.bf16.mxu0 0
    %9830 = vmatpush2.bf16.msra.mxu0 0
    %9831 = vmatprep.subr.bf16.mxu0 0
    %9832 = vmatpush2.bf16.msra.mxu0 0
    %9833 = vmatprep.subr.bf16.mxu0 0
    %9834 = vmatpush2.bf16.msra.mxu0 0
    %9835 = vmatprep.subr.bf16.mxu0 0
    %9836 = vmatpush2.bf16.msra.mxu0 0
    %9837 = vmatprep.mubr.bf16.mxu0 0
    %9838 = vmatmul.mubr.bf16.gmra.mxu0 %v8532
    %v9839 = vpop.f32.mrf.mxu0
    %v9840 = vadd.f32 0.0, %v9839
    %v9841 = vpop.f32.mrf.mxu0
    %v9842 = vpop.f32.mrf.mxu0
    %v9843 = vadd.f32 0.0, %v9842
    %v9844 = vpop.f32.mrf.mxu0
    %9845 = vmatprep.mubr.bf16.mxu0 0
    %9846 = vmatmul.mubr.bf16.gmra.mxu0 %v8533
    %v9847 = vpop.f32.mrf.mxu0
    %v9848 = vadd.f32 0.0, %v9847
    %v9849 = vpop.f32.mrf.mxu0
    %v9850 = vpop.f32.mrf.mxu0
    %v9851 = vadd.f32 0.0, %v9850
    %v9852 = vpop.f32.mrf.mxu0
    %9853 = vmatprep.mubr.bf16.mxu0 0
    %9854 = vmatmul.mubr.bf16.gmra.mxu0 %v8534
    %v9855 = vpop.f32.mrf.mxu0
    %v9856 = vadd.f32 0.0, %v9855
    %v9857 = vpop.f32.mrf.mxu0
    %v9858 = vpop.f32.mrf.mxu0
    %v9859 = vadd.f32 0.0, %v9858
    %v9860 = vpop.f32.mrf.mxu0
    %9861 = vmatprep.mubr.bf16.mxu0 0
    %9862 = vmatmul.mubr.bf16.gmra.mxu0 %v8535
    %v9863 = vpop.f32.mrf.mxu0
    %v9864 = vadd.f32 0.0, %v9863
    %v9865 = vpop.f32.mrf.mxu0
    %v9866 = vpop.f32.mrf.mxu0
    %v9867 = vadd.f32 0.0, %v9866
    %v9868 = vpop.f32.mrf.mxu0
    %9869 = vmatprep.mubr.bf16.mxu0 0
    %9870 = vmatmul.mubr.bf16.gmra.mxu0 %v8536
    %v9871 = vpop.f32.mrf.mxu0
    %v9872 = vadd.f32 0.0, %v9871
    %v9873 = vpop.f32.mrf.mxu0
    %v9874 = vpop.f32.mrf.mxu0
    %v9875 = vadd.f32 0.0, %v9874
    %v9876 = vpop.f32.mrf.mxu0
    %9877 = vmatprep.mubr.bf16.mxu0 0
    %9878 = vmatmul.mubr.bf16.gmra.mxu0 %v8537
    %v9879 = vpop.f32.mrf.mxu0
    %v9880 = vadd.f32 0.0, %v9879
    %v9881 = vpop.f32.mrf.mxu0
    %v9882 = vpop.f32.mrf.mxu0
    %v9883 = vadd.f32 0.0, %v9882
    %v9884 = vpop.f32.mrf.mxu0
    %9885 = vmatprep.mubr.bf16.mxu0 0
    %9886 = vmatmul.mubr.bf16.gmra.mxu0 %v8538
    %v9887 = vpop.f32.mrf.mxu0
    %v9888 = vadd.f32 0.0, %v9887
    %v9889 = vpop.f32.mrf.mxu0
    %v9890 = vpop.f32.mrf.mxu0
    %v9891 = vadd.f32 0.0, %v9890
    %v9892 = vpop.f32.mrf.mxu0
    %9893 = vmatprep.mubr.bf16.mxu0 0
    %9894 = vmatmul.mubr.bf16.gmra.mxu0 %v8539
    %v9895 = vpop.f32.mrf.mxu0
    %v9896 = vadd.f32 0.0, %v9895
    %v9897 = vpop.f32.mrf.mxu0
    %v9898 = vpop.f32.mrf.mxu0
    %v9899 = vadd.f32 0.0, %v9898
    %v9900 = vpop.f32.mrf.mxu0
    %9901 = vmatprep.mubr.bf16.mxu0 0
    %9902 = vmatmul.mubr.bf16.gmra.mxu0 %v8540
    %v9903 = vpop.f32.mrf.mxu0
    %v9904 = vadd.f32 0.0, %v9903
    %v9905 = vpop.f32.mrf.mxu0
    %v9906 = vpop.f32.mrf.mxu0
    %v9907 = vadd.f32 0.0, %v9906
    %v9908 = vpop.f32.mrf.mxu0
    %9909 = vmatprep.mubr.bf16.mxu0 0
    %9910 = vmatmul.mubr.bf16.gmra.mxu0 %v8541
    %v9911 = vpop.f32.mrf.mxu0
    %v9912 = vadd.f32 0.0, %v9911
    %v9913 = vpop.f32.mrf.mxu0
    %v9914 = vpop.f32.mrf.mxu0
    %v9915 = vadd.f32 0.0, %v9914
    %v9916 = vpop.f32.mrf.mxu0
    %9917 = vmatprep.mubr.bf16.mxu0 0
    %9918 = vmatmul.mubr.bf16.gmra.mxu0 %v8542
    %v9919 = vpop.f32.mrf.mxu0
    %v9920 = vadd.f32 0.0, %v9919
    %v9921 = vpop.f32.mrf.mxu0
    %v9922 = vpop.f32.mrf.mxu0
    %v9923 = vadd.f32 0.0, %v9922
    %v9924 = vpop.f32.mrf.mxu0
    %9925 = vmatprep.mubr.bf16.mxu0 0
    %9926 = vmatmul.mubr.bf16.gmra.mxu0 %v8543
    %v9927 = vpop.f32.mrf.mxu0
    %v9928 = vadd.f32 0.0, %v9927
    %v9929 = vpop.f32.mrf.mxu0
    %v9930 = vpop.f32.mrf.mxu0
    %v9931 = vadd.f32 0.0, %v9930
    %v9932 = vpop.f32.mrf.mxu0
    %9933 = vmatprep.mubr.bf16.mxu0 0
    %9934 = vmatmul.mubr.bf16.gmra.mxu0 %v8544
    %v9935 = vpop.f32.mrf.mxu0
    %v9936 = vadd.f32 0.0, %v9935
    %v9937 = vpop.f32.mrf.mxu0
    %v9938 = vpop.f32.mrf.mxu0
    %v9939 = vadd.f32 0.0, %v9938
    %v9940 = vpop.f32.mrf.mxu0
    %9941 = vmatprep.mubr.bf16.mxu0 0
    %9942 = vmatmul.mubr.bf16.gmra.mxu0 %v8545
    %v9943 = vpop.f32.mrf.mxu0
    %v9944 = vadd.f32 0.0, %v9943
    %v9945 = vpop.f32.mrf.mxu0
    %v9946 = vpop.f32.mrf.mxu0
    %v9947 = vadd.f32 0.0, %v9946
    %v9948 = vpop.f32.mrf.mxu0
    %9949 = vmatprep.mubr.bf16.mxu0 0
    %9950 = vmatmul.mubr.bf16.gmra.mxu0 %v8546
    %v9951 = vpop.f32.mrf.mxu0
    %v9952 = vadd.f32 0.0, %v9951
    %v9953 = vpop.f32.mrf.mxu0
    %v9954 = vpop.f32.mrf.mxu0
    %v9955 = vadd.f32 0.0, %v9954
    %v9956 = vpop.f32.mrf.mxu0
    %9957 = vmatprep.mubr.bf16.mxu0 0
    %9958 = vmatmul.mubr.bf16.gmra.mxu0 %v8547
    %v9959 = vpop.f32.mrf.mxu0
    %v9960 = vadd.f32 0.0, %v9959
    %v9961 = vpop.f32.mrf.mxu0
    %v9962 = vpop.f32.mrf.mxu0
    %v9963 = vadd.f32 0.0, %v9962
    %v9964 = vpop.f32.mrf.mxu0
    %9965 = vdwg.mxu0
    %v9966 = vpack.c.bf16 %v9843, %v9840
    %v9967 = vpack.c.bf16 %v9851, %v9848
    %v9968 = vpack.c.bf16 %v9859, %v9856
    %v9969 = vpack.c.bf16 %v9867, %v9864
    %v9970 = vpack.c.bf16 %v9875, %v9872
    %v9971 = vpack.c.bf16 %v9883, %v9880
    %v9972 = vpack.c.bf16 %v9891, %v9888
    %v9973 = vpack.c.bf16 %v9899, %v9896
    %v9974 = vpack.c.bf16 %v9907, %v9904
    %v9975 = vpack.c.bf16 %v9915, %v9912
    %v9976 = vpack.c.bf16 %v9923, %v9920
    %v9977 = vpack.c.bf16 %v9931, %v9928
    %v9978 = vpack.c.bf16 %v9939, %v9936
    %v9979 = vpack.c.bf16 %v9947, %v9944
    %v9980 = vpack.c.bf16 %v9955, %v9952
    %v9981 = vpack.c.bf16 %v9963, %v9960
    %s9982 = scalar_lea.vmem [#allocation2], 3584
    %v9983 = vld [vmem:[%s9982] sm:$0xff]
    %v9984 = vld [vmem:[%s9982 + $0x8] sm:$0xff]
    %v9985 = vld [vmem:[%s9982 + $0x10] sm:$0xff]
    %v9986 = vld [vmem:[%s9982 + $0x18] sm:$0xff]
    %v9987 = vld [vmem:[%s9982 + $0x20] sm:$0xff]
    %v9988 = vld [vmem:[%s9982 + $0x28] sm:$0xff]
    %v9989 = vld [vmem:[%s9982 + $0x30] sm:$0xff]
    %v9990 = vld [vmem:[%s9982 + $0x38] sm:$0xff]
    %v9991 = vld [vmem:[%s9982 + $0x40] sm:$0xff]
    %v9992 = vld [vmem:[%s9982 + $0x48] sm:$0xff]
    %v9993 = vld [vmem:[%s9982 + $0x50] sm:$0xff]
    %v9994 = vld [vmem:[%s9982 + $0x58] sm:$0xff]
    %v9995 = vld [vmem:[%s9982 + $0x60] sm:$0xff]
    %v9996 = vld [vmem:[%s9982 + $0x68] sm:$0xff]
    %v9997 = vld [vmem:[%s9982 + $0x70] sm:$0xff]
    %v9998 = vld [vmem:[%s9982 + $0x78] sm:$0xff]
    %v9999 = vld [vmem:[%s9982 + $0x80] sm:$0xff]
    %v10000 = vld [vmem:[%s9982 + $0x88] sm:$0xff]
    %v10001 = vld [vmem:[%s9982 + $0x90] sm:$0xff]
    %v10002 = vld [vmem:[%s9982 + $0x98] sm:$0xff]
    %v10003 = vld [vmem:[%s9982 + $0xa0] sm:$0xff]
    %v10004 = vld [vmem:[%s9982 + $0xa8] sm:$0xff]
    %v10005 = vld [vmem:[%s9982 + $0xb0] sm:$0xff]
    %v10006 = vld [vmem:[%s9982 + $0xb8] sm:$0xff]
    %v10007 = vld [vmem:[%s9982 + $0xc0] sm:$0xff]
    %v10008 = vld [vmem:[%s9982 + $0xc8] sm:$0xff]
    %v10009 = vld [vmem:[%s9982 + $0xd0] sm:$0xff]
    %v10010 = vld [vmem:[%s9982 + $0xd8] sm:$0xff]
    %v10011 = vld [vmem:[%s9982 + $0xe0] sm:$0xff]
    %v10012 = vld [vmem:[%s9982 + $0xe8] sm:$0xff]
    %v10013 = vld [vmem:[%s9982 + $0xf0] sm:$0xff]
    %v10014 = vld [vmem:[%s9982 + $0xf8] sm:$0xff]
    %v10047 = vunpack.c.l.b16 %v9983
    %v10048 = vunpack.c.h.b16 %v9983
    %v10049 = vunpack.c.l.b16 %v9984
    %v10050 = vunpack.c.h.b16 %v9984
    %v10051 = vunpack.c.l.b16 %v9985
    %v10052 = vunpack.c.h.b16 %v9985
    %v10053 = vunpack.c.l.b16 %v9986
    %v10054 = vunpack.c.h.b16 %v9986
    %v10055 = vunpack.c.l.b16 %v9987
    %v10056 = vunpack.c.h.b16 %v9987
    %v10057 = vunpack.c.l.b16 %v9988
    %v10058 = vunpack.c.h.b16 %v9988
    %v10059 = vunpack.c.l.b16 %v9989
    %v10060 = vunpack.c.h.b16 %v9989
    %v10061 = vunpack.c.l.b16 %v9990
    %v10062 = vunpack.c.h.b16 %v9990
    %v10063 = vunpack.c.l.b16 %v9991
    %v10064 = vunpack.c.h.b16 %v9991
    %v10065 = vunpack.c.l.b16 %v9992
    %v10066 = vunpack.c.h.b16 %v9992
    %v10067 = vunpack.c.l.b16 %v9993
    %v10068 = vunpack.c.h.b16 %v9993
    %v10069 = vunpack.c.l.b16 %v9994
    %v10070 = vunpack.c.h.b16 %v9994
    %v10071 = vunpack.c.l.b16 %v9995
    %v10072 = vunpack.c.h.b16 %v9995
    %v10073 = vunpack.c.l.b16 %v9996
    %v10074 = vunpack.c.h.b16 %v9996
    %v10075 = vunpack.c.l.b16 %v9997
    %v10076 = vunpack.c.h.b16 %v9997
    %v10077 = vunpack.c.l.b16 %v9998
    %v10078 = vunpack.c.h.b16 %v9998
    %v10079 = vunpack.c.l.b16 %v9999
    %v10080 = vunpack.c.h.b16 %v9999
    %v10081 = vunpack.c.l.b16 %v10000
    %v10082 = vunpack.c.h.b16 %v10000
    %v10083 = vunpack.c.l.b16 %v10001
    %v10084 = vunpack.c.h.b16 %v10001
    %v10085 = vunpack.c.l.b16 %v10002
    %v10086 = vunpack.c.h.b16 %v10002
    %v10087 = vunpack.c.l.b16 %v10003
    %v10088 = vunpack.c.h.b16 %v10003
    %v10089 = vunpack.c.l.b16 %v10004
    %v10090 = vunpack.c.h.b16 %v10004
    %v10091 = vunpack.c.l.b16 %v10005
    %v10092 = vunpack.c.h.b16 %v10005
    %v10093 = vunpack.c.l.b16 %v10006
    %v10094 = vunpack.c.h.b16 %v10006
    %v10095 = vunpack.c.l.b16 %v10007
    %v10096 = vunpack.c.h.b16 %v10007
    %v10097 = vunpack.c.l.b16 %v10008
    %v10098 = vunpack.c.h.b16 %v10008
    %v10099 = vunpack.c.l.b16 %v10009
    %v10100 = vunpack.c.h.b16 %v10009
    %v10101 = vunpack.c.l.b16 %v10010
    %v10102 = vunpack.c.h.b16 %v10010
    %v10103 = vunpack.c.l.b16 %v10011
    %v10104 = vunpack.c.h.b16 %v10011
    %v10105 = vunpack.c.l.b16 %v10012
    %v10106 = vunpack.c.h.b16 %v10012
    %v10107 = vunpack.c.l.b16 %v10013
    %v10108 = vunpack.c.h.b16 %v10013
    %v10109 = vunpack.c.l.b16 %v10014
    %v10110 = vunpack.c.h.b16 %v10014
    %v10111 = vpack.c.b16 %v10049, %v10047
    %v10112 = vpack.c.b16 %v10050, %v10048
    %v10113 = vpack.c.b16 %v10053, %v10051
    %v10114 = vpack.c.b16 %v10054, %v10052
    %v10115 = vpack.c.b16 %v10057, %v10055
    %v10116 = vpack.c.b16 %v10058, %v10056
    %v10117 = vpack.c.b16 %v10061, %v10059
    %v10118 = vpack.c.b16 %v10062, %v10060
    %v10119 = vpack.c.b16 %v10065, %v10063
    %v10120 = vpack.c.b16 %v10066, %v10064
    %v10121 = vpack.c.b16 %v10069, %v10067
    %v10122 = vpack.c.b16 %v10070, %v10068
    %v10123 = vpack.c.b16 %v10073, %v10071
    %v10124 = vpack.c.b16 %v10074, %v10072
    %v10125 = vpack.c.b16 %v10077, %v10075
    %v10126 = vpack.c.b16 %v10078, %v10076
    %v10127 = vpack.c.b16 %v10081, %v10079
    %v10128 = vpack.c.b16 %v10082, %v10080
    %v10129 = vpack.c.b16 %v10085, %v10083
    %v10130 = vpack.c.b16 %v10086, %v10084
    %v10131 = vpack.c.b16 %v10089, %v10087
    %v10132 = vpack.c.b16 %v10090, %v10088
    %v10133 = vpack.c.b16 %v10093, %v10091
    %v10134 = vpack.c.b16 %v10094, %v10092
    %v10135 = vpack.c.b16 %v10097, %v10095
    %v10136 = vpack.c.b16 %v10098, %v10096
    %v10137 = vpack.c.b16 %v10101, %v10099
    %v10138 = vpack.c.b16 %v10102, %v10100
    %v10139 = vpack.c.b16 %v10105, %v10103
    %v10140 = vpack.c.b16 %v10106, %v10104
    %v10141 = vpack.c.b16 %v10109, %v10107
    %v10142 = vpack.c.b16 %v10110, %v10108
    %10175 = vmatprep.subr.bf16.mxu0 0
    %10176 = vmatpush1.bf16.msra.mxu0 %v9973
    %10177 = vmatprep.subr.bf16.mxu0 0
    %10178 = vmatpush1.bf16.msra.mxu0 %v9972
    %10179 = vmatprep.subr.bf16.mxu0 0
    %10180 = vmatpush1.bf16.msra.mxu0 %v9971
    %10181 = vmatprep.subr.bf16.mxu0 0
    %10182 = vmatpush1.bf16.msra.mxu0 %v9970
    %10183 = vmatprep.subr.bf16.mxu0 0
    %10184 = vmatpush1.bf16.msra.mxu0 %v9969
    %10185 = vmatprep.subr.bf16.mxu0 0
    %10186 = vmatpush1.bf16.msra.mxu0 %v9968
    %10187 = vmatprep.subr.bf16.mxu0 0
    %10188 = vmatpush1.bf16.msra.mxu0 %v9967
    %10189 = vmatprep.subr.bf16.mxu0 0
    %10190 = vmatpush1.bf16.msra.mxu0 %v9966
    %10191 = vmatprep.subr.bf16.mxu0 0
    %10192 = vmatpush2.bf16.msra.mxu0 %v9981
    %10193 = vmatprep.subr.bf16.mxu0 0
    %10194 = vmatpush2.bf16.msra.mxu0 %v9980
    %10195 = vmatprep.subr.bf16.mxu0 0
    %10196 = vmatpush2.bf16.msra.mxu0 %v9979
    %10197 = vmatprep.subr.bf16.mxu0 0
    %10198 = vmatpush2.bf16.msra.mxu0 %v9978
    %10199 = vmatprep.subr.bf16.mxu0 0
    %10200 = vmatpush2.bf16.msra.mxu0 %v9977
    %10201 = vmatprep.subr.bf16.mxu0 0
    %10202 = vmatpush2.bf16.msra.mxu0 %v9976
    %10203 = vmatprep.subr.bf16.mxu0 0
    %10204 = vmatpush2.bf16.msra.mxu0 %v9975
    %10205 = vmatprep.subr.bf16.mxu0 0
    %10206 = vmatpush2.bf16.msra.mxu0 %v9974
    %10207 = vmatprep.mubr.bf16.mxu0 %v10112
    %10208 = vmatmul.mubr.bf16.gmra.mxu0 %v10111
    %v10209 = vpop.f32.mrf.mxu0
    %v10210 = vadd.f32 0.0, %v10209
    %v10211 = vpop.f32.mrf.mxu0
    %v10212 = vpop.f32.mrf.mxu0
    %v10213 = vadd.f32 0.0, %v10212
    %v10214 = vpop.f32.mrf.mxu0
    %10215 = vmatprep.mubr.bf16.mxu0 %v10114
    %10216 = vmatmul.mubr.bf16.gmra.mxu0 %v10113
    %v10217 = vpop.f32.mrf.mxu0
    %v10218 = vadd.f32 0.0, %v10217
    %v10219 = vpop.f32.mrf.mxu0
    %v10220 = vpop.f32.mrf.mxu0
    %v10221 = vadd.f32 0.0, %v10220
    %v10222 = vpop.f32.mrf.mxu0
    %10223 = vmatprep.mubr.bf16.mxu0 %v10116
    %10224 = vmatmul.mubr.bf16.gmra.mxu0 %v10115
    %v10225 = vpop.f32.mrf.mxu0
    %v10226 = vadd.f32 0.0, %v10225
    %v10227 = vpop.f32.mrf.mxu0
    %v10228 = vpop.f32.mrf.mxu0
    %v10229 = vadd.f32 0.0, %v10228
    %v10230 = vpop.f32.mrf.mxu0
    %10231 = vmatprep.mubr.bf16.mxu0 %v10118
    %10232 = vmatmul.mubr.bf16.gmra.mxu0 %v10117
    %v10233 = vpop.f32.mrf.mxu0
    %v10234 = vadd.f32 0.0, %v10233
    %v10235 = vpop.f32.mrf.mxu0
    %v10236 = vpop.f32.mrf.mxu0
    %v10237 = vadd.f32 0.0, %v10236
    %v10238 = vpop.f32.mrf.mxu0
    %10239 = vmatprep.mubr.bf16.mxu0 %v10120
    %10240 = vmatmul.mubr.bf16.gmra.mxu0 %v10119
    %v10241 = vpop.f32.mrf.mxu0
    %v10242 = vadd.f32 0.0, %v10241
    %v10243 = vpop.f32.mrf.mxu0
    %v10244 = vpop.f32.mrf.mxu0
    %v10245 = vadd.f32 0.0, %v10244
    %v10246 = vpop.f32.mrf.mxu0
    %10247 = vmatprep.mubr.bf16.mxu0 %v10122
    %10248 = vmatmul.mubr.bf16.gmra.mxu0 %v10121
    %v10249 = vpop.f32.mrf.mxu0
    %v10250 = vadd.f32 0.0, %v10249
    %v10251 = vpop.f32.mrf.mxu0
    %v10252 = vpop.f32.mrf.mxu0
    %v10253 = vadd.f32 0.0, %v10252
    %v10254 = vpop.f32.mrf.mxu0
    %10255 = vmatprep.mubr.bf16.mxu0 %v10124
    %10256 = vmatmul.mubr.bf16.gmra.mxu0 %v10123
    %v10257 = vpop.f32.mrf.mxu0
    %v10258 = vadd.f32 0.0, %v10257
    %v10259 = vpop.f32.mrf.mxu0
    %v10260 = vpop.f32.mrf.mxu0
    %v10261 = vadd.f32 0.0, %v10260
    %v10262 = vpop.f32.mrf.mxu0
    %10263 = vmatprep.mubr.bf16.mxu0 %v10126
    %10264 = vmatmul.mubr.bf16.gmra.mxu0 %v10125
    %v10265 = vpop.f32.mrf.mxu0
    %v10266 = vadd.f32 0.0, %v10265
    %v10267 = vpop.f32.mrf.mxu0
    %v10268 = vpop.f32.mrf.mxu0
    %v10269 = vadd.f32 0.0, %v10268
    %v10270 = vpop.f32.mrf.mxu0
    %10271 = vmatprep.mubr.bf16.mxu0 %v10128
    %10272 = vmatmul.mubr.bf16.gmra.mxu0 %v10127
    %v10273 = vpop.f32.mrf.mxu0
    %v10274 = vadd.f32 0.0, %v10273
    %v10275 = vpop.f32.mrf.mxu0
    %v10276 = vpop.f32.mrf.mxu0
    %v10277 = vadd.f32 0.0, %v10276
    %v10278 = vpop.f32.mrf.mxu0
    %10279 = vmatprep.mubr.bf16.mxu0 %v10130
    %10280 = vmatmul.mubr.bf16.gmra.mxu0 %v10129
    %v10281 = vpop.f32.mrf.mxu0
    %v10282 = vadd.f32 0.0, %v10281
    %v10283 = vpop.f32.mrf.mxu0
    %v10284 = vpop.f32.mrf.mxu0
    %v10285 = vadd.f32 0.0, %v10284
    %v10286 = vpop.f32.mrf.mxu0
    %10287 = vmatprep.mubr.bf16.mxu0 %v10132
    %10288 = vmatmul.mubr.bf16.gmra.mxu0 %v10131
    %v10289 = vpop.f32.mrf.mxu0
    %v10290 = vadd.f32 0.0, %v10289
    %v10291 = vpop.f32.mrf.mxu0
    %v10292 = vpop.f32.mrf.mxu0
    %v10293 = vadd.f32 0.0, %v10292
    %v10294 = vpop.f32.mrf.mxu0
    %10295 = vmatprep.mubr.bf16.mxu0 %v10134
    %10296 = vmatmul.mubr.bf16.gmra.mxu0 %v10133
    %v10297 = vpop.f32.mrf.mxu0
    %v10298 = vadd.f32 0.0, %v10297
    %v10299 = vpop.f32.mrf.mxu0
    %v10300 = vpop.f32.mrf.mxu0
    %v10301 = vadd.f32 0.0, %v10300
    %v10302 = vpop.f32.mrf.mxu0
    %10303 = vmatprep.mubr.bf16.mxu0 %v10136
    %10304 = vmatmul.mubr.bf16.gmra.mxu0 %v10135
    %v10305 = vpop.f32.mrf.mxu0
    %v10306 = vadd.f32 0.0, %v10305
    %v10307 = vpop.f32.mrf.mxu0
    %v10308 = vpop.f32.mrf.mxu0
    %v10309 = vadd.f32 0.0, %v10308
    %v10310 = vpop.f32.mrf.mxu0
    %10311 = vmatprep.mubr.bf16.mxu0 %v10138
    %10312 = vmatmul.mubr.bf16.gmra.mxu0 %v10137
    %v10313 = vpop.f32.mrf.mxu0
    %v10314 = vadd.f32 0.0, %v10313
    %v10315 = vpop.f32.mrf.mxu0
    %v10316 = vpop.f32.mrf.mxu0
    %v10317 = vadd.f32 0.0, %v10316
    %v10318 = vpop.f32.mrf.mxu0
    %10319 = vmatprep.mubr.bf16.mxu0 %v10140
    %10320 = vmatmul.mubr.bf16.gmra.mxu0 %v10139
    %v10321 = vpop.f32.mrf.mxu0
    %v10322 = vadd.f32 0.0, %v10321
    %v10323 = vpop.f32.mrf.mxu0
    %v10324 = vpop.f32.mrf.mxu0
    %v10325 = vadd.f32 0.0, %v10324
    %v10326 = vpop.f32.mrf.mxu0
    %10327 = vmatprep.mubr.bf16.mxu0 %v10142
    %10328 = vmatmul.mubr.bf16.gmra.mxu0 %v10141
    %v10329 = vpop.f32.mrf.mxu0
    %v10330 = vadd.f32 0.0, %v10329
    %v10331 = vpop.f32.mrf.mxu0
    %v10332 = vpop.f32.mrf.mxu0
    %v10333 = vadd.f32 0.0, %v10332
    %v10334 = vpop.f32.mrf.mxu0
    %10335 = vdwg.mxu0
    %v10336 = vadd.f32 %v9614, %v10210
    %v10337 = vadd.f32 %v9617, %v10213
    %v10338 = vadd.f32 %v9622, %v10218
    %v10339 = vadd.f32 %v9625, %v10221
    %v10340 = vadd.f32 %v9630, %v10226
    %v10341 = vadd.f32 %v9633, %v10229
    %v10342 = vadd.f32 %v9638, %v10234
    %v10343 = vadd.f32 %v9641, %v10237
    %v10344 = vadd.f32 %v9646, %v10242
    %v10345 = vadd.f32 %v9649, %v10245
    %v10346 = vadd.f32 %v9654, %v10250
    %v10347 = vadd.f32 %v9657, %v10253
    %v10348 = vadd.f32 %v9662, %v10258
    %v10349 = vadd.f32 %v9665, %v10261
    %v10350 = vadd.f32 %v9670, %v10266
    %v10351 = vadd.f32 %v9673, %v10269
    %v10352 = vadd.f32 %v9678, %v10274
    %v10353 = vadd.f32 %v9681, %v10277
    %v10354 = vadd.f32 %v9686, %v10282
    %v10355 = vadd.f32 %v9689, %v10285
    %v10356 = vadd.f32 %v9694, %v10290
    %v10357 = vadd.f32 %v9697, %v10293
    %v10358 = vadd.f32 %v9702, %v10298
    %v10359 = vadd.f32 %v9705, %v10301
    %v10360 = vadd.f32 %v9710, %v10306
    %v10361 = vadd.f32 %v9713, %v10309
    %v10362 = vadd.f32 %v9718, %v10314
    %v10363 = vadd.f32 %v9721, %v10317
    %v10364 = vadd.f32 %v9726, %v10322
    %v10365 = vadd.f32 %v9729, %v10325
    %v10366 = vadd.f32 %v9734, %v10330
    %v10367 = vadd.f32 %v9737, %v10333
    %s10368 = scalar_lea.vmem [#allocation4], 960
    %v10369 = vld [vmem:[%s10368] sm:$0xf]
    %v10370 = vld [vmem:[%s10368 + $0x4] sm:$0xf]
    %v10371 = vld [vmem:[%s10368 + $0x8] sm:$0xf]
    %v10372 = vld [vmem:[%s10368 + $0xc] sm:$0xf]
    %v10373 = vld [vmem:[%s10368 + $0x10] sm:$0xf]
    %v10374 = vld [vmem:[%s10368 + $0x14] sm:$0xf]
    %v10375 = vld [vmem:[%s10368 + $0x18] sm:$0xf]
    %v10376 = vld [vmem:[%s10368 + $0x1c] sm:$0xf]
    %v10377 = vld [vmem:[%s10368 + $0x20] sm:$0xf]
    %v10378 = vld [vmem:[%s10368 + $0x24] sm:$0xf]
    %v10379 = vld [vmem:[%s10368 + $0x28] sm:$0xf]
    %v10380 = vld [vmem:[%s10368 + $0x2c] sm:$0xf]
    %v10381 = vld [vmem:[%s10368 + $0x30] sm:$0xf]
    %v10382 = vld [vmem:[%s10368 + $0x34] sm:$0xf]
    %v10383 = vld [vmem:[%s10368 + $0x38] sm:$0xf]
    %v10384 = vld [vmem:[%s10368 + $0x3c] sm:$0xf]
    %v10401 = vunpack.c.l.b16 %v10369
    %v10402 = vunpack.c.l.b16 %v10370
    %v10403 = vunpack.c.l.b16 %v10371
    %v10404 = vunpack.c.l.b16 %v10372
    %v10405 = vunpack.c.l.b16 %v10373
    %v10406 = vunpack.c.l.b16 %v10374
    %v10407 = vunpack.c.l.b16 %v10375
    %v10408 = vunpack.c.l.b16 %v10376
    %v10409 = vunpack.c.l.b16 %v10377
    %v10410 = vunpack.c.l.b16 %v10378
    %v10411 = vunpack.c.l.b16 %v10379
    %v10412 = vunpack.c.l.b16 %v10380
    %v10413 = vunpack.c.l.b16 %v10381
    %v10414 = vunpack.c.l.b16 %v10382
    %v10415 = vunpack.c.l.b16 %v10383
    %v10416 = vunpack.c.l.b16 %v10384
    %v10417 = vpack.c.b16 %v10402, %v10401
    %v10418 = vpack.c.b16 %v10404, %v10403
    %v10419 = vpack.c.b16 %v10406, %v10405
    %v10420 = vpack.c.b16 %v10408, %v10407
    %v10421 = vpack.c.b16 %v10410, %v10409
    %v10422 = vpack.c.b16 %v10412, %v10411
    %v10423 = vpack.c.b16 %v10414, %v10413
    %v10424 = vpack.c.b16 %v10416, %v10415
    %10433 = vmatprep.subr.bf16.mxu0 0
    %10434 = vmatpush1.bf16.msra.mxu0 %v10424
    %10435 = vmatprep.subr.bf16.mxu0 0
    %10436 = vmatpush1.bf16.msra.mxu0 %v10423
    %10437 = vmatprep.subr.bf16.mxu0 0
    %10438 = vmatpush1.bf16.msra.mxu0 %v10422
    %10439 = vmatprep.subr.bf16.mxu0 0
    %10440 = vmatpush1.bf16.msra.mxu0 %v10421
    %10441 = vmatprep.subr.bf16.mxu0 0
    %10442 = vmatpush1.bf16.msra.mxu0 %v10420
    %10443 = vmatprep.subr.bf16.mxu0 0
    %10444 = vmatpush1.bf16.msra.mxu0 %v10419
    %10445 = vmatprep.subr.bf16.mxu0 0
    %10446 = vmatpush1.bf16.msra.mxu0 %v10418
    %10447 = vmatprep.subr.bf16.mxu0 0
    %10448 = vmatpush1.bf16.msra.mxu0 %v10417
    %10449 = vmatprep.subr.bf16.mxu0 0
    %10450 = vmatpush2.bf16.msra.mxu0 0
    %10451 = vmatprep.subr.bf16.mxu0 0
    %10452 = vmatpush2.bf16.msra.mxu0 0
    %10453 = vmatprep.subr.bf16.mxu0 0
    %10454 = vmatpush2.bf16.msra.mxu0 0
    %10455 = vmatprep.subr.bf16.mxu0 0
    %10456 = vmatpush2.bf16.msra.mxu0 0
    %10457 = vmatprep.subr.bf16.mxu0 0
    %10458 = vmatpush2.bf16.msra.mxu0 0
    %10459 = vmatprep.subr.bf16.mxu0 0
    %10460 = vmatpush2.bf16.msra.mxu0 0
    %10461 = vmatprep.subr.bf16.mxu0 0
    %10462 = vmatpush2.bf16.msra.mxu0 0
    %10463 = vmatprep.subr.bf16.mxu0 0
    %10464 = vmatpush2.bf16.msra.mxu0 0
    %10465 = vmatprep.mubr.bf16.mxu0 0
    %10466 = vmatmul.mubr.bf16.gmra.mxu0 %v8532
    %v10467 = vpop.f32.mrf.mxu0
    %v10468 = vadd.f32 0.0, %v10467
    %v10469 = vpop.f32.mrf.mxu0
    %v10470 = vpop.f32.mrf.mxu0
    %v10471 = vadd.f32 0.0, %v10470
    %v10472 = vpop.f32.mrf.mxu0
    %10473 = vmatprep.mubr.bf16.mxu0 0
    %10474 = vmatmul.mubr.bf16.gmra.mxu0 %v8533
    %v10475 = vpop.f32.mrf.mxu0
    %v10476 = vadd.f32 0.0, %v10475
    %v10477 = vpop.f32.mrf.mxu0
    %v10478 = vpop.f32.mrf.mxu0
    %v10479 = vadd.f32 0.0, %v10478
    %v10480 = vpop.f32.mrf.mxu0
    %10481 = vmatprep.mubr.bf16.mxu0 0
    %10482 = vmatmul.mubr.bf16.gmra.mxu0 %v8534
    %v10483 = vpop.f32.mrf.mxu0
    %v10484 = vadd.f32 0.0, %v10483
    %v10485 = vpop.f32.mrf.mxu0
    %v10486 = vpop.f32.mrf.mxu0
    %v10487 = vadd.f32 0.0, %v10486
    %v10488 = vpop.f32.mrf.mxu0
    %10489 = vmatprep.mubr.bf16.mxu0 0
    %10490 = vmatmul.mubr.bf16.gmra.mxu0 %v8535
    %v10491 = vpop.f32.mrf.mxu0
    %v10492 = vadd.f32 0.0, %v10491
    %v10493 = vpop.f32.mrf.mxu0
    %v10494 = vpop.f32.mrf.mxu0
    %v10495 = vadd.f32 0.0, %v10494
    %v10496 = vpop.f32.mrf.mxu0
    %10497 = vmatprep.mubr.bf16.mxu0 0
    %10498 = vmatmul.mubr.bf16.gmra.mxu0 %v8536
    %v10499 = vpop.f32.mrf.mxu0
    %v10500 = vadd.f32 0.0, %v10499
    %v10501 = vpop.f32.mrf.mxu0
    %v10502 = vpop.f32.mrf.mxu0
    %v10503 = vadd.f32 0.0, %v10502
    %v10504 = vpop.f32.mrf.mxu0
    %10505 = vmatprep.mubr.bf16.mxu0 0
    %10506 = vmatmul.mubr.bf16.gmra.mxu0 %v8537
    %v10507 = vpop.f32.mrf.mxu0
    %v10508 = vadd.f32 0.0, %v10507
    %v10509 = vpop.f32.mrf.mxu0
    %v10510 = vpop.f32.mrf.mxu0
    %v10511 = vadd.f32 0.0, %v10510
    %v10512 = vpop.f32.mrf.mxu0
    %10513 = vmatprep.mubr.bf16.mxu0 0
    %10514 = vmatmul.mubr.bf16.gmra.mxu0 %v8538
    %v10515 = vpop.f32.mrf.mxu0
    %v10516 = vadd.f32 0.0, %v10515
    %v10517 = vpop.f32.mrf.mxu0
    %v10518 = vpop.f32.mrf.mxu0
    %v10519 = vadd.f32 0.0, %v10518
    %v10520 = vpop.f32.mrf.mxu0
    %10521 = vmatprep.mubr.bf16.mxu0 0
    %10522 = vmatmul.mubr.bf16.gmra.mxu0 %v8539
    %v10523 = vpop.f32.mrf.mxu0
    %v10524 = vadd.f32 0.0, %v10523
    %v10525 = vpop.f32.mrf.mxu0
    %v10526 = vpop.f32.mrf.mxu0
    %v10527 = vadd.f32 0.0, %v10526
    %v10528 = vpop.f32.mrf.mxu0
    %10529 = vmatprep.mubr.bf16.mxu0 0
    %10530 = vmatmul.mubr.bf16.gmra.mxu0 %v8540
    %v10531 = vpop.f32.mrf.mxu0
    %v10532 = vadd.f32 0.0, %v10531
    %v10533 = vpop.f32.mrf.mxu0
    %v10534 = vpop.f32.mrf.mxu0
    %v10535 = vadd.f32 0.0, %v10534
    %v10536 = vpop.f32.mrf.mxu0
    %10537 = vmatprep.mubr.bf16.mxu0 0
    %10538 = vmatmul.mubr.bf16.gmra.mxu0 %v8541
    %v10539 = vpop.f32.mrf.mxu0
    %v10540 = vadd.f32 0.0, %v10539
    %v10541 = vpop.f32.mrf.mxu0
    %v10542 = vpop.f32.mrf.mxu0
    %v10543 = vadd.f32 0.0, %v10542
    %v10544 = vpop.f32.mrf.mxu0
    %10545 = vmatprep.mubr.bf16.mxu0 0
    %10546 = vmatmul.mubr.bf16.gmra.mxu0 %v8542
    %v10547 = vpop.f32.mrf.mxu0
    %v10548 = vadd.f32 0.0, %v10547
    %v10549 = vpop.f32.mrf.mxu0
    %v10550 = vpop.f32.mrf.mxu0
    %v10551 = vadd.f32 0.0, %v10550
    %v10552 = vpop.f32.mrf.mxu0
    %10553 = vmatprep.mubr.bf16.mxu0 0
    %10554 = vmatmul.mubr.bf16.gmra.mxu0 %v8543
    %v10555 = vpop.f32.mrf.mxu0
    %v10556 = vadd.f32 0.0, %v10555
    %v10557 = vpop.f32.mrf.mxu0
    %v10558 = vpop.f32.mrf.mxu0
    %v10559 = vadd.f32 0.0, %v10558
    %v10560 = vpop.f32.mrf.mxu0
    %10561 = vmatprep.mubr.bf16.mxu0 0
    %10562 = vmatmul.mubr.bf16.gmra.mxu0 %v8544
    %v10563 = vpop.f32.mrf.mxu0
    %v10564 = vadd.f32 0.0, %v10563
    %v10565 = vpop.f32.mrf.mxu0
    %v10566 = vpop.f32.mrf.mxu0
    %v10567 = vadd.f32 0.0, %v10566
    %v10568 = vpop.f32.mrf.mxu0
    %10569 = vmatprep.mubr.bf16.mxu0 0
    %10570 = vmatmul.mubr.bf16.gmra.mxu0 %v8545
    %v10571 = vpop.f32.mrf.mxu0
    %v10572 = vadd.f32 0.0, %v10571
    %v10573 = vpop.f32.mrf.mxu0
    %v10574 = vpop.f32.mrf.mxu0
    %v10575 = vadd.f32 0.0, %v10574
    %v10576 = vpop.f32.mrf.mxu0
    %10577 = vmatprep.mubr.bf16.mxu0 0
    %10578 = vmatmul.mubr.bf16.gmra.mxu0 %v8546
    %v10579 = vpop.f32.mrf.mxu0
    %v10580 = vadd.f32 0.0, %v10579
    %v10581 = vpop.f32.mrf.mxu0
    %v10582 = vpop.f32.mrf.mxu0
    %v10583 = vadd.f32 0.0, %v10582
    %v10584 = vpop.f32.mrf.mxu0
    %10585 = vmatprep.mubr.bf16.mxu0 0
    %10586 = vmatmul.mubr.bf16.gmra.mxu0 %v8547
    %v10587 = vpop.f32.mrf.mxu0
    %v10588 = vadd.f32 0.0, %v10587
    %v10589 = vpop.f32.mrf.mxu0
    %v10590 = vpop.f32.mrf.mxu0
    %v10591 = vadd.f32 0.0, %v10590
    %v10592 = vpop.f32.mrf.mxu0
    %10593 = vdwg.mxu0
    %v10594 = vpack.c.bf16 %v10471, %v10468
    %v10595 = vpack.c.bf16 %v10479, %v10476
    %v10596 = vpack.c.bf16 %v10487, %v10484
    %v10597 = vpack.c.bf16 %v10495, %v10492
    %v10598 = vpack.c.bf16 %v10503, %v10500
    %v10599 = vpack.c.bf16 %v10511, %v10508
    %v10600 = vpack.c.bf16 %v10519, %v10516
    %v10601 = vpack.c.bf16 %v10527, %v10524
    %v10602 = vpack.c.bf16 %v10535, %v10532
    %v10603 = vpack.c.bf16 %v10543, %v10540
    %v10604 = vpack.c.bf16 %v10551, %v10548
    %v10605 = vpack.c.bf16 %v10559, %v10556
    %v10606 = vpack.c.bf16 %v10567, %v10564
    %v10607 = vpack.c.bf16 %v10575, %v10572
    %v10608 = vpack.c.bf16 %v10583, %v10580
    %v10609 = vpack.c.bf16 %v10591, %v10588
    %s10610 = scalar_lea.vmem [#allocation2], 3840
    %v10611 = vld [vmem:[%s10610] sm:$0xff]
    %v10612 = vld [vmem:[%s10610 + $0x8] sm:$0xff]
    %v10613 = vld [vmem:[%s10610 + $0x10] sm:$0xff]
    %v10614 = vld [vmem:[%s10610 + $0x18] sm:$0xff]
    %v10615 = vld [vmem:[%s10610 + $0x20] sm:$0xff]
    %v10616 = vld [vmem:[%s10610 + $0x28] sm:$0xff]
    %v10617 = vld [vmem:[%s10610 + $0x30] sm:$0xff]
    %v10618 = vld [vmem:[%s10610 + $0x38] sm:$0xff]
    %v10619 = vld [vmem:[%s10610 + $0x40] sm:$0xff]
    %v10620 = vld [vmem:[%s10610 + $0x48] sm:$0xff]
    %v10621 = vld [vmem:[%s10610 + $0x50] sm:$0xff]
    %v10622 = vld [vmem:[%s10610 + $0x58] sm:$0xff]
    %v10623 = vld [vmem:[%s10610 + $0x60] sm:$0xff]
    %v10624 = vld [vmem:[%s10610 + $0x68] sm:$0xff]
    %v10625 = vld [vmem:[%s10610 + $0x70] sm:$0xff]
    %v10626 = vld [vmem:[%s10610 + $0x78] sm:$0xff]
    %v10627 = vld [vmem:[%s10610 + $0x80] sm:$0xff]
    %v10628 = vld [vmem:[%s10610 + $0x88] sm:$0xff]
    %v10629 = vld [vmem:[%s10610 + $0x90] sm:$0xff]
    %v10630 = vld [vmem:[%s10610 + $0x98] sm:$0xff]
    %v10631 = vld [vmem:[%s10610 + $0xa0] sm:$0xff]
    %v10632 = vld [vmem:[%s10610 + $0xa8] sm:$0xff]
    %v10633 = vld [vmem:[%s10610 + $0xb0] sm:$0xff]
    %v10634 = vld [vmem:[%s10610 + $0xb8] sm:$0xff]
    %v10635 = vld [vmem:[%s10610 + $0xc0] sm:$0xff]
    %v10636 = vld [vmem:[%s10610 + $0xc8] sm:$0xff]
    %v10637 = vld [vmem:[%s10610 + $0xd0] sm:$0xff]
    %v10638 = vld [vmem:[%s10610 + $0xd8] sm:$0xff]
    %v10639 = vld [vmem:[%s10610 + $0xe0] sm:$0xff]
    %v10640 = vld [vmem:[%s10610 + $0xe8] sm:$0xff]
    %v10641 = vld [vmem:[%s10610 + $0xf0] sm:$0xff]
    %v10642 = vld [vmem:[%s10610 + $0xf8] sm:$0xff]
    %v10675 = vunpack.c.l.b16 %v10611
    %v10676 = vunpack.c.h.b16 %v10611
    %v10677 = vunpack.c.l.b16 %v10612
    %v10678 = vunpack.c.h.b16 %v10612
    %v10679 = vunpack.c.l.b16 %v10613
    %v10680 = vunpack.c.h.b16 %v10613
    %v10681 = vunpack.c.l.b16 %v10614
    %v10682 = vunpack.c.h.b16 %v10614
    %v10683 = vunpack.c.l.b16 %v10615
    %v10684 = vunpack.c.h.b16 %v10615
    %v10685 = vunpack.c.l.b16 %v10616
    %v10686 = vunpack.c.h.b16 %v10616
    %v10687 = vunpack.c.l.b16 %v10617
    %v10688 = vunpack.c.h.b16 %v10617
    %v10689 = vunpack.c.l.b16 %v10618
    %v10690 = vunpack.c.h.b16 %v10618
    %v10691 = vunpack.c.l.b16 %v10619
    %v10692 = vunpack.c.h.b16 %v10619
    %v10693 = vunpack.c.l.b16 %v10620
    %v10694 = vunpack.c.h.b16 %v10620
    %v10695 = vunpack.c.l.b16 %v10621
    %v10696 = vunpack.c.h.b16 %v10621
    %v10697 = vunpack.c.l.b16 %v10622
    %v10698 = vunpack.c.h.b16 %v10622
    %v10699 = vunpack.c.l.b16 %v10623
    %v10700 = vunpack.c.h.b16 %v10623
    %v10701 = vunpack.c.l.b16 %v10624
    %v10702 = vunpack.c.h.b16 %v10624
    %v10703 = vunpack.c.l.b16 %v10625
    %v10704 = vunpack.c.h.b16 %v10625
    %v10705 = vunpack.c.l.b16 %v10626
    %v10706 = vunpack.c.h.b16 %v10626
    %v10707 = vunpack.c.l.b16 %v10627
    %v10708 = vunpack.c.h.b16 %v10627
    %v10709 = vunpack.c.l.b16 %v10628
    %v10710 = vunpack.c.h.b16 %v10628
    %v10711 = vunpack.c.l.b16 %v10629
    %v10712 = vunpack.c.h.b16 %v10629
    %v10713 = vunpack.c.l.b16 %v10630
    %v10714 = vunpack.c.h.b16 %v10630
    %v10715 = vunpack.c.l.b16 %v10631
    %v10716 = vunpack.c.h.b16 %v10631
    %v10717 = vunpack.c.l.b16 %v10632
    %v10718 = vunpack.c.h.b16 %v10632
    %v10719 = vunpack.c.l.b16 %v10633
    %v10720 = vunpack.c.h.b16 %v10633
    %v10721 = vunpack.c.l.b16 %v10634
    %v10722 = vunpack.c.h.b16 %v10634
    %v10723 = vunpack.c.l.b16 %v10635
    %v10724 = vunpack.c.h.b16 %v10635
    %v10725 = vunpack.c.l.b16 %v10636
    %v10726 = vunpack.c.h.b16 %v10636
    %v10727 = vunpack.c.l.b16 %v10637
    %v10728 = vunpack.c.h.b16 %v10637
    %v10729 = vunpack.c.l.b16 %v10638
    %v10730 = vunpack.c.h.b16 %v10638
    %v10731 = vunpack.c.l.b16 %v10639
    %v10732 = vunpack.c.h.b16 %v10639
    %v10733 = vunpack.c.l.b16 %v10640
    %v10734 = vunpack.c.h.b16 %v10640
    %v10735 = vunpack.c.l.b16 %v10641
    %v10736 = vunpack.c.h.b16 %v10641
    %v10737 = vunpack.c.l.b16 %v10642
    %v10738 = vunpack.c.h.b16 %v10642
    %v10739 = vpack.c.b16 %v10677, %v10675
    %v10740 = vpack.c.b16 %v10678, %v10676
    %v10741 = vpack.c.b16 %v10681, %v10679
    %v10742 = vpack.c.b16 %v10682, %v10680
    %v10743 = vpack.c.b16 %v10685, %v10683
    %v10744 = vpack.c.b16 %v10686, %v10684
    %v10745 = vpack.c.b16 %v10689, %v10687
    %v10746 = vpack.c.b16 %v10690, %v10688
    %v10747 = vpack.c.b16 %v10693, %v10691
    %v10748 = vpack.c.b16 %v10694, %v10692
    %v10749 = vpack.c.b16 %v10697, %v10695
    %v10750 = vpack.c.b16 %v10698, %v10696
    %v10751 = vpack.c.b16 %v10701, %v10699
    %v10752 = vpack.c.b16 %v10702, %v10700
    %v10753 = vpack.c.b16 %v10705, %v10703
    %v10754 = vpack.c.b16 %v10706, %v10704
    %v10755 = vpack.c.b16 %v10709, %v10707
    %v10756 = vpack.c.b16 %v10710, %v10708
    %v10757 = vpack.c.b16 %v10713, %v10711
    %v10758 = vpack.c.b16 %v10714, %v10712
    %v10759 = vpack.c.b16 %v10717, %v10715
    %v10760 = vpack.c.b16 %v10718, %v10716
    %v10761 = vpack.c.b16 %v10721, %v10719
    %v10762 = vpack.c.b16 %v10722, %v10720
    %v10763 = vpack.c.b16 %v10725, %v10723
    %v10764 = vpack.c.b16 %v10726, %v10724
    %v10765 = vpack.c.b16 %v10729, %v10727
    %v10766 = vpack.c.b16 %v10730, %v10728
    %v10767 = vpack.c.b16 %v10733, %v10731
    %v10768 = vpack.c.b16 %v10734, %v10732
    %v10769 = vpack.c.b16 %v10737, %v10735
    %v10770 = vpack.c.b16 %v10738, %v10736
    %10803 = vmatprep.subr.bf16.mxu0 0
    %10804 = vmatpush1.bf16.msra.mxu0 %v10601
    %10805 = vmatprep.subr.bf16.mxu0 0
    %10806 = vmatpush1.bf16.msra.mxu0 %v10600
    %10807 = vmatprep.subr.bf16.mxu0 0
    %10808 = vmatpush1.bf16.msra.mxu0 %v10599
    %10809 = vmatprep.subr.bf16.mxu0 0
    %10810 = vmatpush1.bf16.msra.mxu0 %v10598
    %10811 = vmatprep.subr.bf16.mxu0 0
    %10812 = vmatpush1.bf16.msra.mxu0 %v10597
    %10813 = vmatprep.subr.bf16.mxu0 0
    %10814 = vmatpush1.bf16.msra.mxu0 %v10596
    %10815 = vmatprep.subr.bf16.mxu0 0
    %10816 = vmatpush1.bf16.msra.mxu0 %v10595
    %10817 = vmatprep.subr.bf16.mxu0 0
    %10818 = vmatpush1.bf16.msra.mxu0 %v10594
    %10819 = vmatprep.subr.bf16.mxu0 0
    %10820 = vmatpush2.bf16.msra.mxu0 %v10609
    %10821 = vmatprep.subr.bf16.mxu0 0
    %10822 = vmatpush2.bf16.msra.mxu0 %v10608
    %10823 = vmatprep.subr.bf16.mxu0 0
    %10824 = vmatpush2.bf16.msra.mxu0 %v10607
    %10825 = vmatprep.subr.bf16.mxu0 0
    %10826 = vmatpush2.bf16.msra.mxu0 %v10606
    %10827 = vmatprep.subr.bf16.mxu0 0
    %10828 = vmatpush2.bf16.msra.mxu0 %v10605
    %10829 = vmatprep.subr.bf16.mxu0 0
    %10830 = vmatpush2.bf16.msra.mxu0 %v10604
    %10831 = vmatprep.subr.bf16.mxu0 0
    %10832 = vmatpush2.bf16.msra.mxu0 %v10603
    %10833 = vmatprep.subr.bf16.mxu0 0
    %10834 = vmatpush2.bf16.msra.mxu0 %v10602
    %10835 = vmatprep.mubr.bf16.mxu0 %v10740
    %10836 = vmatmul.mubr.bf16.gmra.mxu0 %v10739
    %v10837 = vpop.f32.mrf.mxu0
    %v10838 = vadd.f32 0.0, %v10837
    %v10839 = vpop.f32.mrf.mxu0
    %v10840 = vpop.f32.mrf.mxu0
    %v10841 = vadd.f32 0.0, %v10840
    %v10842 = vpop.f32.mrf.mxu0
    %10843 = vmatprep.mubr.bf16.mxu0 %v10742
    %10844 = vmatmul.mubr.bf16.gmra.mxu0 %v10741
    %v10845 = vpop.f32.mrf.mxu0
    %v10846 = vadd.f32 0.0, %v10845
    %v10847 = vpop.f32.mrf.mxu0
    %v10848 = vpop.f32.mrf.mxu0
    %v10849 = vadd.f32 0.0, %v10848
    %v10850 = vpop.f32.mrf.mxu0
    %10851 = vmatprep.mubr.bf16.mxu0 %v10744
    %10852 = vmatmul.mubr.bf16.gmra.mxu0 %v10743
    %v10853 = vpop.f32.mrf.mxu0
    %v10854 = vadd.f32 0.0, %v10853
    %v10855 = vpop.f32.mrf.mxu0
    %v10856 = vpop.f32.mrf.mxu0
    %v10857 = vadd.f32 0.0, %v10856
    %v10858 = vpop.f32.mrf.mxu0
    %10859 = vmatprep.mubr.bf16.mxu0 %v10746
    %10860 = vmatmul.mubr.bf16.gmra.mxu0 %v10745
    %v10861 = vpop.f32.mrf.mxu0
    %v10862 = vadd.f32 0.0, %v10861
    %v10863 = vpop.f32.mrf.mxu0
    %v10864 = vpop.f32.mrf.mxu0
    %v10865 = vadd.f32 0.0, %v10864
    %v10866 = vpop.f32.mrf.mxu0
    %10867 = vmatprep.mubr.bf16.mxu0 %v10748
    %10868 = vmatmul.mubr.bf16.gmra.mxu0 %v10747
    %v10869 = vpop.f32.mrf.mxu0
    %v10870 = vadd.f32 0.0, %v10869
    %v10871 = vpop.f32.mrf.mxu0
    %v10872 = vpop.f32.mrf.mxu0
    %v10873 = vadd.f32 0.0, %v10872
    %v10874 = vpop.f32.mrf.mxu0
    %10875 = vmatprep.mubr.bf16.mxu0 %v10750
    %10876 = vmatmul.mubr.bf16.gmra.mxu0 %v10749
    %v10877 = vpop.f32.mrf.mxu0
    %v10878 = vadd.f32 0.0, %v10877
    %v10879 = vpop.f32.mrf.mxu0
    %v10880 = vpop.f32.mrf.mxu0
    %v10881 = vadd.f32 0.0, %v10880
    %v10882 = vpop.f32.mrf.mxu0
    %10883 = vmatprep.mubr.bf16.mxu0 %v10752
    %10884 = vmatmul.mubr.bf16.gmra.mxu0 %v10751
    %v10885 = vpop.f32.mrf.mxu0
    %v10886 = vadd.f32 0.0, %v10885
    %v10887 = vpop.f32.mrf.mxu0
    %v10888 = vpop.f32.mrf.mxu0
    %v10889 = vadd.f32 0.0, %v10888
    %v10890 = vpop.f32.mrf.mxu0
    %10891 = vmatprep.mubr.bf16.mxu0 %v10754
    %10892 = vmatmul.mubr.bf16.gmra.mxu0 %v10753
    %v10893 = vpop.f32.mrf.mxu0
    %v10894 = vadd.f32 0.0, %v10893
    %v10895 = vpop.f32.mrf.mxu0
    %v10896 = vpop.f32.mrf.mxu0
    %v10897 = vadd.f32 0.0, %v10896
    %v10898 = vpop.f32.mrf.mxu0
    %10899 = vmatprep.mubr.bf16.mxu0 %v10756
    %10900 = vmatmul.mubr.bf16.gmra.mxu0 %v10755
    %v10901 = vpop.f32.mrf.mxu0
    %v10902 = vadd.f32 0.0, %v10901
    %v10903 = vpop.f32.mrf.mxu0
    %v10904 = vpop.f32.mrf.mxu0
    %v10905 = vadd.f32 0.0, %v10904
    %v10906 = vpop.f32.mrf.mxu0
    %10907 = vmatprep.mubr.bf16.mxu0 %v10758
    %10908 = vmatmul.mubr.bf16.gmra.mxu0 %v10757
    %v10909 = vpop.f32.mrf.mxu0
    %v10910 = vadd.f32 0.0, %v10909
    %v10911 = vpop.f32.mrf.mxu0
    %v10912 = vpop.f32.mrf.mxu0
    %v10913 = vadd.f32 0.0, %v10912
    %v10914 = vpop.f32.mrf.mxu0
    %10915 = vmatprep.mubr.bf16.mxu0 %v10760
    %10916 = vmatmul.mubr.bf16.gmra.mxu0 %v10759
    %v10917 = vpop.f32.mrf.mxu0
    %v10918 = vadd.f32 0.0, %v10917
    %v10919 = vpop.f32.mrf.mxu0
    %v10920 = vpop.f32.mrf.mxu0
    %v10921 = vadd.f32 0.0, %v10920
    %v10922 = vpop.f32.mrf.mxu0
    %10923 = vmatprep.mubr.bf16.mxu0 %v10762
    %10924 = vmatmul.mubr.bf16.gmra.mxu0 %v10761
    %v10925 = vpop.f32.mrf.mxu0
    %v10926 = vadd.f32 0.0, %v10925
    %v10927 = vpop.f32.mrf.mxu0
    %v10928 = vpop.f32.mrf.mxu0
    %v10929 = vadd.f32 0.0, %v10928
    %v10930 = vpop.f32.mrf.mxu0
    %10931 = vmatprep.mubr.bf16.mxu0 %v10764
    %10932 = vmatmul.mubr.bf16.gmra.mxu0 %v10763
    %v10933 = vpop.f32.mrf.mxu0
    %v10934 = vadd.f32 0.0, %v10933
    %v10935 = vpop.f32.mrf.mxu0
    %v10936 = vpop.f32.mrf.mxu0
    %v10937 = vadd.f32 0.0, %v10936
    %v10938 = vpop.f32.mrf.mxu0
    %10939 = vmatprep.mubr.bf16.mxu0 %v10766
    %10940 = vmatmul.mubr.bf16.gmra.mxu0 %v10765
    %v10941 = vpop.f32.mrf.mxu0
    %v10942 = vadd.f32 0.0, %v10941
    %v10943 = vpop.f32.mrf.mxu0
    %v10944 = vpop.f32.mrf.mxu0
    %v10945 = vadd.f32 0.0, %v10944
    %v10946 = vpop.f32.mrf.mxu0
    %10947 = vmatprep.mubr.bf16.mxu0 %v10768
    %10948 = vmatmul.mubr.bf16.gmra.mxu0 %v10767
    %v10949 = vpop.f32.mrf.mxu0
    %v10950 = vadd.f32 0.0, %v10949
    %v10951 = vpop.f32.mrf.mxu0
    %v10952 = vpop.f32.mrf.mxu0
    %v10953 = vadd.f32 0.0, %v10952
    %v10954 = vpop.f32.mrf.mxu0
    %10955 = vmatprep.mubr.bf16.mxu0 %v10770
    %10956 = vmatmul.mubr.bf16.gmra.mxu0 %v10769
    %v10957 = vpop.f32.mrf.mxu0
    %v10958 = vadd.f32 0.0, %v10957
    %v10959 = vpop.f32.mrf.mxu0
    %v10960 = vpop.f32.mrf.mxu0
    %v10961 = vadd.f32 0.0, %v10960
    %v10962 = vpop.f32.mrf.mxu0
    %10963 = vdwg.mxu0
    %v10964 = vadd.f32 %v10336, %v10838
    %v10965 = vadd.f32 %v10337, %v10841
    %v10966 = vadd.f32 %v10338, %v10846
    %v10967 = vadd.f32 %v10339, %v10849
    %v10968 = vadd.f32 %v10340, %v10854
    %v10969 = vadd.f32 %v10341, %v10857
    %v10970 = vadd.f32 %v10342, %v10862
    %v10971 = vadd.f32 %v10343, %v10865
    %v10972 = vadd.f32 %v10344, %v10870
    %v10973 = vadd.f32 %v10345, %v10873
    %v10974 = vadd.f32 %v10346, %v10878
    %v10975 = vadd.f32 %v10347, %v10881
    %v10976 = vadd.f32 %v10348, %v10886
    %v10977 = vadd.f32 %v10349, %v10889
    %v10978 = vadd.f32 %v10350, %v10894
    %v10979 = vadd.f32 %v10351, %v10897
    %v10980 = vadd.f32 %v10352, %v10902
    %v10981 = vadd.f32 %v10353, %v10905
    %v10982 = vadd.f32 %v10354, %v10910
    %v10983 = vadd.f32 %v10355, %v10913
    %v10984 = vadd.f32 %v10356, %v10918
    %v10985 = vadd.f32 %v10357, %v10921
    %v10986 = vadd.f32 %v10358, %v10926
    %v10987 = vadd.f32 %v10359, %v10929
    %v10988 = vadd.f32 %v10360, %v10934
    %v10989 = vadd.f32 %v10361, %v10937
    %v10990 = vadd.f32 %v10362, %v10942
    %v10991 = vadd.f32 %v10363, %v10945
    %v10992 = vadd.f32 %v10364, %v10950
    %v10993 = vadd.f32 %v10365, %v10953
    %v10994 = vadd.f32 %v10366, %v10958
    %v10995 = vadd.f32 %v10367, %v10961
    %s10996 = scalar_lea.vmem %s3, 768
    %v10997 = vld [vmem:[%s10996] sm:$0xff]
    %v10998 = vld [vmem:[%s10996 + $0x8] sm:$0xff]
    %v10999 = vld [vmem:[%s10996 + $0x10] sm:$0xff]
    %v11000 = vld [vmem:[%s10996 + $0x18] sm:$0xff]
    %v11001 = vld [vmem:[%s10996 + $0x20] sm:$0xff]
    %v11002 = vld [vmem:[%s10996 + $0x28] sm:$0xff]
    %v11003 = vld [vmem:[%s10996 + $0x30] sm:$0xff]
    %v11004 = vld [vmem:[%s10996 + $0x38] sm:$0xff]
    %v11005 = vld [vmem:[%s10996 + $0x40] sm:$0xff]
    %v11006 = vld [vmem:[%s10996 + $0x48] sm:$0xff]
    %v11007 = vld [vmem:[%s10996 + $0x50] sm:$0xff]
    %v11008 = vld [vmem:[%s10996 + $0x58] sm:$0xff]
    %v11009 = vld [vmem:[%s10996 + $0x60] sm:$0xff]
    %v11010 = vld [vmem:[%s10996 + $0x68] sm:$0xff]
    %v11011 = vld [vmem:[%s10996 + $0x70] sm:$0xff]
    %v11012 = vld [vmem:[%s10996 + $0x78] sm:$0xff]
    %v11013 = vld [vmem:[%s10996 + $0x80] sm:$0xff]
    %v11014 = vld [vmem:[%s10996 + $0x88] sm:$0xff]
    %v11015 = vld [vmem:[%s10996 + $0x90] sm:$0xff]
    %v11016 = vld [vmem:[%s10996 + $0x98] sm:$0xff]
    %v11017 = vld [vmem:[%s10996 + $0xa0] sm:$0xff]
    %v11018 = vld [vmem:[%s10996 + $0xa8] sm:$0xff]
    %v11019 = vld [vmem:[%s10996 + $0xb0] sm:$0xff]
    %v11020 = vld [vmem:[%s10996 + $0xb8] sm:$0xff]
    %v11021 = vld [vmem:[%s10996 + $0xc0] sm:$0xff]
    %v11022 = vld [vmem:[%s10996 + $0xc8] sm:$0xff]
    %v11023 = vld [vmem:[%s10996 + $0xd0] sm:$0xff]
    %v11024 = vld [vmem:[%s10996 + $0xd8] sm:$0xff]
    %v11025 = vld [vmem:[%s10996 + $0xe0] sm:$0xff]
    %v11026 = vld [vmem:[%s10996 + $0xe8] sm:$0xff]
    %v11027 = vld [vmem:[%s10996 + $0xf0] sm:$0xff]
    %v11028 = vld [vmem:[%s10996 + $0xf8] sm:$0xff]
    %11030 = vset.pattern.permute.xlu0 0
    %11031 = vperm.xlu0 %11030, %v10997
    %v11032 = vpop.permute.xlu0 %11031
    %11035 = vset.pattern.permute.xlu0 0
    %11036 = vperm.xlu0 %11035, %v10998
    %v11037 = vpop.permute.xlu0 %11036
    %11040 = vset.pattern.permute.xlu0 0
    %11041 = vperm.xlu0 %11040, %v10999
    %v11042 = vpop.permute.xlu0 %11041
    %11045 = vset.pattern.permute.xlu0 0
    %11046 = vperm.xlu0 %11045, %v11000
    %v11047 = vpop.permute.xlu0 %11046
    %11050 = vset.pattern.permute.xlu0 0
    %11051 = vperm.xlu0 %11050, %v11001
    %v11052 = vpop.permute.xlu0 %11051
    %11055 = vset.pattern.permute.xlu0 0
    %11056 = vperm.xlu0 %11055, %v11002
    %v11057 = vpop.permute.xlu0 %11056
    %11060 = vset.pattern.permute.xlu0 0
    %11061 = vperm.xlu0 %11060, %v11003
    %v11062 = vpop.permute.xlu0 %11061
    %11065 = vset.pattern.permute.xlu0 0
    %11066 = vperm.xlu0 %11065, %v11004
    %v11067 = vpop.permute.xlu0 %11066
    %11070 = vset.pattern.permute.xlu0 0
    %11071 = vperm.xlu0 %11070, %v11005
    %v11072 = vpop.permute.xlu0 %11071
    %11075 = vset.pattern.permute.xlu0 0
    %11076 = vperm.xlu0 %11075, %v11006
    %v11077 = vpop.permute.xlu0 %11076
    %11080 = vset.pattern.permute.xlu0 0
    %11081 = vperm.xlu0 %11080, %v11007
    %v11082 = vpop.permute.xlu0 %11081
    %11085 = vset.pattern.permute.xlu0 0
    %11086 = vperm.xlu0 %11085, %v11008
    %v11087 = vpop.permute.xlu0 %11086
    %11090 = vset.pattern.permute.xlu0 0
    %11091 = vperm.xlu0 %11090, %v11009
    %v11092 = vpop.permute.xlu0 %11091
    %11095 = vset.pattern.permute.xlu0 0
    %11096 = vperm.xlu0 %11095, %v11010
    %v11097 = vpop.permute.xlu0 %11096
    %11100 = vset.pattern.permute.xlu0 0
    %11101 = vperm.xlu0 %11100, %v11011
    %v11102 = vpop.permute.xlu0 %11101
    %11105 = vset.pattern.permute.xlu0 0
    %11106 = vperm.xlu0 %11105, %v11012
    %v11107 = vpop.permute.xlu0 %11106
    %11110 = vset.pattern.permute.xlu0 0
    %11111 = vperm.xlu0 %11110, %v11013
    %v11112 = vpop.permute.xlu0 %11111
    %11115 = vset.pattern.permute.xlu0 0
    %11116 = vperm.xlu0 %11115, %v11014
    %v11117 = vpop.permute.xlu0 %11116
    %11120 = vset.pattern.permute.xlu0 0
    %11121 = vperm.xlu0 %11120, %v11015
    %v11122 = vpop.permute.xlu0 %11121
    %11125 = vset.pattern.permute.xlu0 0
    %11126 = vperm.xlu0 %11125, %v11016
    %v11127 = vpop.permute.xlu0 %11126
    %11130 = vset.pattern.permute.xlu0 0
    %11131 = vperm.xlu0 %11130, %v11017
    %v11132 = vpop.permute.xlu0 %11131
    %11135 = vset.pattern.permute.xlu0 0
    %11136 = vperm.xlu0 %11135, %v11018
    %v11137 = vpop.permute.xlu0 %11136
    %11140 = vset.pattern.permute.xlu0 0
    %11141 = vperm.xlu0 %11140, %v11019
    %v11142 = vpop.permute.xlu0 %11141
    %11145 = vset.pattern.permute.xlu0 0
    %11146 = vperm.xlu0 %11145, %v11020
    %v11147 = vpop.permute.xlu0 %11146
    %11150 = vset.pattern.permute.xlu0 0
    %11151 = vperm.xlu0 %11150, %v11021
    %v11152 = vpop.permute.xlu0 %11151
    %11155 = vset.pattern.permute.xlu0 0
    %11156 = vperm.xlu0 %11155, %v11022
    %v11157 = vpop.permute.xlu0 %11156
    %11160 = vset.pattern.permute.xlu0 0
    %11161 = vperm.xlu0 %11160, %v11023
    %v11162 = vpop.permute.xlu0 %11161
    %11165 = vset.pattern.permute.xlu0 0
    %11166 = vperm.xlu0 %11165, %v11024
    %v11167 = vpop.permute.xlu0 %11166
    %11170 = vset.pattern.permute.xlu0 0
    %11171 = vperm.xlu0 %11170, %v11025
    %v11172 = vpop.permute.xlu0 %11171
    %11175 = vset.pattern.permute.xlu0 0
    %11176 = vperm.xlu0 %11175, %v11026
    %v11177 = vpop.permute.xlu0 %11176
    %11180 = vset.pattern.permute.xlu0 0
    %11181 = vperm.xlu0 %11180, %v11027
    %v11182 = vpop.permute.xlu0 %11181
    %11185 = vset.pattern.permute.xlu0 0
    %11186 = vperm.xlu0 %11185, %v11028
    %v11187 = vpop.permute.xlu0 %11186
    %v11189 = vadd.f32 %v10964, %v11032
    %v11190 = vadd.f32 %v10965, %v11037
    %v11191 = vadd.f32 %v10966, %v11042
    %v11192 = vadd.f32 %v10967, %v11047
    %v11193 = vadd.f32 %v10968, %v11052
    %v11194 = vadd.f32 %v10969, %v11057
    %v11195 = vadd.f32 %v10970, %v11062
    %v11196 = vadd.f32 %v10971, %v11067
    %v11197 = vadd.f32 %v10972, %v11072
    %v11198 = vadd.f32 %v10973, %v11077
    %v11199 = vadd.f32 %v10974, %v11082
    %v11200 = vadd.f32 %v10975, %v11087
    %v11201 = vadd.f32 %v10976, %v11092
    %v11202 = vadd.f32 %v10977, %v11097
    %v11203 = vadd.f32 %v10978, %v11102
    %v11204 = vadd.f32 %v10979, %v11107
    %v11205 = vadd.f32 %v10980, %v11112
    %v11206 = vadd.f32 %v10981, %v11117
    %v11207 = vadd.f32 %v10982, %v11122
    %v11208 = vadd.f32 %v10983, %v11127
    %v11209 = vadd.f32 %v10984, %v11132
    %v11210 = vadd.f32 %v10985, %v11137
    %v11211 = vadd.f32 %v10986, %v11142
    %v11212 = vadd.f32 %v10987, %v11147
    %v11213 = vadd.f32 %v10988, %v11152
    %v11214 = vadd.f32 %v10989, %v11157
    %v11215 = vadd.f32 %v10990, %v11162
    %v11216 = vadd.f32 %v10991, %v11167
    %v11217 = vadd.f32 %v10992, %v11172
    %v11218 = vadd.f32 %v10993, %v11177
    %v11219 = vadd.f32 %v10994, %v11182
    %v11220 = vadd.f32 %v10995, %v11187
    %vm11221 = vcmp.gt.f32.partialorder %v11189, 0.0
    %vm11222 = vcmp.gt.f32.partialorder %v11190, 0.0
    %vm11223 = vcmp.gt.f32.partialorder %v11191, 0.0
    %vm11224 = vcmp.gt.f32.partialorder %v11192, 0.0
    %vm11225 = vcmp.gt.f32.partialorder %v11193, 0.0
    %vm11226 = vcmp.gt.f32.partialorder %v11194, 0.0
    %vm11227 = vcmp.gt.f32.partialorder %v11195, 0.0
    %vm11228 = vcmp.gt.f32.partialorder %v11196, 0.0
    %vm11229 = vcmp.gt.f32.partialorder %v11197, 0.0
    %vm11230 = vcmp.gt.f32.partialorder %v11198, 0.0
    %vm11231 = vcmp.gt.f32.partialorder %v11199, 0.0
    %vm11232 = vcmp.gt.f32.partialorder %v11200, 0.0
    %vm11233 = vcmp.gt.f32.partialorder %v11201, 0.0
    %vm11234 = vcmp.gt.f32.partialorder %v11202, 0.0
    %vm11235 = vcmp.gt.f32.partialorder %v11203, 0.0
    %vm11236 = vcmp.gt.f32.partialorder %v11204, 0.0
    %vm11237 = vcmp.gt.f32.partialorder %v11205, 0.0
    %vm11238 = vcmp.gt.f32.partialorder %v11206, 0.0
    %vm11239 = vcmp.gt.f32.partialorder %v11207, 0.0
    %vm11240 = vcmp.gt.f32.partialorder %v11208, 0.0
    %vm11241 = vcmp.gt.f32.partialorder %v11209, 0.0
    %vm11242 = vcmp.gt.f32.partialorder %v11210, 0.0
    %vm11243 = vcmp.gt.f32.partialorder %v11211, 0.0
    %vm11244 = vcmp.gt.f32.partialorder %v11212, 0.0
    %vm11245 = vcmp.gt.f32.partialorder %v11213, 0.0
    %vm11246 = vcmp.gt.f32.partialorder %v11214, 0.0
    %vm11247 = vcmp.gt.f32.partialorder %v11215, 0.0
    %vm11248 = vcmp.gt.f32.partialorder %v11216, 0.0
    %vm11249 = vcmp.gt.f32.partialorder %v11217, 0.0
    %vm11250 = vcmp.gt.f32.partialorder %v11218, 0.0
    %vm11251 = vcmp.gt.f32.partialorder %v11219, 0.0
    %vm11252 = vcmp.gt.f32.partialorder %v11220, 0.0
    %v11253 = vmul.f32 %v11189, 0.2
    %v11254 = vmul.f32 %v11190, 0.2
    %v11255 = vmul.f32 %v11191, 0.2
    %v11256 = vmul.f32 %v11192, 0.2
    %v11257 = vmul.f32 %v11193, 0.2
    %v11258 = vmul.f32 %v11194, 0.2
    %v11259 = vmul.f32 %v11195, 0.2
    %v11260 = vmul.f32 %v11196, 0.2
    %v11261 = vmul.f32 %v11197, 0.2
    %v11262 = vmul.f32 %v11198, 0.2
    %v11263 = vmul.f32 %v11199, 0.2
    %v11264 = vmul.f32 %v11200, 0.2
    %v11265 = vmul.f32 %v11201, 0.2
    %v11266 = vmul.f32 %v11202, 0.2
    %v11267 = vmul.f32 %v11203, 0.2
    %v11268 = vmul.f32 %v11204, 0.2
    %v11269 = vmul.f32 %v11205, 0.2
    %v11270 = vmul.f32 %v11206, 0.2
    %v11271 = vmul.f32 %v11207, 0.2
    %v11272 = vmul.f32 %v11208, 0.2
    %v11273 = vmul.f32 %v11209, 0.2
    %v11274 = vmul.f32 %v11210, 0.2
    %v11275 = vmul.f32 %v11211, 0.2
    %v11276 = vmul.f32 %v11212, 0.2
    %v11277 = vmul.f32 %v11213, 0.2
    %v11278 = vmul.f32 %v11214, 0.2
    %v11279 = vmul.f32 %v11215, 0.2
    %v11280 = vmul.f32 %v11216, 0.2
    %v11281 = vmul.f32 %v11217, 0.2
    %v11282 = vmul.f32 %v11218, 0.2
    %v11283 = vmul.f32 %v11219, 0.2
    %v11284 = vmul.f32 %v11220, 0.2
    %v11285 = vsel %vm11221, %v11189, %v11253
    %v11286 = vsel %vm11222, %v11190, %v11254
    %v11287 = vsel %vm11223, %v11191, %v11255
    %v11288 = vsel %vm11224, %v11192, %v11256
    %v11289 = vsel %vm11225, %v11193, %v11257
    %v11290 = vsel %vm11226, %v11194, %v11258
    %v11291 = vsel %vm11227, %v11195, %v11259
    %v11292 = vsel %vm11228, %v11196, %v11260
    %v11293 = vsel %vm11229, %v11197, %v11261
    %v11294 = vsel %vm11230, %v11198, %v11262
    %v11295 = vsel %vm11231, %v11199, %v11263
    %v11296 = vsel %vm11232, %v11200, %v11264
    %v11297 = vsel %vm11233, %v11201, %v11265
    %v11298 = vsel %vm11234, %v11202, %v11266
    %v11299 = vsel %vm11235, %v11203, %v11267
    %v11300 = vsel %vm11236, %v11204, %v11268
    %v11301 = vsel %vm11237, %v11205, %v11269
    %v11302 = vsel %vm11238, %v11206, %v11270
    %v11303 = vsel %vm11239, %v11207, %v11271
    %v11304 = vsel %vm11240, %v11208, %v11272
    %v11305 = vsel %vm11241, %v11209, %v11273
    %v11306 = vsel %vm11242, %v11210, %v11274
    %v11307 = vsel %vm11243, %v11211, %v11275
    %v11308 = vsel %vm11244, %v11212, %v11276
    %v11309 = vsel %vm11245, %v11213, %v11277
    %v11310 = vsel %vm11246, %v11214, %v11278
    %v11311 = vsel %vm11247, %v11215, %v11279
    %v11312 = vsel %vm11248, %v11216, %v11280
    %v11313 = vsel %vm11249, %v11217, %v11281
    %v11314 = vsel %vm11250, %v11218, %v11282
    %v11315 = vsel %vm11251, %v11219, %v11283
    %v11316 = vsel %vm11252, %v11220, %v11284
    %v11317 = vpack.c.bf16 %v11286, %v11285
    %v11318 = vpack.c.bf16 %v11288, %v11287
    %v11319 = vpack.c.bf16 %v11290, %v11289
    %v11320 = vpack.c.bf16 %v11292, %v11291
    %v11321 = vpack.c.bf16 %v11294, %v11293
    %v11322 = vpack.c.bf16 %v11296, %v11295
    %v11323 = vpack.c.bf16 %v11298, %v11297
    %v11324 = vpack.c.bf16 %v11300, %v11299
    %v11325 = vpack.c.bf16 %v11302, %v11301
    %v11326 = vpack.c.bf16 %v11304, %v11303
    %v11327 = vpack.c.bf16 %v11306, %v11305
    %v11328 = vpack.c.bf16 %v11308, %v11307
    %v11329 = vpack.c.bf16 %v11310, %v11309
    %v11330 = vpack.c.bf16 %v11312, %v11311
    %v11331 = vpack.c.bf16 %v11314, %v11313
    %v11332 = vpack.c.bf16 %v11316, %v11315
    %v11333 = vld [vmem:[%s5] sm:$0xf]
    %v11334 = vld [vmem:[%s5 + $0x4] sm:$0xf]
    %v11335 = vld [vmem:[%s5 + $0x8] sm:$0xf]
    %v11336 = vld [vmem:[%s5 + $0xc] sm:$0xf]
    %v11337 = vld [vmem:[%s5 + $0x10] sm:$0xf]
    %v11338 = vld [vmem:[%s5 + $0x14] sm:$0xf]
    %v11339 = vld [vmem:[%s5 + $0x18] sm:$0xf]
    %v11340 = vld [vmem:[%s5 + $0x1c] sm:$0xf]
    %v11341 = vld [vmem:[%s5 + $0x20] sm:$0xf]
    %v11342 = vld [vmem:[%s5 + $0x24] sm:$0xf]
    %v11343 = vld [vmem:[%s5 + $0x28] sm:$0xf]
    %v11344 = vld [vmem:[%s5 + $0x2c] sm:$0xf]
    %v11345 = vld [vmem:[%s5 + $0x30] sm:$0xf]
    %v11346 = vld [vmem:[%s5 + $0x34] sm:$0xf]
    %v11347 = vld [vmem:[%s5 + $0x38] sm:$0xf]
    %v11348 = vld [vmem:[%s5 + $0x3c] sm:$0xf]
    %v11365 = vunpack.c.l.b16 %v11333
    %v11366 = vunpack.c.l.b16 %v11334
    %v11367 = vunpack.c.l.b16 %v11335
    %v11368 = vunpack.c.l.b16 %v11336
    %v11369 = vunpack.c.l.b16 %v11337
    %v11370 = vunpack.c.l.b16 %v11338
    %v11371 = vunpack.c.l.b16 %v11339
    %v11372 = vunpack.c.l.b16 %v11340
    %v11373 = vunpack.c.l.b16 %v11341
    %v11374 = vunpack.c.l.b16 %v11342
    %v11375 = vunpack.c.l.b16 %v11343
    %v11376 = vunpack.c.l.b16 %v11344
    %v11377 = vunpack.c.l.b16 %v11345
    %v11378 = vunpack.c.l.b16 %v11346
    %v11379 = vunpack.c.l.b16 %v11347
    %v11380 = vunpack.c.l.b16 %v11348
    %v11381 = vpack.c.b16 %v11366, %v11365
    %v11382 = vpack.c.b16 %v11368, %v11367
    %v11383 = vpack.c.b16 %v11370, %v11369
    %v11384 = vpack.c.b16 %v11372, %v11371
    %v11385 = vpack.c.b16 %v11374, %v11373
    %v11386 = vpack.c.b16 %v11376, %v11375
    %v11387 = vpack.c.b16 %v11378, %v11377
    %v11388 = vpack.c.b16 %v11380, %v11379
    %11397 = vmatprep.subr.bf16.mxu0 0
    %11398 = vmatpush1.bf16.msra.mxu0 %v11388
    %11399 = vmatprep.subr.bf16.mxu0 0
    %11400 = vmatpush1.bf16.msra.mxu0 %v11387
    %11401 = vmatprep.subr.bf16.mxu0 0
    %11402 = vmatpush1.bf16.msra.mxu0 %v11386
    %11403 = vmatprep.subr.bf16.mxu0 0
    %11404 = vmatpush1.bf16.msra.mxu0 %v11385
    %11405 = vmatprep.subr.bf16.mxu0 0
    %11406 = vmatpush1.bf16.msra.mxu0 %v11384
    %11407 = vmatprep.subr.bf16.mxu0 0
    %11408 = vmatpush1.bf16.msra.mxu0 %v11383
    %11409 = vmatprep.subr.bf16.mxu0 0
    %11410 = vmatpush1.bf16.msra.mxu0 %v11382
    %11411 = vmatprep.subr.bf16.mxu0 0
    %11412 = vmatpush1.bf16.msra.mxu0 %v11381
    %11413 = vmatprep.subr.bf16.mxu0 0
    %11414 = vmatpush2.bf16.msra.mxu0 0
    %11415 = vmatprep.subr.bf16.mxu0 0
    %11416 = vmatpush2.bf16.msra.mxu0 0
    %11417 = vmatprep.subr.bf16.mxu0 0
    %11418 = vmatpush2.bf16.msra.mxu0 0
    %11419 = vmatprep.subr.bf16.mxu0 0
    %11420 = vmatpush2.bf16.msra.mxu0 0
    %11421 = vmatprep.subr.bf16.mxu0 0
    %11422 = vmatpush2.bf16.msra.mxu0 0
    %11423 = vmatprep.subr.bf16.mxu0 0
    %11424 = vmatpush2.bf16.msra.mxu0 0
    %11425 = vmatprep.subr.bf16.mxu0 0
    %11426 = vmatpush2.bf16.msra.mxu0 0
    %11427 = vmatprep.subr.bf16.mxu0 0
    %11428 = vmatpush2.bf16.msra.mxu0 0
    %11429 = vmatprep.mubr.bf16.mxu0 0
    %11430 = vmatmul.mubr.bf16.gmra.mxu0 %v11317
    %v11431 = vpop.f32.mrf.mxu0
    %v11432 = vadd.f32 0.0, %v11431
    %v11433 = vpop.f32.mrf.mxu0
    %v11434 = vpop.f32.mrf.mxu0
    %v11435 = vadd.f32 0.0, %v11434
    %v11436 = vpop.f32.mrf.mxu0
    %11437 = vmatprep.mubr.bf16.mxu0 0
    %11438 = vmatmul.mubr.bf16.gmra.mxu0 %v11318
    %v11439 = vpop.f32.mrf.mxu0
    %v11440 = vadd.f32 0.0, %v11439
    %v11441 = vpop.f32.mrf.mxu0
    %v11442 = vpop.f32.mrf.mxu0
    %v11443 = vadd.f32 0.0, %v11442
    %v11444 = vpop.f32.mrf.mxu0
    %11445 = vmatprep.mubr.bf16.mxu0 0
    %11446 = vmatmul.mubr.bf16.gmra.mxu0 %v11319
    %v11447 = vpop.f32.mrf.mxu0
    %v11448 = vadd.f32 0.0, %v11447
    %v11449 = vpop.f32.mrf.mxu0
    %v11450 = vpop.f32.mrf.mxu0
    %v11451 = vadd.f32 0.0, %v11450
    %v11452 = vpop.f32.mrf.mxu0
    %11453 = vmatprep.mubr.bf16.mxu0 0
    %11454 = vmatmul.mubr.bf16.gmra.mxu0 %v11320
    %v11455 = vpop.f32.mrf.mxu0
    %v11456 = vadd.f32 0.0, %v11455
    %v11457 = vpop.f32.mrf.mxu0
    %v11458 = vpop.f32.mrf.mxu0
    %v11459 = vadd.f32 0.0, %v11458
    %v11460 = vpop.f32.mrf.mxu0
    %11461 = vmatprep.mubr.bf16.mxu0 0
    %11462 = vmatmul.mubr.bf16.gmra.mxu0 %v11321
    %v11463 = vpop.f32.mrf.mxu0
    %v11464 = vadd.f32 0.0, %v11463
    %v11465 = vpop.f32.mrf.mxu0
    %v11466 = vpop.f32.mrf.mxu0
    %v11467 = vadd.f32 0.0, %v11466
    %v11468 = vpop.f32.mrf.mxu0
    %11469 = vmatprep.mubr.bf16.mxu0 0
    %11470 = vmatmul.mubr.bf16.gmra.mxu0 %v11322
    %v11471 = vpop.f32.mrf.mxu0
    %v11472 = vadd.f32 0.0, %v11471
    %v11473 = vpop.f32.mrf.mxu0
    %v11474 = vpop.f32.mrf.mxu0
    %v11475 = vadd.f32 0.0, %v11474
    %v11476 = vpop.f32.mrf.mxu0
    %11477 = vmatprep.mubr.bf16.mxu0 0
    %11478 = vmatmul.mubr.bf16.gmra.mxu0 %v11323
    %v11479 = vpop.f32.mrf.mxu0
    %v11480 = vadd.f32 0.0, %v11479
    %v11481 = vpop.f32.mrf.mxu0
    %v11482 = vpop.f32.mrf.mxu0
    %v11483 = vadd.f32 0.0, %v11482
    %v11484 = vpop.f32.mrf.mxu0
    %11485 = vmatprep.mubr.bf16.mxu0 0
    %11486 = vmatmul.mubr.bf16.gmra.mxu0 %v11324
    %v11487 = vpop.f32.mrf.mxu0
    %v11488 = vadd.f32 0.0, %v11487
    %v11489 = vpop.f32.mrf.mxu0
    %v11490 = vpop.f32.mrf.mxu0
    %v11491 = vadd.f32 0.0, %v11490
    %v11492 = vpop.f32.mrf.mxu0
    %11493 = vmatprep.mubr.bf16.mxu0 0
    %11494 = vmatmul.mubr.bf16.gmra.mxu0 %v11325
    %v11495 = vpop.f32.mrf.mxu0
    %v11496 = vadd.f32 0.0, %v11495
    %v11497 = vpop.f32.mrf.mxu0
    %v11498 = vpop.f32.mrf.mxu0
    %v11499 = vadd.f32 0.0, %v11498
    %v11500 = vpop.f32.mrf.mxu0
    %11501 = vmatprep.mubr.bf16.mxu0 0
    %11502 = vmatmul.mubr.bf16.gmra.mxu0 %v11326
    %v11503 = vpop.f32.mrf.mxu0
    %v11504 = vadd.f32 0.0, %v11503
    %v11505 = vpop.f32.mrf.mxu0
    %v11506 = vpop.f32.mrf.mxu0
    %v11507 = vadd.f32 0.0, %v11506
    %v11508 = vpop.f32.mrf.mxu0
    %11509 = vmatprep.mubr.bf16.mxu0 0
    %11510 = vmatmul.mubr.bf16.gmra.mxu0 %v11327
    %v11511 = vpop.f32.mrf.mxu0
    %v11512 = vadd.f32 0.0, %v11511
    %v11513 = vpop.f32.mrf.mxu0
    %v11514 = vpop.f32.mrf.mxu0
    %v11515 = vadd.f32 0.0, %v11514
    %v11516 = vpop.f32.mrf.mxu0
    %11517 = vmatprep.mubr.bf16.mxu0 0
    %11518 = vmatmul.mubr.bf16.gmra.mxu0 %v11328
    %v11519 = vpop.f32.mrf.mxu0
    %v11520 = vadd.f32 0.0, %v11519
    %v11521 = vpop.f32.mrf.mxu0
    %v11522 = vpop.f32.mrf.mxu0
    %v11523 = vadd.f32 0.0, %v11522
    %v11524 = vpop.f32.mrf.mxu0
    %11525 = vmatprep.mubr.bf16.mxu0 0
    %11526 = vmatmul.mubr.bf16.gmra.mxu0 %v11329
    %v11527 = vpop.f32.mrf.mxu0
    %v11528 = vadd.f32 0.0, %v11527
    %v11529 = vpop.f32.mrf.mxu0
    %v11530 = vpop.f32.mrf.mxu0
    %v11531 = vadd.f32 0.0, %v11530
    %v11532 = vpop.f32.mrf.mxu0
    %11533 = vmatprep.mubr.bf16.mxu0 0
    %11534 = vmatmul.mubr.bf16.gmra.mxu0 %v11330
    %v11535 = vpop.f32.mrf.mxu0
    %v11536 = vadd.f32 0.0, %v11535
    %v11537 = vpop.f32.mrf.mxu0
    %v11538 = vpop.f32.mrf.mxu0
    %v11539 = vadd.f32 0.0, %v11538
    %v11540 = vpop.f32.mrf.mxu0
    %11541 = vmatprep.mubr.bf16.mxu0 0
    %11542 = vmatmul.mubr.bf16.gmra.mxu0 %v11331
    %v11543 = vpop.f32.mrf.mxu0
    %v11544 = vadd.f32 0.0, %v11543
    %v11545 = vpop.f32.mrf.mxu0
    %v11546 = vpop.f32.mrf.mxu0
    %v11547 = vadd.f32 0.0, %v11546
    %v11548 = vpop.f32.mrf.mxu0
    %11549 = vmatprep.mubr.bf16.mxu0 0
    %11550 = vmatmul.mubr.bf16.gmra.mxu0 %v11332
    %v11551 = vpop.f32.mrf.mxu0
    %v11552 = vadd.f32 0.0, %v11551
    %v11553 = vpop.f32.mrf.mxu0
    %v11554 = vpop.f32.mrf.mxu0
    %v11555 = vadd.f32 0.0, %v11554
    %v11556 = vpop.f32.mrf.mxu0
    %11557 = vdwg.mxu0
    %v11558 = vpack.c.bf16 %v11435, %v11432
    %v11559 = vpack.c.bf16 %v11443, %v11440
    %v11560 = vpack.c.bf16 %v11451, %v11448
    %v11561 = vpack.c.bf16 %v11459, %v11456
    %v11562 = vpack.c.bf16 %v11467, %v11464
    %v11563 = vpack.c.bf16 %v11475, %v11472
    %v11564 = vpack.c.bf16 %v11483, %v11480
    %v11565 = vpack.c.bf16 %v11491, %v11488
    %v11566 = vpack.c.bf16 %v11499, %v11496
    %v11567 = vpack.c.bf16 %v11507, %v11504
    %v11568 = vpack.c.bf16 %v11515, %v11512
    %v11569 = vpack.c.bf16 %v11523, %v11520
    %v11570 = vpack.c.bf16 %v11531, %v11528
    %v11571 = vpack.c.bf16 %v11539, %v11536
    %v11572 = vpack.c.bf16 %v11547, %v11544
    %v11573 = vpack.c.bf16 %v11555, %v11552
    %v11574 = vld [vmem:[#allocation6] sm:$0xff]
    %v11575 = vld [vmem:[#allocation6 + $0x8] sm:$0xff]
    %s11576 = scalar_lea.vmem %s5, 64
    %v11577 = vld [vmem:[%s11576] sm:$0xf]
    %v11578 = vld [vmem:[%s11576 + $0x4] sm:$0xf]
    %v11579 = vld [vmem:[%s11576 + $0x8] sm:$0xf]
    %v11580 = vld [vmem:[%s11576 + $0xc] sm:$0xf]
    %v11581 = vld [vmem:[%s11576 + $0x10] sm:$0xf]
    %v11582 = vld [vmem:[%s11576 + $0x14] sm:$0xf]
    %v11583 = vld [vmem:[%s11576 + $0x18] sm:$0xf]
    %v11584 = vld [vmem:[%s11576 + $0x1c] sm:$0xf]
    %v11585 = vld [vmem:[%s11576 + $0x20] sm:$0xf]
    %v11586 = vld [vmem:[%s11576 + $0x24] sm:$0xf]
    %v11587 = vld [vmem:[%s11576 + $0x28] sm:$0xf]
    %v11588 = vld [vmem:[%s11576 + $0x2c] sm:$0xf]
    %v11589 = vld [vmem:[%s11576 + $0x30] sm:$0xf]
    %v11590 = vld [vmem:[%s11576 + $0x34] sm:$0xf]
    %v11591 = vld [vmem:[%s11576 + $0x38] sm:$0xf]
    %v11592 = vld [vmem:[%s11576 + $0x3c] sm:$0xf]
    %v11609 = vunpack.c.l.b16 %v11577
    %v11610 = vunpack.c.l.b16 %v11578
    %v11611 = vunpack.c.l.b16 %v11579
    %v11612 = vunpack.c.l.b16 %v11580
    %v11613 = vunpack.c.l.b16 %v11581
    %v11614 = vunpack.c.l.b16 %v11582
    %v11615 = vunpack.c.l.b16 %v11583
    %v11616 = vunpack.c.l.b16 %v11584
    %v11617 = vunpack.c.l.b16 %v11585
    %v11618 = vunpack.c.l.b16 %v11586
    %v11619 = vunpack.c.l.b16 %v11587
    %v11620 = vunpack.c.l.b16 %v11588
    %v11621 = vunpack.c.l.b16 %v11589
    %v11622 = vunpack.c.l.b16 %v11590
    %v11623 = vunpack.c.l.b16 %v11591
    %v11624 = vunpack.c.l.b16 %v11592
    %v11625 = vpack.c.b16 %v11610, %v11609
    %v11626 = vpack.c.b16 %v11612, %v11611
    %v11627 = vpack.c.b16 %v11614, %v11613
    %v11628 = vpack.c.b16 %v11616, %v11615
    %v11629 = vpack.c.b16 %v11618, %v11617
    %v11630 = vpack.c.b16 %v11620, %v11619
    %v11631 = vpack.c.b16 %v11622, %v11621
    %v11632 = vpack.c.b16 %v11624, %v11623
    %11641 = vmatprep.subr.bf16.mxu0 0
    %11642 = vmatpush1.bf16.msra.mxu0 %v11632
    %11643 = vmatprep.subr.bf16.mxu0 0
    %11644 = vmatpush1.bf16.msra.mxu0 %v11631
    %11645 = vmatprep.subr.bf16.mxu0 0
    %11646 = vmatpush1.bf16.msra.mxu0 %v11630
    %11647 = vmatprep.subr.bf16.mxu0 0
    %11648 = vmatpush1.bf16.msra.mxu0 %v11629
    %11649 = vmatprep.subr.bf16.mxu0 0
    %11650 = vmatpush1.bf16.msra.mxu0 %v11628
    %11651 = vmatprep.subr.bf16.mxu0 0
    %11652 = vmatpush1.bf16.msra.mxu0 %v11627
    %11653 = vmatprep.subr.bf16.mxu0 0
    %11654 = vmatpush1.bf16.msra.mxu0 %v11626
    %11655 = vmatprep.subr.bf16.mxu0 0
    %11656 = vmatpush1.bf16.msra.mxu0 %v11625
    %11657 = vmatprep.subr.bf16.mxu0 0
    %11658 = vmatpush2.bf16.msra.mxu0 0
    %11659 = vmatprep.subr.bf16.mxu0 0
    %11660 = vmatpush2.bf16.msra.mxu0 0
    %11661 = vmatprep.subr.bf16.mxu0 0
    %11662 = vmatpush2.bf16.msra.mxu0 0
    %11663 = vmatprep.subr.bf16.mxu0 0
    %11664 = vmatpush2.bf16.msra.mxu0 0
    %11665 = vmatprep.subr.bf16.mxu0 0
    %11666 = vmatpush2.bf16.msra.mxu0 0
    %11667 = vmatprep.subr.bf16.mxu0 0
    %11668 = vmatpush2.bf16.msra.mxu0 0
    %11669 = vmatprep.subr.bf16.mxu0 0
    %11670 = vmatpush2.bf16.msra.mxu0 0
    %11671 = vmatprep.subr.bf16.mxu0 0
    %11672 = vmatpush2.bf16.msra.mxu0 0
    %11673 = vmatprep.mubr.bf16.mxu0 0
    %11674 = vmatmul.mubr.bf16.gmra.mxu0 %v11317
    %v11675 = vpop.f32.mrf.mxu0
    %v11676 = vadd.f32 0.0, %v11675
    %v11677 = vpop.f32.mrf.mxu0
    %v11678 = vpop.f32.mrf.mxu0
    %v11679 = vadd.f32 0.0, %v11678
    %v11680 = vpop.f32.mrf.mxu0
    %11681 = vmatprep.mubr.bf16.mxu0 0
    %11682 = vmatmul.mubr.bf16.gmra.mxu0 %v11318
    %v11683 = vpop.f32.mrf.mxu0
    %v11684 = vadd.f32 0.0, %v11683
    %v11685 = vpop.f32.mrf.mxu0
    %v11686 = vpop.f32.mrf.mxu0
    %v11687 = vadd.f32 0.0, %v11686
    %v11688 = vpop.f32.mrf.mxu0
    %11689 = vmatprep.mubr.bf16.mxu0 0
    %11690 = vmatmul.mubr.bf16.gmra.mxu0 %v11319
    %v11691 = vpop.f32.mrf.mxu0
    %v11692 = vadd.f32 0.0, %v11691
    %v11693 = vpop.f32.mrf.mxu0
    %v11694 = vpop.f32.mrf.mxu0
    %v11695 = vadd.f32 0.0, %v11694
    %v11696 = vpop.f32.mrf.mxu0
    %11697 = vmatprep.mubr.bf16.mxu0 0
    %11698 = vmatmul.mubr.bf16.gmra.mxu0 %v11320
    %v11699 = vpop.f32.mrf.mxu0
    %v11700 = vadd.f32 0.0, %v11699
    %v11701 = vpop.f32.mrf.mxu0
    %v11702 = vpop.f32.mrf.mxu0
    %v11703 = vadd.f32 0.0, %v11702
    %v11704 = vpop.f32.mrf.mxu0
    %11705 = vmatprep.mubr.bf16.mxu0 0
    %11706 = vmatmul.mubr.bf16.gmra.mxu0 %v11321
    %v11707 = vpop.f32.mrf.mxu0
    %v11708 = vadd.f32 0.0, %v11707
    %v11709 = vpop.f32.mrf.mxu0
    %v11710 = vpop.f32.mrf.mxu0
    %v11711 = vadd.f32 0.0, %v11710
    %v11712 = vpop.f32.mrf.mxu0
    %11713 = vmatprep.mubr.bf16.mxu0 0
    %11714 = vmatmul.mubr.bf16.gmra.mxu0 %v11322
    %v11715 = vpop.f32.mrf.mxu0
    %v11716 = vadd.f32 0.0, %v11715
    %v11717 = vpop.f32.mrf.mxu0
    %v11718 = vpop.f32.mrf.mxu0
    %v11719 = vadd.f32 0.0, %v11718
    %v11720 = vpop.f32.mrf.mxu0
    %11721 = vmatprep.mubr.bf16.mxu0 0
    %11722 = vmatmul.mubr.bf16.gmra.mxu0 %v11323
    %v11723 = vpop.f32.mrf.mxu0
    %v11724 = vadd.f32 0.0, %v11723
    %v11725 = vpop.f32.mrf.mxu0
    %v11726 = vpop.f32.mrf.mxu0
    %v11727 = vadd.f32 0.0, %v11726
    %v11728 = vpop.f32.mrf.mxu0
    %11729 = vmatprep.mubr.bf16.mxu0 0
    %11730 = vmatmul.mubr.bf16.gmra.mxu0 %v11324
    %v11731 = vpop.f32.mrf.mxu0
    %v11732 = vadd.f32 0.0, %v11731
    %v11733 = vpop.f32.mrf.mxu0
    %v11734 = vpop.f32.mrf.mxu0
    %v11735 = vadd.f32 0.0, %v11734
    %v11736 = vpop.f32.mrf.mxu0
    %11737 = vmatprep.mubr.bf16.mxu0 0
    %11738 = vmatmul.mubr.bf16.gmra.mxu0 %v11325
    %v11739 = vpop.f32.mrf.mxu0
    %v11740 = vadd.f32 0.0, %v11739
    %v11741 = vpop.f32.mrf.mxu0
    %v11742 = vpop.f32.mrf.mxu0
    %v11743 = vadd.f32 0.0, %v11742
    %v11744 = vpop.f32.mrf.mxu0
    %11745 = vmatprep.mubr.bf16.mxu0 0
    %11746 = vmatmul.mubr.bf16.gmra.mxu0 %v11326
    %v11747 = vpop.f32.mrf.mxu0
    %v11748 = vadd.f32 0.0, %v11747
    %v11749 = vpop.f32.mrf.mxu0
    %v11750 = vpop.f32.mrf.mxu0
    %v11751 = vadd.f32 0.0, %v11750
    %v11752 = vpop.f32.mrf.mxu0
    %11753 = vmatprep.mubr.bf16.mxu0 0
    %11754 = vmatmul.mubr.bf16.gmra.mxu0 %v11327
    %v11755 = vpop.f32.mrf.mxu0
    %v11756 = vadd.f32 0.0, %v11755
    %v11757 = vpop.f32.mrf.mxu0
    %v11758 = vpop.f32.mrf.mxu0
    %v11759 = vadd.f32 0.0, %v11758
    %v11760 = vpop.f32.mrf.mxu0
    %11761 = vmatprep.mubr.bf16.mxu0 0
    %11762 = vmatmul.mubr.bf16.gmra.mxu0 %v11328
    %v11763 = vpop.f32.mrf.mxu0
    %v11764 = vadd.f32 0.0, %v11763
    %v11765 = vpop.f32.mrf.mxu0
    %v11766 = vpop.f32.mrf.mxu0
    %v11767 = vadd.f32 0.0, %v11766
    %v11768 = vpop.f32.mrf.mxu0
    %11769 = vmatprep.mubr.bf16.mxu0 0
    %11770 = vmatmul.mubr.bf16.gmra.mxu0 %v11329
    %v11771 = vpop.f32.mrf.mxu0
    %v11772 = vadd.f32 0.0, %v11771
    %v11773 = vpop.f32.mrf.mxu0
    %v11774 = vpop.f32.mrf.mxu0
    %v11775 = vadd.f32 0.0, %v11774
    %v11776 = vpop.f32.mrf.mxu0
    %11777 = vmatprep.mubr.bf16.mxu0 0
    %11778 = vmatmul.mubr.bf16.gmra.mxu0 %v11330
    %v11779 = vpop.f32.mrf.mxu0
    %v11780 = vadd.f32 0.0, %v11779
    %v11781 = vpop.f32.mrf.mxu0
    %v11782 = vpop.f32.mrf.mxu0
    %v11783 = vadd.f32 0.0, %v11782
    %v11784 = vpop.f32.mrf.mxu0
    %11785 = vmatprep.mubr.bf16.mxu0 0
    %11786 = vmatmul.mubr.bf16.gmra.mxu0 %v11331
    %v11787 = vpop.f32.mrf.mxu0
    %v11788 = vadd.f32 0.0, %v11787
    %v11789 = vpop.f32.mrf.mxu0
    %v11790 = vpop.f32.mrf.mxu0
    %v11791 = vadd.f32 0.0, %v11790
    %v11792 = vpop.f32.mrf.mxu0
    %11793 = vmatprep.mubr.bf16.mxu0 0
    %11794 = vmatmul.mubr.bf16.gmra.mxu0 %v11332
    %v11795 = vpop.f32.mrf.mxu0
    %v11796 = vadd.f32 0.0, %v11795
    %v11797 = vpop.f32.mrf.mxu0
    %v11798 = vpop.f32.mrf.mxu0
    %v11799 = vadd.f32 0.0, %v11798
    %v11800 = vpop.f32.mrf.mxu0
    %11801 = vdwg.mxu0
    %v11802 = vpack.c.bf16 %v11679, %v11676
    %v11803 = vpack.c.bf16 %v11687, %v11684
    %v11804 = vpack.c.bf16 %v11695, %v11692
    %v11805 = vpack.c.bf16 %v11703, %v11700
    %v11806 = vpack.c.bf16 %v11711, %v11708
    %v11807 = vpack.c.bf16 %v11719, %v11716
    %v11808 = vpack.c.bf16 %v11727, %v11724
    %v11809 = vpack.c.bf16 %v11735, %v11732
    %v11810 = vpack.c.bf16 %v11743, %v11740
    %v11811 = vpack.c.bf16 %v11751, %v11748
    %v11812 = vpack.c.bf16 %v11759, %v11756
    %v11813 = vpack.c.bf16 %v11767, %v11764
    %v11814 = vpack.c.bf16 %v11775, %v11772
    %v11815 = vpack.c.bf16 %v11783, %v11780
    %v11816 = vpack.c.bf16 %v11791, %v11788
    %v11817 = vpack.c.bf16 %v11799, %v11796
    %s11818 = scalar_lea.vmem [#allocation6], 16
    %v11819 = vld [vmem:[%s11818] sm:$0xff]
    %v11820 = vld [vmem:[%s11818 + $0x8] sm:$0xff]
    %v11823 = vunpack.c.l.b16 %v11819
    %v11824 = vunpack.c.h.b16 %v11819
    %v11825 = vunpack.c.l.b16 %v11820
    %v11826 = vunpack.c.h.b16 %v11820
    %v11827 = vpack.c.b16 %v11825, %v11823
    %v11828 = vpack.c.b16 %v11826, %v11824
    %11831 = vmatprep.subr.bf16.mxu0 0
    %11832 = vmatpush1.bf16.msra.mxu0 %v11809
    %11833 = vmatprep.subr.bf16.mxu0 0
    %11834 = vmatpush1.bf16.msra.mxu0 %v11808
    %11835 = vmatprep.subr.bf16.mxu0 0
    %11836 = vmatpush1.bf16.msra.mxu0 %v11807
    %11837 = vmatprep.subr.bf16.mxu0 0
    %11838 = vmatpush1.bf16.msra.mxu0 %v11806
    %11839 = vmatprep.subr.bf16.mxu0 0
    %11840 = vmatpush1.bf16.msra.mxu0 %v11805
    %11841 = vmatprep.subr.bf16.mxu0 0
    %11842 = vmatpush1.bf16.msra.mxu0 %v11804
    %11843 = vmatprep.subr.bf16.mxu0 0
    %11844 = vmatpush1.bf16.msra.mxu0 %v11803
    %11845 = vmatprep.subr.bf16.mxu0 0
    %11846 = vmatpush1.bf16.msra.mxu0 %v11802
    %11847 = vmatprep.subr.bf16.mxu0 0
    %11848 = vmatpush2.bf16.msra.mxu0 %v11817
    %11849 = vmatprep.subr.bf16.mxu0 0
    %11850 = vmatpush2.bf16.msra.mxu0 %v11816
    %11851 = vmatprep.subr.bf16.mxu0 0
    %11852 = vmatpush2.bf16.msra.mxu0 %v11815
    %11853 = vmatprep.subr.bf16.mxu0 0
    %11854 = vmatpush2.bf16.msra.mxu0 %v11814
    %11855 = vmatprep.subr.bf16.mxu0 0
    %11856 = vmatpush2.bf16.msra.mxu0 %v11813
    %11857 = vmatprep.subr.bf16.mxu0 0
    %11858 = vmatpush2.bf16.msra.mxu0 %v11812
    %11859 = vmatprep.subr.bf16.mxu0 0
    %11860 = vmatpush2.bf16.msra.mxu0 %v11811
    %11861 = vmatprep.subr.bf16.mxu0 0
    %11862 = vmatpush2.bf16.msra.mxu0 %v11810
    %11863 = vmatprep.mubr.bf16.mxu0 %v11828
    %11864 = vmatmul.mubr.bf16.gmra.mxu0 %v11827
    %v11865 = vpop.f32.mrf.mxu0
    %v11866 = vadd.f32 0.0, %v11865
    %v11867 = vpop.f32.mrf.mxu0
    %v11868 = vpop.f32.mrf.mxu0
    %v11869 = vadd.f32 0.0, %v11868
    %v11870 = vpop.f32.mrf.mxu0
    %11871 = vdwg.mxu0
    %v11874 = vunpack.c.l.b16 %v11574
    %v11875 = vunpack.c.h.b16 %v11574
    %v11876 = vunpack.c.l.b16 %v11575
    %v11877 = vunpack.c.h.b16 %v11575
    %v11878 = vpack.c.b16 %v11876, %v11874
    %v11879 = vpack.c.b16 %v11877, %v11875
    %11882 = vmatprep.subr.bf16.mxu0 0
    %11883 = vmatpush1.bf16.msra.mxu0 %v11565
    %11884 = vmatprep.subr.bf16.mxu0 0
    %11885 = vmatpush1.bf16.msra.mxu0 %v11564
    %11886 = vmatprep.subr.bf16.mxu0 0
    %11887 = vmatpush1.bf16.msra.mxu0 %v11563
    %11888 = vmatprep.subr.bf16.mxu0 0
    %11889 = vmatpush1.bf16.msra.mxu0 %v11562
    %11890 = vmatprep.subr.bf16.mxu0 0
    %11891 = vmatpush1.bf16.msra.mxu0 %v11561
    %11892 = vmatprep.subr.bf16.mxu0 0
    %11893 = vmatpush1.bf16.msra.mxu0 %v11560
    %11894 = vmatprep.subr.bf16.mxu0 0
    %11895 = vmatpush1.bf16.msra.mxu0 %v11559
    %11896 = vmatprep.subr.bf16.mxu0 0
    %11897 = vmatpush1.bf16.msra.mxu0 %v11558
    %11898 = vmatprep.subr.bf16.mxu0 0
    %11899 = vmatpush2.bf16.msra.mxu0 %v11573
    %11900 = vmatprep.subr.bf16.mxu0 0
    %11901 = vmatpush2.bf16.msra.mxu0 %v11572
    %11902 = vmatprep.subr.bf16.mxu0 0
    %11903 = vmatpush2.bf16.msra.mxu0 %v11571
    %11904 = vmatprep.subr.bf16.mxu0 0
    %11905 = vmatpush2.bf16.msra.mxu0 %v11570
    %11906 = vmatprep.subr.bf16.mxu0 0
    %11907 = vmatpush2.bf16.msra.mxu0 %v11569
    %11908 = vmatprep.subr.bf16.mxu0 0
    %11909 = vmatpush2.bf16.msra.mxu0 %v11568
    %11910 = vmatprep.subr.bf16.mxu0 0
    %11911 = vmatpush2.bf16.msra.mxu0 %v11567
    %11912 = vmatprep.subr.bf16.mxu0 0
    %11913 = vmatpush2.bf16.msra.mxu0 %v11566
    %11914 = vmatprep.mubr.bf16.mxu0 %v11879
    %11915 = vmatmul.mubr.bf16.gmra.mxu0 %v11878
    %v11916 = vpop.f32.mrf.mxu0
    %v11917 = vadd.f32 %v11866, %v11916
    %v11918 = vpop.f32.mrf.mxu0
    %v11919 = vpop.f32.mrf.mxu0
    %v11920 = vadd.f32 %v11869, %v11919
    %v11921 = vpop.f32.mrf.mxu0
    %11922 = vdwg.mxu0
    %s11923 = scalar_lea.vmem %s5, 128
    %v11924 = vld [vmem:[%s11923] sm:$0xf]
    %v11925 = vld [vmem:[%s11923 + $0x4] sm:$0xf]
    %v11926 = vld [vmem:[%s11923 + $0x8] sm:$0xf]
    %v11927 = vld [vmem:[%s11923 + $0xc] sm:$0xf]
    %v11928 = vld [vmem:[%s11923 + $0x10] sm:$0xf]
    %v11929 = vld [vmem:[%s11923 + $0x14] sm:$0xf]
    %v11930 = vld [vmem:[%s11923 + $0x18] sm:$0xf]
    %v11931 = vld [vmem:[%s11923 + $0x1c] sm:$0xf]
    %v11932 = vld [vmem:[%s11923 + $0x20] sm:$0xf]
    %v11933 = vld [vmem:[%s11923 + $0x24] sm:$0xf]
    %v11934 = vld [vmem:[%s11923 + $0x28] sm:$0xf]
    %v11935 = vld [vmem:[%s11923 + $0x2c] sm:$0xf]
    %v11936 = vld [vmem:[%s11923 + $0x30] sm:$0xf]
    %v11937 = vld [vmem:[%s11923 + $0x34] sm:$0xf]
    %v11938 = vld [vmem:[%s11923 + $0x38] sm:$0xf]
    %v11939 = vld [vmem:[%s11923 + $0x3c] sm:$0xf]
    %v11956 = vunpack.c.l.b16 %v11924
    %v11957 = vunpack.c.l.b16 %v11925
    %v11958 = vunpack.c.l.b16 %v11926
    %v11959 = vunpack.c.l.b16 %v11927
    %v11960 = vunpack.c.l.b16 %v11928
    %v11961 = vunpack.c.l.b16 %v11929
    %v11962 = vunpack.c.l.b16 %v11930
    %v11963 = vunpack.c.l.b16 %v11931
    %v11964 = vunpack.c.l.b16 %v11932
    %v11965 = vunpack.c.l.b16 %v11933
    %v11966 = vunpack.c.l.b16 %v11934
    %v11967 = vunpack.c.l.b16 %v11935
    %v11968 = vunpack.c.l.b16 %v11936
    %v11969 = vunpack.c.l.b16 %v11937
    %v11970 = vunpack.c.l.b16 %v11938
    %v11971 = vunpack.c.l.b16 %v11939
    %v11972 = vpack.c.b16 %v11957, %v11956
    %v11973 = vpack.c.b16 %v11959, %v11958
    %v11974 = vpack.c.b16 %v11961, %v11960
    %v11975 = vpack.c.b16 %v11963, %v11962
    %v11976 = vpack.c.b16 %v11965, %v11964
    %v11977 = vpack.c.b16 %v11967, %v11966
    %v11978 = vpack.c.b16 %v11969, %v11968
    %v11979 = vpack.c.b16 %v11971, %v11970
    %11988 = vmatprep.subr.bf16.mxu0 0
    %11989 = vmatpush1.bf16.msra.mxu0 %v11979
    %11990 = vmatprep.subr.bf16.mxu0 0
    %11991 = vmatpush1.bf16.msra.mxu0 %v11978
    %11992 = vmatprep.subr.bf16.mxu0 0
    %11993 = vmatpush1.bf16.msra.mxu0 %v11977
    %11994 = vmatprep.subr.bf16.mxu0 0
    %11995 = vmatpush1.bf16.msra.mxu0 %v11976
    %11996 = vmatprep.subr.bf16.mxu0 0
    %11997 = vmatpush1.bf16.msra.mxu0 %v11975
    %11998 = vmatprep.subr.bf16.mxu0 0
    %11999 = vmatpush1.bf16.msra.mxu0 %v11974
    %12000 = vmatprep.subr.bf16.mxu0 0
    %12001 = vmatpush1.bf16.msra.mxu0 %v11973
    %12002 = vmatprep.subr.bf16.mxu0 0
    %12003 = vmatpush1.bf16.msra.mxu0 %v11972
    %12004 = vmatprep.subr.bf16.mxu0 0
    %12005 = vmatpush2.bf16.msra.mxu0 0
    %12006 = vmatprep.subr.bf16.mxu0 0
    %12007 = vmatpush2.bf16.msra.mxu0 0
    %12008 = vmatprep.subr.bf16.mxu0 0
    %12009 = vmatpush2.bf16.msra.mxu0 0
    %12010 = vmatprep.subr.bf16.mxu0 0
    %12011 = vmatpush2.bf16.msra.mxu0 0
    %12012 = vmatprep.subr.bf16.mxu0 0
    %12013 = vmatpush2.bf16.msra.mxu0 0
    %12014 = vmatprep.subr.bf16.mxu0 0
    %12015 = vmatpush2.bf16.msra.mxu0 0
    %12016 = vmatprep.subr.bf16.mxu0 0
    %12017 = vmatpush2.bf16.msra.mxu0 0
    %12018 = vmatprep.subr.bf16.mxu0 0
    %12019 = vmatpush2.bf16.msra.mxu0 0
    %12020 = vmatprep.mubr.bf16.mxu0 0
    %12021 = vmatmul.mubr.bf16.gmra.mxu0 %v11317
    %v12022 = vpop.f32.mrf.mxu0
    %v12023 = vadd.f32 0.0, %v12022
    %v12024 = vpop.f32.mrf.mxu0
    %v12025 = vpop.f32.mrf.mxu0
    %v12026 = vadd.f32 0.0, %v12025
    %v12027 = vpop.f32.mrf.mxu0
    %12028 = vmatprep.mubr.bf16.mxu0 0
    %12029 = vmatmul.mubr.bf16.gmra.mxu0 %v11318
    %v12030 = vpop.f32.mrf.mxu0
    %v12031 = vadd.f32 0.0, %v12030
    %v12032 = vpop.f32.mrf.mxu0
    %v12033 = vpop.f32.mrf.mxu0
    %v12034 = vadd.f32 0.0, %v12033
    %v12035 = vpop.f32.mrf.mxu0
    %12036 = vmatprep.mubr.bf16.mxu0 0
    %12037 = vmatmul.mubr.bf16.gmra.mxu0 %v11319
    %v12038 = vpop.f32.mrf.mxu0
    %v12039 = vadd.f32 0.0, %v12038
    %v12040 = vpop.f32.mrf.mxu0
    %v12041 = vpop.f32.mrf.mxu0
    %v12042 = vadd.f32 0.0, %v12041
    %v12043 = vpop.f32.mrf.mxu0
    %12044 = vmatprep.mubr.bf16.mxu0 0
    %12045 = vmatmul.mubr.bf16.gmra.mxu0 %v11320
    %v12046 = vpop.f32.mrf.mxu0
    %v12047 = vadd.f32 0.0, %v12046
    %v12048 = vpop.f32.mrf.mxu0
    %v12049 = vpop.f32.mrf.mxu0
    %v12050 = vadd.f32 0.0, %v12049
    %v12051 = vpop.f32.mrf.mxu0
    %12052 = vmatprep.mubr.bf16.mxu0 0
    %12053 = vmatmul.mubr.bf16.gmra.mxu0 %v11321
    %v12054 = vpop.f32.mrf.mxu0
    %v12055 = vadd.f32 0.0, %v12054
    %v12056 = vpop.f32.mrf.mxu0
    %v12057 = vpop.f32.mrf.mxu0
    %v12058 = vadd.f32 0.0, %v12057
    %v12059 = vpop.f32.mrf.mxu0
    %12060 = vmatprep.mubr.bf16.mxu0 0
    %12061 = vmatmul.mubr.bf16.gmra.mxu0 %v11322
    %v12062 = vpop.f32.mrf.mxu0
    %v12063 = vadd.f32 0.0, %v12062
    %v12064 = vpop.f32.mrf.mxu0
    %v12065 = vpop.f32.mrf.mxu0
    %v12066 = vadd.f32 0.0, %v12065
    %v12067 = vpop.f32.mrf.mxu0
    %12068 = vmatprep.mubr.bf16.mxu0 0
    %12069 = vmatmul.mubr.bf16.gmra.mxu0 %v11323
    %v12070 = vpop.f32.mrf.mxu0
    %v12071 = vadd.f32 0.0, %v12070
    %v12072 = vpop.f32.mrf.mxu0
    %v12073 = vpop.f32.mrf.mxu0
    %v12074 = vadd.f32 0.0, %v12073
    %v12075 = vpop.f32.mrf.mxu0
    %12076 = vmatprep.mubr.bf16.mxu0 0
    %12077 = vmatmul.mubr.bf16.gmra.mxu0 %v11324
    %v12078 = vpop.f32.mrf.mxu0
    %v12079 = vadd.f32 0.0, %v12078
    %v12080 = vpop.f32.mrf.mxu0
    %v12081 = vpop.f32.mrf.mxu0
    %v12082 = vadd.f32 0.0, %v12081
    %v12083 = vpop.f32.mrf.mxu0
    %12084 = vmatprep.mubr.bf16.mxu0 0
    %12085 = vmatmul.mubr.bf16.gmra.mxu0 %v11325
    %v12086 = vpop.f32.mrf.mxu0
    %v12087 = vadd.f32 0.0, %v12086
    %v12088 = vpop.f32.mrf.mxu0
    %v12089 = vpop.f32.mrf.mxu0
    %v12090 = vadd.f32 0.0, %v12089
    %v12091 = vpop.f32.mrf.mxu0
    %12092 = vmatprep.mubr.bf16.mxu0 0
    %12093 = vmatmul.mubr.bf16.gmra.mxu0 %v11326
    %v12094 = vpop.f32.mrf.mxu0
    %v12095 = vadd.f32 0.0, %v12094
    %v12096 = vpop.f32.mrf.mxu0
    %v12097 = vpop.f32.mrf.mxu0
    %v12098 = vadd.f32 0.0, %v12097
    %v12099 = vpop.f32.mrf.mxu0
    %12100 = vmatprep.mubr.bf16.mxu0 0
    %12101 = vmatmul.mubr.bf16.gmra.mxu0 %v11327
    %v12102 = vpop.f32.mrf.mxu0
    %v12103 = vadd.f32 0.0, %v12102
    %v12104 = vpop.f32.mrf.mxu0
    %v12105 = vpop.f32.mrf.mxu0
    %v12106 = vadd.f32 0.0, %v12105
    %v12107 = vpop.f32.mrf.mxu0
    %12108 = vmatprep.mubr.bf16.mxu0 0
    %12109 = vmatmul.mubr.bf16.gmra.mxu0 %v11328
    %v12110 = vpop.f32.mrf.mxu0
    %v12111 = vadd.f32 0.0, %v12110
    %v12112 = vpop.f32.mrf.mxu0
    %v12113 = vpop.f32.mrf.mxu0
    %v12114 = vadd.f32 0.0, %v12113
    %v12115 = vpop.f32.mrf.mxu0
    %12116 = vmatprep.mubr.bf16.mxu0 0
    %12117 = vmatmul.mubr.bf16.gmra.mxu0 %v11329
    %v12118 = vpop.f32.mrf.mxu0
    %v12119 = vadd.f32 0.0, %v12118
    %v12120 = vpop.f32.mrf.mxu0
    %v12121 = vpop.f32.mrf.mxu0
    %v12122 = vadd.f32 0.0, %v12121
    %v12123 = vpop.f32.mrf.mxu0
    %12124 = vmatprep.mubr.bf16.mxu0 0
    %12125 = vmatmul.mubr.bf16.gmra.mxu0 %v11330
    %v12126 = vpop.f32.mrf.mxu0
    %v12127 = vadd.f32 0.0, %v12126
    %v12128 = vpop.f32.mrf.mxu0
    %v12129 = vpop.f32.mrf.mxu0
    %v12130 = vadd.f32 0.0, %v12129
    %v12131 = vpop.f32.mrf.mxu0
    %12132 = vmatprep.mubr.bf16.mxu0 0
    %12133 = vmatmul.mubr.bf16.gmra.mxu0 %v11331
    %v12134 = vpop.f32.mrf.mxu0
    %v12135 = vadd.f32 0.0, %v12134
    %v12136 = vpop.f32.mrf.mxu0
    %v12137 = vpop.f32.mrf.mxu0
    %v12138 = vadd.f32 0.0, %v12137
    %v12139 = vpop.f32.mrf.mxu0
    %12140 = vmatprep.mubr.bf16.mxu0 0
    %12141 = vmatmul.mubr.bf16.gmra.mxu0 %v11332
    %v12142 = vpop.f32.mrf.mxu0
    %v12143 = vadd.f32 0.0, %v12142
    %v12144 = vpop.f32.mrf.mxu0
    %v12145 = vpop.f32.mrf.mxu0
    %v12146 = vadd.f32 0.0, %v12145
    %v12147 = vpop.f32.mrf.mxu0
    %12148 = vdwg.mxu0
    %v12149 = vpack.c.bf16 %v12026, %v12023
    %v12150 = vpack.c.bf16 %v12034, %v12031
    %v12151 = vpack.c.bf16 %v12042, %v12039
    %v12152 = vpack.c.bf16 %v12050, %v12047
    %v12153 = vpack.c.bf16 %v12058, %v12055
    %v12154 = vpack.c.bf16 %v12066, %v12063
    %v12155 = vpack.c.bf16 %v12074, %v12071
    %v12156 = vpack.c.bf16 %v12082, %v12079
    %v12157 = vpack.c.bf16 %v12090, %v12087
    %v12158 = vpack.c.bf16 %v12098, %v12095
    %v12159 = vpack.c.bf16 %v12106, %v12103
    %v12160 = vpack.c.bf16 %v12114, %v12111
    %v12161 = vpack.c.bf16 %v12122, %v12119
    %v12162 = vpack.c.bf16 %v12130, %v12127
    %v12163 = vpack.c.bf16 %v12138, %v12135
    %v12164 = vpack.c.bf16 %v12146, %v12143
    %s12165 = scalar_lea.vmem [#allocation6], 32
    %v12166 = vld [vmem:[%s12165] sm:$0xff]
    %v12167 = vld [vmem:[%s12165 + $0x8] sm:$0xff]
    %v12170 = vunpack.c.l.b16 %v12166
    %v12171 = vunpack.c.h.b16 %v12166
    %v12172 = vunpack.c.l.b16 %v12167
    %v12173 = vunpack.c.h.b16 %v12167
    %v12174 = vpack.c.b16 %v12172, %v12170
    %v12175 = vpack.c.b16 %v12173, %v12171
    %12178 = vmatprep.subr.bf16.mxu0 0
    %12179 = vmatpush1.bf16.msra.mxu0 %v12156
    %12180 = vmatprep.subr.bf16.mxu0 0
    %12181 = vmatpush1.bf16.msra.mxu0 %v12155
    %12182 = vmatprep.subr.bf16.mxu0 0
    %12183 = vmatpush1.bf16.msra.mxu0 %v12154
    %12184 = vmatprep.subr.bf16.mxu0 0
    %12185 = vmatpush1.bf16.msra.mxu0 %v12153
    %12186 = vmatprep.subr.bf16.mxu0 0
    %12187 = vmatpush1.bf16.msra.mxu0 %v12152
    %12188 = vmatprep.subr.bf16.mxu0 0
    %12189 = vmatpush1.bf16.msra.mxu0 %v12151
    %12190 = vmatprep.subr.bf16.mxu0 0
    %12191 = vmatpush1.bf16.msra.mxu0 %v12150
    %12192 = vmatprep.subr.bf16.mxu0 0
    %12193 = vmatpush1.bf16.msra.mxu0 %v12149
    %12194 = vmatprep.subr.bf16.mxu0 0
    %12195 = vmatpush2.bf16.msra.mxu0 %v12164
    %12196 = vmatprep.subr.bf16.mxu0 0
    %12197 = vmatpush2.bf16.msra.mxu0 %v12163
    %12198 = vmatprep.subr.bf16.mxu0 0
    %12199 = vmatpush2.bf16.msra.mxu0 %v12162
    %12200 = vmatprep.subr.bf16.mxu0 0
    %12201 = vmatpush2.bf16.msra.mxu0 %v12161
    %12202 = vmatprep.subr.bf16.mxu0 0
    %12203 = vmatpush2.bf16.msra.mxu0 %v12160
    %12204 = vmatprep.subr.bf16.mxu0 0
    %12205 = vmatpush2.bf16.msra.mxu0 %v12159
    %12206 = vmatprep.subr.bf16.mxu0 0
    %12207 = vmatpush2.bf16.msra.mxu0 %v12158
    %12208 = vmatprep.subr.bf16.mxu0 0
    %12209 = vmatpush2.bf16.msra.mxu0 %v12157
    %12210 = vmatprep.mubr.bf16.mxu0 %v12175
    %12211 = vmatmul.mubr.bf16.gmra.mxu0 %v12174
    %v12212 = vpop.f32.mrf.mxu0
    %v12213 = vadd.f32 0.0, %v12212
    %v12214 = vpop.f32.mrf.mxu0
    %v12215 = vpop.f32.mrf.mxu0
    %v12216 = vadd.f32 0.0, %v12215
    %v12217 = vpop.f32.mrf.mxu0
    %12218 = vdwg.mxu0
    %v12219 = vadd.f32 %v11917, %v12213
    %v12220 = vadd.f32 %v11920, %v12216
    %s12221 = scalar_lea.vmem %s5, 192
    %v12222 = vld [vmem:[%s12221] sm:$0xf]
    %v12223 = vld [vmem:[%s12221 + $0x4] sm:$0xf]
    %v12224 = vld [vmem:[%s12221 + $0x8] sm:$0xf]
    %v12225 = vld [vmem:[%s12221 + $0xc] sm:$0xf]
    %v12226 = vld [vmem:[%s12221 + $0x10] sm:$0xf]
    %v12227 = vld [vmem:[%s12221 + $0x14] sm:$0xf]
    %v12228 = vld [vmem:[%s12221 + $0x18] sm:$0xf]
    %v12229 = vld [vmem:[%s12221 + $0x1c] sm:$0xf]
    %v12230 = vld [vmem:[%s12221 + $0x20] sm:$0xf]
    %v12231 = vld [vmem:[%s12221 + $0x24] sm:$0xf]
    %v12232 = vld [vmem:[%s12221 + $0x28] sm:$0xf]
    %v12233 = vld [vmem:[%s12221 + $0x2c] sm:$0xf]
    %v12234 = vld [vmem:[%s12221 + $0x30] sm:$0xf]
    %v12235 = vld [vmem:[%s12221 + $0x34] sm:$0xf]
    %v12236 = vld [vmem:[%s12221 + $0x38] sm:$0xf]
    %v12237 = vld [vmem:[%s12221 + $0x3c] sm:$0xf]
    %v12254 = vunpack.c.l.b16 %v12222
    %v12255 = vunpack.c.l.b16 %v12223
    %v12256 = vunpack.c.l.b16 %v12224
    %v12257 = vunpack.c.l.b16 %v12225
    %v12258 = vunpack.c.l.b16 %v12226
    %v12259 = vunpack.c.l.b16 %v12227
    %v12260 = vunpack.c.l.b16 %v12228
    %v12261 = vunpack.c.l.b16 %v12229
    %v12262 = vunpack.c.l.b16 %v12230
    %v12263 = vunpack.c.l.b16 %v12231
    %v12264 = vunpack.c.l.b16 %v12232
    %v12265 = vunpack.c.l.b16 %v12233
    %v12266 = vunpack.c.l.b16 %v12234
    %v12267 = vunpack.c.l.b16 %v12235
    %v12268 = vunpack.c.l.b16 %v12236
    %v12269 = vunpack.c.l.b16 %v12237
    %v12270 = vpack.c.b16 %v12255, %v12254
    %v12271 = vpack.c.b16 %v12257, %v12256
    %v12272 = vpack.c.b16 %v12259, %v12258
    %v12273 = vpack.c.b16 %v12261, %v12260
    %v12274 = vpack.c.b16 %v12263, %v12262
    %v12275 = vpack.c.b16 %v12265, %v12264
    %v12276 = vpack.c.b16 %v12267, %v12266
    %v12277 = vpack.c.b16 %v12269, %v12268
    %12286 = vmatprep.subr.bf16.mxu0 0
    %12287 = vmatpush1.bf16.msra.mxu0 %v12277
    %12288 = vmatprep.subr.bf16.mxu0 0
    %12289 = vmatpush1.bf16.msra.mxu0 %v12276
    %12290 = vmatprep.subr.bf16.mxu0 0
    %12291 = vmatpush1.bf16.msra.mxu0 %v12275
    %12292 = vmatprep.subr.bf16.mxu0 0
    %12293 = vmatpush1.bf16.msra.mxu0 %v12274
    %12294 = vmatprep.subr.bf16.mxu0 0
    %12295 = vmatpush1.bf16.msra.mxu0 %v12273
    %12296 = vmatprep.subr.bf16.mxu0 0
    %12297 = vmatpush1.bf16.msra.mxu0 %v12272
    %12298 = vmatprep.subr.bf16.mxu0 0
    %12299 = vmatpush1.bf16.msra.mxu0 %v12271
    %12300 = vmatprep.subr.bf16.mxu0 0
    %12301 = vmatpush1.bf16.msra.mxu0 %v12270
    %12302 = vmatprep.subr.bf16.mxu0 0
    %12303 = vmatpush2.bf16.msra.mxu0 0
    %12304 = vmatprep.subr.bf16.mxu0 0
    %12305 = vmatpush2.bf16.msra.mxu0 0
    %12306 = vmatprep.subr.bf16.mxu0 0
    %12307 = vmatpush2.bf16.msra.mxu0 0
    %12308 = vmatprep.subr.bf16.mxu0 0
    %12309 = vmatpush2.bf16.msra.mxu0 0
    %12310 = vmatprep.subr.bf16.mxu0 0
    %12311 = vmatpush2.bf16.msra.mxu0 0
    %12312 = vmatprep.subr.bf16.mxu0 0
    %12313 = vmatpush2.bf16.msra.mxu0 0
    %12314 = vmatprep.subr.bf16.mxu0 0
    %12315 = vmatpush2.bf16.msra.mxu0 0
    %12316 = vmatprep.subr.bf16.mxu0 0
    %12317 = vmatpush2.bf16.msra.mxu0 0
    %12318 = vmatprep.mubr.bf16.mxu0 0
    %12319 = vmatmul.mubr.bf16.gmra.mxu0 %v11317
    %v12320 = vpop.f32.mrf.mxu0
    %v12321 = vadd.f32 0.0, %v12320
    %v12322 = vpop.f32.mrf.mxu0
    %v12323 = vpop.f32.mrf.mxu0
    %v12324 = vadd.f32 0.0, %v12323
    %v12325 = vpop.f32.mrf.mxu0
    %12326 = vmatprep.mubr.bf16.mxu0 0
    %12327 = vmatmul.mubr.bf16.gmra.mxu0 %v11318
    %v12328 = vpop.f32.mrf.mxu0
    %v12329 = vadd.f32 0.0, %v12328
    %v12330 = vpop.f32.mrf.mxu0
    %v12331 = vpop.f32.mrf.mxu0
    %v12332 = vadd.f32 0.0, %v12331
    %v12333 = vpop.f32.mrf.mxu0
    %12334 = vmatprep.mubr.bf16.mxu0 0
    %12335 = vmatmul.mubr.bf16.gmra.mxu0 %v11319
    %v12336 = vpop.f32.mrf.mxu0
    %v12337 = vadd.f32 0.0, %v12336
    %v12338 = vpop.f32.mrf.mxu0
    %v12339 = vpop.f32.mrf.mxu0
    %v12340 = vadd.f32 0.0, %v12339
    %v12341 = vpop.f32.mrf.mxu0
    %12342 = vmatprep.mubr.bf16.mxu0 0
    %12343 = vmatmul.mubr.bf16.gmra.mxu0 %v11320
    %v12344 = vpop.f32.mrf.mxu0
    %v12345 = vadd.f32 0.0, %v12344
    %v12346 = vpop.f32.mrf.mxu0
    %v12347 = vpop.f32.mrf.mxu0
    %v12348 = vadd.f32 0.0, %v12347
    %v12349 = vpop.f32.mrf.mxu0
    %12350 = vmatprep.mubr.bf16.mxu0 0
    %12351 = vmatmul.mubr.bf16.gmra.mxu0 %v11321
    %v12352 = vpop.f32.mrf.mxu0
    %v12353 = vadd.f32 0.0, %v12352
    %v12354 = vpop.f32.mrf.mxu0
    %v12355 = vpop.f32.mrf.mxu0
    %v12356 = vadd.f32 0.0, %v12355
    %v12357 = vpop.f32.mrf.mxu0
    %12358 = vmatprep.mubr.bf16.mxu0 0
    %12359 = vmatmul.mubr.bf16.gmra.mxu0 %v11322
    %v12360 = vpop.f32.mrf.mxu0
    %v12361 = vadd.f32 0.0, %v12360
    %v12362 = vpop.f32.mrf.mxu0
    %v12363 = vpop.f32.mrf.mxu0
    %v12364 = vadd.f32 0.0, %v12363
    %v12365 = vpop.f32.mrf.mxu0
    %12366 = vmatprep.mubr.bf16.mxu0 0
    %12367 = vmatmul.mubr.bf16.gmra.mxu0 %v11323
    %v12368 = vpop.f32.mrf.mxu0
    %v12369 = vadd.f32 0.0, %v12368
    %v12370 = vpop.f32.mrf.mxu0
    %v12371 = vpop.f32.mrf.mxu0
    %v12372 = vadd.f32 0.0, %v12371
    %v12373 = vpop.f32.mrf.mxu0
    %12374 = vmatprep.mubr.bf16.mxu0 0
    %12375 = vmatmul.mubr.bf16.gmra.mxu0 %v11324
    %v12376 = vpop.f32.mrf.mxu0
    %v12377 = vadd.f32 0.0, %v12376
    %v12378 = vpop.f32.mrf.mxu0
    %v12379 = vpop.f32.mrf.mxu0
    %v12380 = vadd.f32 0.0, %v12379
    %v12381 = vpop.f32.mrf.mxu0
    %12382 = vmatprep.mubr.bf16.mxu0 0
    %12383 = vmatmul.mubr.bf16.gmra.mxu0 %v11325
    %v12384 = vpop.f32.mrf.mxu0
    %v12385 = vadd.f32 0.0, %v12384
    %v12386 = vpop.f32.mrf.mxu0
    %v12387 = vpop.f32.mrf.mxu0
    %v12388 = vadd.f32 0.0, %v12387
    %v12389 = vpop.f32.mrf.mxu0
    %12390 = vmatprep.mubr.bf16.mxu0 0
    %12391 = vmatmul.mubr.bf16.gmra.mxu0 %v11326
    %v12392 = vpop.f32.mrf.mxu0
    %v12393 = vadd.f32 0.0, %v12392
    %v12394 = vpop.f32.mrf.mxu0
    %v12395 = vpop.f32.mrf.mxu0
    %v12396 = vadd.f32 0.0, %v12395
    %v12397 = vpop.f32.mrf.mxu0
    %12398 = vmatprep.mubr.bf16.mxu0 0
    %12399 = vmatmul.mubr.bf16.gmra.mxu0 %v11327
    %v12400 = vpop.f32.mrf.mxu0
    %v12401 = vadd.f32 0.0, %v12400
    %v12402 = vpop.f32.mrf.mxu0
    %v12403 = vpop.f32.mrf.mxu0
    %v12404 = vadd.f32 0.0, %v12403
    %v12405 = vpop.f32.mrf.mxu0
    %12406 = vmatprep.mubr.bf16.mxu0 0
    %12407 = vmatmul.mubr.bf16.gmra.mxu0 %v11328
    %v12408 = vpop.f32.mrf.mxu0
    %v12409 = vadd.f32 0.0, %v12408
    %v12410 = vpop.f32.mrf.mxu0
    %v12411 = vpop.f32.mrf.mxu0
    %v12412 = vadd.f32 0.0, %v12411
    %v12413 = vpop.f32.mrf.mxu0
    %12414 = vmatprep.mubr.bf16.mxu0 0
    %12415 = vmatmul.mubr.bf16.gmra.mxu0 %v11329
    %v12416 = vpop.f32.mrf.mxu0
    %v12417 = vadd.f32 0.0, %v12416
    %v12418 = vpop.f32.mrf.mxu0
    %v12419 = vpop.f32.mrf.mxu0
    %v12420 = vadd.f32 0.0, %v12419
    %v12421 = vpop.f32.mrf.mxu0
    %12422 = vmatprep.mubr.bf16.mxu0 0
    %12423 = vmatmul.mubr.bf16.gmra.mxu0 %v11330
    %v12424 = vpop.f32.mrf.mxu0
    %v12425 = vadd.f32 0.0, %v12424
    %v12426 = vpop.f32.mrf.mxu0
    %v12427 = vpop.f32.mrf.mxu0
    %v12428 = vadd.f32 0.0, %v12427
    %v12429 = vpop.f32.mrf.mxu0
    %12430 = vmatprep.mubr.bf16.mxu0 0
    %12431 = vmatmul.mubr.bf16.gmra.mxu0 %v11331
    %v12432 = vpop.f32.mrf.mxu0
    %v12433 = vadd.f32 0.0, %v12432
    %v12434 = vpop.f32.mrf.mxu0
    %v12435 = vpop.f32.mrf.mxu0
    %v12436 = vadd.f32 0.0, %v12435
    %v12437 = vpop.f32.mrf.mxu0
    %12438 = vmatprep.mubr.bf16.mxu0 0
    %12439 = vmatmul.mubr.bf16.gmra.mxu0 %v11332
    %v12440 = vpop.f32.mrf.mxu0
    %v12441 = vadd.f32 0.0, %v12440
    %v12442 = vpop.f32.mrf.mxu0
    %v12443 = vpop.f32.mrf.mxu0
    %v12444 = vadd.f32 0.0, %v12443
    %v12445 = vpop.f32.mrf.mxu0
    %12446 = vdwg.mxu0
    %v12447 = vpack.c.bf16 %v12324, %v12321
    %v12448 = vpack.c.bf16 %v12332, %v12329
    %v12449 = vpack.c.bf16 %v12340, %v12337
    %v12450 = vpack.c.bf16 %v12348, %v12345
    %v12451 = vpack.c.bf16 %v12356, %v12353
    %v12452 = vpack.c.bf16 %v12364, %v12361
    %v12453 = vpack.c.bf16 %v12372, %v12369
    %v12454 = vpack.c.bf16 %v12380, %v12377
    %v12455 = vpack.c.bf16 %v12388, %v12385
    %v12456 = vpack.c.bf16 %v12396, %v12393
    %v12457 = vpack.c.bf16 %v12404, %v12401
    %v12458 = vpack.c.bf16 %v12412, %v12409
    %v12459 = vpack.c.bf16 %v12420, %v12417
    %v12460 = vpack.c.bf16 %v12428, %v12425
    %v12461 = vpack.c.bf16 %v12436, %v12433
    %v12462 = vpack.c.bf16 %v12444, %v12441
    %s12463 = scalar_lea.vmem [#allocation6], 48
    %v12464 = vld [vmem:[%s12463] sm:$0xff]
    %v12465 = vld [vmem:[%s12463 + $0x8] sm:$0xff]
    %v12468 = vunpack.c.l.b16 %v12464
    %v12469 = vunpack.c.h.b16 %v12464
    %v12470 = vunpack.c.l.b16 %v12465
    %v12471 = vunpack.c.h.b16 %v12465
    %v12472 = vpack.c.b16 %v12470, %v12468
    %v12473 = vpack.c.b16 %v12471, %v12469
    %12476 = vmatprep.subr.bf16.mxu0 0
    %12477 = vmatpush1.bf16.msra.mxu0 %v12454
    %12478 = vmatprep.subr.bf16.mxu0 0
    %12479 = vmatpush1.bf16.msra.mxu0 %v12453
    %12480 = vmatprep.subr.bf16.mxu0 0
    %12481 = vmatpush1.bf16.msra.mxu0 %v12452
    %12482 = vmatprep.subr.bf16.mxu0 0
    %12483 = vmatpush1.bf16.msra.mxu0 %v12451
    %12484 = vmatprep.subr.bf16.mxu0 0
    %12485 = vmatpush1.bf16.msra.mxu0 %v12450
    %12486 = vmatprep.subr.bf16.mxu0 0
    %12487 = vmatpush1.bf16.msra.mxu0 %v12449
    %12488 = vmatprep.subr.bf16.mxu0 0
    %12489 = vmatpush1.bf16.msra.mxu0 %v12448
    %12490 = vmatprep.subr.bf16.mxu0 0
    %12491 = vmatpush1.bf16.msra.mxu0 %v12447
    %12492 = vmatprep.subr.bf16.mxu0 0
    %12493 = vmatpush2.bf16.msra.mxu0 %v12462
    %12494 = vmatprep.subr.bf16.mxu0 0
    %12495 = vmatpush2.bf16.msra.mxu0 %v12461
    %12496 = vmatprep.subr.bf16.mxu0 0
    %12497 = vmatpush2.bf16.msra.mxu0 %v12460
    %12498 = vmatprep.subr.bf16.mxu0 0
    %12499 = vmatpush2.bf16.msra.mxu0 %v12459
    %12500 = vmatprep.subr.bf16.mxu0 0
    %12501 = vmatpush2.bf16.msra.mxu0 %v12458
    %12502 = vmatprep.subr.bf16.mxu0 0
    %12503 = vmatpush2.bf16.msra.mxu0 %v12457
    %12504 = vmatprep.subr.bf16.mxu0 0
    %12505 = vmatpush2.bf16.msra.mxu0 %v12456
    %12506 = vmatprep.subr.bf16.mxu0 0
    %12507 = vmatpush2.bf16.msra.mxu0 %v12455
    %12508 = vmatprep.mubr.bf16.mxu0 %v12473
    %12509 = vmatmul.mubr.bf16.gmra.mxu0 %v12472
    %v12510 = vpop.f32.mrf.mxu0
    %v12511 = vadd.f32 0.0, %v12510
    %v12512 = vpop.f32.mrf.mxu0
    %v12513 = vpop.f32.mrf.mxu0
    %v12514 = vadd.f32 0.0, %v12513
    %v12515 = vpop.f32.mrf.mxu0
    %12516 = vdwg.mxu0
    %v12517 = vadd.f32 %v12219, %v12511
    %v12518 = vadd.f32 %v12220, %v12514
    %v12519 = vld [vmem:[%s6] sm:$0xff]
    %v12520 = vld [vmem:[%s6 + $0x8] sm:$0xff]
    %12522 = vset.pattern.permute.xlu0 0
    %12523 = vperm.xlu0 %12522, %v12519
    %v12524 = vpop.permute.xlu0 %12523
    %12527 = vset.pattern.permute.xlu0 0
    %12528 = vperm.xlu0 %12527, %v12520
    %v12529 = vpop.permute.xlu0 %12528
    %v12531 = vadd.f32 %v12517, %v12524
    %v12532 = vadd.f32 %v12518, %v12529
    %vm12533 = vcmask 15360
    %12534 = vst.msk [vmem:[%s7] sm:$0xff] %vm12533, %v12531
    %12535 = vst.msk [vmem:[%s7 + $0x8] sm:$0xff] %vm12533, %v12532
    // Predicated region
    $region42: #{encoder_forward.1} parent=1 // pred_check
      _
    $region43: #{encoder_forward.1} parent=1 // pred_check_branch
      %12537 = sbr.rel (0) target = $region45
    $region44: #{encoder_forward.1} parent=1 // pred_region
      _
    $region45: #{encoder_forward.1} parent=1 // pred_fallthru
      _
    // Predicated region
    $region46: #{encoder_forward.1} parent=1 // pred_check
      _
    $region47: #{encoder_forward.1} parent=1 // pred_check_branch
      %12539 = sbr.rel (0) target = $region49
    $region48: #{encoder_forward.1} parent=1 // pred_region
      _
    $region49: #{encoder_forward.1} parent=1 // pred_fallthru
      _
    %12540 = vsyncpa [#allocation3], 1
    %12541 = vsyncpa [#allocation5], 1

</llo_original>
